<compile_context>
chip_gen: v6e
topology: v6e:2x2x1
jax: 0.10.0
libtpu: 0.0.40
codegen_flags: <defaults>
</compile_context>

<pallas_src>
import math

import jax
import jax.numpy as jnp
from jax.experimental import pallas as pl
from jax.experimental.pallas import tpu as pltpu

SLOPE = 1e-5      # nn.LeakyReLU(1e-05) in the reference module (NOT the 0.01 default)
BN_EPS = 1e-5     # nn.BatchNorm3d default eps


def _leaky(y):
  return jnp.where(y > 0, y, SLOPE * y)


# ---------------------------------------------------------------------------
# Kernel 1: direct 3x3x3 / stride-1 / pad-1 Conv3d on "HW-padded plane"
# activations  x_pp[N, D, P, Cin]  with  P = (H+2)*(W+2), halo entries == 0.
#
# grid = (N, D, 3): (batch, output depth, kernel-depth tap kd).  kd is the
# innermost reduction axis and accumulates into a f32 VMEM accumulator.
# Per tap: ONE wide matmul (P, Cin) @ (Cin, 9*Cout) feeds the MXU well
# (N = 9*Cout instead of Cout), then the nine (kh,kw) taps are added into the
# accumulator through statically shifted row windows (the shift along the
# flattened padded plane is (kh-1)*Wp + (kw-1)).
# Fused: optional pre-BN-affine + LeakyReLU prologue (VoxRes bn_1/relu),
# BN-affine (+LeakyReLU) epilogue, optional residual add, halo re-zeroing.
# ---------------------------------------------------------------------------
def _make_conv3x3s1_kernel(Wp, P, Cout, D, has_pre, leaky, has_res):
  shifts = [(kh - 1) * Wp + (kw - 1) for kh in range(3) for kw in range(3)]

  def kernel(*refs):
    x_ref, w_ref, s_ref, b_ref, m_ref = refs[:5]
    rest = list(refs[5:])
    if has_pre:
      ps_ref, pb_ref = rest[0], rest[1]
      rest = rest[2:]
    if has_res:
      r_ref = rest[0]
      rest = rest[1:]
    o_ref, acc_ref = rest

    od = pl.program_id(1)
    kd = pl.program_id(2)

    @pl.when(kd == 0)
    def _init():
      acc_ref[...] = jnp.zeros_like(acc_ref)

    d_in = od + kd - 1                       # input depth slice for this tap

    @pl.when((d_in >= 0) & (d_in < D))       # implicit zero padding along depth
    def _accumulate():
      slab = x_ref[...]                                    # (P, Cin) bf16
      if has_pre:
        # VoxRes bn_1 + LeakyReLU fused as a prologue; halo kept at zero so it
        # still acts as the conv's zero padding.
        t32 = slab.astype(jnp.float32) * ps_ref[...] + pb_ref[...]
        slab = (_leaky(t32) * m_ref[...]).astype(jnp.bfloat16)
      w_kd = w_ref[kd]                                     # (Cin, 9*Cout) bf16
      r = jnp.dot(slab, w_kd, preferred_element_type=jnp.float32)  # (P, 9*Cout)
      for t, delta in enumerate(shifts):                   # 9 static (kh,kw) taps
        a0 = max(0, -delta)
        b0 = max(0, delta)
        length = P - abs(delta)
        acc_ref[pl.ds(a0, length), :] += r[b0:b0 + length,
                                           t * Cout:(t + 1) * Cout]

    @pl.when(kd == 2)
    def _epilogue():
      y = acc_ref[...] * s_ref[...] + b_ref[...]           # f32 epilogue
      if leaky:
        y = _leaky(y)
      if has_res:
        y = y + r_ref[...].astype(jnp.float32)
      o_ref[...] = (y * m_ref[...]).astype(o_ref.dtype)    # re-zero the halo

  return kernel


def conv3x3s1_pp(x_pp, w_dir, scale, bias, mask, *, Wp, leaky,
                 pre_scale=None, pre_bias=None, residual=None,
                 out_dtype=jnp.bfloat16):
  """Direct 3x3x3 stride-1 conv on padded-plane activations.

  x_pp:  [N, D, P, Cin] bf16, P = (H+2)*(W+2), halo entries zero.
  w_dir: [3, Cin, 9*Cout] bf16 (see conv_w_to_dir).
  mask:  [P, 1] f32, 1.0 on interior positions, 0.0 on the halo.
  Returns [N, D, P, Cout] with zeroed halo (same layout as the input).
  """
  N, D, P, Cin = x_pp.shape
  Cout = w_dir.shape[-1] // 9
  has_pre = pre_scale is not None
  has_res = residual is not None

  in_specs = [
      pl.BlockSpec((None, None, P, Cin),
                   lambda n, d, k: (n, jnp.clip(d + k - 1, 0, D - 1), 0, 0)),
      pl.BlockSpec((3, Cin, 9 * Cout), lambda n, d, k: (0, 0, 0)),   # resident
      pl.BlockSpec((1, Cout), lambda n, d, k: (0, 0)),
      pl.BlockSpec((1, Cout), lambda n, d, k: (0, 0)),
      pl.BlockSpec((P, 1), lambda n, d, k: (0, 0)),
  ]
  args = [x_pp, w_dir,
          scale.reshape(1, Cout).astype(jnp.float32),
          bias.reshape(1, Cout).astype(jnp.float32),
          mask]
  if has_pre:
    in_specs += [pl.BlockSpec((1, Cin), lambda n, d, k: (0, 0)),
                 pl.BlockSpec((1, Cin), lambda n, d, k: (0, 0))]
    args += [pre_scale.reshape(1, Cin).astype(jnp.float32),
             pre_bias.reshape(1, Cin).astype(jnp.float32)]
  if has_res:
    in_specs.append(pl.BlockSpec((None, None, P, Cout),
                                 lambda n, d, k: (n, d, 0, 0)))
    args.append(residual)

  return pl.pallas_call(
      _make_conv3x3s1_kernel(Wp, P, Cout, D, has_pre, leaky, has_res),
      out_shape=jax.ShapeDtypeStruct((N, D, P, Cout), out_dtype),
      grid_spec=pltpu.PrefetchScalarGridSpec(
          num_scalar_prefetch=0,
          grid=(N, D, 3),
          in_specs=in_specs,
          out_specs=pl.BlockSpec((None, None, P, Cout),
                                 lambda n, d, k: (n, d, 0, 0)),
          scratch_shapes=[pltpu.VMEM((P, Cout), jnp.float32)]),
      # n / od are independent (megacore-shardable, keeps v7x's 2 TCs busy);
      # kd is the accumulation axis and must stay "arbitrary"/innermost.
      compiler_params=pltpu.CompilerParams(
          dimension_semantics=("parallel", "parallel", "arbitrary")),
  )(*args)


# ---------------------------------------------------------------------------
# Kernel 2: fused GEMM  (M,K)@(K,N) bf16 -> f32 acc, affine (+LeakyReLU)
# epilogue.  Used for the stride-2 conv_1c (bf16 im2col) and the fused
# ConvTranspose+classifier head.
# ---------------------------------------------------------------------------
def _make_gemm_kernel(leaky):
  def kernel(a_ref, b_ref, s_ref, c_ref, o_ref):
    acc = jnp.dot(a_ref[...], b_ref[...], preferred_element_type=jnp.float32)
    y = acc * s_ref[...] + c_ref[...]
    if leaky:
      y = _leaky(y)
    o_ref[...] = y.astype(o_ref.dtype)
  return kernel


def _pick_tm(m, cap=512):
  # Big M-tiles amortize per-grid-step overhead; sweep 512/1024 on real shapes.
  for t in (cap, 256, 128, 64, 32, 16, 8):
    if t <= cap and m % t == 0:
      return t
  return m


def fused_matmul(a, b, scale, bias, *, leaky=False, out_dtype=jnp.bfloat16,
                 tm_cap=512):
  M, K = a.shape
  K2, Nc = b.shape
  assert K == K2
  tm = _pick_tm(M, tm_cap)
  # VMEM @ tm=512, K<=1728 bf16: ~1.7 MiB/buffer x 2 for A + weights + out
  # < 5 MiB total -> fits the default scoped VMEM on v5e/v6e/v7x.
  return pl.pallas_call(
      _make_gemm_kernel(leaky),
      out_shape=jax.ShapeDtypeStruct((M, Nc), out_dtype),
      grid_spec=pltpu.PrefetchScalarGridSpec(
          num_scalar_prefetch=0,
          grid=(M // tm,),
          in_specs=[pl.BlockSpec((tm, K), lambda i: (i, 0)),
                    pl.BlockSpec((K, Nc), lambda i: (0, 0)),
                    pl.BlockSpec((1, Nc), lambda i: (0, 0)),
                    pl.BlockSpec((1, Nc), lambda i: (0, 0))],
          out_specs=pl.BlockSpec((tm, Nc), lambda i: (i, 0))),
      compiler_params=pltpu.CompilerParams(
          dimension_semantics=("parallel",)),
  )(a.astype(jnp.bfloat16), b.astype(jnp.bfloat16),
    scale.reshape(1, Nc).astype(jnp.float32),
    bias.reshape(1, Nc).astype(jnp.float32))


# ---------------------------------------------------------------------------
# Glue: layouts, weight reshapes, BN folding.
# ---------------------------------------------------------------------------
def pad_channels(x, c_to):
  c = x.shape[-1]
  if c == c_to:
    return x
  return jnp.pad(x, [(0, 0)] * (x.ndim - 1) + [(0, c_to - c)])


def to_padded_plane(x):
  """[N,D,H,W,C] -> ([N, D, (H+2)*(W+2), C], Wp) with zero H/W halo."""
  N, D, H, W, C = x.shape
  xp = jnp.pad(x, ((0, 0), (0, 0), (1, 1), (1, 1), (0, 0)))
  return xp.reshape(N, D, (H + 2) * (W + 2), C), W + 2


def from_padded_plane(x_pp, H, W):
  N, D, P, C = x_pp.shape
  return x_pp.reshape(N, D, H + 2, W + 2, C)[:, :, 1:H + 1, 1:W + 1, :]


def plane_mask(H, W):
  m = jnp.zeros((H + 2, W + 2), jnp.float32).at[1:H + 1, 1:W + 1].set(1.0)
  return m.reshape((H + 2) * (W + 2), 1)


def conv_w_to_dir(w):
  """[Cout, Cin, 3,3,3] -> [3(kd), Cin, 9*Cout] (columns = (kh*3+kw)*Cout+co)."""
  cout, cin = w.shape[0], w.shape[1]
  return jnp.transpose(w, (2, 1, 3, 4, 0)).reshape(3, cin, 9 * cout)


def conv_w_to_mat(w):
  """[Cout, Cin, kD,kH,kW] -> [kD*kH*kW*Cin, Cout] (matches im2col K order)."""
  cout, cin, kd, kh, kw = w.shape
  return jnp.transpose(w, (2, 3, 4, 1, 0)).reshape(kd * kh * kw * cin, cout)


def build_up_cls(up_w, up_b, cls_w, cls_b):
  """Fuse ConvTranspose3d(64,64,2,2) with Conv3d(64,2,1) into one (64,16) matmul."""
  cls_mat = cls_w[:, :, 0, 0, 0].T                        # [64, 2]
  up_perm = jnp.transpose(up_w, (0, 2, 3, 4, 1))          # [Cin, kd,kh,kw, Cout]
  w_comb = jnp.einsum('iklmo,oc->iklmc', up_perm, cls_mat).reshape(64, 16)
  b_comb = jnp.tile(up_b @ cls_mat + cls_b, 8)            # [16]
  return w_comb, b_comb


def extract_patches_s2(x_hwpad):
  """Stride-2 3x3x3 patches (bf16) from an HW-padded [N,D,Hp,Wp,C] tensor."""
  N, D, Hp, Wp, C = x_hwpad.shape
  H, W = Hp - 2, Wp - 2
  xp = jnp.pad(x_hwpad, ((0, 0), (1, 1), (0, 0), (0, 0), (0, 0)))
  Do = (D + 2 - 3) // 2 + 1
  Ho = (H + 2 - 3) // 2 + 1
  Wo = (W + 2 - 3) // 2 + 1
  pats = []
  for kd in range(3):
    for kh in range(3):
      for kw in range(3):
        sl = xp[:, kd:kd + 2 * (Do - 1) + 1:2,
                kh:kh + 2 * (Ho - 1) + 1:2,
                kw:kw + 2 * (Wo - 1) + 1:2, :]
        pats.append(sl)
  p = jnp.concatenate(pats, axis=-1)
  return p.reshape(N * Do * Ho * Wo, 27 * C), (N, Do, Ho, Wo)


def fold_bn_after_conv(bn, conv_bias):
  inv = bn["g"] / jnp.sqrt(bn["v"] + BN_EPS)
  return inv, bn["b"] + (conv_bias - bn["m"]) * inv


def fold_bn_pre(bn):
  inv = bn["g"] / jnp.sqrt(bn["v"] + BN_EPS)
  return inv, bn["b"] - bn["m"] * inv


# ---------------------------------------------------------------------------
# Parameter init (deterministic, mirrors the module __init__ shapes).
# ---------------------------------------------------------------------------
def kaiming_conv3d(key, cout, cin, k):
  fan_in = cin * k ** 3
  std = math.sqrt(2.0 / fan_in)
  return jax.random.normal(key, (cout, cin, k, k, k), jnp.float32) * std


def bn_init(c):
  return dict(g=jnp.ones((c,), jnp.float32), b=jnp.zeros((c,), jnp.float32),
              m=jnp.zeros((c,), jnp.float32), v=jnp.ones((c,), jnp.float32))


def init_voxres_params(k1, k2):
  return dict(
      bn1=bn_init(64),
      conv1_w=conv_w_to_dir(kaiming_conv3d(k1, 64, 64, 3)).astype(jnp.bfloat16),
      conv1_b=jnp.zeros((64,), jnp.float32),
      bn2=bn_init(64),
      conv2_w=conv_w_to_dir(kaiming_conv3d(k2, 64, 64, 3)).astype(jnp.bfloat16),
      conv2_b=jnp.zeros((64,), jnp.float32),
  )


def init_seghead_params(key, in_dims):
  ks = jax.random.split(key, 9)
  cin_p = ((in_dims + 7) // 8) * 8          # pad first-layer K to a multiple of 8
  w1a = kaiming_conv3d(ks[0], 32, in_dims, 3)
  w1a = jnp.pad(w1a, ((0, 0), (0, cin_p - in_dims), (0, 0), (0, 0), (0, 0)))
  up_w = jax.random.normal(ks[7], (64, 64, 2, 2, 2), jnp.float32) * 0.05
  cls_w = kaiming_conv3d(ks[8], 2, 64, 1)
  upcls_w, upcls_b = build_up_cls(up_w, jnp.zeros((64,), jnp.float32),
                                  cls_w, jnp.zeros((2,), jnp.float32))
  return dict(
      conv1a_w=conv_w_to_dir(w1a).astype(jnp.bfloat16),
      conv1a_b=jnp.zeros((32,), jnp.float32),
      bn1a=bn_init(32),
      conv1b_w=conv_w_to_dir(kaiming_conv3d(ks[1], 32, 32, 3)).astype(jnp.bfloat16),
      conv1b_b=jnp.zeros((32,), jnp.float32),
      bn1b=bn_init(32),
      conv1c_w=conv_w_to_mat(kaiming_conv3d(ks[2], 64, 32, 3)).astype(jnp.bfloat16),
      conv1c_b=jnp.zeros((64,), jnp.float32),
      res2=init_voxres_params(ks[3], ks[4]),
      res3=init_voxres_params(ks[5], ks[6]),
      upcls_w=upcls_w.astype(jnp.bfloat16),
      upcls_b=upcls_b.astype(jnp.float32),
  )


# ---------------------------------------------------------------------------
# Forward pass.
# ---------------------------------------------------------------------------
def voxres_forward(x_pp, p, mask, Wp):
  """x_pp: [N, Dh, P, 64] padded-plane bf16 -> same layout."""
  s1, b1 = fold_bn_pre(p["bn1"])                       # bn_1 + relu -> prologue
  s2, b2 = fold_bn_after_conv(p["bn2"], p["conv1_b"])  # bn_2 + relu -> epilogue
  t = conv3x3s1_pp(x_pp, p["conv1_w"], s2, b2, mask, Wp=Wp, leaky=True,
                   pre_scale=s1, pre_bias=b1)
  ones = jnp.ones((64,), jnp.float32)
  t = conv3x3s1_pp(t, p["conv2_w"], ones, p["conv2_b"], mask, Wp=Wp,
                   leaky=False, residual=x_pp)         # conv_2 + skip
  return t


def seg_head_forward(x, p):
  """x: [N, D, H, W, Cin] (NDHWC, f32) -> logits [N, D, H, W, 2] (f32)."""
  N, D, H, W, Cin = x.shape
  assert D % 2 == 0 and H % 2 == 0 and W % 2 == 0
  Dh, Hh, Wh = D // 2, H // 2, W // 2

  cin_p = p["conv1a_w"].shape[1]
  x_pp, Wp = to_padded_plane(pad_channels(x, cin_p).astype(jnp.bfloat16))
  mask_full = plane_mask(H, W)

  s, b = fold_bn_after_conv(p["bn1a"], p["conv1a_b"])
  t = conv3x3s1_pp(x_pp, p["conv1a_w"], s, b, mask_full, Wp=Wp, leaky=True)

  s, b = fold_bn_after_conv(p["bn1b"], p["conv1b_b"])
  t = conv3x3s1_pp(t, p["conv1b_w"], s, b, mask_full, Wp=Wp, leaky=True)

  # conv_1c: 3x3x3 stride-2 -> bf16 im2col + GEMM (halo of t is already zero).
  t_hw = t.reshape(N, D, H + 2, W + 2, 32)
  patches, (_, do, ho, wo) = extract_patches_s2(t_hw)
  y = fused_matmul(patches, p["conv1c_w"], jnp.ones((64,), jnp.float32),
                   p["conv1c_b"], leaky=False, out_dtype=jnp.bfloat16)
  y = y.reshape(N, do, ho, wo, 64)

  x_res, Wph = to_padded_plane(y)
  mask_half = plane_mask(Hh, Wh)
  x_res = voxres_forward(x_res, p["res2"], mask_half, Wph)
  x_res = voxres_forward(x_res, p["res3"], mask_half, Wph)

  # Fused ConvTranspose3d(64,64,2,2) + Conv3d(64,2,1): one (M,64)@(64,16) GEMM
  # producing the 2-class logits for all 8 offsets directly.
  t_in = from_padded_plane(x_res, Hh, Wh).reshape(-1, 64)
  z = fused_matmul(t_in, p["upcls_w"], jnp.ones((16,), jnp.float32),
                   p["upcls_b"], leaky=False, out_dtype=jnp.float32)
  z = z.reshape(N, Dh, Hh, Wh, 2, 2, 2, 2)
  z = jnp.transpose(z, (0, 1, 4, 2, 5, 3, 6, 7)).reshape(N, D, H, W, 2)
  return z


# ---------------------------------------------------------------------------
if __name__ == "__main__":
  key = jax.random.PRNGKey(0)
  kx, kp = jax.random.split(key)

  N, Cin, D, H, W = 2, 4, 8, 8, 8                 # small NCDHW input
  x_ncdhw = jax.random.normal(kx, (N, Cin, D, H, W), jnp.float32)
  x_ndhwc = jnp.transpose(x_ncdhw, (0, 2, 3, 4, 1))

  params = init_seghead_params(kp, Cin)
  fwd = jax.jit(seg_head_forward)
  out = jax.block_until_ready(fwd(x_ndhwc, params))

  assert out.shape == (N, D, H, W, 2), out.shape
  assert bool(jnp.all(jnp.isfinite(out)))
  print("KERNEL_OK")
</pallas_src>

<mosaic_0001>
module attributes {stable_mosaic.version = 11 : i64} {
  func.func @kernel(%arg0: i32, %arg1: i32, %arg2: i32, %arg3: memref<1x1x100x8xbf16, #tpu.memory_space<vmem>>, %arg4: memref<3x8x288xbf16, #tpu.memory_space<vmem>>, %arg5: memref<1x32xf32, #tpu.memory_space<vmem>>, %arg6: memref<1x32xf32, #tpu.memory_space<vmem>>, %arg7: memref<100x1xf32, #tpu.memory_space<vmem>>, %arg8: memref<1x1x100x32xbf16, #tpu.memory_space<vmem>>, %arg9: memref<100x32xf32, #tpu.memory_space<vmem>>) attributes {dimension_semantics = [#tpu.dimension_semantics<parallel>, #tpu.dimension_semantics<parallel>, #tpu.dimension_semantics<arbitrary>], iteration_bounds = array<i64: 2, 8, 3>, scalar_prefetch = 0 : i64, scratch_operands = 1 : i64, tpu.core_type = #tpu.core_type<tc>, window_params = [{transform_indices = @transform_0, window_bounds = array<i64: 1, 1, 100, 8>}, {pipeline_mode = #tpu.pipeline_mode<synchronous>, transform_indices = @transform_1, window_bounds = array<i64: 3, 8, 288>}, {pipeline_mode = #tpu.pipeline_mode<synchronous>, transform_indices = @transform_2, window_bounds = array<i64: 1, 32>}, {pipeline_mode = #tpu.pipeline_mode<synchronous>, transform_indices = @transform_3, window_bounds = array<i64: 1, 32>}, {pipeline_mode = #tpu.pipeline_mode<synchronous>, transform_indices = @transform_4, window_bounds = array<i64: 100, 1>}, {transform_indices = @transform_5, window_bounds = array<i64: 1, 1, 100, 32>}]} {
    %c0_i32 = arith.constant 0 : i32
    %0 = arith.cmpi eq, %arg2, %c0_i32 : i32
    %1 = arith.extui %0 : i1 to i32
    %c0_i32_0 = arith.constant 0 : i32
    %2 = arith.cmpi ne, %1, %c0_i32_0 : i32
    scf.if %2 {
      %cst = arith.constant 0.000000e+00 : f32
      %13 = vector.broadcast %cst : f32 to vector<100x32xf32>
      %c0 = arith.constant 0 : index
      %c0_4 = arith.constant 0 : index
      %14 = vector.load %arg9[%c0, %c0_4] : memref<100x32xf32, #tpu.memory_space<vmem>>, vector<100x32xf32>
      tpu.vector_store %arg9[%c0, %c0_4], %13 {strides = array<i32>} : memref<100x32xf32, #tpu.memory_space<vmem>>, vector<100x32xf32>,
    } else {
    }
    %3 = arith.addi %arg1, %arg2 : i32
    %c1_i32 = arith.constant 1 : i32
    %4 = arith.subi %3, %c1_i32 : i32
    %c0_i32_1 = arith.constant 0 : i32
    %5 = arith.cmpi sge, %4, %c0_i32_1 : i32
    %c8_i32 = arith.constant 8 : i32
    %6 = arith.cmpi slt, %4, %c8_i32 : i32
    %7 = arith.andi %5, %6 : i1
    %8 = arith.extui %7 : i1 to i32
    %c0_i32_2 = arith.constant 0 : i32
    %9 = arith.cmpi ne, %8, %c0_i32_2 : i32
    scf.if %9 {
      %c0 = arith.constant 0 : index
      %c0_4 = arith.constant 0 : index
      %c0_5 = arith.constant 0 : index
      %c0_6 = arith.constant 0 : index
      %13 = vector.load %arg3[%c0, %c0_4, %c0_5, %c0_6] : memref<1x1x100x8xbf16, #tpu.memory_space<vmem>>, vector<1x1x100x8xbf16>
      %14 = vector.shape_cast %13 : vector<1x1x100x8xbf16> to vector<100x8xbf16>
      %15 = arith.index_cast %arg2 : i32 to index
      %c0_7 = arith.constant 0 : index
      %c0_8 = arith.constant 0 : index
      %16 = vector.load %arg4[%15, %c0_7, %c0_8] : memref<3x8x288xbf16, #tpu.memory_space<vmem>>, vector<1x8x288xbf16>
      %17 = vector.shape_cast %16 : vector<1x8x288xbf16> to vector<8x288xbf16>
      %cst = arith.constant dense<0.000000e+00> : vector<100x288xf32>
      %18 = tpu.matmul %14, %17, %cst {dimension_numbers = #tpu.dot_dimension_numbers<[1], [0], [0], [1], [0, 0, 1, 1], [], []>} : vector<100x8xbf16>, vector<8x288xbf16>, vector<100x288xf32> -> vector<100x288xf32>
      %c11 = arith.constant 11 : index
      %c0_9 = arith.constant 0 : index
      %19 = vector.load %arg9[%c11, %c0_9] : memref<100x32xf32, #tpu.memory_space<vmem>>, vector<89x32xf32>
      %20 = vector.extract_strided_slice %18 {offsets = [0, 0], sizes = [89, 32], strides = [1, 1]} : vector<100x288xf32> to vector<89x32xf32>
      %21 = arith.addf %19, %20 : vector<89x32xf32>
      %c11_10 = arith.constant 11 : index
      %c0_11 = arith.constant 0 : index
      %22 = vector.load %arg9[%c11_10, %c0_11] : memref<100x32xf32, #tpu.memory_space<vmem>>, vector<89x32xf32>
      tpu.vector_store %arg9[%c11_10, %c0_11], %21 {strides = array<i32>} : memref<100x32xf32, #tpu.memory_space<vmem>>, vector<89x32xf32>,
      %c10 = arith.constant 10 : index
      %c0_12 = arith.constant 0 : index
      %23 = vector.load %arg9[%c10, %c0_12] : memref<100x32xf32, #tpu.memory_space<vmem>>, vector<90x32xf32>
      %24 = vector.extract_strided_slice %18 {offsets = [0, 32], sizes = [90, 32], strides = [1, 1]} : vector<100x288xf32> to vector<90x32xf32>
      %25 = arith.addf %23, %24 : vector<90x32xf32>
      %c10_13 = arith.constant 10 : index
      %c0_14 = arith.constant 0 : index
      %26 = vector.load %arg9[%c10_13, %c0_14] : memref<100x32xf32, #tpu.memory_space<vmem>>, vector<90x32xf32>
      tpu.vector_store %arg9[%c10_13, %c0_14], %25 {strides = array<i32>} : memref<100x32xf32, #tpu.memory_space<vmem>>, vector<90x32xf32>,
      %c9 = arith.constant 9 : index
      %c0_15 = arith.constant 0 : index
      %27 = vector.load %arg9[%c9, %c0_15] : memref<100x32xf32, #tpu.memory_space<vmem>>, vector<91x32xf32>
      %28 = vector.extract_strided_slice %18 {offsets = [0, 64], sizes = [91, 32], strides = [1, 1]} : vector<100x288xf32> to vector<91x32xf32>
      %29 = arith.addf %27, %28 : vector<91x32xf32>
      %c9_16 = arith.constant 9 : index
      %c0_17 = arith.constant 0 : index
      %30 = vector.load %arg9[%c9_16, %c0_17] : memref<100x32xf32, #tpu.memory_space<vmem>>, vector<91x32xf32>
      tpu.vector_store %arg9[%c9_16, %c0_17], %29 {strides = array<i32>} : memref<100x32xf32, #tpu.memory_space<vmem>>, vector<91x32xf32>,
      %c1 = arith.constant 1 : index
      %c0_18 = arith.constant 0 : index
      %31 = vector.load %arg9[%c1, %c0_18] : memref<100x32xf32, #tpu.memory_space<vmem>>, vector<99x32xf32>
      %32 = vector.extract_strided_slice %18 {offsets = [0, 96], sizes = [99, 32], strides = [1, 1]} : vector<100x288xf32> to vector<99x32xf32>
      %33 = arith.addf %31, %32 : vector<99x32xf32>
      %c1_19 = arith.constant 1 : index
      %c0_20 = arith.constant 0 : index
      %34 = vector.load %arg9[%c1_19, %c0_20] : memref<100x32xf32, #tpu.memory_space<vmem>>, vector<99x32xf32>
      tpu.vector_store %arg9[%c1_19, %c0_20], %33 {strides = array<i32>} : memref<100x32xf32, #tpu.memory_space<vmem>>, vector<99x32xf32>,
      %c0_21 = arith.constant 0 : index
      %c0_22 = arith.constant 0 : index
      %35 = vector.load %arg9[%c0_21, %c0_22] : memref<100x32xf32, #tpu.memory_space<vmem>>, vector<100x32xf32>
      %36 = vector.extract_strided_slice %18 {offsets = [0, 128], sizes = [100, 32], strides = [1, 1]} : vector<100x288xf32> to vector<100x32xf32>
      %37 = arith.addf %35, %36 : vector<100x32xf32>
      %c0_23 = arith.constant 0 : index
      %c0_24 = arith.constant 0 : index
      %38 = vector.load %arg9[%c0_23, %c0_24] : memref<100x32xf32, #tpu.memory_space<vmem>>, vector<100x32xf32>
      tpu.vector_store %arg9[%c0_23, %c0_24], %37 {strides = array<i32>} : memref<100x32xf32, #tpu.memory_space<vmem>>, vector<100x32xf32>,
      %c0_25 = arith.constant 0 : index
      %c0_26 = arith.constant 0 : index
      %39 = vector.load %arg9[%c0_25, %c0_26] : memref<100x32xf32, #tpu.memory_space<vmem>>, vector<99x32xf32>
      %40 = vector.extract_strided_slice %18 {offsets = [1, 160], sizes = [99, 32], strides = [1, 1]} : vector<100x288xf32> to vector<99x32xf32>
      %41 = arith.addf %39, %40 : vector<99x32xf32>
      %c0_27 = arith.constant 0 : index
      %c0_28 = arith.constant 0 : index
      %42 = vector.load %arg9[%c0_27, %c0_28] : memref<100x32xf32, #tpu.memory_space<vmem>>, vector<99x32xf32>
      tpu.vector_store %arg9[%c0_27, %c0_28], %41 {strides = array<i32>} : memref<100x32xf32, #tpu.memory_space<vmem>>, vector<99x32xf32>,
      %c0_29 = arith.constant 0 : index
      %c0_30 = arith.constant 0 : index
      %43 = vector.load %arg9[%c0_29, %c0_30] : memref<100x32xf32, #tpu.memory_space<vmem>>, vector<91x32xf32>
      %44 = vector.extract_strided_slice %18 {offsets = [9, 192], sizes = [91, 32], strides = [1, 1]} : vector<100x288xf32> to vector<91x32xf32>
      %45 = arith.addf %43, %44 : vector<91x32xf32>
      %c0_31 = arith.constant 0 : index
      %c0_32 = arith.constant 0 : index
      %46 = vector.load %arg9[%c0_31, %c0_32] : memref<100x32xf32, #tpu.memory_space<vmem>>, vector<91x32xf32>
      tpu.vector_store %arg9[%c0_31, %c0_32], %45 {strides = array<i32>} : memref<100x32xf32, #tpu.memory_space<vmem>>, vector<91x32xf32>,
      %c0_33 = arith.constant 0 : index
      %c0_34 = arith.constant 0 : index
      %47 = vector.load %arg9[%c0_33, %c0_34] : memref<100x32xf32, #tpu.memory_space<vmem>>, vector<90x32xf32>
      %48 = vector.extract_strided_slice %18 {offsets = [10, 224], sizes = [90, 32], strides = [1, 1]} : vector<100x288xf32> to vector<90x32xf32>
      %49 = arith.addf %47, %48 : vector<90x32xf32>
      %c0_35 = arith.constant 0 : index
      %c0_36 = arith.constant 0 : index
      %50 = vector.load %arg9[%c0_35, %c0_36] : memref<100x32xf32, #tpu.memory_space<vmem>>, vector<90x32xf32>
      tpu.vector_store %arg9[%c0_35, %c0_36], %49 {strides = array<i32>} : memref<100x32xf32, #tpu.memory_space<vmem>>, vector<90x32xf32>,
      %c0_37 = arith.constant 0 : index
      %c0_38 = arith.constant 0 : index
      %51 = vector.load %arg9[%c0_37, %c0_38] : memref<100x32xf32, #tpu.memory_space<vmem>>, vector<89x32xf32>
      %52 = vector.extract_strided_slice %18 {offsets = [11, 256], sizes = [89, 32], strides = [1, 1]} : vector<100x288xf32> to vector<89x32xf32>
      %53 = arith.addf %51, %52 : vector<89x32xf32>
      %c0_39 = arith.constant 0 : index
      %c0_40 = arith.constant 0 : index
      %54 = vector.load %arg9[%c0_39, %c0_40] : memref<100x32xf32, #tpu.memory_space<vmem>>, vector<89x32xf32>
      tpu.vector_store %arg9[%c0_39, %c0_40], %53 {strides = array<i32>} : memref<100x32xf32, #tpu.memory_space<vmem>>, vector<89x32xf32>,
    } else {
    }
    %c2_i32 = arith.constant 2 : i32
    %10 = arith.cmpi eq, %arg2, %c2_i32 : i32
    %11 = arith.extui %10 : i1 to i32
    %c0_i32_3 = arith.constant 0 : i32
    %12 = arith.cmpi ne, %11, %c0_i32_3 : i32
    scf.if %12 {
      %c0 = arith.constant 0 : index
      %c0_4 = arith.constant 0 : index
      %13 = vector.load %arg9[%c0, %c0_4] : memref<100x32xf32, #tpu.memory_space<vmem>>, vector<100x32xf32>
      %c0_5 = arith.constant 0 : index
      %c0_6 = arith.constant 0 : index
      %14 = vector.load %arg5[%c0_5, %c0_6] : memref<1x32xf32, #tpu.memory_space<vmem>>, vector<1x32xf32>
      %15 = vector.broadcast %14 : vector<1x32xf32> to vector<100x32xf32>
      %16 = arith.mulf %13, %15 : vector<100x32xf32>
      %c0_7 = arith.constant 0 : index
      %c0_8 = arith.constant 0 : index
      %17 = vector.load %arg6[%c0_7, %c0_8] : memref<1x32xf32, #tpu.memory_space<vmem>>, vector<1x32xf32>
      %18 = vector.broadcast %17 : vector<1x32xf32> to vector<100x32xf32>
      %19 = arith.addf %16, %18 : vector<100x32xf32>
      %cst = arith.constant 0.000000e+00 : f32
      %20 = vector.broadcast %cst : f32 to vector<100x32xf32>
      %21 = arith.cmpf ogt, %19, %20 : vector<100x32xf32>
      %cst_9 = arith.constant 9.99999974E-6 : f32
      %22 = vector.broadcast %cst_9 : f32 to vector<100x32xf32>
      %23 = arith.mulf %22, %19 : vector<100x32xf32>
      %24 = arith.select %21, %19, %23 : vector<100x32xi1>, vector<100x32xf32>
      %c0_10 = arith.constant 0 : index
      %c0_11 = arith.constant 0 : index
      %25 = vector.load %arg7[%c0_10, %c0_11] : memref<100x1xf32, #tpu.memory_space<vmem>>, vector<100x1xf32>
      %26 = vector.broadcast %25 : vector<100x1xf32> to vector<100x32xf32>
      %27 = arith.mulf %24, %26 : vector<100x32xf32>
      %28 = arith.truncf %27 : vector<100x32xf32> to vector<100x32xbf16>
      %c0_12 = arith.constant 0 : index
      %c0_13 = arith.constant 0 : index
      %c0_14 = arith.constant 0 : index
      %c0_15 = arith.constant 0 : index
      %29 = vector.load %arg8[%c0_12, %c0_13, %c0_14, %c0_15] : memref<1x1x100x32xbf16, #tpu.memory_space<vmem>>, vector<1x1x100x32xbf16>
      %30 = vector.shape_cast %29 : vector<1x1x100x32xbf16> to vector<100x32xbf16>
      %31 = vector.shape_cast %28 : vector<100x32xbf16> to vector<1x1x100x32xbf16>
      tpu.vector_store %arg8[%c0_12, %c0_13, %c0_14, %c0_15], %31 {strides = array<i32>} : memref<1x1x100x32xbf16, #tpu.memory_space<vmem>>, vector<1x1x100x32xbf16>,
    } else {
    }
    return
  }
  func.func @transform_0(%arg0: i32, %arg1: i32, %arg2: i32) -> (i32, i32, i32, i32) {
    %0 = arith.addi %arg1, %arg2 : i32
    %c1_i32 = arith.constant 1 : i32
    %1 = arith.subi %0, %c1_i32 : i32
    %c0_i32 = arith.constant 0 : i32
    %c7_i32 = arith.constant 7 : i32
    %2 = arith.maxsi %c0_i32, %1 : i32
    %3 = arith.minsi %c7_i32, %2 : i32
    %c0_i32_0 = arith.constant 0 : i32
    %c0_i32_1 = arith.constant 0 : i32
    %c0_i32_2 = arith.constant 0 : i32
    return %arg0, %3, %c0_i32_0, %c0_i32_1 : i32, i32, i32, i32
  }
  func.func @transform_1(%arg0: i32, %arg1: i32, %arg2: i32) -> (i32, i32, i32) {
    %c0_i32 = arith.constant 0 : i32
    %c0_i32_0 = arith.constant 0 : i32
    %c0_i32_1 = arith.constant 0 : i32
    %c0_i32_2 = arith.constant 0 : i32
    return %c0_i32, %c0_i32_0, %c0_i32_1 : i32, i32, i32
  }
  func.func @transform_2(%arg0: i32, %arg1: i32, %arg2: i32) -> (i32, i32) {
    %c0_i32 = arith.constant 0 : i32
    %c0_i32_0 = arith.constant 0 : i32
    %c0_i32_1 = arith.constant 0 : i32
    return %c0_i32, %c0_i32_0 : i32, i32
  }
  func.func @transform_3(%arg0: i32, %arg1: i32, %arg2: i32) -> (i32, i32) {
    %c0_i32 = arith.constant 0 : i32
    %c0_i32_0 = arith.constant 0 : i32
    %c0_i32_1 = arith.constant 0 : i32
    return %c0_i32, %c0_i32_0 : i32, i32
  }
  func.func @transform_4(%arg0: i32, %arg1: i32, %arg2: i32) -> (i32, i32) {
    %c0_i32 = arith.constant 0 : i32
    %c0_i32_0 = arith.constant 0 : i32
    %c0_i32_1 = arith.constant 0 : i32
    return %c0_i32, %c0_i32_0 : i32, i32
  }
  func.func @transform_5(%arg0: i32, %arg1: i32, %arg2: i32) -> (i32, i32, i32, i32) {
    %c0_i32 = arith.constant 0 : i32
    %c0_i32_0 = arith.constant 0 : i32
    %c0_i32_1 = arith.constant 0 : i32
    return %arg0, %arg1, %c0_i32, %c0_i32_0 : i32, i32, i32, i32
  }
}

module attributes {stable_mosaic.version = 11 : i64} {
  func.func @kernel(%arg0: i32, %arg1: i32, %arg2: i32, %arg3: memref<1x1x100x32xbf16, #tpu.memory_space<vmem>>, %arg4: memref<3x32x288xbf16, #tpu.memory_space<vmem>>, %arg5: memref<1x32xf32, #tpu.memory_space<vmem>>, %arg6: memref<1x32xf32, #tpu.memory_space<vmem>>, %arg7: memref<100x1xf32, #tpu.memory_space<vmem>>, %arg8: memref<1x1x100x32xbf16, #tpu.memory_space<vmem>>, %arg9: memref<100x32xf32, #tpu.memory_space<vmem>>) attributes {dimension_semantics = [#tpu.dimension_semantics<parallel>, #tpu.dimension_semantics<parallel>, #tpu.dimension_semantics<arbitrary>], iteration_bounds = array<i64: 2, 8, 3>, scalar_prefetch = 0 : i64, scratch_operands = 1 : i64, tpu.core_type = #tpu.core_type<tc>, window_params = [{transform_indices = @transform_0, window_bounds = array<i64: 1, 1, 100, 32>}, {pipeline_mode = #tpu.pipeline_mode<synchronous>, transform_indices = @transform_1, window_bounds = array<i64: 3, 32, 288>}, {pipeline_mode = #tpu.pipeline_mode<synchronous>, transform_indices = @transform_2, window_bounds = array<i64: 1, 32>}, {pipeline_mode = #tpu.pipeline_mode<synchronous>, transform_indices = @transform_3, window_bounds = array<i64: 1, 32>}, {pipeline_mode = #tpu.pipeline_mode<synchronous>, transform_indices = @transform_4, window_bounds = array<i64: 100, 1>}, {transform_indices = @transform_5, window_bounds = array<i64: 1, 1, 100, 32>}]} {
    %c0_i32 = arith.constant 0 : i32
    %0 = arith.cmpi eq, %arg2, %c0_i32 : i32
    %1 = arith.extui %0 : i1 to i32
    %c0_i32_0 = arith.constant 0 : i32
    %2 = arith.cmpi ne, %1, %c0_i32_0 : i32
    scf.if %2 {
      %cst = arith.constant 0.000000e+00 : f32
      %13 = vector.broadcast %cst : f32 to vector<100x32xf32>
      %c0 = arith.constant 0 : index
      %c0_4 = arith.constant 0 : index
      %14 = vector.load %arg9[%c0, %c0_4] : memref<100x32xf32, #tpu.memory_space<vmem>>, vector<100x32xf32>
      tpu.vector_store %arg9[%c0, %c0_4], %13 {strides = array<i32>} : memref<100x32xf32, #tpu.memory_space<vmem>>, vector<100x32xf32>,
    } else {
    }
    %3 = arith.addi %arg1, %arg2 : i32
    %c1_i32 = arith.constant 1 : i32
    %4 = arith.subi %3, %c1_i32 : i32
    %c0_i32_1 = arith.constant 0 : i32
    %5 = arith.cmpi sge, %4, %c0_i32_1 : i32
    %c8_i32 = arith.constant 8 : i32
    %6 = arith.cmpi slt, %4, %c8_i32 : i32
    %7 = arith.andi %5, %6 : i1
    %8 = arith.extui %7 : i1 to i32
    %c0_i32_2 = arith.constant 0 : i32
    %9 = arith.cmpi ne, %8, %c0_i32_2 : i32
    scf.if %9 {
      %c0 = arith.constant 0 : index
      %c0_4 = arith.constant 0 : index
      %c0_5 = arith.constant 0 : index
      %c0_6 = arith.constant 0 : index
      %13 = vector.load %arg3[%c0, %c0_4, %c0_5, %c0_6] : memref<1x1x100x32xbf16, #tpu.memory_space<vmem>>, vector<1x1x100x32xbf16>
      %14 = vector.shape_cast %13 : vector<1x1x100x32xbf16> to vector<100x32xbf16>
      %15 = arith.index_cast %arg2 : i32 to index
      %c0_7 = arith.constant 0 : index
      %c0_8 = arith.constant 0 : index
      %16 = vector.load %arg4[%15, %c0_7, %c0_8] : memref<3x32x288xbf16, #tpu.memory_space<vmem>>, vector<1x32x288xbf16>
      %17 = vector.shape_cast %16 : vector<1x32x288xbf16> to vector<32x288xbf16>
      %cst = arith.constant dense<0.000000e+00> : vector<100x288xf32>
      %18 = tpu.matmul %14, %17, %cst {dimension_numbers = #tpu.dot_dimension_numbers<[1], [0], [0], [1], [0, 0, 1, 1], [], []>} : vector<100x32xbf16>, vector<32x288xbf16>, vector<100x288xf32> -> vector<100x288xf32>
      %c11 = arith.constant 11 : index
      %c0_9 = arith.constant 0 : index
      %19 = vector.load %arg9[%c11, %c0_9] : memref<100x32xf32, #tpu.memory_space<vmem>>, vector<89x32xf32>
      %20 = vector.extract_strided_slice %18 {offsets = [0, 0], sizes = [89, 32], strides = [1, 1]} : vector<100x288xf32> to vector<89x32xf32>
      %21 = arith.addf %19, %20 : vector<89x32xf32>
      %c11_10 = arith.constant 11 : index
      %c0_11 = arith.constant 0 : index
      %22 = vector.load %arg9[%c11_10, %c0_11] : memref<100x32xf32, #tpu.memory_space<vmem>>, vector<89x32xf32>
      tpu.vector_store %arg9[%c11_10, %c0_11], %21 {strides = array<i32>} : memref<100x32xf32, #tpu.memory_space<vmem>>, vector<89x32xf32>,
      %c10 = arith.constant 10 : index
      %c0_12 = arith.constant 0 : index
      %23 = vector.load %arg9[%c10, %c0_12] : memref<100x32xf32, #tpu.memory_space<vmem>>, vector<90x32xf32>
      %24 = vector.extract_strided_slice %18 {offsets = [0, 32], sizes = [90, 32], strides = [1, 1]} : vector<100x288xf32> to vector<90x32xf32>
      %25 = arith.addf %23, %24 : vector<90x32xf32>
      %c10_13 = arith.constant 10 : index
      %c0_14 = arith.constant 0 : index
      %26 = vector.load %arg9[%c10_13, %c0_14] : memref<100x32xf32, #tpu.memory_space<vmem>>, vector<90x32xf32>
      tpu.vector_store %arg9[%c10_13, %c0_14], %25 {strides = array<i32>} : memref<100x32xf32, #tpu.memory_space<vmem>>, vector<90x32xf32>,
      %c9 = arith.constant 9 : index
      %c0_15 = arith.constant 0 : index
      %27 = vector.load %arg9[%c9, %c0_15] : memref<100x32xf32, #tpu.memory_space<vmem>>, vector<91x32xf32>
      %28 = vector.extract_strided_slice %18 {offsets = [0, 64], sizes = [91, 32], strides = [1, 1]} : vector<100x288xf32> to vector<91x32xf32>
      %29 = arith.addf %27, %28 : vector<91x32xf32>
      %c9_16 = arith.constant 9 : index
      %c0_17 = arith.constant 0 : index
      %30 = vector.load %arg9[%c9_16, %c0_17] : memref<100x32xf32, #tpu.memory_space<vmem>>, vector<91x32xf32>
      tpu.vector_store %arg9[%c9_16, %c0_17], %29 {strides = array<i32>} : memref<100x32xf32, #tpu.memory_space<vmem>>, vector<91x32xf32>,
      %c1 = arith.constant 1 : index
      %c0_18 = arith.constant 0 : index
      %31 = vector.load %arg9[%c1, %c0_18] : memref<100x32xf32, #tpu.memory_space<vmem>>, vector<99x32xf32>
      %32 = vector.extract_strided_slice %18 {offsets = [0, 96], sizes = [99, 32], strides = [1, 1]} : vector<100x288xf32> to vector<99x32xf32>
      %33 = arith.addf %31, %32 : vector<99x32xf32>
      %c1_19 = arith.constant 1 : index
      %c0_20 = arith.constant 0 : index
      %34 = vector.load %arg9[%c1_19, %c0_20] : memref<100x32xf32, #tpu.memory_space<vmem>>, vector<99x32xf32>
      tpu.vector_store %arg9[%c1_19, %c0_20], %33 {strides = array<i32>} : memref<100x32xf32, #tpu.memory_space<vmem>>, vector<99x32xf32>,
      %c0_21 = arith.constant 0 : index
      %c0_22 = arith.constant 0 : index
      %35 = vector.load %arg9[%c0_21, %c0_22] : memref<100x32xf32, #tpu.memory_space<vmem>>, vector<100x32xf32>
      %36 = vector.extract_strided_slice %18 {offsets = [0, 128], sizes = [100, 32], strides = [1, 1]} : vector<100x288xf32> to vector<100x32xf32>
      %37 = arith.addf %35, %36 : vector<100x32xf32>
      %c0_23 = arith.constant 0 : index
      %c0_24 = arith.constant 0 : index
      %38 = vector.load %arg9[%c0_23, %c0_24] : memref<100x32xf32, #tpu.memory_space<vmem>>, vector<100x32xf32>
      tpu.vector_store %arg9[%c0_23, %c0_24], %37 {strides = array<i32>} : memref<100x32xf32, #tpu.memory_space<vmem>>, vector<100x32xf32>,
      %c0_25 = arith.constant 0 : index
      %c0_26 = arith.constant 0 : index
      %39 = vector.load %arg9[%c0_25, %c0_26] : memref<100x32xf32, #tpu.memory_space<vmem>>, vector<99x32xf32>
      %40 = vector.extract_strided_slice %18 {offsets = [1, 160], sizes = [99, 32], strides = [1, 1]} : vector<100x288xf32> to vector<99x32xf32>
      %41 = arith.addf %39, %40 : vector<99x32xf32>
      %c0_27 = arith.constant 0 : index
      %c0_28 = arith.constant 0 : index
      %42 = vector.load %arg9[%c0_27, %c0_28] : memref<100x32xf32, #tpu.memory_space<vmem>>, vector<99x32xf32>
      tpu.vector_store %arg9[%c0_27, %c0_28], %41 {strides = array<i32>} : memref<100x32xf32, #tpu.memory_space<vmem>>, vector<99x32xf32>,
      %c0_29 = arith.constant 0 : index
      %c0_30 = arith.constant 0 : index
      %43 = vector.load %arg9[%c0_29, %c0_30] : memref<100x32xf32, #tpu.memory_space<vmem>>, vector<91x32xf32>
      %44 = vector.extract_strided_slice %18 {offsets = [9, 192], sizes = [91, 32], strides = [1, 1]} : vector<100x288xf32> to vector<91x32xf32>
      %45 = arith.addf %43, %44 : vector<91x32xf32>
      %c0_31 = arith.constant 0 : index
      %c0_32 = arith.constant 0 : index
      %46 = vector.load %arg9[%c0_31, %c0_32] : memref<100x32xf32, #tpu.memory_space<vmem>>, vector<91x32xf32>
      tpu.vector_store %arg9[%c0_31, %c0_32], %45 {strides = array<i32>} : memref<100x32xf32, #tpu.memory_space<vmem>>, vector<91x32xf32>,
      %c0_33 = arith.constant 0 : index
      %c0_34 = arith.constant 0 : index
      %47 = vector.load %arg9[%c0_33, %c0_34] : memref<100x32xf32, #tpu.memory_space<vmem>>, vector<90x32xf32>
      %48 = vector.extract_strided_slice %18 {offsets = [10, 224], sizes = [90, 32], strides = [1, 1]} : vector<100x288xf32> to vector<90x32xf32>
      %49 = arith.addf %47, %48 : vector<90x32xf32>
      %c0_35 = arith.constant 0 : index
      %c0_36 = arith.constant 0 : index
      %50 = vector.load %arg9[%c0_35, %c0_36] : memref<100x32xf32, #tpu.memory_space<vmem>>, vector<90x32xf32>
      tpu.vector_store %arg9[%c0_35, %c0_36], %49 {strides = array<i32>} : memref<100x32xf32, #tpu.memory_space<vmem>>, vector<90x32xf32>,
      %c0_37 = arith.constant 0 : index
      %c0_38 = arith.constant 0 : index
      %51 = vector.load %arg9[%c0_37, %c0_38] : memref<100x32xf32, #tpu.memory_space<vmem>>, vector<89x32xf32>
      %52 = vector.extract_strided_slice %18 {offsets = [11, 256], sizes = [89, 32], strides = [1, 1]} : vector<100x288xf32> to vector<89x32xf32>
      %53 = arith.addf %51, %52 : vector<89x32xf32>
      %c0_39 = arith.constant 0 : index
      %c0_40 = arith.constant 0 : index
      %54 = vector.load %arg9[%c0_39, %c0_40] : memref<100x32xf32, #tpu.memory_space<vmem>>, vector<89x32xf32>
      tpu.vector_store %arg9[%c0_39, %c0_40], %53 {strides = array<i32>} : memref<100x32xf32, #tpu.memory_space<vmem>>, vector<89x32xf32>,
    } else {
    }
    %c2_i32 = arith.constant 2 : i32
    %10 = arith.cmpi eq, %arg2, %c2_i32 : i32
    %11 = arith.extui %10 : i1 to i32
    %c0_i32_3 = arith.constant 0 : i32
    %12 = arith.cmpi ne, %11, %c0_i32_3 : i32
    scf.if %12 {
      %c0 = arith.constant 0 : index
      %c0_4 = arith.constant 0 : index
      %13 = vector.load %arg9[%c0, %c0_4] : memref<100x32xf32, #tpu.memory_space<vmem>>, vector<100x32xf32>
      %c0_5 = arith.constant 0 : index
      %c0_6 = arith.constant 0 : index
      %14 = vector.load %arg5[%c0_5, %c0_6] : memref<1x32xf32, #tpu.memory_space<vmem>>, vector<1x32xf32>
      %15 = vector.broadcast %14 : vector<1x32xf32> to vector<100x32xf32>
      %16 = arith.mulf %13, %15 : vector<100x32xf32>
      %c0_7 = arith.constant 0 : index
      %c0_8 = arith.constant 0 : index
      %17 = vector.load %arg6[%c0_7, %c0_8] : memref<1x32xf32, #tpu.memory_space<vmem>>, vector<1x32xf32>
      %18 = vector.broadcast %17 : vector<1x32xf32> to vector<100x32xf32>
      %19 = arith.addf %16, %18 : vector<100x32xf32>
      %cst = arith.constant 0.000000e+00 : f32
      %20 = vector.broadcast %cst : f32 to vector<100x32xf32>
      %21 = arith.cmpf ogt, %19, %20 : vector<100x32xf32>
      %cst_9 = arith.constant 9.99999974E-6 : f32
      %22 = vector.broadcast %cst_9 : f32 to vector<100x32xf32>
      %23 = arith.mulf %22, %19 : vector<100x32xf32>
      %24 = arith.select %21, %19, %23 : vector<100x32xi1>, vector<100x32xf32>
      %c0_10 = arith.constant 0 : index
      %c0_11 = arith.constant 0 : index
      %25 = vector.load %arg7[%c0_10, %c0_11] : memref<100x1xf32, #tpu.memory_space<vmem>>, vector<100x1xf32>
      %26 = vector.broadcast %25 : vector<100x1xf32> to vector<100x32xf32>
      %27 = arith.mulf %24, %26 : vector<100x32xf32>
      %28 = arith.truncf %27 : vector<100x32xf32> to vector<100x32xbf16>
      %c0_12 = arith.constant 0 : index
      %c0_13 = arith.constant 0 : index
      %c0_14 = arith.constant 0 : index
      %c0_15 = arith.constant 0 : index
      %29 = vector.load %arg8[%c0_12, %c0_13, %c0_14, %c0_15] : memref<1x1x100x32xbf16, #tpu.memory_space<vmem>>, vector<1x1x100x32xbf16>
      %30 = vector.shape_cast %29 : vector<1x1x100x32xbf16> to vector<100x32xbf16>
      %31 = vector.shape_cast %28 : vector<100x32xbf16> to vector<1x1x100x32xbf16>
      tpu.vector_store %arg8[%c0_12, %c0_13, %c0_14, %c0_15], %31 {strides = array<i32>} : memref<1x1x100x32xbf16, #tpu.memory_space<vmem>>, vector<1x1x100x32xbf16>,
    } else {
    }
    return
  }
  func.func @transform_0(%arg0: i32, %arg1: i32, %arg2: i32) -> (i32, i32, i32, i32) {
    %0 = arith.addi %arg1, %arg2 : i32
    %c1_i32 = arith.constant 1 : i32
    %1 = arith.subi %0, %c1_i32 : i32
    %c0_i32 = arith.constant 0 : i32
    %c7_i32 = arith.constant 7 : i32
    %2 = arith.maxsi %c0_i32, %1 : i32
    %3 = arith.minsi %c7_i32, %2 : i32
    %c0_i32_0 = arith.constant 0 : i32
    %c0_i32_1 = arith.constant 0 : i32
    %c0_i32_2 = arith.constant 0 : i32
    return %arg0, %3, %c0_i32_0, %c0_i32_1 : i32, i32, i32, i32
  }
  func.func @transform_1(%arg0: i32, %arg1: i32, %arg2: i32) -> (i32, i32, i32) {
    %c0_i32 = arith.constant 0 : i32
    %c0_i32_0 = arith.constant 0 : i32
    %c0_i32_1 = arith.constant 0 : i32
    %c0_i32_2 = arith.constant 0 : i32
    return %c0_i32, %c0_i32_0, %c0_i32_1 : i32, i32, i32
  }
  func.func @transform_2(%arg0: i32, %arg1: i32, %arg2: i32) -> (i32, i32) {
    %c0_i32 = arith.constant 0 : i32
    %c0_i32_0 = arith.constant 0 : i32
    %c0_i32_1 = arith.constant 0 : i32
    return %c0_i32, %c0_i32_0 : i32, i32
  }
  func.func @transform_3(%arg0: i32, %arg1: i32, %arg2: i32) -> (i32, i32) {
    %c0_i32 = arith.constant 0 : i32
    %c0_i32_0 = arith.constant 0 : i32
    %c0_i32_1 = arith.constant 0 : i32
    return %c0_i32, %c0_i32_0 : i32, i32
  }
  func.func @transform_4(%arg0: i32, %arg1: i32, %arg2: i32) -> (i32, i32) {
    %c0_i32 = arith.constant 0 : i32
    %c0_i32_0 = arith.constant 0 : i32
    %c0_i32_1 = arith.constant 0 : i32
    return %c0_i32, %c0_i32_0 : i32, i32
  }
  func.func @transform_5(%arg0: i32, %arg1: i32, %arg2: i32) -> (i32, i32, i32, i32) {
    %c0_i32 = arith.constant 0 : i32
    %c0_i32_0 = arith.constant 0 : i32
    %c0_i32_1 = arith.constant 0 : i32
    return %arg0, %arg1, %c0_i32, %c0_i32_0 : i32, i32, i32, i32
  }
}

module attributes {stable_mosaic.version = 11 : i64} {
  func.func @kernel(%arg0: i32, %arg1: memref<128x864xbf16, #tpu.memory_space<vmem>>, %arg2: memref<864x64xbf16, #tpu.memory_space<vmem>>, %arg3: memref<1x64xf32, #tpu.memory_space<vmem>>, %arg4: memref<1x64xf32, #tpu.memory_space<vmem>>, %arg5: memref<128x64xbf16, #tpu.memory_space<vmem>>) attributes {dimension_semantics = [#tpu.dimension_semantics<parallel>], iteration_bounds = array<i64: 1>, scalar_prefetch = 0 : i64, scratch_operands = 0 : i64, tpu.core_type = #tpu.core_type<tc>, window_params = [{transform_indices = @transform_0, window_bounds = array<i64: 128, 864>}, {pipeline_mode = #tpu.pipeline_mode<synchronous>, transform_indices = @transform_1, window_bounds = array<i64: 864, 64>}, {pipeline_mode = #tpu.pipeline_mode<synchronous>, transform_indices = @transform_2, window_bounds = array<i64: 1, 64>}, {pipeline_mode = #tpu.pipeline_mode<synchronous>, transform_indices = @transform_3, window_bounds = array<i64: 1, 64>}, {transform_indices = @transform_4, window_bounds = array<i64: 128, 64>}]} {
    %c0 = arith.constant 0 : index
    %c0_0 = arith.constant 0 : index
    %0 = vector.load %arg1[%c0, %c0_0] : memref<128x864xbf16, #tpu.memory_space<vmem>>, vector<128x864xbf16>
    %c0_1 = arith.constant 0 : index
    %c0_2 = arith.constant 0 : index
    %1 = vector.load %arg2[%c0_1, %c0_2] : memref<864x64xbf16, #tpu.memory_space<vmem>>, vector<864x64xbf16>
    %cst = arith.constant dense<0.000000e+00> : vector<128x64xf32>
    %2 = tpu.matmul %0, %1, %cst {dimension_numbers = #tpu.dot_dimension_numbers<[1], [0], [0], [1], [0, 0, 1, 1], [], []>} : vector<128x864xbf16>, vector<864x64xbf16>, vector<128x64xf32> -> vector<128x64xf32>
    %c0_3 = arith.constant 0 : index
    %c0_4 = arith.constant 0 : index
    %3 = vector.load %arg3[%c0_3, %c0_4] : memref<1x64xf32, #tpu.memory_space<vmem>>, vector<1x64xf32>
    %4 = vector.broadcast %3 : vector<1x64xf32> to vector<128x64xf32>
    %5 = arith.mulf %2, %4 : vector<128x64xf32>
    %c0_5 = arith.constant 0 : index
    %c0_6 = arith.constant 0 : index
    %6 = vector.load %arg4[%c0_5, %c0_6] : memref<1x64xf32, #tpu.memory_space<vmem>>, vector<1x64xf32>
    %7 = vector.broadcast %6 : vector<1x64xf32> to vector<128x64xf32>
    %8 = arith.addf %5, %7 : vector<128x64xf32>
    %9 = arith.truncf %8 : vector<128x64xf32> to vector<128x64xbf16>
    %c0_7 = arith.constant 0 : index
    %c0_8 = arith.constant 0 : index
    %10 = vector.load %arg5[%c0_7, %c0_8] : memref<128x64xbf16, #tpu.memory_space<vmem>>, vector<128x64xbf16>
    tpu.vector_store %arg5[%c0_7, %c0_8], %9 {strides = array<i32>} : memref<128x64xbf16, #tpu.memory_space<vmem>>, vector<128x64xbf16>,
    return
  }
  func.func @transform_0(%arg0: i32) -> (i32, i32) {
    %c0_i32 = arith.constant 0 : i32
    %c0_i32_0 = arith.constant 0 : i32
    return %arg0, %c0_i32 : i32, i32
  }
  func.func @transform_1(%arg0: i32) -> (i32, i32) {
    %c0_i32 = arith.constant 0 : i32
    %c0_i32_0 = arith.constant 0 : i32
    %c0_i32_1 = arith.constant 0 : i32
    return %c0_i32, %c0_i32_0 : i32, i32
  }
  func.func @transform_2(%arg0: i32) -> (i32, i32) {
    %c0_i32 = arith.constant 0 : i32
    %c0_i32_0 = arith.constant 0 : i32
    %c0_i32_1 = arith.constant 0 : i32
    return %c0_i32, %c0_i32_0 : i32, i32
  }
  func.func @transform_3(%arg0: i32) -> (i32, i32) {
    %c0_i32 = arith.constant 0 : i32
    %c0_i32_0 = arith.constant 0 : i32
    %c0_i32_1 = arith.constant 0 : i32
    return %c0_i32, %c0_i32_0 : i32, i32
  }
  func.func @transform_4(%arg0: i32) -> (i32, i32) {
    %c0_i32 = arith.constant 0 : i32
    %c0_i32_0 = arith.constant 0 : i32
    return %arg0, %c0_i32 : i32, i32
  }
}

module attributes {stable_mosaic.version = 11 : i64} {
  func.func @kernel(%arg0: i32, %arg1: i32, %arg2: i32, %arg3: memref<1x1x36x64xbf16, #tpu.memory_space<vmem>>, %arg4: memref<3x64x576xbf16, #tpu.memory_space<vmem>>, %arg5: memref<1x64xf32, #tpu.memory_space<vmem>>, %arg6: memref<1x64xf32, #tpu.memory_space<vmem>>, %arg7: memref<36x1xf32, #tpu.memory_space<vmem>>, %arg8: memref<1x64xf32, #tpu.memory_space<vmem>>, %arg9: memref<1x64xf32, #tpu.memory_space<vmem>>, %arg10: memref<1x1x36x64xbf16, #tpu.memory_space<vmem>>, %arg11: memref<36x64xf32, #tpu.memory_space<vmem>>) attributes {dimension_semantics = [#tpu.dimension_semantics<parallel>, #tpu.dimension_semantics<parallel>, #tpu.dimension_semantics<arbitrary>], iteration_bounds = array<i64: 2, 4, 3>, scalar_prefetch = 0 : i64, scratch_operands = 1 : i64, tpu.core_type = #tpu.core_type<tc>, window_params = [{transform_indices = @transform_0, window_bounds = array<i64: 1, 1, 36, 64>}, {pipeline_mode = #tpu.pipeline_mode<synchronous>, transform_indices = @transform_1, window_bounds = array<i64: 3, 64, 576>}, {pipeline_mode = #tpu.pipeline_mode<synchronous>, transform_indices = @transform_2, window_bounds = array<i64: 1, 64>}, {pipeline_mode = #tpu.pipeline_mode<synchronous>, transform_indices = @transform_3, window_bounds = array<i64: 1, 64>}, {pipeline_mode = #tpu.pipeline_mode<synchronous>, transform_indices = @transform_4, window_bounds = array<i64: 36, 1>}, {pipeline_mode = #tpu.pipeline_mode<synchronous>, transform_indices = @transform_5, window_bounds = array<i64: 1, 64>}, {pipeline_mode = #tpu.pipeline_mode<synchronous>, transform_indices = @transform_6, window_bounds = array<i64: 1, 64>}, {transform_indices = @transform_7, window_bounds = array<i64: 1, 1, 36, 64>}]} {
    %c0_i32 = arith.constant 0 : i32
    %0 = arith.cmpi eq, %arg2, %c0_i32 : i32
    %1 = arith.extui %0 : i1 to i32
    %c0_i32_0 = arith.constant 0 : i32
    %2 = arith.cmpi ne, %1, %c0_i32_0 : i32
    scf.if %2 {
      %cst = arith.constant 0.000000e+00 : f32
      %13 = vector.broadcast %cst : f32 to vector<36x64xf32>
      %c0 = arith.constant 0 : index
      %c0_4 = arith.constant 0 : index
      %14 = vector.load %arg11[%c0, %c0_4] : memref<36x64xf32, #tpu.memory_space<vmem>>, vector<36x64xf32>
      tpu.vector_store %arg11[%c0, %c0_4], %13 {strides = array<i32>} : memref<36x64xf32, #tpu.memory_space<vmem>>, vector<36x64xf32>,
    } else {
    }
    %3 = arith.addi %arg1, %arg2 : i32
    %c1_i32 = arith.constant 1 : i32
    %4 = arith.subi %3, %c1_i32 : i32
    %c0_i32_1 = arith.constant 0 : i32
    %5 = arith.cmpi sge, %4, %c0_i32_1 : i32
    %c4_i32 = arith.constant 4 : i32
    %6 = arith.cmpi slt, %4, %c4_i32 : i32
    %7 = arith.andi %5, %6 : i1
    %8 = arith.extui %7 : i1 to i32
    %c0_i32_2 = arith.constant 0 : i32
    %9 = arith.cmpi ne, %8, %c0_i32_2 : i32
    scf.if %9 {
      %c0 = arith.constant 0 : index
      %c0_4 = arith.constant 0 : index
      %c0_5 = arith.constant 0 : index
      %c0_6 = arith.constant 0 : index
      %13 = vector.load %arg3[%c0, %c0_4, %c0_5, %c0_6] : memref<1x1x36x64xbf16, #tpu.memory_space<vmem>>, vector<1x1x36x64xbf16>
      %14 = vector.shape_cast %13 : vector<1x1x36x64xbf16> to vector<36x64xbf16>
      %15 = arith.extf %14 : vector<36x64xbf16> to vector<36x64xf32>
      %c0_7 = arith.constant 0 : index
      %c0_8 = arith.constant 0 : index
      %16 = vector.load %arg8[%c0_7, %c0_8] : memref<1x64xf32, #tpu.memory_space<vmem>>, vector<1x64xf32>
      %17 = vector.broadcast %16 : vector<1x64xf32> to vector<36x64xf32>
      %18 = arith.mulf %15, %17 : vector<36x64xf32>
      %c0_9 = arith.constant 0 : index
      %c0_10 = arith.constant 0 : index
      %19 = vector.load %arg9[%c0_9, %c0_10] : memref<1x64xf32, #tpu.memory_space<vmem>>, vector<1x64xf32>
      %20 = vector.broadcast %19 : vector<1x64xf32> to vector<36x64xf32>
      %21 = arith.addf %18, %20 : vector<36x64xf32>
      %cst = arith.constant 0.000000e+00 : f32
      %22 = vector.broadcast %cst : f32 to vector<36x64xf32>
      %23 = arith.cmpf ogt, %21, %22 : vector<36x64xf32>
      %cst_11 = arith.constant 9.99999974E-6 : f32
      %24 = vector.broadcast %cst_11 : f32 to vector<36x64xf32>
      %25 = arith.mulf %24, %21 : vector<36x64xf32>
      %26 = arith.select %23, %21, %25 : vector<36x64xi1>, vector<36x64xf32>
      %c0_12 = arith.constant 0 : index
      %c0_13 = arith.constant 0 : index
      %27 = vector.load %arg7[%c0_12, %c0_13] : memref<36x1xf32, #tpu.memory_space<vmem>>, vector<36x1xf32>
      %28 = vector.broadcast %27 : vector<36x1xf32> to vector<36x64xf32>
      %29 = arith.mulf %26, %28 : vector<36x64xf32>
      %30 = arith.truncf %29 : vector<36x64xf32> to vector<36x64xbf16>
      %31 = arith.index_cast %arg2 : i32 to index
      %c0_14 = arith.constant 0 : index
      %c0_15 = arith.constant 0 : index
      %32 = vector.load %arg4[%31, %c0_14, %c0_15] : memref<3x64x576xbf16, #tpu.memory_space<vmem>>, vector<1x64x576xbf16>
      %33 = vector.shape_cast %32 : vector<1x64x576xbf16> to vector<64x576xbf16>
      %cst_16 = arith.constant dense<0.000000e+00> : vector<36x576xf32>
      %34 = tpu.matmul %30, %33, %cst_16 {dimension_numbers = #tpu.dot_dimension_numbers<[1], [0], [0], [1], [0, 0, 1, 1], [], []>} : vector<36x64xbf16>, vector<64x576xbf16>, vector<36x576xf32> -> vector<36x576xf32>
      %c7 = arith.constant 7 : index
      %c0_17 = arith.constant 0 : index
      %35 = vector.load %arg11[%c7, %c0_17] : memref<36x64xf32, #tpu.memory_space<vmem>>, vector<29x64xf32>
      %36 = vector.extract_strided_slice %34 {offsets = [0, 0], sizes = [29, 64], strides = [1, 1]} : vector<36x576xf32> to vector<29x64xf32>
      %37 = arith.addf %35, %36 : vector<29x64xf32>
      %c7_18 = arith.constant 7 : index
      %c0_19 = arith.constant 0 : index
      %38 = vector.load %arg11[%c7_18, %c0_19] : memref<36x64xf32, #tpu.memory_space<vmem>>, vector<29x64xf32>
      tpu.vector_store %arg11[%c7_18, %c0_19], %37 {strides = array<i32>} : memref<36x64xf32, #tpu.memory_space<vmem>>, vector<29x64xf32>,
      %c6 = arith.constant 6 : index
      %c0_20 = arith.constant 0 : index
      %39 = vector.load %arg11[%c6, %c0_20] : memref<36x64xf32, #tpu.memory_space<vmem>>, vector<30x64xf32>
      %40 = vector.extract_strided_slice %34 {offsets = [0, 64], sizes = [30, 64], strides = [1, 1]} : vector<36x576xf32> to vector<30x64xf32>
      %41 = arith.addf %39, %40 : vector<30x64xf32>
      %c6_21 = arith.constant 6 : index
      %c0_22 = arith.constant 0 : index
      %42 = vector.load %arg11[%c6_21, %c0_22] : memref<36x64xf32, #tpu.memory_space<vmem>>, vector<30x64xf32>
      tpu.vector_store %arg11[%c6_21, %c0_22], %41 {strides = array<i32>} : memref<36x64xf32, #tpu.memory_space<vmem>>, vector<30x64xf32>,
      %c5 = arith.constant 5 : index
      %c0_23 = arith.constant 0 : index
      %43 = vector.load %arg11[%c5, %c0_23] : memref<36x64xf32, #tpu.memory_space<vmem>>, vector<31x64xf32>
      %44 = vector.extract_strided_slice %34 {offsets = [0, 128], sizes = [31, 64], strides = [1, 1]} : vector<36x576xf32> to vector<31x64xf32>
      %45 = arith.addf %43, %44 : vector<31x64xf32>
      %c5_24 = arith.constant 5 : index
      %c0_25 = arith.constant 0 : index
      %46 = vector.load %arg11[%c5_24, %c0_25] : memref<36x64xf32, #tpu.memory_space<vmem>>, vector<31x64xf32>
      tpu.vector_store %arg11[%c5_24, %c0_25], %45 {strides = array<i32>} : memref<36x64xf32, #tpu.memory_space<vmem>>, vector<31x64xf32>,
      %c1 = arith.constant 1 : index
      %c0_26 = arith.constant 0 : index
      %47 = vector.load %arg11[%c1, %c0_26] : memref<36x64xf32, #tpu.memory_space<vmem>>, vector<35x64xf32>
      %48 = vector.extract_strided_slice %34 {offsets = [0, 192], sizes = [35, 64], strides = [1, 1]} : vector<36x576xf32> to vector<35x64xf32>
      %49 = arith.addf %47, %48 : vector<35x64xf32>
      %c1_27 = arith.constant 1 : index
      %c0_28 = arith.constant 0 : index
      %50 = vector.load %arg11[%c1_27, %c0_28] : memref<36x64xf32, #tpu.memory_space<vmem>>, vector<35x64xf32>
      tpu.vector_store %arg11[%c1_27, %c0_28], %49 {strides = array<i32>} : memref<36x64xf32, #tpu.memory_space<vmem>>, vector<35x64xf32>,
      %c0_29 = arith.constant 0 : index
      %c0_30 = arith.constant 0 : index
      %51 = vector.load %arg11[%c0_29, %c0_30] : memref<36x64xf32, #tpu.memory_space<vmem>>, vector<36x64xf32>
      %52 = vector.extract_strided_slice %34 {offsets = [0, 256], sizes = [36, 64], strides = [1, 1]} : vector<36x576xf32> to vector<36x64xf32>
      %53 = arith.addf %51, %52 : vector<36x64xf32>
      %c0_31 = arith.constant 0 : index
      %c0_32 = arith.constant 0 : index
      %54 = vector.load %arg11[%c0_31, %c0_32] : memref<36x64xf32, #tpu.memory_space<vmem>>, vector<36x64xf32>
      tpu.vector_store %arg11[%c0_31, %c0_32], %53 {strides = array<i32>} : memref<36x64xf32, #tpu.memory_space<vmem>>, vector<36x64xf32>,
      %c0_33 = arith.constant 0 : index
      %c0_34 = arith.constant 0 : index
      %55 = vector.load %arg11[%c0_33, %c0_34] : memref<36x64xf32, #tpu.memory_space<vmem>>, vector<35x64xf32>
      %56 = vector.extract_strided_slice %34 {offsets = [1, 320], sizes = [35, 64], strides = [1, 1]} : vector<36x576xf32> to vector<35x64xf32>
      %57 = arith.addf %55, %56 : vector<35x64xf32>
      %c0_35 = arith.constant 0 : index
      %c0_36 = arith.constant 0 : index
      %58 = vector.load %arg11[%c0_35, %c0_36] : memref<36x64xf32, #tpu.memory_space<vmem>>, vector<35x64xf32>
      tpu.vector_store %arg11[%c0_35, %c0_36], %57 {strides = array<i32>} : memref<36x64xf32, #tpu.memory_space<vmem>>, vector<35x64xf32>,
      %c0_37 = arith.constant 0 : index
      %c0_38 = arith.constant 0 : index
      %59 = vector.load %arg11[%c0_37, %c0_38] : memref<36x64xf32, #tpu.memory_space<vmem>>, vector<31x64xf32>
      %60 = vector.extract_strided_slice %34 {offsets = [5, 384], sizes = [31, 64], strides = [1, 1]} : vector<36x576xf32> to vector<31x64xf32>
      %61 = arith.addf %59, %60 : vector<31x64xf32>
      %c0_39 = arith.constant 0 : index
      %c0_40 = arith.constant 0 : index
      %62 = vector.load %arg11[%c0_39, %c0_40] : memref<36x64xf32, #tpu.memory_space<vmem>>, vector<31x64xf32>
      tpu.vector_store %arg11[%c0_39, %c0_40], %61 {strides = array<i32>} : memref<36x64xf32, #tpu.memory_space<vmem>>, vector<31x64xf32>,
      %c0_41 = arith.constant 0 : index
      %c0_42 = arith.constant 0 : index
      %63 = vector.load %arg11[%c0_41, %c0_42] : memref<36x64xf32, #tpu.memory_space<vmem>>, vector<30x64xf32>
      %64 = vector.extract_strided_slice %34 {offsets = [6, 448], sizes = [30, 64], strides = [1, 1]} : vector<36x576xf32> to vector<30x64xf32>
      %65 = arith.addf %63, %64 : vector<30x64xf32>
      %c0_43 = arith.constant 0 : index
      %c0_44 = arith.constant 0 : index
      %66 = vector.load %arg11[%c0_43, %c0_44] : memref<36x64xf32, #tpu.memory_space<vmem>>, vector<30x64xf32>
      tpu.vector_store %arg11[%c0_43, %c0_44], %65 {strides = array<i32>} : memref<36x64xf32, #tpu.memory_space<vmem>>, vector<30x64xf32>,
      %c0_45 = arith.constant 0 : index
      %c0_46 = arith.constant 0 : index
      %67 = vector.load %arg11[%c0_45, %c0_46] : memref<36x64xf32, #tpu.memory_space<vmem>>, vector<29x64xf32>
      %68 = vector.extract_strided_slice %34 {offsets = [7, 512], sizes = [29, 64], strides = [1, 1]} : vector<36x576xf32> to vector<29x64xf32>
      %69 = arith.addf %67, %68 : vector<29x64xf32>
      %c0_47 = arith.constant 0 : index
      %c0_48 = arith.constant 0 : index
      %70 = vector.load %arg11[%c0_47, %c0_48] : memref<36x64xf32, #tpu.memory_space<vmem>>, vector<29x64xf32>
      tpu.vector_store %arg11[%c0_47, %c0_48], %69 {strides = array<i32>} : memref<36x64xf32, #tpu.memory_space<vmem>>, vector<29x64xf32>,
    } else {
    }
    %c2_i32 = arith.constant 2 : i32
    %10 = arith.cmpi eq, %arg2, %c2_i32 : i32
    %11 = arith.extui %10 : i1 to i32
    %c0_i32_3 = arith.constant 0 : i32
    %12 = arith.cmpi ne, %11, %c0_i32_3 : i32
    scf.if %12 {
      %c0 = arith.constant 0 : index
      %c0_4 = arith.constant 0 : index
      %13 = vector.load %arg11[%c0, %c0_4] : memref<36x64xf32, #tpu.memory_space<vmem>>, vector<36x64xf32>
      %c0_5 = arith.constant 0 : index
      %c0_6 = arith.constant 0 : index
      %14 = vector.load %arg5[%c0_5, %c0_6] : memref<1x64xf32, #tpu.memory_space<vmem>>, vector<1x64xf32>
      %15 = vector.broadcast %14 : vector<1x64xf32> to vector<36x64xf32>
      %16 = arith.mulf %13, %15 : vector<36x64xf32>
      %c0_7 = arith.constant 0 : index
      %c0_8 = arith.constant 0 : index
      %17 = vector.load %arg6[%c0_7, %c0_8] : memref<1x64xf32, #tpu.memory_space<vmem>>, vector<1x64xf32>
      %18 = vector.broadcast %17 : vector<1x64xf32> to vector<36x64xf32>
      %19 = arith.addf %16, %18 : vector<36x64xf32>
      %cst = arith.constant 0.000000e+00 : f32
      %20 = vector.broadcast %cst : f32 to vector<36x64xf32>
      %21 = arith.cmpf ogt, %19, %20 : vector<36x64xf32>
      %cst_9 = arith.constant 9.99999974E-6 : f32
      %22 = vector.broadcast %cst_9 : f32 to vector<36x64xf32>
      %23 = arith.mulf %22, %19 : vector<36x64xf32>
      %24 = arith.select %21, %19, %23 : vector<36x64xi1>, vector<36x64xf32>
      %c0_10 = arith.constant 0 : index
      %c0_11 = arith.constant 0 : index
      %25 = vector.load %arg7[%c0_10, %c0_11] : memref<36x1xf32, #tpu.memory_space<vmem>>, vector<36x1xf32>
      %26 = vector.broadcast %25 : vector<36x1xf32> to vector<36x64xf32>
      %27 = arith.mulf %24, %26 : vector<36x64xf32>
      %28 = arith.truncf %27 : vector<36x64xf32> to vector<36x64xbf16>
      %c0_12 = arith.constant 0 : index
      %c0_13 = arith.constant 0 : index
      %c0_14 = arith.constant 0 : index
      %c0_15 = arith.constant 0 : index
      %29 = vector.load %arg10[%c0_12, %c0_13, %c0_14, %c0_15] : memref<1x1x36x64xbf16, #tpu.memory_space<vmem>>, vector<1x1x36x64xbf16>
      %30 = vector.shape_cast %29 : vector<1x1x36x64xbf16> to vector<36x64xbf16>
      %31 = vector.shape_cast %28 : vector<36x64xbf16> to vector<1x1x36x64xbf16>
      tpu.vector_store %arg10[%c0_12, %c0_13, %c0_14, %c0_15], %31 {strides = array<i32>} : memref<1x1x36x64xbf16, #tpu.memory_space<vmem>>, vector<1x1x36x64xbf16>,
    } else {
    }
    return
  }
  func.func @transform_0(%arg0: i32, %arg1: i32, %arg2: i32) -> (i32, i32, i32, i32) {
    %0 = arith.addi %arg1, %arg2 : i32
    %c1_i32 = arith.constant 1 : i32
    %1 = arith.subi %0, %c1_i32 : i32
    %c0_i32 = arith.constant 0 : i32
    %c3_i32 = arith.constant 3 : i32
    %2 = arith.maxsi %c0_i32, %1 : i32
    %3 = arith.minsi %c3_i32, %2 : i32
    %c0_i32_0 = arith.constant 0 : i32
    %c0_i32_1 = arith.constant 0 : i32
    %c0_i32_2 = arith.constant 0 : i32
    return %arg0, %3, %c0_i32_0, %c0_i32_1 : i32, i32, i32, i32
  }
  func.func @transform_1(%arg0: i32, %arg1: i32, %arg2: i32) -> (i32, i32, i32) {
    %c0_i32 = arith.constant 0 : i32
    %c0_i32_0 = arith.constant 0 : i32
    %c0_i32_1 = arith.constant 0 : i32
    %c0_i32_2 = arith.constant 0 : i32
    return %c0_i32, %c0_i32_0, %c0_i32_1 : i32, i32, i32
  }
  func.func @transform_2(%arg0: i32, %arg1: i32, %arg2: i32) -> (i32, i32) {
    %c0_i32 = arith.constant 0 : i32
    %c0_i32_0 = arith.constant 0 : i32
    %c0_i32_1 = arith.constant 0 : i32
    return %c0_i32, %c0_i32_0 : i32, i32
  }
  func.func @transform_3(%arg0: i32, %arg1: i32, %arg2: i32) -> (i32, i32) {
    %c0_i32 = arith.constant 0 : i32
    %c0_i32_0 = arith.constant 0 : i32
    %c0_i32_1 = arith.constant 0 : i32
    return %c0_i32, %c0_i32_0 : i32, i32
  }
  func.func @transform_4(%arg0: i32, %arg1: i32, %arg2: i32) -> (i32, i32) {
    %c0_i32 = arith.constant 0 : i32
    %c0_i32_0 = arith.constant 0 : i32
    %c0_i32_1 = arith.constant 0 : i32
    return %c0_i32, %c0_i32_0 : i32, i32
  }
  func.func @transform_5(%arg0: i32, %arg1: i32, %arg2: i32) -> (i32, i32) {
    %c0_i32 = arith.constant 0 : i32
    %c0_i32_0 = arith.constant 0 : i32
    %c0_i32_1 = arith.constant 0 : i32
    return %c0_i32, %c0_i32_0 : i32, i32
  }
  func.func @transform_6(%arg0: i32, %arg1: i32, %arg2: i32) -> (i32, i32) {
    %c0_i32 = arith.constant 0 : i32
    %c0_i32_0 = arith.constant 0 : i32
    %c0_i32_1 = arith.constant 0 : i32
    return %c0_i32, %c0_i32_0 : i32, i32
  }
  func.func @transform_7(%arg0: i32, %arg1: i32, %arg2: i32) -> (i32, i32, i32, i32) {
    %c0_i32 = arith.constant 0 : i32
    %c0_i32_0 = arith.constant 0 : i32
    %c0_i32_1 = arith.constant 0 : i32
    return %arg0, %arg1, %c0_i32, %c0_i32_0 : i32, i32, i32, i32
  }
}

module attributes {stable_mosaic.version = 11 : i64} {
  func.func @kernel(%arg0: i32, %arg1: i32, %arg2: i32, %arg3: memref<1x1x36x64xbf16, #tpu.memory_space<vmem>>, %arg4: memref<3x64x576xbf16, #tpu.memory_space<vmem>>, %arg5: memref<1x64xf32, #tpu.memory_space<vmem>>, %arg6: memref<1x64xf32, #tpu.memory_space<vmem>>, %arg7: memref<36x1xf32, #tpu.memory_space<vmem>>, %arg8: memref<1x1x36x64xbf16, #tpu.memory_space<vmem>>, %arg9: memref<1x1x36x64xbf16, #tpu.memory_space<vmem>>, %arg10: memref<36x64xf32, #tpu.memory_space<vmem>>) attributes {dimension_semantics = [#tpu.dimension_semantics<parallel>, #tpu.dimension_semantics<parallel>, #tpu.dimension_semantics<arbitrary>], iteration_bounds = array<i64: 2, 4, 3>, scalar_prefetch = 0 : i64, scratch_operands = 1 : i64, tpu.core_type = #tpu.core_type<tc>, window_params = [{transform_indices = @transform_0, window_bounds = array<i64: 1, 1, 36, 64>}, {pipeline_mode = #tpu.pipeline_mode<synchronous>, transform_indices = @transform_1, window_bounds = array<i64: 3, 64, 576>}, {pipeline_mode = #tpu.pipeline_mode<synchronous>, transform_indices = @transform_2, window_bounds = array<i64: 1, 64>}, {pipeline_mode = #tpu.pipeline_mode<synchronous>, transform_indices = @transform_3, window_bounds = array<i64: 1, 64>}, {pipeline_mode = #tpu.pipeline_mode<synchronous>, transform_indices = @transform_4, window_bounds = array<i64: 36, 1>}, {transform_indices = @transform_5, window_bounds = array<i64: 1, 1, 36, 64>}, {transform_indices = @transform_6, window_bounds = array<i64: 1, 1, 36, 64>}]} {
    %c0_i32 = arith.constant 0 : i32
    %0 = arith.cmpi eq, %arg2, %c0_i32 : i32
    %1 = arith.extui %0 : i1 to i32
    %c0_i32_0 = arith.constant 0 : i32
    %2 = arith.cmpi ne, %1, %c0_i32_0 : i32
    scf.if %2 {
      %cst = arith.constant 0.000000e+00 : f32
      %13 = vector.broadcast %cst : f32 to vector<36x64xf32>
      %c0 = arith.constant 0 : index
      %c0_4 = arith.constant 0 : index
      %14 = vector.load %arg10[%c0, %c0_4] : memref<36x64xf32, #tpu.memory_space<vmem>>, vector<36x64xf32>
      tpu.vector_store %arg10[%c0, %c0_4], %13 {strides = array<i32>} : memref<36x64xf32, #tpu.memory_space<vmem>>, vector<36x64xf32>,
    } else {
    }
    %3 = arith.addi %arg1, %arg2 : i32
    %c1_i32 = arith.constant 1 : i32
    %4 = arith.subi %3, %c1_i32 : i32
    %c0_i32_1 = arith.constant 0 : i32
    %5 = arith.cmpi sge, %4, %c0_i32_1 : i32
    %c4_i32 = arith.constant 4 : i32
    %6 = arith.cmpi slt, %4, %c4_i32 : i32
    %7 = arith.andi %5, %6 : i1
    %8 = arith.extui %7 : i1 to i32
    %c0_i32_2 = arith.constant 0 : i32
    %9 = arith.cmpi ne, %8, %c0_i32_2 : i32
    scf.if %9 {
      %c0 = arith.constant 0 : index
      %c0_4 = arith.constant 0 : index
      %c0_5 = arith.constant 0 : index
      %c0_6 = arith.constant 0 : index
      %13 = vector.load %arg3[%c0, %c0_4, %c0_5, %c0_6] : memref<1x1x36x64xbf16, #tpu.memory_space<vmem>>, vector<1x1x36x64xbf16>
      %14 = vector.shape_cast %13 : vector<1x1x36x64xbf16> to vector<36x64xbf16>
      %15 = arith.index_cast %arg2 : i32 to index
      %c0_7 = arith.constant 0 : index
      %c0_8 = arith.constant 0 : index
      %16 = vector.load %arg4[%15, %c0_7, %c0_8] : memref<3x64x576xbf16, #tpu.memory_space<vmem>>, vector<1x64x576xbf16>
      %17 = vector.shape_cast %16 : vector<1x64x576xbf16> to vector<64x576xbf16>
      %cst = arith.constant dense<0.000000e+00> : vector<36x576xf32>
      %18 = tpu.matmul %14, %17, %cst {dimension_numbers = #tpu.dot_dimension_numbers<[1], [0], [0], [1], [0, 0, 1, 1], [], []>} : vector<36x64xbf16>, vector<64x576xbf16>, vector<36x576xf32> -> vector<36x576xf32>
      %c7 = arith.constant 7 : index
      %c0_9 = arith.constant 0 : index
      %19 = vector.load %arg10[%c7, %c0_9] : memref<36x64xf32, #tpu.memory_space<vmem>>, vector<29x64xf32>
      %20 = vector.extract_strided_slice %18 {offsets = [0, 0], sizes = [29, 64], strides = [1, 1]} : vector<36x576xf32> to vector<29x64xf32>
      %21 = arith.addf %19, %20 : vector<29x64xf32>
      %c7_10 = arith.constant 7 : index
      %c0_11 = arith.constant 0 : index
      %22 = vector.load %arg10[%c7_10, %c0_11] : memref<36x64xf32, #tpu.memory_space<vmem>>, vector<29x64xf32>
      tpu.vector_store %arg10[%c7_10, %c0_11], %21 {strides = array<i32>} : memref<36x64xf32, #tpu.memory_space<vmem>>, vector<29x64xf32>,
      %c6 = arith.constant 6 : index
      %c0_12 = arith.constant 0 : index
      %23 = vector.load %arg10[%c6, %c0_12] : memref<36x64xf32, #tpu.memory_space<vmem>>, vector<30x64xf32>
      %24 = vector.extract_strided_slice %18 {offsets = [0, 64], sizes = [30, 64], strides = [1, 1]} : vector<36x576xf32> to vector<30x64xf32>
      %25 = arith.addf %23, %24 : vector<30x64xf32>
      %c6_13 = arith.constant 6 : index
      %c0_14 = arith.constant 0 : index
      %26 = vector.load %arg10[%c6_13, %c0_14] : memref<36x64xf32, #tpu.memory_space<vmem>>, vector<30x64xf32>
      tpu.vector_store %arg10[%c6_13, %c0_14], %25 {strides = array<i32>} : memref<36x64xf32, #tpu.memory_space<vmem>>, vector<30x64xf32>,
      %c5 = arith.constant 5 : index
      %c0_15 = arith.constant 0 : index
      %27 = vector.load %arg10[%c5, %c0_15] : memref<36x64xf32, #tpu.memory_space<vmem>>, vector<31x64xf32>
      %28 = vector.extract_strided_slice %18 {offsets = [0, 128], sizes = [31, 64], strides = [1, 1]} : vector<36x576xf32> to vector<31x64xf32>
      %29 = arith.addf %27, %28 : vector<31x64xf32>
      %c5_16 = arith.constant 5 : index
      %c0_17 = arith.constant 0 : index
      %30 = vector.load %arg10[%c5_16, %c0_17] : memref<36x64xf32, #tpu.memory_space<vmem>>, vector<31x64xf32>
      tpu.vector_store %arg10[%c5_16, %c0_17], %29 {strides = array<i32>} : memref<36x64xf32, #tpu.memory_space<vmem>>, vector<31x64xf32>,
      %c1 = arith.constant 1 : index
      %c0_18 = arith.constant 0 : index
      %31 = vector.load %arg10[%c1, %c0_18] : memref<36x64xf32, #tpu.memory_space<vmem>>, vector<35x64xf32>
      %32 = vector.extract_strided_slice %18 {offsets = [0, 192], sizes = [35, 64], strides = [1, 1]} : vector<36x576xf32> to vector<35x64xf32>
      %33 = arith.addf %31, %32 : vector<35x64xf32>
      %c1_19 = arith.constant 1 : index
      %c0_20 = arith.constant 0 : index
      %34 = vector.load %arg10[%c1_19, %c0_20] : memref<36x64xf32, #tpu.memory_space<vmem>>, vector<35x64xf32>
      tpu.vector_store %arg10[%c1_19, %c0_20], %33 {strides = array<i32>} : memref<36x64xf32, #tpu.memory_space<vmem>>, vector<35x64xf32>,
      %c0_21 = arith.constant 0 : index
      %c0_22 = arith.constant 0 : index
      %35 = vector.load %arg10[%c0_21, %c0_22] : memref<36x64xf32, #tpu.memory_space<vmem>>, vector<36x64xf32>
      %36 = vector.extract_strided_slice %18 {offsets = [0, 256], sizes = [36, 64], strides = [1, 1]} : vector<36x576xf32> to vector<36x64xf32>
      %37 = arith.addf %35, %36 : vector<36x64xf32>
      %c0_23 = arith.constant 0 : index
      %c0_24 = arith.constant 0 : index
      %38 = vector.load %arg10[%c0_23, %c0_24] : memref<36x64xf32, #tpu.memory_space<vmem>>, vector<36x64xf32>
      tpu.vector_store %arg10[%c0_23, %c0_24], %37 {strides = array<i32>} : memref<36x64xf32, #tpu.memory_space<vmem>>, vector<36x64xf32>,
      %c0_25 = arith.constant 0 : index
      %c0_26 = arith.constant 0 : index
      %39 = vector.load %arg10[%c0_25, %c0_26] : memref<36x64xf32, #tpu.memory_space<vmem>>, vector<35x64xf32>
      %40 = vector.extract_strided_slice %18 {offsets = [1, 320], sizes = [35, 64], strides = [1, 1]} : vector<36x576xf32> to vector<35x64xf32>
      %41 = arith.addf %39, %40 : vector<35x64xf32>
      %c0_27 = arith.constant 0 : index
      %c0_28 = arith.constant 0 : index
      %42 = vector.load %arg10[%c0_27, %c0_28] : memref<36x64xf32, #tpu.memory_space<vmem>>, vector<35x64xf32>
      tpu.vector_store %arg10[%c0_27, %c0_28], %41 {strides = array<i32>} : memref<36x64xf32, #tpu.memory_space<vmem>>, vector<35x64xf32>,
      %c0_29 = arith.constant 0 : index
      %c0_30 = arith.constant 0 : index
      %43 = vector.load %arg10[%c0_29, %c0_30] : memref<36x64xf32, #tpu.memory_space<vmem>>, vector<31x64xf32>
      %44 = vector.extract_strided_slice %18 {offsets = [5, 384], sizes = [31, 64], strides = [1, 1]} : vector<36x576xf32> to vector<31x64xf32>
      %45 = arith.addf %43, %44 : vector<31x64xf32>
      %c0_31 = arith.constant 0 : index
      %c0_32 = arith.constant 0 : index
      %46 = vector.load %arg10[%c0_31, %c0_32] : memref<36x64xf32, #tpu.memory_space<vmem>>, vector<31x64xf32>
      tpu.vector_store %arg10[%c0_31, %c0_32], %45 {strides = array<i32>} : memref<36x64xf32, #tpu.memory_space<vmem>>, vector<31x64xf32>,
      %c0_33 = arith.constant 0 : index
      %c0_34 = arith.constant 0 : index
      %47 = vector.load %arg10[%c0_33, %c0_34] : memref<36x64xf32, #tpu.memory_space<vmem>>, vector<30x64xf32>
      %48 = vector.extract_strided_slice %18 {offsets = [6, 448], sizes = [30, 64], strides = [1, 1]} : vector<36x576xf32> to vector<30x64xf32>
      %49 = arith.addf %47, %48 : vector<30x64xf32>
      %c0_35 = arith.constant 0 : index
      %c0_36 = arith.constant 0 : index
      %50 = vector.load %arg10[%c0_35, %c0_36] : memref<36x64xf32, #tpu.memory_space<vmem>>, vector<30x64xf32>
      tpu.vector_store %arg10[%c0_35, %c0_36], %49 {strides = array<i32>} : memref<36x64xf32, #tpu.memory_space<vmem>>, vector<30x64xf32>,
      %c0_37 = arith.constant 0 : index
      %c0_38 = arith.constant 0 : index
      %51 = vector.load %arg10[%c0_37, %c0_38] : memref<36x64xf32, #tpu.memory_space<vmem>>, vector<29x64xf32>
      %52 = vector.extract_strided_slice %18 {offsets = [7, 512], sizes = [29, 64], strides = [1, 1]} : vector<36x576xf32> to vector<29x64xf32>
      %53 = arith.addf %51, %52 : vector<29x64xf32>
      %c0_39 = arith.constant 0 : index
      %c0_40 = arith.constant 0 : index
      %54 = vector.load %arg10[%c0_39, %c0_40] : memref<36x64xf32, #tpu.memory_space<vmem>>, vector<29x64xf32>
      tpu.vector_store %arg10[%c0_39, %c0_40], %53 {strides = array<i32>} : memref<36x64xf32, #tpu.memory_space<vmem>>, vector<29x64xf32>,
    } else {
    }
    %c2_i32 = arith.constant 2 : i32
    %10 = arith.cmpi eq, %arg2, %c2_i32 : i32
    %11 = arith.extui %10 : i1 to i32
    %c0_i32_3 = arith.constant 0 : i32
    %12 = arith.cmpi ne, %11, %c0_i32_3 : i32
    scf.if %12 {
      %c0 = arith.constant 0 : index
      %c0_4 = arith.constant 0 : index
      %13 = vector.load %arg10[%c0, %c0_4] : memref<36x64xf32, #tpu.memory_space<vmem>>, vector<36x64xf32>
      %c0_5 = arith.constant 0 : index
      %c0_6 = arith.constant 0 : index
      %14 = vector.load %arg5[%c0_5, %c0_6] : memref<1x64xf32, #tpu.memory_space<vmem>>, vector<1x64xf32>
      %15 = vector.broadcast %14 : vector<1x64xf32> to vector<36x64xf32>
      %16 = arith.mulf %13, %15 : vector<36x64xf32>
      %c0_7 = arith.constant 0 : index
      %c0_8 = arith.constant 0 : index
      %17 = vector.load %arg6[%c0_7, %c0_8] : memref<1x64xf32, #tpu.memory_space<vmem>>, vector<1x64xf32>
      %18 = vector.broadcast %17 : vector<1x64xf32> to vector<36x64xf32>
      %19 = arith.addf %16, %18 : vector<36x64xf32>
      %c0_9 = arith.constant 0 : index
      %c0_10 = arith.constant 0 : index
      %c0_11 = arith.constant 0 : index
      %c0_12 = arith.constant 0 : index
      %20 = vector.load %arg8[%c0_9, %c0_10, %c0_11, %c0_12] : memref<1x1x36x64xbf16, #tpu.memory_space<vmem>>, vector<1x1x36x64xbf16>
      %21 = vector.shape_cast %20 : vector<1x1x36x64xbf16> to vector<36x64xbf16>
      %22 = arith.extf %21 : vector<36x64xbf16> to vector<36x64xf32>
      %23 = arith.addf %19, %22 : vector<36x64xf32>
      %c0_13 = arith.constant 0 : index
      %c0_14 = arith.constant 0 : index
      %24 = vector.load %arg7[%c0_13, %c0_14] : memref<36x1xf32, #tpu.memory_space<vmem>>, vector<36x1xf32>
      %25 = vector.broadcast %24 : vector<36x1xf32> to vector<36x64xf32>
      %26 = arith.mulf %23, %25 : vector<36x64xf32>
      %27 = arith.truncf %26 : vector<36x64xf32> to vector<36x64xbf16>
      %c0_15 = arith.constant 0 : index
      %c0_16 = arith.constant 0 : index
      %c0_17 = arith.constant 0 : index
      %c0_18 = arith.constant 0 : index
      %28 = vector.load %arg9[%c0_15, %c0_16, %c0_17, %c0_18] : memref<1x1x36x64xbf16, #tpu.memory_space<vmem>>, vector<1x1x36x64xbf16>
      %29 = vector.shape_cast %28 : vector<1x1x36x64xbf16> to vector<36x64xbf16>
      %30 = vector.shape_cast %27 : vector<36x64xbf16> to vector<1x1x36x64xbf16>
      tpu.vector_store %arg9[%c0_15, %c0_16, %c0_17, %c0_18], %30 {strides = array<i32>} : memref<1x1x36x64xbf16, #tpu.memory_space<vmem>>, vector<1x1x36x64xbf16>,
    } else {
    }
    return
  }
  func.func @transform_0(%arg0: i32, %arg1: i32, %arg2: i32) -> (i32, i32, i32, i32) {
    %0 = arith.addi %arg1, %arg2 : i32
    %c1_i32 = arith.constant 1 : i32
    %1 = arith.subi %0, %c1_i32 : i32
    %c0_i32 = arith.constant 0 : i32
    %c3_i32 = arith.constant 3 : i32
    %2 = arith.maxsi %c0_i32, %1 : i32
    %3 = arith.minsi %c3_i32, %2 : i32
    %c0_i32_0 = arith.constant 0 : i32
    %c0_i32_1 = arith.constant 0 : i32
    %c0_i32_2 = arith.constant 0 : i32
    return %arg0, %3, %c0_i32_0, %c0_i32_1 : i32, i32, i32, i32
  }
  func.func @transform_1(%arg0: i32, %arg1: i32, %arg2: i32) -> (i32, i32, i32) {
    %c0_i32 = arith.constant 0 : i32
    %c0_i32_0 = arith.constant 0 : i32
    %c0_i32_1 = arith.constant 0 : i32
    %c0_i32_2 = arith.constant 0 : i32
    return %c0_i32, %c0_i32_0, %c0_i32_1 : i32, i32, i32
  }
  func.func @transform_2(%arg0: i32, %arg1: i32, %arg2: i32) -> (i32, i32) {
    %c0_i32 = arith.constant 0 : i32
    %c0_i32_0 = arith.constant 0 : i32
    %c0_i32_1 = arith.constant 0 : i32
    return %c0_i32, %c0_i32_0 : i32, i32
  }
  func.func @transform_3(%arg0: i32, %arg1: i32, %arg2: i32) -> (i32, i32) {
    %c0_i32 = arith.constant 0 : i32
    %c0_i32_0 = arith.constant 0 : i32
    %c0_i32_1 = arith.constant 0 : i32
    return %c0_i32, %c0_i32_0 : i32, i32
  }
  func.func @transform_4(%arg0: i32, %arg1: i32, %arg2: i32) -> (i32, i32) {
    %c0_i32 = arith.constant 0 : i32
    %c0_i32_0 = arith.constant 0 : i32
    %c0_i32_1 = arith.constant 0 : i32
    return %c0_i32, %c0_i32_0 : i32, i32
  }
  func.func @transform_5(%arg0: i32, %arg1: i32, %arg2: i32) -> (i32, i32, i32, i32) {
    %c0_i32 = arith.constant 0 : i32
    %c0_i32_0 = arith.constant 0 : i32
    %c0_i32_1 = arith.constant 0 : i32
    return %arg0, %arg1, %c0_i32, %c0_i32_0 : i32, i32, i32, i32
  }
  func.func @transform_6(%arg0: i32, %arg1: i32, %arg2: i32) -> (i32, i32, i32, i32) {
    %c0_i32 = arith.constant 0 : i32
    %c0_i32_0 = arith.constant 0 : i32
    %c0_i32_1 = arith.constant 0 : i32
    return %arg0, %arg1, %c0_i32, %c0_i32_0 : i32, i32, i32, i32
  }
}

module attributes {stable_mosaic.version = 11 : i64} {
  func.func @kernel(%arg0: i32, %arg1: memref<128x64xbf16, #tpu.memory_space<vmem>>, %arg2: memref<64x16xbf16, #tpu.memory_space<vmem>>, %arg3: memref<1x16xf32, #tpu.memory_space<vmem>>, %arg4: memref<1x16xf32, #tpu.memory_space<vmem>>, %arg5: memref<128x16xf32, #tpu.memory_space<vmem>>) attributes {dimension_semantics = [#tpu.dimension_semantics<parallel>], iteration_bounds = array<i64: 1>, scalar_prefetch = 0 : i64, scratch_operands = 0 : i64, tpu.core_type = #tpu.core_type<tc>, window_params = [{transform_indices = @transform_0, window_bounds = array<i64: 128, 64>}, {pipeline_mode = #tpu.pipeline_mode<synchronous>, transform_indices = @transform_1, window_bounds = array<i64: 64, 16>}, {pipeline_mode = #tpu.pipeline_mode<synchronous>, transform_indices = @transform_2, window_bounds = array<i64: 1, 16>}, {pipeline_mode = #tpu.pipeline_mode<synchronous>, transform_indices = @transform_3, window_bounds = array<i64: 1, 16>}, {transform_indices = @transform_4, window_bounds = array<i64: 128, 16>}]} {
    %c0 = arith.constant 0 : index
    %c0_0 = arith.constant 0 : index
    %0 = vector.load %arg1[%c0, %c0_0] : memref<128x64xbf16, #tpu.memory_space<vmem>>, vector<128x64xbf16>
    %c0_1 = arith.constant 0 : index
    %c0_2 = arith.constant 0 : index
    %1 = vector.load %arg2[%c0_1, %c0_2] : memref<64x16xbf16, #tpu.memory_space<vmem>>, vector<64x16xbf16>
    %cst = arith.constant dense<0.000000e+00> : vector<128x16xf32>
    %2 = tpu.matmul %0, %1, %cst {dimension_numbers = #tpu.dot_dimension_numbers<[1], [0], [0], [1], [0, 0, 1, 1], [], []>} : vector<128x64xbf16>, vector<64x16xbf16>, vector<128x16xf32> -> vector<128x16xf32>
    %c0_3 = arith.constant 0 : index
    %c0_4 = arith.constant 0 : index
    %3 = vector.load %arg3[%c0_3, %c0_4] : memref<1x16xf32, #tpu.memory_space<vmem>>, vector<1x16xf32>
    %4 = vector.broadcast %3 : vector<1x16xf32> to vector<128x16xf32>
    %5 = arith.mulf %2, %4 : vector<128x16xf32>
    %c0_5 = arith.constant 0 : index
    %c0_6 = arith.constant 0 : index
    %6 = vector.load %arg4[%c0_5, %c0_6] : memref<1x16xf32, #tpu.memory_space<vmem>>, vector<1x16xf32>
    %7 = vector.broadcast %6 : vector<1x16xf32> to vector<128x16xf32>
    %8 = arith.addf %5, %7 : vector<128x16xf32>
    %c0_7 = arith.constant 0 : index
    %c0_8 = arith.constant 0 : index
    %9 = vector.load %arg5[%c0_7, %c0_8] : memref<128x16xf32, #tpu.memory_space<vmem>>, vector<128x16xf32>
    tpu.vector_store %arg5[%c0_7, %c0_8], %8 {strides = array<i32>} : memref<128x16xf32, #tpu.memory_space<vmem>>, vector<128x16xf32>,
    return
  }
  func.func @transform_0(%arg0: i32) -> (i32, i32) {
    %c0_i32 = arith.constant 0 : i32
    %c0_i32_0 = arith.constant 0 : i32
    return %arg0, %c0_i32 : i32, i32
  }
  func.func @transform_1(%arg0: i32) -> (i32, i32) {
    %c0_i32 = arith.constant 0 : i32
    %c0_i32_0 = arith.constant 0 : i32
    %c0_i32_1 = arith.constant 0 : i32
    return %c0_i32, %c0_i32_0 : i32, i32
  }
  func.func @transform_2(%arg0: i32) -> (i32, i32) {
    %c0_i32 = arith.constant 0 : i32
    %c0_i32_0 = arith.constant 0 : i32
    %c0_i32_1 = arith.constant 0 : i32
    return %c0_i32, %c0_i32_0 : i32, i32
  }
  func.func @transform_3(%arg0: i32) -> (i32, i32) {
    %c0_i32 = arith.constant 0 : i32
    %c0_i32_0 = arith.constant 0 : i32
    %c0_i32_1 = arith.constant 0 : i32
    return %c0_i32, %c0_i32_0 : i32, i32
  }
  func.func @transform_4(%arg0: i32) -> (i32, i32) {
    %c0_i32 = arith.constant 0 : i32
    %c0_i32_0 = arith.constant 0 : i32
    return %arg0, %c0_i32 : i32, i32
  }
}

</mosaic_0001>

<llo_original>
// kernel: seg_head_forward.8
$region0: #{seg_head_forward.8}
  #allocation0 [shape = 'u32[]', space=smem, size = 0x4, offset = 0x4, fixed_abs, tag = 'smem constant byte address 0x4 - core index']
  #allocation1 [shape = 'u32[144,128]{1,0:T(1,128)}', space=vmem, size = 0x12000, scoped, tag = 'internal scratch']
  #allocation2 [shape = 'f32[100,32]{1,0:T(8,128)}', space=vmem, size = 0xd000, scoped, tag = 'scratch operand']
  %s0 = inlined_call_operand.vmem [shape: bf16[2,8,100,8], index: 0, kind: input, shape index: {}]
  %s1 = inlined_call_operand.vmem [shape: bf16[3,8,288], index: 1, kind: input, shape index: {}]
  %s2 = inlined_call_operand.vmem [shape: f32[1,32], index: 2, kind: input, shape index: {}]
  %s3 = inlined_call_operand.vmem [shape: f32[1,32], index: 3, kind: input, shape index: {}]
  %s4 = inlined_call_operand.vmem [shape: f32[100,1], index: 4, kind: input, shape index: {}]
  %s5 = inlined_call_operand.vmem [shape: bf16[2,8,100,32], index: 5, kind: output, shape index: {}]
  %s6 = sld [smem:[#allocation0]]
  $region65: #{seg_head_forward.8} parent=0
    _
  %s8 = ssub.s32 1, %s6
  %s9 = scalar_select 0, %s8, %s6
  loop: start=0, step=1, limit=50
  $region2: #{seg_head_forward.8} parent=0 // loop_pre_header
    _
  $region3: #{seg_head_forward.8} parent=0 // loop_header
    %s11 = sphi 0, %s15
    %p12 = scmp.ge.s32.totalorder %s11, 50
    %s18 = sphi 0, %s37
    %s19 = sphi 0, %s33
    %s20 = sphi 0, %s29
    %s21 = sphi 0, %s18
    %s22 = sphi 0, %s19
    %s23 = sphi 0, %s20
    %s24 = sphi 0, %s21
    %s25 = sphi 0, %s22
    %s26 = sphi 0, %s23
    %s54 = sphi 0, %s56
    %s57 = sphi 0, %s54
    %s58 = sphi 0, %s57
    %s74 = sphi 0, %s58
    %s78 = sphi 0, %s78
    %s80 = sphi 0, %s78
    %s81 = sphi 0, %s80
    %s95 = sphi 0, %s81
    %s99 = sphi 0, %s99
    %s101 = sphi 0, %s99
    %s102 = sphi 0, %s101
    %s116 = sphi 0, %s102
    %s120 = sphi 0, %s120
    %s122 = sphi 0, %s120
    %s123 = sphi 0, %s122
    %s137 = sphi 0, %s123
    %s141 = sphi 0, %s141
    %s143 = sphi 0, %s141
    %s144 = sphi 0, %s143
    %s158 = sphi 0, %s144
    %s166 = sphi 0, %s168
    %s169 = sphi 0, %s166
    %s170 = sphi 0, %s169
    %s186 = sphi 0, %s170
  $region4: #{seg_head_forward.8} parent=0 // loop_header_branch
    %14 = sbr.rel (%p12) target = $region8
  $region5: #{seg_head_forward.8} parent=0 // loop_body
    %s16 = ssub.s32 %s11, 1
    %s17 = ssub.s32 %s11, 2
    %s27 = sadd.s32 1, %s20
    %p28 = scmp.ge.s32.totalorder %s27, 3
    %s29 = scalar_select %p28, 0, %s27
    %s30 = sadd.s32 1, %s19
    %s31 = scalar_select %p28, %s30, %s19
    %p32 = scmp.ge.s32.totalorder %s31, 8
    %s33 = scalar_select %p32, 0, %s31
    %s34 = sadd.s32 1, %s18
    %s35 = scalar_select %p32, %s34, %s18
    %p36 = scmp.ge.s32.totalorder %s35, 2
    %s37 = scalar_select %p36, 0, %s35
    %s38 = sadd.s32 %s19, %s20
    %s39 = ssub.s32 %s38, 1
    %p40 = scmp.gt.s32.totalorder %s39, 0
    %s41 = scalar_select %p40, %s39, 0
    %p42 = scmp.lt.s32.totalorder %s41, 7
    %s43 = scalar_select %p42, %s41, 7
    %s44 = sadd.s32 %s33, %s29
    %s45 = ssub.s32 %s44, 1
    %p46 = scmp.gt.s32.totalorder %s45, 0
    %s47 = scalar_select %p46, %s45, 0
    %p48 = scmp.lt.s32.totalorder %s47, 7
    %s49 = scalar_select %p48, %s47, 7
    %s50 = ssub.s32 %s18, %s37
    %s51 = ssub.s32 %s43, %s49
    %s52 = sor.u32 %s50, %s51
    %p53 = scmp.eq.s32.totalorder %s52, 0
    %s55 = sadd.s32 %s54, 1
    %s56 = scalar_select %p53, %s54, %s55
    %p59 = pneg %p53
    %p60 = scmp.eq.s32.totalorder %s11, 47
    %p61 = por %p59, %p60
    %p62 = scmp.ne.s32.totalorder %s54, %s57
    %p63 = scmp.eq.s32.totalorder %s11, 0
    %p64 = por %p62, %p63
    %p65 = scmp.ne.s32.totalorder %s54, %s57
    %p66 = scmp.eq.s32.totalorder %s16, 47
    %p67 = por %p65, %p66
    %p68 = scmp.ne.s32.totalorder %s57, %s58
    %p69 = scmp.eq.s32.totalorder %s16, 0
    %p70 = por %p68, %p69
    %p71 = scmp.ne.s32.totalorder %s57, %s58
    %p72 = scmp.eq.s32.totalorder %s17, 47
    %p73 = por %p71, %p72
    %p75 = scmp.ne.s32.totalorder %s58, %s74
    %p76 = scmp.eq.s32.totalorder %s17, 0
    %p77 = por %p75, %p76
    %s79 = sadd.s32 %s78, 1
    %p82 = scmp.eq.s32.totalorder %s11, 47
    %p83 = scmp.ne.s32.totalorder %s78, %s80
    %p84 = scmp.eq.s32.totalorder %s11, 0
    %p85 = por %p83, %p84
    %p86 = scmp.ne.s32.totalorder %s78, %s80
    %p87 = scmp.eq.s32.totalorder %s16, 47
    %p88 = por %p86, %p87
    %p89 = scmp.ne.s32.totalorder %s80, %s81
    %p90 = scmp.eq.s32.totalorder %s16, 0
    %p91 = por %p89, %p90
    %p92 = scmp.ne.s32.totalorder %s80, %s81
    %p93 = scmp.eq.s32.totalorder %s17, 47
    %p94 = por %p92, %p93
    %p96 = scmp.ne.s32.totalorder %s81, %s95
    %p97 = scmp.eq.s32.totalorder %s17, 0
    %p98 = por %p96, %p97
    %s100 = sadd.s32 %s99, 1
    %p103 = scmp.eq.s32.totalorder %s11, 47
    %p104 = scmp.ne.s32.totalorder %s99, %s101
    %p105 = scmp.eq.s32.totalorder %s11, 0
    %p106 = por %p104, %p105
    %p107 = scmp.ne.s32.totalorder %s99, %s101
    %p108 = scmp.eq.s32.totalorder %s16, 47
    %p109 = por %p107, %p108
    %p110 = scmp.ne.s32.totalorder %s101, %s102
    %p111 = scmp.eq.s32.totalorder %s16, 0
    %p112 = por %p110, %p111
    %p113 = scmp.ne.s32.totalorder %s101, %s102
    %p114 = scmp.eq.s32.totalorder %s17, 47
    %p115 = por %p113, %p114
    %p117 = scmp.ne.s32.totalorder %s102, %s116
    %p118 = scmp.eq.s32.totalorder %s17, 0
    %p119 = por %p117, %p118
    %s121 = sadd.s32 %s120, 1
    %p124 = scmp.eq.s32.totalorder %s11, 47
    %p125 = scmp.ne.s32.totalorder %s120, %s122
    %p126 = scmp.eq.s32.totalorder %s11, 0
    %p127 = por %p125, %p126
    %p128 = scmp.ne.s32.totalorder %s120, %s122
    %p129 = scmp.eq.s32.totalorder %s16, 47
    %p130 = por %p128, %p129
    %p131 = scmp.ne.s32.totalorder %s122, %s123
    %p132 = scmp.eq.s32.totalorder %s16, 0
    %p133 = por %p131, %p132
    %p134 = scmp.ne.s32.totalorder %s122, %s123
    %p135 = scmp.eq.s32.totalorder %s17, 47
    %p136 = por %p134, %p135
    %p138 = scmp.ne.s32.totalorder %s123, %s137
    %p139 = scmp.eq.s32.totalorder %s17, 0
    %p140 = por %p138, %p139
    %s142 = sadd.s32 %s141, 1
    %p145 = scmp.eq.s32.totalorder %s11, 47
    %p146 = scmp.ne.s32.totalorder %s141, %s143
    %p147 = scmp.eq.s32.totalorder %s11, 0
    %p148 = por %p146, %p147
    %p149 = scmp.ne.s32.totalorder %s141, %s143
    %p150 = scmp.eq.s32.totalorder %s16, 47
    %p151 = por %p149, %p150
    %p152 = scmp.ne.s32.totalorder %s143, %s144
    %p153 = scmp.eq.s32.totalorder %s16, 0
    %p154 = por %p152, %p153
    %p155 = scmp.ne.s32.totalorder %s143, %s144
    %p156 = scmp.eq.s32.totalorder %s17, 47
    %p157 = por %p155, %p156
    %p159 = scmp.ne.s32.totalorder %s144, %s158
    %p160 = scmp.eq.s32.totalorder %s17, 0
    %p161 = por %p159, %p160
    %s162 = ssub.s32 %s18, %s37
    %s163 = ssub.s32 %s19, %s33
    %s164 = sor.u32 %s162, %s163
    %p165 = scmp.eq.s32.totalorder %s164, 0
    %s167 = sadd.s32 %s166, 1
    %s168 = scalar_select %p165, %s166, %s167
    %p171 = pneg %p165
    %p172 = scmp.eq.s32.totalorder %s11, 47
    %p173 = por %p171, %p172
    %p174 = scmp.ne.s32.totalorder %s166, %s169
    %p175 = scmp.eq.s32.totalorder %s11, 0
    %p176 = por %p174, %p175
    %p177 = scmp.ne.s32.totalorder %s166, %s169
    %p178 = scmp.eq.s32.totalorder %s16, 47
    %p179 = por %p177, %p178
    %p180 = scmp.ne.s32.totalorder %s169, %s170
    %p181 = scmp.eq.s32.totalorder %s16, 0
    %p182 = por %p180, %p181
    %p183 = scmp.ne.s32.totalorder %s169, %s170
    %p184 = scmp.eq.s32.totalorder %s17, 47
    %p185 = por %p183, %p184
    %p187 = scmp.ne.s32.totalorder %s170, %s186
    %p188 = scmp.eq.s32.totalorder %s17, 0
    %p189 = por %p187, %p188
    %p190 = scmp.le.s32.totalorder 1, %s11
    %p191 = scmp.lt.s32.totalorder %s11, 49
    %p192 = pnand %p190, %p191
    %p193 = pneg %p192
    // Predicated region
    $region9: #{seg_head_forward.8} parent=5 // pred_check
      _
    $region10: #{seg_head_forward.8} parent=5 // pred_check_branch
      %195 = sbr.rel (%p192) target = $region12
    $region11: #{seg_head_forward.8} parent=5 // pred_region
      %s196 = ssub.s32 %s11, 1
      // Predicated region
      $region13: #{seg_head_forward.8} parent=11 // pred_check
        %p197 = pneg %p91
      $region14: #{seg_head_forward.8} parent=11 // pred_check_branch
        %199 = sbr.rel (%p197) target = $region16
      $region15: #{seg_head_forward.8} parent=11 // pred_region
        _
      $region16: #{seg_head_forward.8} parent=11 // pred_fallthru
        _
      // Predicated region
      $region17: #{seg_head_forward.8} parent=11 // pred_check
        %p200 = pneg %p112
      $region18: #{seg_head_forward.8} parent=11 // pred_check_branch
        %202 = sbr.rel (%p200) target = $region20
      $region19: #{seg_head_forward.8} parent=11 // pred_region
        _
      $region20: #{seg_head_forward.8} parent=11 // pred_fallthru
        _
      // Predicated region
      $region21: #{seg_head_forward.8} parent=11 // pred_check
        %p203 = pneg %p133
      $region22: #{seg_head_forward.8} parent=11 // pred_check_branch
        %205 = sbr.rel (%p203) target = $region24
      $region23: #{seg_head_forward.8} parent=11 // pred_region
        _
      $region24: #{seg_head_forward.8} parent=11 // pred_fallthru
        _
      // Predicated region
      $region25: #{seg_head_forward.8} parent=11 // pred_check
        %p206 = pneg %p154
      $region26: #{seg_head_forward.8} parent=11 // pred_check_branch
        %208 = sbr.rel (%p206) target = $region28
      $region27: #{seg_head_forward.8} parent=11 // pred_region
        _
      $region28: #{seg_head_forward.8} parent=11 // pred_fallthru
        _
    $region12: #{seg_head_forward.8} parent=5 // pred_fallthru
      _
    %p209 = scmp.lt.s32.totalorder %s11, 48
    // Predicated region
    $region29: #{seg_head_forward.8} parent=5 // pred_check
      %p210 = pneg %p209
    $region30: #{seg_head_forward.8} parent=5 // pred_check_branch
      %212 = sbr.rel (%p210) target = $region32
    $region31: #{seg_head_forward.8} parent=5 // pred_region
      // Predicated region
      $region33: #{seg_head_forward.8} parent=31 // pred_check
        %p213 = pneg %p64
      $region34: #{seg_head_forward.8} parent=31 // pred_check_branch
        %215 = sbr.rel (%p213) target = $region36
      $region35: #{seg_head_forward.8} parent=31 // pred_region
        %s216 = sadd.s32 %s19, %s20
        %s217 = ssub.s32 %s216, 1
        %p218 = scmp.gt.s32.totalorder %s217, 0
        %s219 = scalar_select %p218, %s217, 0
        %p220 = scmp.lt.s32.totalorder %s219, 7
        %s221 = scalar_select %p220, %s219, 7
        %p222 = scmp.lt.s32.totalorder %s18, 1
        %s223 = scalar_select %p222, %s18, 1
        %p224 = scmp.lt.s32.totalorder %s221, 7
        %s225 = scalar_select %p224, %s221, 7
        %s226 = smul.addr %s225, 13
        %s227 = smul.addr %s223, 104
        %s228 = sadd.s32 %s226, %s227
        %s229 = smul.addr %s228, 4
        %s230 = scalar_lea.vmem %s0, %s229
        %s231 = sadd.s32 %s19, %s20
        %s232 = ssub.s32 %s231, 1
        %p233 = scmp.gt.s32.totalorder %s232, 0
        %s234 = scalar_select %p233, %s232, 0
        %p235 = scmp.lt.s32.totalorder %s234, 7
        %s236 = scalar_select %p235, %s234, 7
      $region36: #{seg_head_forward.8} parent=31 // pred_fallthru
        _
    $region32: #{seg_head_forward.8} parent=5 // pred_fallthru
      _
    %p237 = scmp.le.s32.totalorder 1, %s11
    %p238 = scmp.lt.s32.totalorder %s11, 49
    %p239 = pnand %p237, %p238
    %p240 = pneg %p239
    // Predicated region
    $region37: #{seg_head_forward.8} parent=5 // pred_check
      _
    $region38: #{seg_head_forward.8} parent=5 // pred_check_branch
      %242 = sbr.rel (%p239) target = $region40
    $region39: #{seg_head_forward.8} parent=5 // pred_region
      %s243 = ssub.s32 %s11, 1
      %s244 = sadd.s32 %s22, %s23
      %s245 = ssub.s32 %s244, 1
      %p246 = scmp.gt.s32.totalorder %s245, 0
      %s247 = scalar_select %p246, %s245, 0
      %p248 = scmp.lt.s32.totalorder %s247, 7
      %s249 = scalar_select %p248, %s247, 7
      %p250 = scmp.lt.s32.totalorder %s21, 1
      %s251 = scalar_select %p250, %s21, 1
      %p252 = scmp.lt.s32.totalorder %s249, 7
      %s253 = scalar_select %p252, %s249, 7
      %s254 = smul.addr %s253, 13
      %s255 = smul.addr %s251, 104
      %s256 = sadd.s32 %s254, %s255
      %s257 = smul.addr %s256, 4
      %s258 = scalar_lea.vmem %s0, %s257
      %p259 = pneg %p70
      %p260 = pneg %p67
      %p261 = pneg %p91
      %p262 = pneg %p88
      %p263 = pneg %p112
      %p264 = pneg %p109
      %p265 = pneg %p133
      %p266 = pneg %p130
      %p267 = pneg %p154
      %p268 = pneg %p151
      %p269 = pneg %p182
      %p270 = pneg %p179
      %p271 = scmp.lt.s32.totalorder %s21, 1
      %s272 = scalar_select %p271, %s21, 1
      %p273 = scmp.lt.s32.totalorder %s22, 7
      %s274 = scalar_select %p273, %s22, 7
      %s275 = smul.addr %s274, 13
      %s276 = smul.addr %s272, 104
      %s277 = sadd.s32 %s275, %s276
      %s278 = smul.addr %s277, 4
      %s279 = scalar_lea.vmem %s5, %s278
      %s280 = sadd.s32 %s22, %s23
      %s281 = ssub.s32 %s280, 1
      %p282 = scmp.gt.s32.totalorder %s281, 0
      %s283 = scalar_select %p282, %s281, 0
      %p284 = scmp.lt.s32.totalorder %s283, 7
      %s285 = scalar_select %p284, %s283, 7
      %p286 = scmp.lt.s32.totalorder %s21, 1
      %s287 = scalar_select %p286, %s21, 1
      %p288 = scmp.lt.s32.totalorder %s285, 7
      %s289 = scalar_select %p288, %s285, 7
      %s290 = smul.addr %s289, 13
      %s291 = smul.addr %s287, 104
      %s292 = sadd.s32 %s290, %s291
      %s293 = smul.addr %s292, 4
      %s294 = scalar_lea.vmem %s0, %s293
      %s295 = sadd.s32 %s22, %s23
      %s296 = ssub.s32 %s295, 1
      %p297 = scmp.gt.s32.totalorder %s296, 0
      %s298 = scalar_select %p297, %s296, 0
      %p299 = scmp.lt.s32.totalorder %s298, 7
      %s300 = scalar_select %p299, %s298, 7
      %p301 = scmp.lt.s32.totalorder %s21, 1
      %s302 = scalar_select %p301, %s21, 1
      %p303 = scmp.lt.s32.totalorder %s22, 7
      %s304 = scalar_select %p303, %s22, 7
      %s305 = smul.addr %s304, 13
      %s306 = smul.addr %s302, 104
      %s307 = sadd.s32 %s305, %s306
      %s308 = smul.addr %s307, 4
      %s309 = scalar_lea.vmem %s5, %s308
      %p311 = scmp.eq.s32.totalorder %s23, 0
      // Predicated region
      $region41: #{seg_head_forward.8} parent=39 // pred_check
        %p312 = pneg %p311
      $region42: #{seg_head_forward.8} parent=39 // pred_check_branch
        %314 = sbr.rel (%p312) target = $region44
      $region43: #{seg_head_forward.8} parent=39 // pred_region
        %vm315 = vcmask 261120
        %316 = vst.msk [vmem:[#allocation2] sm:$0xff] %vm315, 0.0
        %317 = vst.msk [vmem:[#allocation2 + $0x8] sm:$0xff] %vm315, 0.0
        %318 = vst.msk [vmem:[#allocation2 + $0x10] sm:$0xff] %vm315, 0.0
        %319 = vst.msk [vmem:[#allocation2 + $0x18] sm:$0xff] %vm315, 0.0
        %320 = vst.msk [vmem:[#allocation2 + $0x20] sm:$0xff] %vm315, 0.0
        %321 = vst.msk [vmem:[#allocation2 + $0x28] sm:$0xff] %vm315, 0.0
        %322 = vst.msk [vmem:[#allocation2 + $0x30] sm:$0xff] %vm315, 0.0
        %323 = vst.msk [vmem:[#allocation2 + $0x38] sm:$0xff] %vm315, 0.0
        %324 = vst.msk [vmem:[#allocation2 + $0x40] sm:$0xff] %vm315, 0.0
        %325 = vst.msk [vmem:[#allocation2 + $0x48] sm:$0xff] %vm315, 0.0
        %326 = vst.msk [vmem:[#allocation2 + $0x50] sm:$0xff] %vm315, 0.0
        %327 = vst.msk [vmem:[#allocation2 + $0x58] sm:$0xff] %vm315, 0.0
        %vm328 = vcmask 257024
        %329 = vst.msk [vmem:[#allocation2 + $0x60] sm:$0xf] %vm328, 0.0
      $region44: #{seg_head_forward.8} parent=39 // pred_fallthru
        _
      %s330 = sadd.s32 %s22, %s23
      %s331 = ssub.s32 %s330, 1
      %p332 = scmp.ge.s32.totalorder %s331, 0
      %p333 = scmp.lt.s32.totalorder %s331, 8
      %p334 = pnand %p332, %p333
      %p335 = pneg %p334
      // Predicated region
      $region45: #{seg_head_forward.8} parent=39 // pred_check
        _
      $region46: #{seg_head_forward.8} parent=39 // pred_check_branch
        %337 = sbr.rel (%p334) target = $region48
      $region47: #{seg_head_forward.8} parent=39 // pred_region
        %v338 = vld [vmem:[%s294] sm:$0xf]
        %v339 = vld [vmem:[%s294 + $0x4] sm:$0xf]
        %v340 = vld [vmem:[%s294 + $0x8] sm:$0xf]
        %v341 = vld [vmem:[%s294 + $0xc] sm:$0xf]
        %v342 = vld [vmem:[%s294 + $0x10] sm:$0xf]
        %v343 = vld [vmem:[%s294 + $0x14] sm:$0xf]
        %v344 = vld [vmem:[%s294 + $0x18] sm:$0xf]
        %v345 = vld [vmem:[%s294 + $0x1c] sm:$0xf]
        %v346 = vld [vmem:[%s294 + $0x20] sm:$0xf]
        %v347 = vld [vmem:[%s294 + $0x24] sm:$0xf]
        %v348 = vld [vmem:[%s294 + $0x28] sm:$0xf]
        %v349 = vld [vmem:[%s294 + $0x2c] sm:$0xf]
        %v350 = vld [vmem:[%s294 + $0x30] sm:$0x3]
        %s351 = smul.u32 %s23, 3
        %s352 = smul.addr %s351, 4
        %s353 = scalar_lea.vmem %s1, %s352
        %v354 = vld [vmem:[%s353] sm:$0xff]
        %v355 = vld [vmem:[%s353 + $0x8] sm:$0xf]
        %v369 = vunpack.c.l.b16 %v338
        %v370 = vunpack.c.l.b16 %v339
        %v371 = vunpack.c.l.b16 %v340
        %v372 = vunpack.c.l.b16 %v341
        %v373 = vunpack.c.l.b16 %v342
        %v374 = vunpack.c.l.b16 %v343
        %v375 = vunpack.c.l.b16 %v344
        %v376 = vunpack.c.l.b16 %v345
        %v377 = vunpack.c.l.b16 %v346
        %v378 = vunpack.c.l.b16 %v347
        %v379 = vunpack.c.l.b16 %v348
        %v380 = vunpack.c.l.b16 %v349
        %v381 = vunpack.c.l.b16 %v350
        %v382 = vpack.c.b16 %v370, %v369
        %v383 = vpack.c.b16 %v372, %v371
        %v384 = vpack.c.b16 %v374, %v373
        %v385 = vpack.c.b16 %v376, %v375
        %v386 = vpack.c.b16 %v378, %v377
        %v387 = vpack.c.b16 %v380, %v379
        %v388 = vpack.c.b16 %v381, %v381
        %v391 = vunpack.c.l.b16 %v354
        %v392 = vunpack.c.h.b16 %v354
        %v393 = vunpack.c.l.b16 %v355
        %v394 = vpack.c.b16 %v391, %v391
        %v395 = vpack.c.b16 %v392, %v392
        %v396 = vpack.c.b16 %v393, %v393
        %vm397 = vcmask 64512
        %v399 = vsel %vm397, %v382, 0
        %v402 = vsel %vm397, %v383, 0
        %v405 = vsel %vm397, %v384, 0
        %v408 = vsel %vm397, %v385, 0
        %v411 = vsel %vm397, %v386, 0
        %v414 = vsel %vm397, %v387, 0
        %v417 = vsel %vm397, %v388, 0
        %vm419 = vcmask 1043456
        %v421 = vsel %vm419, %v394, 0
        %v424 = vsel %vm419, %v395, 0
        %v427 = vsel %vm419, %v396, 0
        %429 = vmatprep.subr.bf16.mxu0 0
        %430 = vmatpush1.bf16.msra.mxu0 0
        %431 = vmatprep.subr.bf16.mxu0 0
        %432 = vmatpush1.bf16.msra.mxu0 0
        %433 = vmatprep.subr.bf16.mxu0 0
        %434 = vmatpush1.bf16.msra.mxu0 0
        %435 = vmatprep.subr.bf16.mxu0 0
        %436 = vmatpush1.bf16.msra.mxu0 0
        %437 = vmatprep.subr.bf16.mxu0 0
        %438 = vmatpush1.bf16.msra.mxu0 0
        %439 = vmatprep.subr.bf16.mxu0 0
        %440 = vmatpush1.bf16.msra.mxu0 0
        %441 = vmatprep.subr.bf16.mxu0 0
        %442 = vmatpush1.bf16.msra.mxu0 0
        %443 = vmatprep.subr.bf16.mxu0 %v424
        %444 = vmatpush1.bf16.msra.mxu0 %v421
        %445 = vmatprep.subr.bf16.mxu0 0
        %446 = vmatpush2.bf16.msra.mxu0 0
        %447 = vmatprep.subr.bf16.mxu0 0
        %448 = vmatpush2.bf16.msra.mxu0 0
        %449 = vmatprep.subr.bf16.mxu0 0
        %450 = vmatpush2.bf16.msra.mxu0 0
        %451 = vmatprep.subr.bf16.mxu0 0
        %452 = vmatpush2.bf16.msra.mxu0 0
        %453 = vmatprep.subr.bf16.mxu0 0
        %454 = vmatpush2.bf16.msra.mxu0 0
        %455 = vmatprep.subr.bf16.mxu0 0
        %456 = vmatpush2.bf16.msra.mxu0 0
        %457 = vmatprep.subr.bf16.mxu0 0
        %458 = vmatpush2.bf16.msra.mxu0 0
        %459 = vmatprep.subr.bf16.mxu0 0
        %460 = vmatpush2.bf16.msra.mxu0 0
        %461 = vmatprep.mubr.bf16.mxu0 0
        %462 = vmatmul.mubr.bf16.gmra.mxu0 %v399
        %v463 = vpop.f32.mrf.mxu0
        %v464 = vadd.f32 0.0, %v463
        %v465 = vpop.f32.mrf.mxu0
        %v466 = vadd.f32 0.0, %v465
        %v467 = vpop.f32.mrf.mxu0
        %v468 = vadd.f32 0.0, %v467
        %v469 = vpop.f32.mrf.mxu0
        %v470 = vadd.f32 0.0, %v469
        %471 = vmatprep.mubr.bf16.mxu0 0
        %472 = vmatmul.mubr.bf16.gmra.mxu0 %v402
        %v473 = vpop.f32.mrf.mxu0
        %v474 = vadd.f32 0.0, %v473
        %v475 = vpop.f32.mrf.mxu0
        %v476 = vadd.f32 0.0, %v475
        %v477 = vpop.f32.mrf.mxu0
        %v478 = vadd.f32 0.0, %v477
        %v479 = vpop.f32.mrf.mxu0
        %v480 = vadd.f32 0.0, %v479
        %481 = vmatprep.mubr.bf16.mxu0 0
        %482 = vmatmul.mubr.bf16.gmra.mxu0 %v405
        %v483 = vpop.f32.mrf.mxu0
        %v484 = vadd.f32 0.0, %v483
        %v485 = vpop.f32.mrf.mxu0
        %v486 = vadd.f32 0.0, %v485
        %v487 = vpop.f32.mrf.mxu0
        %v488 = vadd.f32 0.0, %v487
        %v489 = vpop.f32.mrf.mxu0
        %v490 = vadd.f32 0.0, %v489
        %491 = vmatprep.mubr.bf16.mxu0 0
        %492 = vmatmul.mubr.bf16.gmra.mxu0 %v408
        %v493 = vpop.f32.mrf.mxu0
        %v494 = vadd.f32 0.0, %v493
        %v495 = vpop.f32.mrf.mxu0
        %v496 = vadd.f32 0.0, %v495
        %v497 = vpop.f32.mrf.mxu0
        %v498 = vadd.f32 0.0, %v497
        %v499 = vpop.f32.mrf.mxu0
        %v500 = vadd.f32 0.0, %v499
        %501 = vmatprep.mubr.bf16.mxu0 0
        %502 = vmatmul.mubr.bf16.gmra.mxu0 %v411
        %v503 = vpop.f32.mrf.mxu0
        %v504 = vadd.f32 0.0, %v503
        %v505 = vpop.f32.mrf.mxu0
        %v506 = vadd.f32 0.0, %v505
        %v507 = vpop.f32.mrf.mxu0
        %v508 = vadd.f32 0.0, %v507
        %v509 = vpop.f32.mrf.mxu0
        %v510 = vadd.f32 0.0, %v509
        %511 = vmatprep.mubr.bf16.mxu0 0
        %512 = vmatmul.mubr.bf16.gmra.mxu0 %v414
        %v513 = vpop.f32.mrf.mxu0
        %v514 = vadd.f32 0.0, %v513
        %v515 = vpop.f32.mrf.mxu0
        %v516 = vadd.f32 0.0, %v515
        %v517 = vpop.f32.mrf.mxu0
        %v518 = vadd.f32 0.0, %v517
        %v519 = vpop.f32.mrf.mxu0
        %v520 = vadd.f32 0.0, %v519
        %521 = vmatprep.mubr.bf16.mxu0 0
        %522 = vmatmul.mubr.bf16.gmra.mxu0 %v417
        %v523 = vpop.f32.mrf.mxu0
        %v524 = vadd.f32 0.0, %v523
        %v525 = vpop.f32.mrf.mxu0
        %v526 = vadd.f32 0.0, %v525
        %v527 = vpop.f32.mrf.mxu0
        %v528 = vpop.f32.mrf.mxu0
        %529 = vdwg.mxu0
        %530 = vmatprep.subr.bf16.mxu0 0
        %531 = vmatpush1.bf16.msra.mxu0 0
        %532 = vmatprep.subr.bf16.mxu0 0
        %533 = vmatpush1.bf16.msra.mxu0 0
        %534 = vmatprep.subr.bf16.mxu0 0
        %535 = vmatpush1.bf16.msra.mxu0 0
        %536 = vmatprep.subr.bf16.mxu0 0
        %537 = vmatpush1.bf16.msra.mxu0 0
        %538 = vmatprep.subr.bf16.mxu0 0
        %539 = vmatpush1.bf16.msra.mxu0 0
        %540 = vmatprep.subr.bf16.mxu0 0
        %541 = vmatpush1.bf16.msra.mxu0 0
        %542 = vmatprep.subr.bf16.mxu0 0
        %543 = vmatpush1.bf16.msra.mxu0 0
        %544 = vmatprep.subr.bf16.mxu0 0
        %545 = vmatpush1.bf16.msra.mxu0 %v427
        %546 = vmatprep.subr.bf16.mxu0 0
        %547 = vmatpush2.bf16.msra.mxu0 0
        %548 = vmatprep.subr.bf16.mxu0 0
        %549 = vmatpush2.bf16.msra.mxu0 0
        %550 = vmatprep.subr.bf16.mxu0 0
        %551 = vmatpush2.bf16.msra.mxu0 0
        %552 = vmatprep.subr.bf16.mxu0 0
        %553 = vmatpush2.bf16.msra.mxu0 0
        %554 = vmatprep.subr.bf16.mxu0 0
        %555 = vmatpush2.bf16.msra.mxu0 0
        %556 = vmatprep.subr.bf16.mxu0 0
        %557 = vmatpush2.bf16.msra.mxu0 0
        %558 = vmatprep.subr.bf16.mxu0 0
        %559 = vmatpush2.bf16.msra.mxu0 0
        %560 = vmatprep.subr.bf16.mxu0 0
        %561 = vmatpush2.bf16.msra.mxu0 0
        %562 = vmatprep.mubr.bf16.mxu0 0
        %563 = vmatmul.mubr.bf16.gmra.mxu0 %v399
        %v564 = vpop.f32.mrf.mxu0
        %v565 = vpop.f32.mrf.mxu0
        %v566 = vpop.f32.mrf.mxu0
        %v567 = vadd.f32 0.0, %v566
        %v568 = vpop.f32.mrf.mxu0
        %569 = vmatprep.mubr.bf16.mxu0 0
        %570 = vmatmul.mubr.bf16.gmra.mxu0 %v402
        %v571 = vpop.f32.mrf.mxu0
        %v572 = vadd.f32 0.0, %v571
        %v573 = vpop.f32.mrf.mxu0
        %v574 = vpop.f32.mrf.mxu0
        %v575 = vadd.f32 0.0, %v574
        %v576 = vpop.f32.mrf.mxu0
        %577 = vmatprep.mubr.bf16.mxu0 0
        %578 = vmatmul.mubr.bf16.gmra.mxu0 %v405
        %v579 = vpop.f32.mrf.mxu0
        %v580 = vadd.f32 0.0, %v579
        %v581 = vpop.f32.mrf.mxu0
        %v582 = vpop.f32.mrf.mxu0
        %v583 = vadd.f32 0.0, %v582
        %v584 = vpop.f32.mrf.mxu0
        %585 = vmatprep.mubr.bf16.mxu0 0
        %586 = vmatmul.mubr.bf16.gmra.mxu0 %v408
        %v587 = vpop.f32.mrf.mxu0
        %v588 = vadd.f32 0.0, %v587
        %v589 = vpop.f32.mrf.mxu0
        %v590 = vpop.f32.mrf.mxu0
        %v591 = vadd.f32 0.0, %v590
        %v592 = vpop.f32.mrf.mxu0
        %593 = vmatprep.mubr.bf16.mxu0 0
        %594 = vmatmul.mubr.bf16.gmra.mxu0 %v411
        %v595 = vpop.f32.mrf.mxu0
        %v596 = vadd.f32 0.0, %v595
        %v597 = vpop.f32.mrf.mxu0
        %v598 = vpop.f32.mrf.mxu0
        %v599 = vadd.f32 0.0, %v598
        %v600 = vpop.f32.mrf.mxu0
        %601 = vmatprep.mubr.bf16.mxu0 0
        %602 = vmatmul.mubr.bf16.gmra.mxu0 %v414
        %v603 = vpop.f32.mrf.mxu0
        %v604 = vadd.f32 0.0, %v603
        %v605 = vpop.f32.mrf.mxu0
        %v606 = vpop.f32.mrf.mxu0
        %v607 = vadd.f32 0.0, %v606
        %v608 = vpop.f32.mrf.mxu0
        %609 = vmatprep.mubr.bf16.mxu0 0
        %610 = vmatmul.mubr.bf16.gmra.mxu0 %v417
        %v611 = vpop.f32.mrf.mxu0
        %v612 = vadd.f32 0.0, %v611
        %v613 = vpop.f32.mrf.mxu0
        %v614 = vpop.f32.mrf.mxu0
        %v615 = vpop.f32.mrf.mxu0
        %616 = vdwg.mxu0
        %v617 = vld [vmem:[#allocation2 + $0xb] sm:$0xff]
        %v618 = vld [vmem:[#allocation2 + $0x13] sm:$0xff]
        %v619 = vld [vmem:[#allocation2 + $0x1b] sm:$0xff]
        %v620 = vld [vmem:[#allocation2 + $0x23] sm:$0xff]
        %v621 = vld [vmem:[#allocation2 + $0x2b] sm:$0xff]
        %v622 = vld [vmem:[#allocation2 + $0x33] sm:$0xff]
        %v623 = vld [vmem:[#allocation2 + $0x3b] sm:$0xff]
        %v624 = vld [vmem:[#allocation2 + $0x43] sm:$0xff]
        %v625 = vld [vmem:[#allocation2 + $0x4b] sm:$0xff]
        %v626 = vld [vmem:[#allocation2 + $0x53] sm:$0xff]
        %v627 = vld [vmem:[#allocation2 + $0x5b] sm:$0xff]
        %v628 = vld [vmem:[#allocation2 + $0x63] sm:$0x1]
        %v629 = vadd.f32 %v617, %v464
        %v630 = vadd.f32 %v618, %v468
        %v631 = vadd.f32 %v619, %v474
        %v632 = vadd.f32 %v620, %v478
        %v633 = vadd.f32 %v621, %v484
        %v634 = vadd.f32 %v622, %v488
        %v635 = vadd.f32 %v623, %v494
        %v636 = vadd.f32 %v624, %v498
        %v637 = vadd.f32 %v625, %v504
        %v638 = vadd.f32 %v626, %v508
        %v639 = vadd.f32 %v627, %v514
        %v640 = vadd.f32 %v628, %v518
        %vm641 = vcmask 261120
        %642 = vst.msk [vmem:[#allocation2 + $0xb] sm:$0xff] %vm641, %v629
        %643 = vst.msk [vmem:[#allocation2 + $0x13] sm:$0xff] %vm641, %v630
        %644 = vst.msk [vmem:[#allocation2 + $0x1b] sm:$0xff] %vm641, %v631
        %645 = vst.msk [vmem:[#allocation2 + $0x23] sm:$0xff] %vm641, %v632
        %646 = vst.msk [vmem:[#allocation2 + $0x2b] sm:$0xff] %vm641, %v633
        %647 = vst.msk [vmem:[#allocation2 + $0x33] sm:$0xff] %vm641, %v634
        %648 = vst.msk [vmem:[#allocation2 + $0x3b] sm:$0xff] %vm641, %v635
        %649 = vst.msk [vmem:[#allocation2 + $0x43] sm:$0xff] %vm641, %v636
        %650 = vst.msk [vmem:[#allocation2 + $0x4b] sm:$0xff] %vm641, %v637
        %651 = vst.msk [vmem:[#allocation2 + $0x53] sm:$0xff] %vm641, %v638
        %652 = vst.msk [vmem:[#allocation2 + $0x5b] sm:$0xff] %vm641, %v639
        %vm653 = vcmask 253952
        %654 = vst.msk [vmem:[#allocation2 + $0x63] sm:$0x1] %vm653, %v640
        %v655 = vld [vmem:[#allocation2 + $0xa] sm:$0xff]
        %v656 = vld [vmem:[#allocation2 + $0x12] sm:$0xff]
        %v657 = vld [vmem:[#allocation2 + $0x1a] sm:$0xff]
        %v658 = vld [vmem:[#allocation2 + $0x22] sm:$0xff]
        %v659 = vld [vmem:[#allocation2 + $0x2a] sm:$0xff]
        %v660 = vld [vmem:[#allocation2 + $0x32] sm:$0xff]
        %v661 = vld [vmem:[#allocation2 + $0x3a] sm:$0xff]
        %v662 = vld [vmem:[#allocation2 + $0x42] sm:$0xff]
        %v663 = vld [vmem:[#allocation2 + $0x4a] sm:$0xff]
        %v664 = vld [vmem:[#allocation2 + $0x52] sm:$0xff]
        %v665 = vld [vmem:[#allocation2 + $0x5a] sm:$0xff]
        %v666 = vld [vmem:[#allocation2 + $0x62] sm:$0x3]
        %679 = vrot.lane.b32.xlu0 %v464, 96
        %v680 = vpop.permute.xlu0 %679
        %681 = vrot.lane.b32.xlu0 %v468, 96
        %v682 = vpop.permute.xlu0 %681
        %683 = vrot.lane.b32.xlu0 %v474, 96
        %v684 = vpop.permute.xlu0 %683
        %685 = vrot.lane.b32.xlu0 %v478, 96
        %v686 = vpop.permute.xlu0 %685
        %687 = vrot.lane.b32.xlu0 %v484, 96
        %v688 = vpop.permute.xlu0 %687
        %689 = vrot.lane.b32.xlu0 %v488, 96
        %v690 = vpop.permute.xlu0 %689
        %691 = vrot.lane.b32.xlu0 %v494, 96
        %v692 = vpop.permute.xlu0 %691
        %693 = vrot.lane.b32.xlu0 %v498, 96
        %v694 = vpop.permute.xlu0 %693
        %695 = vrot.lane.b32.xlu0 %v504, 96
        %v696 = vpop.permute.xlu0 %695
        %697 = vrot.lane.b32.xlu0 %v508, 96
        %v698 = vpop.permute.xlu0 %697
        %699 = vrot.lane.b32.xlu0 %v514, 96
        %v700 = vpop.permute.xlu0 %699
        %701 = vrot.lane.b32.xlu0 %v518, 96
        %v702 = vpop.permute.xlu0 %701
        %v715 = vadd.f32 %v655, %v680
        %v716 = vadd.f32 %v656, %v682
        %v717 = vadd.f32 %v657, %v684
        %v718 = vadd.f32 %v658, %v686
        %v719 = vadd.f32 %v659, %v688
        %v720 = vadd.f32 %v660, %v690
        %v721 = vadd.f32 %v661, %v692
        %v722 = vadd.f32 %v662, %v694
        %v723 = vadd.f32 %v663, %v696
        %v724 = vadd.f32 %v664, %v698
        %v725 = vadd.f32 %v665, %v700
        %v726 = vadd.f32 %v666, %v702
        %727 = vst.msk [vmem:[#allocation2 + $0xa] sm:$0xff] %vm641, %v715
        %728 = vst.msk [vmem:[#allocation2 + $0x12] sm:$0xff] %vm641, %v716
        %729 = vst.msk [vmem:[#allocation2 + $0x1a] sm:$0xff] %vm641, %v717
        %730 = vst.msk [vmem:[#allocation2 + $0x22] sm:$0xff] %vm641, %v718
        %731 = vst.msk [vmem:[#allocation2 + $0x2a] sm:$0xff] %vm641, %v719
        %732 = vst.msk [vmem:[#allocation2 + $0x32] sm:$0xff] %vm641, %v720
        %733 = vst.msk [vmem:[#allocation2 + $0x3a] sm:$0xff] %vm641, %v721
        %734 = vst.msk [vmem:[#allocation2 + $0x42] sm:$0xff] %vm641, %v722
        %735 = vst.msk [vmem:[#allocation2 + $0x4a] sm:$0xff] %vm641, %v723
        %736 = vst.msk [vmem:[#allocation2 + $0x52] sm:$0xff] %vm641, %v724
        %737 = vst.msk [vmem:[#allocation2 + $0x5a] sm:$0xff] %vm641, %v725
        %vm738 = vcmask 254976
        %739 = vst.msk [vmem:[#allocation2 + $0x62] sm:$0x3] %vm738, %v726
        %v740 = vld [vmem:[#allocation2 + $0x9] sm:$0xff]
        %v741 = vld [vmem:[#allocation2 + $0x11] sm:$0xff]
        %v742 = vld [vmem:[#allocation2 + $0x19] sm:$0xff]
        %v743 = vld [vmem:[#allocation2 + $0x21] sm:$0xff]
        %v744 = vld [vmem:[#allocation2 + $0x29] sm:$0xff]
        %v745 = vld [vmem:[#allocation2 + $0x31] sm:$0xff]
        %v746 = vld [vmem:[#allocation2 + $0x39] sm:$0xff]
        %v747 = vld [vmem:[#allocation2 + $0x41] sm:$0xff]
        %v748 = vld [vmem:[#allocation2 + $0x49] sm:$0xff]
        %v749 = vld [vmem:[#allocation2 + $0x51] sm:$0xff]
        %v750 = vld [vmem:[#allocation2 + $0x59] sm:$0xff]
        %v751 = vld [vmem:[#allocation2 + $0x61] sm:$0x7]
        %752 = vrot.lane.b32.xlu0 %v464, 64
        %v753 = vpop.permute.xlu0 %752
        %754 = vrot.lane.b32.xlu0 %v468, 64
        %v755 = vpop.permute.xlu0 %754
        %756 = vrot.lane.b32.xlu0 %v474, 64
        %v757 = vpop.permute.xlu0 %756
        %758 = vrot.lane.b32.xlu0 %v478, 64
        %v759 = vpop.permute.xlu0 %758
        %760 = vrot.lane.b32.xlu0 %v484, 64
        %v761 = vpop.permute.xlu0 %760
        %762 = vrot.lane.b32.xlu0 %v488, 64
        %v763 = vpop.permute.xlu0 %762
        %764 = vrot.lane.b32.xlu0 %v494, 64
        %v765 = vpop.permute.xlu0 %764
        %766 = vrot.lane.b32.xlu0 %v498, 64
        %v767 = vpop.permute.xlu0 %766
        %768 = vrot.lane.b32.xlu0 %v504, 64
        %v769 = vpop.permute.xlu0 %768
        %770 = vrot.lane.b32.xlu0 %v508, 64
        %v771 = vpop.permute.xlu0 %770
        %772 = vrot.lane.b32.xlu0 %v514, 64
        %v773 = vpop.permute.xlu0 %772
        %774 = vrot.lane.b32.xlu0 %v518, 64
        %v775 = vpop.permute.xlu0 %774
        %v788 = vadd.f32 %v740, %v753
        %v789 = vadd.f32 %v741, %v755
        %v790 = vadd.f32 %v742, %v757
        %v791 = vadd.f32 %v743, %v759
        %v792 = vadd.f32 %v744, %v761
        %v793 = vadd.f32 %v745, %v763
        %v794 = vadd.f32 %v746, %v765
        %v795 = vadd.f32 %v747, %v767
        %v796 = vadd.f32 %v748, %v769
        %v797 = vadd.f32 %v749, %v771
        %v798 = vadd.f32 %v750, %v773
        %v799 = vadd.f32 %v751, %v775
        %800 = vst.msk [vmem:[#allocation2 + $0x9] sm:$0xff] %vm641, %v788
        %801 = vst.msk [vmem:[#allocation2 + $0x11] sm:$0xff] %vm641, %v789
        %802 = vst.msk [vmem:[#allocation2 + $0x19] sm:$0xff] %vm641, %v790
        %803 = vst.msk [vmem:[#allocation2 + $0x21] sm:$0xff] %vm641, %v791
        %804 = vst.msk [vmem:[#allocation2 + $0x29] sm:$0xff] %vm641, %v792
        %805 = vst.msk [vmem:[#allocation2 + $0x31] sm:$0xff] %vm641, %v793
        %806 = vst.msk [vmem:[#allocation2 + $0x39] sm:$0xff] %vm641, %v794
        %807 = vst.msk [vmem:[#allocation2 + $0x41] sm:$0xff] %vm641, %v795
        %808 = vst.msk [vmem:[#allocation2 + $0x49] sm:$0xff] %vm641, %v796
        %809 = vst.msk [vmem:[#allocation2 + $0x51] sm:$0xff] %vm641, %v797
        %810 = vst.msk [vmem:[#allocation2 + $0x59] sm:$0xff] %vm641, %v798
        %vm811 = vcmask 256000
        %812 = vst.msk [vmem:[#allocation2 + $0x61] sm:$0x7] %vm811, %v799
        %v813 = vld [vmem:[#allocation2 + $0x1] sm:$0xff]
        %v814 = vld [vmem:[#allocation2 + $0x9] sm:$0xff]
        %v815 = vld [vmem:[#allocation2 + $0x11] sm:$0xff]
        %v816 = vld [vmem:[#allocation2 + $0x19] sm:$0xff]
        %v817 = vld [vmem:[#allocation2 + $0x21] sm:$0xff]
        %v818 = vld [vmem:[#allocation2 + $0x29] sm:$0xff]
        %v819 = vld [vmem:[#allocation2 + $0x31] sm:$0xff]
        %v820 = vld [vmem:[#allocation2 + $0x39] sm:$0xff]
        %v821 = vld [vmem:[#allocation2 + $0x41] sm:$0xff]
        %v822 = vld [vmem:[#allocation2 + $0x49] sm:$0xff]
        %v823 = vld [vmem:[#allocation2 + $0x51] sm:$0xff]
        %v824 = vld [vmem:[#allocation2 + $0x59] sm:$0xff]
        %v825 = vld [vmem:[#allocation2 + $0x61] sm:$0x7]
        %827 = vrot.lane.b32.xlu0 %v464, 32
        %v828 = vpop.permute.xlu0 %827
        %829 = vrot.lane.b32.xlu0 %v468, 32
        %v830 = vpop.permute.xlu0 %829
        %831 = vrot.lane.b32.xlu0 %v474, 32
        %v832 = vpop.permute.xlu0 %831
        %833 = vrot.lane.b32.xlu0 %v478, 32
        %v834 = vpop.permute.xlu0 %833
        %835 = vrot.lane.b32.xlu0 %v484, 32
        %v836 = vpop.permute.xlu0 %835
        %837 = vrot.lane.b32.xlu0 %v488, 32
        %v838 = vpop.permute.xlu0 %837
        %839 = vrot.lane.b32.xlu0 %v494, 32
        %v840 = vpop.permute.xlu0 %839
        %841 = vrot.lane.b32.xlu0 %v498, 32
        %v842 = vpop.permute.xlu0 %841
        %843 = vrot.lane.b32.xlu0 %v504, 32
        %v844 = vpop.permute.xlu0 %843
        %845 = vrot.lane.b32.xlu0 %v508, 32
        %v846 = vpop.permute.xlu0 %845
        %847 = vrot.lane.b32.xlu0 %v514, 32
        %v848 = vpop.permute.xlu0 %847
        %849 = vrot.lane.b32.xlu0 %v518, 32
        %v850 = vpop.permute.xlu0 %849
        %851 = vrot.lane.b32.xlu0 %v524, 32
        %v852 = vpop.permute.xlu0 %851
        %v866 = vadd.f32 %v813, %v828
        %v867 = vadd.f32 %v814, %v830
        %v868 = vadd.f32 %v815, %v832
        %v869 = vadd.f32 %v816, %v834
        %v870 = vadd.f32 %v817, %v836
        %v871 = vadd.f32 %v818, %v838
        %v872 = vadd.f32 %v819, %v840
        %v873 = vadd.f32 %v820, %v842
        %v874 = vadd.f32 %v821, %v844
        %v875 = vadd.f32 %v822, %v846
        %v876 = vadd.f32 %v823, %v848
        %v877 = vadd.f32 %v824, %v850
        %v878 = vadd.f32 %v825, %v852
        %879 = vst.msk [vmem:[#allocation2 + $0x1] sm:$0xff] %vm641, %v866
        %880 = vst.msk [vmem:[#allocation2 + $0x9] sm:$0xff] %vm641, %v867
        %881 = vst.msk [vmem:[#allocation2 + $0x11] sm:$0xff] %vm641, %v868
        %882 = vst.msk [vmem:[#allocation2 + $0x19] sm:$0xff] %vm641, %v869
        %883 = vst.msk [vmem:[#allocation2 + $0x21] sm:$0xff] %vm641, %v870
        %884 = vst.msk [vmem:[#allocation2 + $0x29] sm:$0xff] %vm641, %v871
        %885 = vst.msk [vmem:[#allocation2 + $0x31] sm:$0xff] %vm641, %v872
        %886 = vst.msk [vmem:[#allocation2 + $0x39] sm:$0xff] %vm641, %v873
        %887 = vst.msk [vmem:[#allocation2 + $0x41] sm:$0xff] %vm641, %v874
        %888 = vst.msk [vmem:[#allocation2 + $0x49] sm:$0xff] %vm641, %v875
        %889 = vst.msk [vmem:[#allocation2 + $0x51] sm:$0xff] %vm641, %v876
        %890 = vst.msk [vmem:[#allocation2 + $0x59] sm:$0xff] %vm641, %v877
        %891 = vst.msk [vmem:[#allocation2 + $0x61] sm:$0x7] %vm811, %v878
        %v892 = vld [vmem:[#allocation2] sm:$0xff]
        %v893 = vld [vmem:[#allocation2 + $0x8] sm:$0xff]
        %v894 = vld [vmem:[#allocation2 + $0x10] sm:$0xff]
        %v895 = vld [vmem:[#allocation2 + $0x18] sm:$0xff]
        %v896 = vld [vmem:[#allocation2 + $0x20] sm:$0xff]
        %v897 = vld [vmem:[#allocation2 + $0x28] sm:$0xff]
        %v898 = vld [vmem:[#allocation2 + $0x30] sm:$0xff]
        %v899 = vld [vmem:[#allocation2 + $0x38] sm:$0xff]
        %v900 = vld [vmem:[#allocation2 + $0x40] sm:$0xff]
        %v901 = vld [vmem:[#allocation2 + $0x48] sm:$0xff]
        %v902 = vld [vmem:[#allocation2 + $0x50] sm:$0xff]
        %v903 = vld [vmem:[#allocation2 + $0x58] sm:$0xff]
        %v904 = vld [vmem:[#allocation2 + $0x60] sm:$0xf]
        %v905 = vadd.f32 %v892, %v466
        %v906 = vadd.f32 %v893, %v470
        %v907 = vadd.f32 %v894, %v476
        %v908 = vadd.f32 %v895, %v480
        %v909 = vadd.f32 %v896, %v486
        %v910 = vadd.f32 %v897, %v490
        %v911 = vadd.f32 %v898, %v496
        %v912 = vadd.f32 %v899, %v500
        %v913 = vadd.f32 %v900, %v506
        %v914 = vadd.f32 %v901, %v510
        %v915 = vadd.f32 %v902, %v516
        %v916 = vadd.f32 %v903, %v520
        %v917 = vadd.f32 %v904, %v526
        %918 = vst.msk [vmem:[#allocation2] sm:$0xff] %vm641, %v905
        %919 = vst.msk [vmem:[#allocation2 + $0x8] sm:$0xff] %vm641, %v906
        %920 = vst.msk [vmem:[#allocation2 + $0x10] sm:$0xff] %vm641, %v907
        %921 = vst.msk [vmem:[#allocation2 + $0x18] sm:$0xff] %vm641, %v908
        %922 = vst.msk [vmem:[#allocation2 + $0x20] sm:$0xff] %vm641, %v909
        %923 = vst.msk [vmem:[#allocation2 + $0x28] sm:$0xff] %vm641, %v910
        %924 = vst.msk [vmem:[#allocation2 + $0x30] sm:$0xff] %vm641, %v911
        %925 = vst.msk [vmem:[#allocation2 + $0x38] sm:$0xff] %vm641, %v912
        %926 = vst.msk [vmem:[#allocation2 + $0x40] sm:$0xff] %vm641, %v913
        %927 = vst.msk [vmem:[#allocation2 + $0x48] sm:$0xff] %vm641, %v914
        %928 = vst.msk [vmem:[#allocation2 + $0x50] sm:$0xff] %vm641, %v915
        %929 = vst.msk [vmem:[#allocation2 + $0x58] sm:$0xff] %vm641, %v916
        %vm930 = vcmask 257024
        %931 = vst.msk [vmem:[#allocation2 + $0x60] sm:$0xf] %vm930, %v917
        %v932 = vld [vmem:[#allocation2] sm:$0xff]
        %v933 = vld [vmem:[#allocation2 + $0x8] sm:$0xff]
        %v934 = vld [vmem:[#allocation2 + $0x10] sm:$0xff]
        %v935 = vld [vmem:[#allocation2 + $0x18] sm:$0xff]
        %v936 = vld [vmem:[#allocation2 + $0x20] sm:$0xff]
        %v937 = vld [vmem:[#allocation2 + $0x28] sm:$0xff]
        %v938 = vld [vmem:[#allocation2 + $0x30] sm:$0xff]
        %v939 = vld [vmem:[#allocation2 + $0x38] sm:$0xff]
        %v940 = vld [vmem:[#allocation2 + $0x40] sm:$0xff]
        %v941 = vld [vmem:[#allocation2 + $0x48] sm:$0xff]
        %v942 = vld [vmem:[#allocation2 + $0x50] sm:$0xff]
        %v943 = vld [vmem:[#allocation2 + $0x58] sm:$0xff]
        %v944 = vld [vmem:[#allocation2 + $0x60] sm:$0x7]
        %vm958 = vcmask 1046528
        %v959 = vrot.slane %v466, 1
        %v960 = vrot.slane %v470, 1
        %v961 = vsel %vm958, %v959, %v960
        %v962 = vrot.slane %v476, 1
        %v963 = vsel %vm958, %v960, %v962
        %v964 = vrot.slane %v480, 1
        %v965 = vsel %vm958, %v962, %v964
        %v966 = vrot.slane %v486, 1
        %v967 = vsel %vm958, %v964, %v966
        %v968 = vrot.slane %v490, 1
        %v969 = vsel %vm958, %v966, %v968
        %v970 = vrot.slane %v496, 1
        %v971 = vsel %vm958, %v968, %v970
        %v972 = vrot.slane %v500, 1
        %v973 = vsel %vm958, %v970, %v972
        %v974 = vrot.slane %v506, 1
        %v975 = vsel %vm958, %v972, %v974
        %v976 = vrot.slane %v510, 1
        %v977 = vsel %vm958, %v974, %v976
        %v978 = vrot.slane %v516, 1
        %v979 = vsel %vm958, %v976, %v978
        %v980 = vrot.slane %v520, 1
        %v981 = vsel %vm958, %v978, %v980
        %v982 = vrot.slane %v526, 1
        %v983 = vsel %vm958, %v980, %v982
        %984 = vrot.lane.b32.xlu0 %v961, 96
        %v985 = vpop.permute.xlu0 %984
        %986 = vrot.lane.b32.xlu0 %v963, 96
        %v987 = vpop.permute.xlu0 %986
        %988 = vrot.lane.b32.xlu0 %v965, 96
        %v989 = vpop.permute.xlu0 %988
        %990 = vrot.lane.b32.xlu0 %v967, 96
        %v991 = vpop.permute.xlu0 %990
        %992 = vrot.lane.b32.xlu0 %v969, 96
        %v993 = vpop.permute.xlu0 %992
        %994 = vrot.lane.b32.xlu0 %v971, 96
        %v995 = vpop.permute.xlu0 %994
        %996 = vrot.lane.b32.xlu0 %v973, 96
        %v997 = vpop.permute.xlu0 %996
        %998 = vrot.lane.b32.xlu0 %v975, 96
        %v999 = vpop.permute.xlu0 %998
        %1000 = vrot.lane.b32.xlu0 %v977, 96
        %v1001 = vpop.permute.xlu0 %1000
        %1002 = vrot.lane.b32.xlu0 %v979, 96
        %v1003 = vpop.permute.xlu0 %1002
        %1004 = vrot.lane.b32.xlu0 %v981, 96
        %v1005 = vpop.permute.xlu0 %1004
        %1006 = vrot.lane.b32.xlu0 %v983, 96
        %v1007 = vpop.permute.xlu0 %1006
        %1008 = vrot.lane.b32.xlu0 %v982, 96
        %v1009 = vpop.permute.xlu0 %1008
        %v1023 = vadd.f32 %v932, %v985
        %v1024 = vadd.f32 %v933, %v987
        %v1025 = vadd.f32 %v934, %v989
        %v1026 = vadd.f32 %v935, %v991
        %v1027 = vadd.f32 %v936, %v993
        %v1028 = vadd.f32 %v937, %v995
        %v1029 = vadd.f32 %v938, %v997
        %v1030 = vadd.f32 %v939, %v999
        %v1031 = vadd.f32 %v940, %v1001
        %v1032 = vadd.f32 %v941, %v1003
        %v1033 = vadd.f32 %v942, %v1005
        %v1034 = vadd.f32 %v943, %v1007
        %v1035 = vadd.f32 %v944, %v1009
        %1036 = vst.msk [vmem:[#allocation2] sm:$0xff] %vm641, %v1023
        %1037 = vst.msk [vmem:[#allocation2 + $0x8] sm:$0xff] %vm641, %v1024
        %1038 = vst.msk [vmem:[#allocation2 + $0x10] sm:$0xff] %vm641, %v1025
        %1039 = vst.msk [vmem:[#allocation2 + $0x18] sm:$0xff] %vm641, %v1026
        %1040 = vst.msk [vmem:[#allocation2 + $0x20] sm:$0xff] %vm641, %v1027
        %1041 = vst.msk [vmem:[#allocation2 + $0x28] sm:$0xff] %vm641, %v1028
        %1042 = vst.msk [vmem:[#allocation2 + $0x30] sm:$0xff] %vm641, %v1029
        %1043 = vst.msk [vmem:[#allocation2 + $0x38] sm:$0xff] %vm641, %v1030
        %1044 = vst.msk [vmem:[#allocation2 + $0x40] sm:$0xff] %vm641, %v1031
        %1045 = vst.msk [vmem:[#allocation2 + $0x48] sm:$0xff] %vm641, %v1032
        %1046 = vst.msk [vmem:[#allocation2 + $0x50] sm:$0xff] %vm641, %v1033
        %1047 = vst.msk [vmem:[#allocation2 + $0x58] sm:$0xff] %vm641, %v1034
        %1048 = vst.msk [vmem:[#allocation2 + $0x60] sm:$0x7] %vm811, %v1035
        %v1049 = vld [vmem:[#allocation2] sm:$0xff]
        %v1050 = vld [vmem:[#allocation2 + $0x8] sm:$0xff]
        %v1051 = vld [vmem:[#allocation2 + $0x10] sm:$0xff]
        %v1052 = vld [vmem:[#allocation2 + $0x18] sm:$0xff]
        %v1053 = vld [vmem:[#allocation2 + $0x20] sm:$0xff]
        %v1054 = vld [vmem:[#allocation2 + $0x28] sm:$0xff]
        %v1055 = vld [vmem:[#allocation2 + $0x30] sm:$0xff]
        %v1056 = vld [vmem:[#allocation2 + $0x38] sm:$0xff]
        %v1057 = vld [vmem:[#allocation2 + $0x40] sm:$0xff]
        %v1058 = vld [vmem:[#allocation2 + $0x48] sm:$0xff]
        %v1059 = vld [vmem:[#allocation2 + $0x50] sm:$0xff]
        %v1060 = vld [vmem:[#allocation2 + $0x58] sm:$0x7]
        %1061 = vrot.lane.b32.xlu0 %v963, 64
        %v1062 = vpop.permute.xlu0 %1061
        %1063 = vrot.lane.b32.xlu0 %v965, 64
        %v1064 = vpop.permute.xlu0 %1063
        %1065 = vrot.lane.b32.xlu0 %v967, 64
        %v1066 = vpop.permute.xlu0 %1065
        %1067 = vrot.lane.b32.xlu0 %v969, 64
        %v1068 = vpop.permute.xlu0 %1067
        %1069 = vrot.lane.b32.xlu0 %v971, 64
        %v1070 = vpop.permute.xlu0 %1069
        %1071 = vrot.lane.b32.xlu0 %v973, 64
        %v1072 = vpop.permute.xlu0 %1071
        %1073 = vrot.lane.b32.xlu0 %v975, 64
        %v1074 = vpop.permute.xlu0 %1073
        %1075 = vrot.lane.b32.xlu0 %v977, 64
        %v1076 = vpop.permute.xlu0 %1075
        %1077 = vrot.lane.b32.xlu0 %v979, 64
        %v1078 = vpop.permute.xlu0 %1077
        %1079 = vrot.lane.b32.xlu0 %v981, 64
        %v1080 = vpop.permute.xlu0 %1079
        %1081 = vrot.lane.b32.xlu0 %v983, 64
        %v1082 = vpop.permute.xlu0 %1081
        %1083 = vrot.lane.b32.xlu0 %v982, 64
        %v1084 = vpop.permute.xlu0 %1083
        %v1097 = vadd.f32 %v1049, %v1062
        %v1098 = vadd.f32 %v1050, %v1064
        %v1099 = vadd.f32 %v1051, %v1066
        %v1100 = vadd.f32 %v1052, %v1068
        %v1101 = vadd.f32 %v1053, %v1070
        %v1102 = vadd.f32 %v1054, %v1072
        %v1103 = vadd.f32 %v1055, %v1074
        %v1104 = vadd.f32 %v1056, %v1076
        %v1105 = vadd.f32 %v1057, %v1078
        %v1106 = vadd.f32 %v1058, %v1080
        %v1107 = vadd.f32 %v1059, %v1082
        %v1108 = vadd.f32 %v1060, %v1084
        %1109 = vst.msk [vmem:[#allocation2] sm:$0xff] %vm641, %v1097
        %1110 = vst.msk [vmem:[#allocation2 + $0x8] sm:$0xff] %vm641, %v1098
        %1111 = vst.msk [vmem:[#allocation2 + $0x10] sm:$0xff] %vm641, %v1099
        %1112 = vst.msk [vmem:[#allocation2 + $0x18] sm:$0xff] %vm641, %v1100
        %1113 = vst.msk [vmem:[#allocation2 + $0x20] sm:$0xff] %vm641, %v1101
        %1114 = vst.msk [vmem:[#allocation2 + $0x28] sm:$0xff] %vm641, %v1102
        %1115 = vst.msk [vmem:[#allocation2 + $0x30] sm:$0xff] %vm641, %v1103
        %1116 = vst.msk [vmem:[#allocation2 + $0x38] sm:$0xff] %vm641, %v1104
        %1117 = vst.msk [vmem:[#allocation2 + $0x40] sm:$0xff] %vm641, %v1105
        %1118 = vst.msk [vmem:[#allocation2 + $0x48] sm:$0xff] %vm641, %v1106
        %1119 = vst.msk [vmem:[#allocation2 + $0x50] sm:$0xff] %vm641, %v1107
        %1120 = vst.msk [vmem:[#allocation2 + $0x58] sm:$0x7] %vm811, %v1108
        %v1121 = vld [vmem:[#allocation2] sm:$0xff]
        %v1122 = vld [vmem:[#allocation2 + $0x8] sm:$0xff]
        %v1123 = vld [vmem:[#allocation2 + $0x10] sm:$0xff]
        %v1124 = vld [vmem:[#allocation2 + $0x18] sm:$0xff]
        %v1125 = vld [vmem:[#allocation2 + $0x20] sm:$0xff]
        %v1126 = vld [vmem:[#allocation2 + $0x28] sm:$0xff]
        %v1127 = vld [vmem:[#allocation2 + $0x30] sm:$0xff]
        %v1128 = vld [vmem:[#allocation2 + $0x38] sm:$0xff]
        %v1129 = vld [vmem:[#allocation2 + $0x40] sm:$0xff]
        %v1130 = vld [vmem:[#allocation2 + $0x48] sm:$0xff]
        %v1131 = vld [vmem:[#allocation2 + $0x50] sm:$0xff]
        %v1132 = vld [vmem:[#allocation2 + $0x58] sm:$0x3]
        %vm1133 = vcmask 1045504
        %v1134 = vrot.slane %v470, 2
        %v1135 = vrot.slane %v476, 2
        %v1136 = vsel %vm1133, %v1134, %v1135
        %v1137 = vrot.slane %v480, 2
        %v1138 = vsel %vm1133, %v1135, %v1137
        %v1139 = vrot.slane %v486, 2
        %v1140 = vsel %vm1133, %v1137, %v1139
        %v1141 = vrot.slane %v490, 2
        %v1142 = vsel %vm1133, %v1139, %v1141
        %v1143 = vrot.slane %v496, 2
        %v1144 = vsel %vm1133, %v1141, %v1143
        %v1145 = vrot.slane %v500, 2
        %v1146 = vsel %vm1133, %v1143, %v1145
        %v1147 = vrot.slane %v506, 2
        %v1148 = vsel %vm1133, %v1145, %v1147
        %v1149 = vrot.slane %v510, 2
        %v1150 = vsel %vm1133, %v1147, %v1149
        %v1151 = vrot.slane %v516, 2
        %v1152 = vsel %vm1133, %v1149, %v1151
        %v1153 = vrot.slane %v520, 2
        %v1154 = vsel %vm1133, %v1151, %v1153
        %v1155 = vrot.slane %v526, 2
        %v1156 = vsel %vm1133, %v1153, %v1155
        %1157 = vrot.lane.b32.xlu0 %v1136, 32
        %v1158 = vpop.permute.xlu0 %1157
        %1159 = vrot.lane.b32.xlu0 %v1138, 32
        %v1160 = vpop.permute.xlu0 %1159
        %1161 = vrot.lane.b32.xlu0 %v1140, 32
        %v1162 = vpop.permute.xlu0 %1161
        %1163 = vrot.lane.b32.xlu0 %v1142, 32
        %v1164 = vpop.permute.xlu0 %1163
        %1165 = vrot.lane.b32.xlu0 %v1144, 32
        %v1166 = vpop.permute.xlu0 %1165
        %1167 = vrot.lane.b32.xlu0 %v1146, 32
        %v1168 = vpop.permute.xlu0 %1167
        %1169 = vrot.lane.b32.xlu0 %v1148, 32
        %v1170 = vpop.permute.xlu0 %1169
        %1171 = vrot.lane.b32.xlu0 %v1150, 32
        %v1172 = vpop.permute.xlu0 %1171
        %1173 = vrot.lane.b32.xlu0 %v1152, 32
        %v1174 = vpop.permute.xlu0 %1173
        %1175 = vrot.lane.b32.xlu0 %v1154, 32
        %v1176 = vpop.permute.xlu0 %1175
        %1177 = vrot.lane.b32.xlu0 %v1156, 32
        %v1178 = vpop.permute.xlu0 %1177
        %1179 = vrot.lane.b32.xlu0 %v1155, 32
        %v1180 = vpop.permute.xlu0 %1179
        %v1193 = vadd.f32 %v1121, %v1158
        %v1194 = vadd.f32 %v1122, %v1160
        %v1195 = vadd.f32 %v1123, %v1162
        %v1196 = vadd.f32 %v1124, %v1164
        %v1197 = vadd.f32 %v1125, %v1166
        %v1198 = vadd.f32 %v1126, %v1168
        %v1199 = vadd.f32 %v1127, %v1170
        %v1200 = vadd.f32 %v1128, %v1172
        %v1201 = vadd.f32 %v1129, %v1174
        %v1202 = vadd.f32 %v1130, %v1176
        %v1203 = vadd.f32 %v1131, %v1178
        %v1204 = vadd.f32 %v1132, %v1180
        %1205 = vst.msk [vmem:[#allocation2] sm:$0xff] %vm641, %v1193
        %1206 = vst.msk [vmem:[#allocation2 + $0x8] sm:$0xff] %vm641, %v1194
        %1207 = vst.msk [vmem:[#allocation2 + $0x10] sm:$0xff] %vm641, %v1195
        %1208 = vst.msk [vmem:[#allocation2 + $0x18] sm:$0xff] %vm641, %v1196
        %1209 = vst.msk [vmem:[#allocation2 + $0x20] sm:$0xff] %vm641, %v1197
        %1210 = vst.msk [vmem:[#allocation2 + $0x28] sm:$0xff] %vm641, %v1198
        %1211 = vst.msk [vmem:[#allocation2 + $0x30] sm:$0xff] %vm641, %v1199
        %1212 = vst.msk [vmem:[#allocation2 + $0x38] sm:$0xff] %vm641, %v1200
        %1213 = vst.msk [vmem:[#allocation2 + $0x40] sm:$0xff] %vm641, %v1201
        %1214 = vst.msk [vmem:[#allocation2 + $0x48] sm:$0xff] %vm641, %v1202
        %1215 = vst.msk [vmem:[#allocation2 + $0x50] sm:$0xff] %vm641, %v1203
        %1216 = vst.msk [vmem:[#allocation2 + $0x58] sm:$0x3] %vm738, %v1204
        %v1217 = vld [vmem:[#allocation2] sm:$0xff]
        %v1218 = vld [vmem:[#allocation2 + $0x8] sm:$0xff]
        %v1219 = vld [vmem:[#allocation2 + $0x10] sm:$0xff]
        %v1220 = vld [vmem:[#allocation2 + $0x18] sm:$0xff]
        %v1221 = vld [vmem:[#allocation2 + $0x20] sm:$0xff]
        %v1222 = vld [vmem:[#allocation2 + $0x28] sm:$0xff]
        %v1223 = vld [vmem:[#allocation2 + $0x30] sm:$0xff]
        %v1224 = vld [vmem:[#allocation2 + $0x38] sm:$0xff]
        %v1225 = vld [vmem:[#allocation2 + $0x40] sm:$0xff]
        %v1226 = vld [vmem:[#allocation2 + $0x48] sm:$0xff]
        %v1227 = vld [vmem:[#allocation2 + $0x50] sm:$0xff]
        %v1228 = vld [vmem:[#allocation2 + $0x58] sm:$0x1]
        %vm1241 = vcmask 1044480
        %v1242 = vrot.slane %v567, 3
        %v1243 = vrot.slane %v572, 3
        %v1244 = vsel %vm1241, %v1242, %v1243
        %v1245 = vrot.slane %v575, 3
        %v1246 = vsel %vm1241, %v1243, %v1245
        %v1247 = vrot.slane %v580, 3
        %v1248 = vsel %vm1241, %v1245, %v1247
        %v1249 = vrot.slane %v583, 3
        %v1250 = vsel %vm1241, %v1247, %v1249
        %v1251 = vrot.slane %v588, 3
        %v1252 = vsel %vm1241, %v1249, %v1251
        %v1253 = vrot.slane %v591, 3
        %v1254 = vsel %vm1241, %v1251, %v1253
        %v1255 = vrot.slane %v596, 3
        %v1256 = vsel %vm1241, %v1253, %v1255
        %v1257 = vrot.slane %v599, 3
        %v1258 = vsel %vm1241, %v1255, %v1257
        %v1259 = vrot.slane %v604, 3
        %v1260 = vsel %vm1241, %v1257, %v1259
        %v1261 = vrot.slane %v607, 3
        %v1262 = vsel %vm1241, %v1259, %v1261
        %v1263 = vrot.slane %v612, 3
        %v1264 = vsel %vm1241, %v1261, %v1263
        %v1277 = vadd.f32 %v1217, %v1244
        %v1278 = vadd.f32 %v1218, %v1246
        %v1279 = vadd.f32 %v1219, %v1248
        %v1280 = vadd.f32 %v1220, %v1250
        %v1281 = vadd.f32 %v1221, %v1252
        %v1282 = vadd.f32 %v1222, %v1254
        %v1283 = vadd.f32 %v1223, %v1256
        %v1284 = vadd.f32 %v1224, %v1258
        %v1285 = vadd.f32 %v1225, %v1260
        %v1286 = vadd.f32 %v1226, %v1262
        %v1287 = vadd.f32 %v1227, %v1264
        %v1288 = vadd.f32 %v1228, %v1263
        %1289 = vst.msk [vmem:[#allocation2] sm:$0xff] %vm641, %v1277
        %1290 = vst.msk [vmem:[#allocation2 + $0x8] sm:$0xff] %vm641, %v1278
        %1291 = vst.msk [vmem:[#allocation2 + $0x10] sm:$0xff] %vm641, %v1279
        %1292 = vst.msk [vmem:[#allocation2 + $0x18] sm:$0xff] %vm641, %v1280
        %1293 = vst.msk [vmem:[#allocation2 + $0x20] sm:$0xff] %vm641, %v1281
        %1294 = vst.msk [vmem:[#allocation2 + $0x28] sm:$0xff] %vm641, %v1282
        %1295 = vst.msk [vmem:[#allocation2 + $0x30] sm:$0xff] %vm641, %v1283
        %1296 = vst.msk [vmem:[#allocation2 + $0x38] sm:$0xff] %vm641, %v1284
        %1297 = vst.msk [vmem:[#allocation2 + $0x40] sm:$0xff] %vm641, %v1285
        %1298 = vst.msk [vmem:[#allocation2 + $0x48] sm:$0xff] %vm641, %v1286
        %1299 = vst.msk [vmem:[#allocation2 + $0x50] sm:$0xff] %vm641, %v1287
        %1300 = vst.msk [vmem:[#allocation2 + $0x58] sm:$0x1] %vm653, %v1288
      $region48: #{seg_head_forward.8} parent=39 // pred_fallthru
        _
      %p1301 = scmp.eq.s32.totalorder %s23, 2
      // Predicated region
      $region49: #{seg_head_forward.8} parent=39 // pred_check
        %p1302 = pneg %p1301
      $region50: #{seg_head_forward.8} parent=39 // pred_check_branch
        %1304 = sbr.rel (%p1302) target = $region52
      $region51: #{seg_head_forward.8} parent=39 // pred_region
        %v1305 = vld [vmem:[#allocation2] sm:$0xff]
        %v1306 = vld [vmem:[#allocation2 + $0x8] sm:$0xff]
        %v1307 = vld [vmem:[#allocation2 + $0x10] sm:$0xff]
        %v1308 = vld [vmem:[#allocation2 + $0x18] sm:$0xff]
        %v1309 = vld [vmem:[#allocation2 + $0x20] sm:$0xff]
        %v1310 = vld [vmem:[#allocation2 + $0x28] sm:$0xff]
        %v1311 = vld [vmem:[#allocation2 + $0x30] sm:$0xff]
        %v1312 = vld [vmem:[#allocation2 + $0x38] sm:$0xff]
        %v1313 = vld [vmem:[#allocation2 + $0x40] sm:$0xff]
        %v1314 = vld [vmem:[#allocation2 + $0x48] sm:$0xff]
        %v1315 = vld [vmem:[#allocation2 + $0x50] sm:$0xff]
        %v1316 = vld [vmem:[#allocation2 + $0x58] sm:$0xff]
        %v1317 = vld [vmem:[#allocation2 + $0x60] sm:$0xf]
        %v1318 = vld [vmem:[%s2] sm:$0x1]
        %v1320 = vlaneseq
        %v1321 = vshrl.u32 %v1320, 7
        %v1322 = vsub.s32 0, %v1321
        %v1323 = vrot.slane %v1318, %v1322
        %v1325 = vmul.f32 %v1305, %v1323
        %v1326 = vmul.f32 %v1306, %v1323
        %v1327 = vmul.f32 %v1307, %v1323
        %v1328 = vmul.f32 %v1308, %v1323
        %v1329 = vmul.f32 %v1309, %v1323
        %v1330 = vmul.f32 %v1310, %v1323
        %v1331 = vmul.f32 %v1311, %v1323
        %v1332 = vmul.f32 %v1312, %v1323
        %v1333 = vmul.f32 %v1313, %v1323
        %v1334 = vmul.f32 %v1314, %v1323
        %v1335 = vmul.f32 %v1315, %v1323
        %v1336 = vmul.f32 %v1316, %v1323
        %v1337 = vmul.f32 %v1317, %v1323
        %v1338 = vld [vmem:[%s3] sm:$0x1]
        %v1340 = vlaneseq
        %v1341 = vshrl.u32 %v1340, 7
        %v1342 = vsub.s32 0, %v1341
        %v1343 = vrot.slane %v1338, %v1342
        %v1345 = vadd.f32 %v1325, %v1343
        %v1346 = vadd.f32 %v1326, %v1343
        %v1347 = vadd.f32 %v1327, %v1343
        %v1348 = vadd.f32 %v1328, %v1343
        %v1349 = vadd.f32 %v1329, %v1343
        %v1350 = vadd.f32 %v1330, %v1343
        %v1351 = vadd.f32 %v1331, %v1343
        %v1352 = vadd.f32 %v1332, %v1343
        %v1353 = vadd.f32 %v1333, %v1343
        %v1354 = vadd.f32 %v1334, %v1343
        %v1355 = vadd.f32 %v1335, %v1343
        %v1356 = vadd.f32 %v1336, %v1343
        %v1357 = vadd.f32 %v1337, %v1343
        %vm1358 = vcmp.gt.f32.partialorder %v1345, 0.0
        %vm1359 = vcmp.gt.f32.partialorder %v1346, 0.0
        %vm1360 = vcmp.gt.f32.partialorder %v1347, 0.0
        %vm1361 = vcmp.gt.f32.partialorder %v1348, 0.0
        %vm1362 = vcmp.gt.f32.partialorder %v1349, 0.0
        %vm1363 = vcmp.gt.f32.partialorder %v1350, 0.0
        %vm1364 = vcmp.gt.f32.partialorder %v1351, 0.0
        %vm1365 = vcmp.gt.f32.partialorder %v1352, 0.0
        %vm1366 = vcmp.gt.f32.partialorder %v1353, 0.0
        %vm1367 = vcmp.gt.f32.partialorder %v1354, 0.0
        %vm1368 = vcmp.gt.f32.partialorder %v1355, 0.0
        %vm1369 = vcmp.gt.f32.partialorder %v1356, 0.0
        %vm1370 = vcmp.gt.f32.partialorder %v1357, 0.0
        %v1371 = vmul.f32 %v1345, 1e-05
        %v1372 = vmul.f32 %v1346, 1e-05
        %v1373 = vmul.f32 %v1347, 1e-05
        %v1374 = vmul.f32 %v1348, 1e-05
        %v1375 = vmul.f32 %v1349, 1e-05
        %v1376 = vmul.f32 %v1350, 1e-05
        %v1377 = vmul.f32 %v1351, 1e-05
        %v1378 = vmul.f32 %v1352, 1e-05
        %v1379 = vmul.f32 %v1353, 1e-05
        %v1380 = vmul.f32 %v1354, 1e-05
        %v1381 = vmul.f32 %v1355, 1e-05
        %v1382 = vmul.f32 %v1356, 1e-05
        %v1383 = vmul.f32 %v1357, 1e-05
        %v1384 = vsel %vm1358, %v1345, %v1371
        %v1385 = vsel %vm1359, %v1346, %v1372
        %v1386 = vsel %vm1360, %v1347, %v1373
        %v1387 = vsel %vm1361, %v1348, %v1374
        %v1388 = vsel %vm1362, %v1349, %v1375
        %v1389 = vsel %vm1363, %v1350, %v1376
        %v1390 = vsel %vm1364, %v1351, %v1377
        %v1391 = vsel %vm1365, %v1352, %v1378
        %v1392 = vsel %vm1366, %v1353, %v1379
        %v1393 = vsel %vm1367, %v1354, %v1380
        %v1394 = vsel %vm1368, %v1355, %v1381
        %v1395 = vsel %vm1369, %v1356, %v1382
        %v1396 = vsel %vm1370, %v1357, %v1383
        %v1397 = vld [vmem:[%s4] sm:$0xff]
        %v1398 = vld [vmem:[%s4 + $0x8] sm:$0xff]
        %v1399 = vld [vmem:[%s4 + $0x10] sm:$0xff]
        %v1400 = vld [vmem:[%s4 + $0x18] sm:$0xff]
        %v1401 = vld [vmem:[%s4 + $0x20] sm:$0xff]
        %v1402 = vld [vmem:[%s4 + $0x28] sm:$0xff]
        %v1403 = vld [vmem:[%s4 + $0x30] sm:$0xff]
        %v1404 = vld [vmem:[%s4 + $0x38] sm:$0xff]
        %v1405 = vld [vmem:[%s4 + $0x40] sm:$0xff]
        %v1406 = vld [vmem:[%s4 + $0x48] sm:$0xff]
        %v1407 = vld [vmem:[%s4 + $0x50] sm:$0xff]
        %v1408 = vld [vmem:[%s4 + $0x58] sm:$0xff]
        %v1409 = vld [vmem:[%s4 + $0x60] sm:$0xf]
        %1411 = vset.pattern.permute.xlu0 0
        %1412 = vperm.xlu0 %1411, %v1397
        %v1413 = vpop.permute.xlu0 %1412
        %1416 = vset.pattern.permute.xlu0 0
        %1417 = vperm.xlu0 %1416, %v1398
        %v1418 = vpop.permute.xlu0 %1417
        %1421 = vset.pattern.permute.xlu0 0
        %1422 = vperm.xlu0 %1421, %v1399
        %v1423 = vpop.permute.xlu0 %1422
        %1426 = vset.pattern.permute.xlu0 0
        %1427 = vperm.xlu0 %1426, %v1400
        %v1428 = vpop.permute.xlu0 %1427
        %1431 = vset.pattern.permute.xlu0 0
        %1432 = vperm.xlu0 %1431, %v1401
        %v1433 = vpop.permute.xlu0 %1432
        %1436 = vset.pattern.permute.xlu0 0
        %1437 = vperm.xlu0 %1436, %v1402
        %v1438 = vpop.permute.xlu0 %1437
        %1441 = vset.pattern.permute.xlu0 0
        %1442 = vperm.xlu0 %1441, %v1403
        %v1443 = vpop.permute.xlu0 %1442
        %1446 = vset.pattern.permute.xlu0 0
        %1447 = vperm.xlu0 %1446, %v1404
        %v1448 = vpop.permute.xlu0 %1447
        %1451 = vset.pattern.permute.xlu0 0
        %1452 = vperm.xlu0 %1451, %v1405
        %v1453 = vpop.permute.xlu0 %1452
        %1456 = vset.pattern.permute.xlu0 0
        %1457 = vperm.xlu0 %1456, %v1406
        %v1458 = vpop.permute.xlu0 %1457
        %1461 = vset.pattern.permute.xlu0 0
        %1462 = vperm.xlu0 %1461, %v1407
        %v1463 = vpop.permute.xlu0 %1462
        %1466 = vset.pattern.permute.xlu0 0
        %1467 = vperm.xlu0 %1466, %v1408
        %v1468 = vpop.permute.xlu0 %1467
        %1471 = vset.pattern.permute.xlu0 0
        %1472 = vperm.xlu0 %1471, %v1409
        %v1473 = vpop.permute.xlu0 %1472
        %v1475 = vmul.f32 %v1384, %v1413
        %v1476 = vmul.f32 %v1385, %v1418
        %v1477 = vmul.f32 %v1386, %v1423
        %v1478 = vmul.f32 %v1387, %v1428
        %v1479 = vmul.f32 %v1388, %v1433
        %v1480 = vmul.f32 %v1389, %v1438
        %v1481 = vmul.f32 %v1390, %v1443
        %v1482 = vmul.f32 %v1391, %v1448
        %v1483 = vmul.f32 %v1392, %v1453
        %v1484 = vmul.f32 %v1393, %v1458
        %v1485 = vmul.f32 %v1394, %v1463
        %v1486 = vmul.f32 %v1395, %v1468
        %v1487 = vmul.f32 %v1396, %v1473
        %v1488 = vpack.c.bf16 %v1476, %v1475
        %v1489 = vpack.c.bf16 %v1478, %v1477
        %v1490 = vpack.c.bf16 %v1480, %v1479
        %v1491 = vpack.c.bf16 %v1482, %v1481
        %v1492 = vpack.c.bf16 %v1484, %v1483
        %v1493 = vpack.c.bf16 %v1486, %v1485
        %v1494 = vpack.c.bf16 %v1487, %v1487
        %v1502 = vunpack.c.l.b16 %v1488
        %v1503 = vunpack.c.h.b16 %v1488
        %v1504 = vunpack.c.l.b16 %v1489
        %v1505 = vunpack.c.h.b16 %v1489
        %v1506 = vunpack.c.l.b16 %v1490
        %v1507 = vunpack.c.h.b16 %v1490
        %v1508 = vunpack.c.l.b16 %v1491
        %v1509 = vunpack.c.h.b16 %v1491
        %v1510 = vunpack.c.l.b16 %v1492
        %v1511 = vunpack.c.h.b16 %v1492
        %v1512 = vunpack.c.l.b16 %v1493
        %v1513 = vunpack.c.h.b16 %v1493
        %v1514 = vunpack.c.l.b16 %v1494
        %v1515 = vpack.c.b16 %v1502, %v1502
        %v1516 = vpack.c.b16 %v1503, %v1503
        %v1517 = vpack.c.b16 %v1504, %v1504
        %v1518 = vpack.c.b16 %v1505, %v1505
        %v1519 = vpack.c.b16 %v1506, %v1506
        %v1520 = vpack.c.b16 %v1507, %v1507
        %v1521 = vpack.c.b16 %v1508, %v1508
        %v1522 = vpack.c.b16 %v1509, %v1509
        %v1523 = vpack.c.b16 %v1510, %v1510
        %v1524 = vpack.c.b16 %v1511, %v1511
        %v1525 = vpack.c.b16 %v1512, %v1512
        %v1526 = vpack.c.b16 %v1513, %v1513
        %v1527 = vpack.c.b16 %v1514, %v1514
        %vm1541 = vcmask 257024
        %1542 = vst.msk [vmem:[%s309] sm:$0xf] %vm1541, %v1515
        %1543 = vst.msk [vmem:[%s309 + $0x4] sm:$0xf] %vm1541, %v1516
        %1544 = vst.msk [vmem:[%s309 + $0x8] sm:$0xf] %vm1541, %v1517
        %1545 = vst.msk [vmem:[%s309 + $0xc] sm:$0xf] %vm1541, %v1518
        %1546 = vst.msk [vmem:[%s309 + $0x10] sm:$0xf] %vm1541, %v1519
        %1547 = vst.msk [vmem:[%s309 + $0x14] sm:$0xf] %vm1541, %v1520
        %1548 = vst.msk [vmem:[%s309 + $0x18] sm:$0xf] %vm1541, %v1521
        %1549 = vst.msk [vmem:[%s309 + $0x1c] sm:$0xf] %vm1541, %v1522
        %1550 = vst.msk [vmem:[%s309 + $0x20] sm:$0xf] %vm1541, %v1523
        %1551 = vst.msk [vmem:[%s309 + $0x24] sm:$0xf] %vm1541, %v1524
        %1552 = vst.msk [vmem:[%s309 + $0x28] sm:$0xf] %vm1541, %v1525
        %1553 = vst.msk [vmem:[%s309 + $0x2c] sm:$0xf] %vm1541, %v1526
        %vm1554 = vcmask 254976
        %1555 = vst.msk [vmem:[%s309 + $0x30] sm:$0x3] %vm1554, %v1527
      $region52: #{seg_head_forward.8} parent=39 // pred_fallthru
        _
      %p1556 = scmp.lt.s32.totalorder %s21, 1
      %s1557 = scalar_select %p1556, %s21, 1
      %p1558 = scmp.lt.s32.totalorder %s22, 7
      %s1559 = scalar_select %p1558, %s22, 7
      %s1560 = smul.addr %s1559, 13
      %s1561 = smul.addr %s1557, 104
      %s1562 = sadd.s32 %s1560, %s1561
      %s1563 = smul.addr %s1562, 4
      %s1564 = scalar_lea.vmem %s5, %s1563
      // Predicated region
      $region53: #{seg_head_forward.8} parent=39 // pred_check
        %p1565 = pneg %p179
      $region54: #{seg_head_forward.8} parent=39 // pred_check_branch
        %1567 = sbr.rel (%p1565) target = $region56
      $region55: #{seg_head_forward.8} parent=39 // pred_region
        _
      $region56: #{seg_head_forward.8} parent=39 // pred_fallthru
        _
    $region40: #{seg_head_forward.8} parent=5 // pred_fallthru
      _
    %p1568 = scmp.le.s32.totalorder 2, %s11
    // Predicated region
    $region57: #{seg_head_forward.8} parent=5 // pred_check
      %p1569 = pneg %p1568
    $region58: #{seg_head_forward.8} parent=5 // pred_check_branch
      %1571 = sbr.rel (%p1569) target = $region60
    $region59: #{seg_head_forward.8} parent=5 // pred_region
      %s1572 = ssub.s32 %s11, 2
      // Predicated region
      $region61: #{seg_head_forward.8} parent=59 // pred_check
        %p1573 = pneg %p185
      $region62: #{seg_head_forward.8} parent=59 // pred_check_branch
        %1575 = sbr.rel (%p1573) target = $region64
      $region63: #{seg_head_forward.8} parent=59 // pred_region
        %p1576 = scmp.lt.s32.totalorder %s24, 1
        %s1577 = scalar_select %p1576, %s24, 1
        %p1578 = scmp.lt.s32.totalorder %s25, 7
        %s1579 = scalar_select %p1578, %s25, 7
        %s1580 = smul.addr %s1579, 13
        %s1581 = smul.addr %s1577, 104
        %s1582 = sadd.s32 %s1580, %s1581
        %s1583 = smul.addr %s1582, 4
        %s1584 = scalar_lea.vmem %s5, %s1583
      $region64: #{seg_head_forward.8} parent=59 // pred_fallthru
        _
    $region60: #{seg_head_forward.8} parent=5 // pred_fallthru
      _
  $region6: #{seg_head_forward.8} parent=0 // loop_footer
    %s15 = sadd.s32 1, %s11
  $region7: #{seg_head_forward.8} parent=0 // loop_footer_branch
    %10 = sbr.rel target = $region3
  $region8: #{seg_head_forward.8} parent=0 // loop_exit
    _

// kernel: seg_head_forward.9
$region0: #{seg_head_forward.9}
  #allocation0 [shape = 'u32[]', space=smem, size = 0x4, offset = 0x4, fixed_abs, tag = 'smem constant byte address 0x4 - core index']
  #allocation1 [shape = 'u32[144,128]{1,0:T(1,128)}', space=vmem, size = 0x12000, scoped, tag = 'internal scratch']
  #allocation2 [shape = 'f32[100,32]{1,0:T(8,128)}', space=vmem, size = 0xd000, scoped, tag = 'scratch operand']
  %s0 = inlined_call_operand.vmem [shape: bf16[2,8,100,32], index: 0, kind: input, shape index: {}]
  %s1 = inlined_call_operand.vmem [shape: bf16[3,32,288], index: 1, kind: input, shape index: {}]
  %s2 = inlined_call_operand.vmem [shape: f32[1,32], index: 2, kind: input, shape index: {}]
  %s3 = inlined_call_operand.vmem [shape: f32[1,32], index: 3, kind: input, shape index: {}]
  %s4 = inlined_call_operand.vmem [shape: f32[100,1], index: 4, kind: input, shape index: {}]
  %s5 = inlined_call_operand.vmem [shape: bf16[2,8,100,32], index: 5, kind: output, shape index: {}]
  %s6 = sld [smem:[#allocation0]]
  $region65: #{seg_head_forward.9} parent=0
    _
  %s8 = ssub.s32 1, %s6
  %s9 = scalar_select 0, %s8, %s6
  loop: start=0, step=1, limit=50
  $region2: #{seg_head_forward.9} parent=0 // loop_pre_header
    _
  $region3: #{seg_head_forward.9} parent=0 // loop_header
    %s11 = sphi 0, %s15
    %p12 = scmp.ge.s32.totalorder %s11, 50
    %s18 = sphi 0, %s37
    %s19 = sphi 0, %s33
    %s20 = sphi 0, %s29
    %s21 = sphi 0, %s18
    %s22 = sphi 0, %s19
    %s23 = sphi 0, %s20
    %s24 = sphi 0, %s21
    %s25 = sphi 0, %s22
    %s26 = sphi 0, %s23
    %s54 = sphi 0, %s56
    %s57 = sphi 0, %s54
    %s58 = sphi 0, %s57
    %s74 = sphi 0, %s58
    %s78 = sphi 0, %s78
    %s80 = sphi 0, %s78
    %s81 = sphi 0, %s80
    %s95 = sphi 0, %s81
    %s99 = sphi 0, %s99
    %s101 = sphi 0, %s99
    %s102 = sphi 0, %s101
    %s116 = sphi 0, %s102
    %s120 = sphi 0, %s120
    %s122 = sphi 0, %s120
    %s123 = sphi 0, %s122
    %s137 = sphi 0, %s123
    %s141 = sphi 0, %s141
    %s143 = sphi 0, %s141
    %s144 = sphi 0, %s143
    %s158 = sphi 0, %s144
    %s166 = sphi 0, %s168
    %s169 = sphi 0, %s166
    %s170 = sphi 0, %s169
    %s186 = sphi 0, %s170
  $region4: #{seg_head_forward.9} parent=0 // loop_header_branch
    %14 = sbr.rel (%p12) target = $region8
  $region5: #{seg_head_forward.9} parent=0 // loop_body
    %s16 = ssub.s32 %s11, 1
    %s17 = ssub.s32 %s11, 2
    %s27 = sadd.s32 1, %s20
    %p28 = scmp.ge.s32.totalorder %s27, 3
    %s29 = scalar_select %p28, 0, %s27
    %s30 = sadd.s32 1, %s19
    %s31 = scalar_select %p28, %s30, %s19
    %p32 = scmp.ge.s32.totalorder %s31, 8
    %s33 = scalar_select %p32, 0, %s31
    %s34 = sadd.s32 1, %s18
    %s35 = scalar_select %p32, %s34, %s18
    %p36 = scmp.ge.s32.totalorder %s35, 2
    %s37 = scalar_select %p36, 0, %s35
    %s38 = sadd.s32 %s19, %s20
    %s39 = ssub.s32 %s38, 1
    %p40 = scmp.gt.s32.totalorder %s39, 0
    %s41 = scalar_select %p40, %s39, 0
    %p42 = scmp.lt.s32.totalorder %s41, 7
    %s43 = scalar_select %p42, %s41, 7
    %s44 = sadd.s32 %s33, %s29
    %s45 = ssub.s32 %s44, 1
    %p46 = scmp.gt.s32.totalorder %s45, 0
    %s47 = scalar_select %p46, %s45, 0
    %p48 = scmp.lt.s32.totalorder %s47, 7
    %s49 = scalar_select %p48, %s47, 7
    %s50 = ssub.s32 %s18, %s37
    %s51 = ssub.s32 %s43, %s49
    %s52 = sor.u32 %s50, %s51
    %p53 = scmp.eq.s32.totalorder %s52, 0
    %s55 = sadd.s32 %s54, 1
    %s56 = scalar_select %p53, %s54, %s55
    %p59 = pneg %p53
    %p60 = scmp.eq.s32.totalorder %s11, 47
    %p61 = por %p59, %p60
    %p62 = scmp.ne.s32.totalorder %s54, %s57
    %p63 = scmp.eq.s32.totalorder %s11, 0
    %p64 = por %p62, %p63
    %p65 = scmp.ne.s32.totalorder %s54, %s57
    %p66 = scmp.eq.s32.totalorder %s16, 47
    %p67 = por %p65, %p66
    %p68 = scmp.ne.s32.totalorder %s57, %s58
    %p69 = scmp.eq.s32.totalorder %s16, 0
    %p70 = por %p68, %p69
    %p71 = scmp.ne.s32.totalorder %s57, %s58
    %p72 = scmp.eq.s32.totalorder %s17, 47
    %p73 = por %p71, %p72
    %p75 = scmp.ne.s32.totalorder %s58, %s74
    %p76 = scmp.eq.s32.totalorder %s17, 0
    %p77 = por %p75, %p76
    %s79 = sadd.s32 %s78, 1
    %p82 = scmp.eq.s32.totalorder %s11, 47
    %p83 = scmp.ne.s32.totalorder %s78, %s80
    %p84 = scmp.eq.s32.totalorder %s11, 0
    %p85 = por %p83, %p84
    %p86 = scmp.ne.s32.totalorder %s78, %s80
    %p87 = scmp.eq.s32.totalorder %s16, 47
    %p88 = por %p86, %p87
    %p89 = scmp.ne.s32.totalorder %s80, %s81
    %p90 = scmp.eq.s32.totalorder %s16, 0
    %p91 = por %p89, %p90
    %p92 = scmp.ne.s32.totalorder %s80, %s81
    %p93 = scmp.eq.s32.totalorder %s17, 47
    %p94 = por %p92, %p93
    %p96 = scmp.ne.s32.totalorder %s81, %s95
    %p97 = scmp.eq.s32.totalorder %s17, 0
    %p98 = por %p96, %p97
    %s100 = sadd.s32 %s99, 1
    %p103 = scmp.eq.s32.totalorder %s11, 47
    %p104 = scmp.ne.s32.totalorder %s99, %s101
    %p105 = scmp.eq.s32.totalorder %s11, 0
    %p106 = por %p104, %p105
    %p107 = scmp.ne.s32.totalorder %s99, %s101
    %p108 = scmp.eq.s32.totalorder %s16, 47
    %p109 = por %p107, %p108
    %p110 = scmp.ne.s32.totalorder %s101, %s102
    %p111 = scmp.eq.s32.totalorder %s16, 0
    %p112 = por %p110, %p111
    %p113 = scmp.ne.s32.totalorder %s101, %s102
    %p114 = scmp.eq.s32.totalorder %s17, 47
    %p115 = por %p113, %p114
    %p117 = scmp.ne.s32.totalorder %s102, %s116
    %p118 = scmp.eq.s32.totalorder %s17, 0
    %p119 = por %p117, %p118
    %s121 = sadd.s32 %s120, 1
    %p124 = scmp.eq.s32.totalorder %s11, 47
    %p125 = scmp.ne.s32.totalorder %s120, %s122
    %p126 = scmp.eq.s32.totalorder %s11, 0
    %p127 = por %p125, %p126
    %p128 = scmp.ne.s32.totalorder %s120, %s122
    %p129 = scmp.eq.s32.totalorder %s16, 47
    %p130 = por %p128, %p129
    %p131 = scmp.ne.s32.totalorder %s122, %s123
    %p132 = scmp.eq.s32.totalorder %s16, 0
    %p133 = por %p131, %p132
    %p134 = scmp.ne.s32.totalorder %s122, %s123
    %p135 = scmp.eq.s32.totalorder %s17, 47
    %p136 = por %p134, %p135
    %p138 = scmp.ne.s32.totalorder %s123, %s137
    %p139 = scmp.eq.s32.totalorder %s17, 0
    %p140 = por %p138, %p139
    %s142 = sadd.s32 %s141, 1
    %p145 = scmp.eq.s32.totalorder %s11, 47
    %p146 = scmp.ne.s32.totalorder %s141, %s143
    %p147 = scmp.eq.s32.totalorder %s11, 0
    %p148 = por %p146, %p147
    %p149 = scmp.ne.s32.totalorder %s141, %s143
    %p150 = scmp.eq.s32.totalorder %s16, 47
    %p151 = por %p149, %p150
    %p152 = scmp.ne.s32.totalorder %s143, %s144
    %p153 = scmp.eq.s32.totalorder %s16, 0
    %p154 = por %p152, %p153
    %p155 = scmp.ne.s32.totalorder %s143, %s144
    %p156 = scmp.eq.s32.totalorder %s17, 47
    %p157 = por %p155, %p156
    %p159 = scmp.ne.s32.totalorder %s144, %s158
    %p160 = scmp.eq.s32.totalorder %s17, 0
    %p161 = por %p159, %p160
    %s162 = ssub.s32 %s18, %s37
    %s163 = ssub.s32 %s19, %s33
    %s164 = sor.u32 %s162, %s163
    %p165 = scmp.eq.s32.totalorder %s164, 0
    %s167 = sadd.s32 %s166, 1
    %s168 = scalar_select %p165, %s166, %s167
    %p171 = pneg %p165
    %p172 = scmp.eq.s32.totalorder %s11, 47
    %p173 = por %p171, %p172
    %p174 = scmp.ne.s32.totalorder %s166, %s169
    %p175 = scmp.eq.s32.totalorder %s11, 0
    %p176 = por %p174, %p175
    %p177 = scmp.ne.s32.totalorder %s166, %s169
    %p178 = scmp.eq.s32.totalorder %s16, 47
    %p179 = por %p177, %p178
    %p180 = scmp.ne.s32.totalorder %s169, %s170
    %p181 = scmp.eq.s32.totalorder %s16, 0
    %p182 = por %p180, %p181
    %p183 = scmp.ne.s32.totalorder %s169, %s170
    %p184 = scmp.eq.s32.totalorder %s17, 47
    %p185 = por %p183, %p184
    %p187 = scmp.ne.s32.totalorder %s170, %s186
    %p188 = scmp.eq.s32.totalorder %s17, 0
    %p189 = por %p187, %p188
    %p190 = scmp.le.s32.totalorder 1, %s11
    %p191 = scmp.lt.s32.totalorder %s11, 49
    %p192 = pnand %p190, %p191
    %p193 = pneg %p192
    // Predicated region
    $region9: #{seg_head_forward.9} parent=5 // pred_check
      _
    $region10: #{seg_head_forward.9} parent=5 // pred_check_branch
      %195 = sbr.rel (%p192) target = $region12
    $region11: #{seg_head_forward.9} parent=5 // pred_region
      %s196 = ssub.s32 %s11, 1
      // Predicated region
      $region13: #{seg_head_forward.9} parent=11 // pred_check
        %p197 = pneg %p91
      $region14: #{seg_head_forward.9} parent=11 // pred_check_branch
        %199 = sbr.rel (%p197) target = $region16
      $region15: #{seg_head_forward.9} parent=11 // pred_region
        _
      $region16: #{seg_head_forward.9} parent=11 // pred_fallthru
        _
      // Predicated region
      $region17: #{seg_head_forward.9} parent=11 // pred_check
        %p200 = pneg %p112
      $region18: #{seg_head_forward.9} parent=11 // pred_check_branch
        %202 = sbr.rel (%p200) target = $region20
      $region19: #{seg_head_forward.9} parent=11 // pred_region
        _
      $region20: #{seg_head_forward.9} parent=11 // pred_fallthru
        _
      // Predicated region
      $region21: #{seg_head_forward.9} parent=11 // pred_check
        %p203 = pneg %p133
      $region22: #{seg_head_forward.9} parent=11 // pred_check_branch
        %205 = sbr.rel (%p203) target = $region24
      $region23: #{seg_head_forward.9} parent=11 // pred_region
        _
      $region24: #{seg_head_forward.9} parent=11 // pred_fallthru
        _
      // Predicated region
      $region25: #{seg_head_forward.9} parent=11 // pred_check
        %p206 = pneg %p154
      $region26: #{seg_head_forward.9} parent=11 // pred_check_branch
        %208 = sbr.rel (%p206) target = $region28
      $region27: #{seg_head_forward.9} parent=11 // pred_region
        _
      $region28: #{seg_head_forward.9} parent=11 // pred_fallthru
        _
    $region12: #{seg_head_forward.9} parent=5 // pred_fallthru
      _
    %p209 = scmp.lt.s32.totalorder %s11, 48
    // Predicated region
    $region29: #{seg_head_forward.9} parent=5 // pred_check
      %p210 = pneg %p209
    $region30: #{seg_head_forward.9} parent=5 // pred_check_branch
      %212 = sbr.rel (%p210) target = $region32
    $region31: #{seg_head_forward.9} parent=5 // pred_region
      // Predicated region
      $region33: #{seg_head_forward.9} parent=31 // pred_check
        %p213 = pneg %p64
      $region34: #{seg_head_forward.9} parent=31 // pred_check_branch
        %215 = sbr.rel (%p213) target = $region36
      $region35: #{seg_head_forward.9} parent=31 // pred_region
        %s216 = sadd.s32 %s19, %s20
        %s217 = ssub.s32 %s216, 1
        %p218 = scmp.gt.s32.totalorder %s217, 0
        %s219 = scalar_select %p218, %s217, 0
        %p220 = scmp.lt.s32.totalorder %s219, 7
        %s221 = scalar_select %p220, %s219, 7
        %p222 = scmp.lt.s32.totalorder %s18, 1
        %s223 = scalar_select %p222, %s18, 1
        %p224 = scmp.lt.s32.totalorder %s221, 7
        %s225 = scalar_select %p224, %s221, 7
        %s226 = smul.addr %s225, 13
        %s227 = smul.addr %s223, 104
        %s228 = sadd.s32 %s226, %s227
        %s229 = smul.addr %s228, 4
        %s230 = scalar_lea.vmem %s0, %s229
        %s231 = sadd.s32 %s19, %s20
        %s232 = ssub.s32 %s231, 1
        %p233 = scmp.gt.s32.totalorder %s232, 0
        %s234 = scalar_select %p233, %s232, 0
        %p235 = scmp.lt.s32.totalorder %s234, 7
        %s236 = scalar_select %p235, %s234, 7
      $region36: #{seg_head_forward.9} parent=31 // pred_fallthru
        _
    $region32: #{seg_head_forward.9} parent=5 // pred_fallthru
      _
    %p237 = scmp.le.s32.totalorder 1, %s11
    %p238 = scmp.lt.s32.totalorder %s11, 49
    %p239 = pnand %p237, %p238
    %p240 = pneg %p239
    // Predicated region
    $region37: #{seg_head_forward.9} parent=5 // pred_check
      _
    $region38: #{seg_head_forward.9} parent=5 // pred_check_branch
      %242 = sbr.rel (%p239) target = $region40
    $region39: #{seg_head_forward.9} parent=5 // pred_region
      %s243 = ssub.s32 %s11, 1
      %s244 = sadd.s32 %s22, %s23
      %s245 = ssub.s32 %s244, 1
      %p246 = scmp.gt.s32.totalorder %s245, 0
      %s247 = scalar_select %p246, %s245, 0
      %p248 = scmp.lt.s32.totalorder %s247, 7
      %s249 = scalar_select %p248, %s247, 7
      %p250 = scmp.lt.s32.totalorder %s21, 1
      %s251 = scalar_select %p250, %s21, 1
      %p252 = scmp.lt.s32.totalorder %s249, 7
      %s253 = scalar_select %p252, %s249, 7
      %s254 = smul.addr %s253, 13
      %s255 = smul.addr %s251, 104
      %s256 = sadd.s32 %s254, %s255
      %s257 = smul.addr %s256, 4
      %s258 = scalar_lea.vmem %s0, %s257
      %p259 = pneg %p70
      %p260 = pneg %p67
      %p261 = pneg %p91
      %p262 = pneg %p88
      %p263 = pneg %p112
      %p264 = pneg %p109
      %p265 = pneg %p133
      %p266 = pneg %p130
      %p267 = pneg %p154
      %p268 = pneg %p151
      %p269 = pneg %p182
      %p270 = pneg %p179
      %p271 = scmp.lt.s32.totalorder %s21, 1
      %s272 = scalar_select %p271, %s21, 1
      %p273 = scmp.lt.s32.totalorder %s22, 7
      %s274 = scalar_select %p273, %s22, 7
      %s275 = smul.addr %s274, 13
      %s276 = smul.addr %s272, 104
      %s277 = sadd.s32 %s275, %s276
      %s278 = smul.addr %s277, 4
      %s279 = scalar_lea.vmem %s5, %s278
      %s280 = sadd.s32 %s22, %s23
      %s281 = ssub.s32 %s280, 1
      %p282 = scmp.gt.s32.totalorder %s281, 0
      %s283 = scalar_select %p282, %s281, 0
      %p284 = scmp.lt.s32.totalorder %s283, 7
      %s285 = scalar_select %p284, %s283, 7
      %p286 = scmp.lt.s32.totalorder %s21, 1
      %s287 = scalar_select %p286, %s21, 1
      %p288 = scmp.lt.s32.totalorder %s285, 7
      %s289 = scalar_select %p288, %s285, 7
      %s290 = smul.addr %s289, 13
      %s291 = smul.addr %s287, 104
      %s292 = sadd.s32 %s290, %s291
      %s293 = smul.addr %s292, 4
      %s294 = scalar_lea.vmem %s0, %s293
      %s295 = sadd.s32 %s22, %s23
      %s296 = ssub.s32 %s295, 1
      %p297 = scmp.gt.s32.totalorder %s296, 0
      %s298 = scalar_select %p297, %s296, 0
      %p299 = scmp.lt.s32.totalorder %s298, 7
      %s300 = scalar_select %p299, %s298, 7
      %p301 = scmp.lt.s32.totalorder %s21, 1
      %s302 = scalar_select %p301, %s21, 1
      %p303 = scmp.lt.s32.totalorder %s22, 7
      %s304 = scalar_select %p303, %s22, 7
      %s305 = smul.addr %s304, 13
      %s306 = smul.addr %s302, 104
      %s307 = sadd.s32 %s305, %s306
      %s308 = smul.addr %s307, 4
      %s309 = scalar_lea.vmem %s5, %s308
      %p311 = scmp.eq.s32.totalorder %s23, 0
      // Predicated region
      $region41: #{seg_head_forward.9} parent=39 // pred_check
        %p312 = pneg %p311
      $region42: #{seg_head_forward.9} parent=39 // pred_check_branch
        %314 = sbr.rel (%p312) target = $region44
      $region43: #{seg_head_forward.9} parent=39 // pred_region
        %vm315 = vcmask 261120
        %316 = vst.msk [vmem:[#allocation2] sm:$0xff] %vm315, 0.0
        %317 = vst.msk [vmem:[#allocation2 + $0x8] sm:$0xff] %vm315, 0.0
        %318 = vst.msk [vmem:[#allocation2 + $0x10] sm:$0xff] %vm315, 0.0
        %319 = vst.msk [vmem:[#allocation2 + $0x18] sm:$0xff] %vm315, 0.0
        %320 = vst.msk [vmem:[#allocation2 + $0x20] sm:$0xff] %vm315, 0.0
        %321 = vst.msk [vmem:[#allocation2 + $0x28] sm:$0xff] %vm315, 0.0
        %322 = vst.msk [vmem:[#allocation2 + $0x30] sm:$0xff] %vm315, 0.0
        %323 = vst.msk [vmem:[#allocation2 + $0x38] sm:$0xff] %vm315, 0.0
        %324 = vst.msk [vmem:[#allocation2 + $0x40] sm:$0xff] %vm315, 0.0
        %325 = vst.msk [vmem:[#allocation2 + $0x48] sm:$0xff] %vm315, 0.0
        %326 = vst.msk [vmem:[#allocation2 + $0x50] sm:$0xff] %vm315, 0.0
        %327 = vst.msk [vmem:[#allocation2 + $0x58] sm:$0xff] %vm315, 0.0
        %vm328 = vcmask 257024
        %329 = vst.msk [vmem:[#allocation2 + $0x60] sm:$0xf] %vm328, 0.0
      $region44: #{seg_head_forward.9} parent=39 // pred_fallthru
        _
      %s330 = sadd.s32 %s22, %s23
      %s331 = ssub.s32 %s330, 1
      %p332 = scmp.ge.s32.totalorder %s331, 0
      %p333 = scmp.lt.s32.totalorder %s331, 8
      %p334 = pnand %p332, %p333
      %p335 = pneg %p334
      // Predicated region
      $region45: #{seg_head_forward.9} parent=39 // pred_check
        _
      $region46: #{seg_head_forward.9} parent=39 // pred_check_branch
        %337 = sbr.rel (%p334) target = $region48
      $region47: #{seg_head_forward.9} parent=39 // pred_region
        %v338 = vld [vmem:[%s294] sm:$0xf]
        %v339 = vld [vmem:[%s294 + $0x4] sm:$0xf]
        %v340 = vld [vmem:[%s294 + $0x8] sm:$0xf]
        %v341 = vld [vmem:[%s294 + $0xc] sm:$0xf]
        %v342 = vld [vmem:[%s294 + $0x10] sm:$0xf]
        %v343 = vld [vmem:[%s294 + $0x14] sm:$0xf]
        %v344 = vld [vmem:[%s294 + $0x18] sm:$0xf]
        %v345 = vld [vmem:[%s294 + $0x1c] sm:$0xf]
        %v346 = vld [vmem:[%s294 + $0x20] sm:$0xf]
        %v347 = vld [vmem:[%s294 + $0x24] sm:$0xf]
        %v348 = vld [vmem:[%s294 + $0x28] sm:$0xf]
        %v349 = vld [vmem:[%s294 + $0x2c] sm:$0xf]
        %v350 = vld [vmem:[%s294 + $0x30] sm:$0x3]
        %s351 = smul.u32 %s23, 12
        %s352 = smul.addr %s351, 4
        %s353 = scalar_lea.vmem %s1, %s352
        %v354 = vld [vmem:[%s353] sm:$0xff]
        %v355 = vld [vmem:[%s353 + $0x8] sm:$0xf]
        %v356 = vld [vmem:[%s353 + $0xc] sm:$0xff]
        %v357 = vld [vmem:[%s353 + $0x14] sm:$0xf]
        %v358 = vld [vmem:[%s353 + $0x18] sm:$0xff]
        %v359 = vld [vmem:[%s353 + $0x20] sm:$0xf]
        %v360 = vld [vmem:[%s353 + $0x24] sm:$0xff]
        %v361 = vld [vmem:[%s353 + $0x2c] sm:$0xf]
        %v375 = vunpack.c.l.b16 %v338
        %v376 = vunpack.c.l.b16 %v339
        %v377 = vunpack.c.l.b16 %v340
        %v378 = vunpack.c.l.b16 %v341
        %v379 = vunpack.c.l.b16 %v342
        %v380 = vunpack.c.l.b16 %v343
        %v381 = vunpack.c.l.b16 %v344
        %v382 = vunpack.c.l.b16 %v345
        %v383 = vunpack.c.l.b16 %v346
        %v384 = vunpack.c.l.b16 %v347
        %v385 = vunpack.c.l.b16 %v348
        %v386 = vunpack.c.l.b16 %v349
        %v387 = vunpack.c.l.b16 %v350
        %v388 = vpack.c.b16 %v376, %v375
        %v389 = vpack.c.b16 %v378, %v377
        %v390 = vpack.c.b16 %v380, %v379
        %v391 = vpack.c.b16 %v382, %v381
        %v392 = vpack.c.b16 %v384, %v383
        %v393 = vpack.c.b16 %v386, %v385
        %v394 = vpack.c.b16 %v387, %v387
        %v403 = vunpack.c.l.b16 %v354
        %v404 = vunpack.c.h.b16 %v354
        %v405 = vunpack.c.l.b16 %v355
        %v406 = vunpack.c.l.b16 %v356
        %v407 = vunpack.c.h.b16 %v356
        %v408 = vunpack.c.l.b16 %v357
        %v409 = vunpack.c.l.b16 %v358
        %v410 = vunpack.c.h.b16 %v358
        %v411 = vunpack.c.l.b16 %v359
        %v412 = vunpack.c.l.b16 %v360
        %v413 = vunpack.c.h.b16 %v360
        %v414 = vunpack.c.l.b16 %v361
        %v415 = vpack.c.b16 %v406, %v403
        %v416 = vpack.c.b16 %v407, %v404
        %v417 = vpack.c.b16 %v408, %v405
        %v418 = vpack.c.b16 %v412, %v409
        %v419 = vpack.c.b16 %v413, %v410
        %v420 = vpack.c.b16 %v414, %v411
        %vm427 = vcmask 261120
        %v429 = vsel %vm427, %v388, 0
        %v432 = vsel %vm427, %v389, 0
        %v435 = vsel %vm427, %v390, 0
        %v438 = vsel %vm427, %v391, 0
        %v441 = vsel %vm427, %v392, 0
        %v444 = vsel %vm427, %v393, 0
        %v447 = vsel %vm427, %v394, 0
        %449 = vmatprep.subr.bf16.mxu0 0
        %450 = vmatpush1.bf16.msra.mxu0 0
        %451 = vmatprep.subr.bf16.mxu0 0
        %452 = vmatpush1.bf16.msra.mxu0 0
        %453 = vmatprep.subr.bf16.mxu0 0
        %454 = vmatpush1.bf16.msra.mxu0 0
        %455 = vmatprep.subr.bf16.mxu0 0
        %456 = vmatpush1.bf16.msra.mxu0 0
        %457 = vmatprep.subr.bf16.mxu0 0
        %458 = vmatpush1.bf16.msra.mxu0 0
        %459 = vmatprep.subr.bf16.mxu0 0
        %460 = vmatpush1.bf16.msra.mxu0 0
        %461 = vmatprep.subr.bf16.mxu0 %v419
        %462 = vmatpush1.bf16.msra.mxu0 %v418
        %463 = vmatprep.subr.bf16.mxu0 %v416
        %464 = vmatpush1.bf16.msra.mxu0 %v415
        %465 = vmatprep.subr.bf16.mxu0 0
        %466 = vmatpush2.bf16.msra.mxu0 0
        %467 = vmatprep.subr.bf16.mxu0 0
        %468 = vmatpush2.bf16.msra.mxu0 0
        %469 = vmatprep.subr.bf16.mxu0 0
        %470 = vmatpush2.bf16.msra.mxu0 0
        %471 = vmatprep.subr.bf16.mxu0 0
        %472 = vmatpush2.bf16.msra.mxu0 0
        %473 = vmatprep.subr.bf16.mxu0 0
        %474 = vmatpush2.bf16.msra.mxu0 0
        %475 = vmatprep.subr.bf16.mxu0 0
        %476 = vmatpush2.bf16.msra.mxu0 0
        %477 = vmatprep.subr.bf16.mxu0 0
        %478 = vmatpush2.bf16.msra.mxu0 0
        %479 = vmatprep.subr.bf16.mxu0 0
        %480 = vmatpush2.bf16.msra.mxu0 0
        %481 = vmatprep.mubr.bf16.mxu0 0
        %482 = vmatmul.mubr.bf16.gmra.mxu0 %v429
        %v483 = vpop.f32.mrf.mxu0
        %v484 = vadd.f32 0.0, %v483
        %v485 = vpop.f32.mrf.mxu0
        %v486 = vadd.f32 0.0, %v485
        %v487 = vpop.f32.mrf.mxu0
        %v488 = vadd.f32 0.0, %v487
        %v489 = vpop.f32.mrf.mxu0
        %v490 = vadd.f32 0.0, %v489
        %491 = vmatprep.mubr.bf16.mxu0 0
        %492 = vmatmul.mubr.bf16.gmra.mxu0 %v432
        %v493 = vpop.f32.mrf.mxu0
        %v494 = vadd.f32 0.0, %v493
        %v495 = vpop.f32.mrf.mxu0
        %v496 = vadd.f32 0.0, %v495
        %v497 = vpop.f32.mrf.mxu0
        %v498 = vadd.f32 0.0, %v497
        %v499 = vpop.f32.mrf.mxu0
        %v500 = vadd.f32 0.0, %v499
        %501 = vmatprep.mubr.bf16.mxu0 0
        %502 = vmatmul.mubr.bf16.gmra.mxu0 %v435
        %v503 = vpop.f32.mrf.mxu0
        %v504 = vadd.f32 0.0, %v503
        %v505 = vpop.f32.mrf.mxu0
        %v506 = vadd.f32 0.0, %v505
        %v507 = vpop.f32.mrf.mxu0
        %v508 = vadd.f32 0.0, %v507
        %v509 = vpop.f32.mrf.mxu0
        %v510 = vadd.f32 0.0, %v509
        %511 = vmatprep.mubr.bf16.mxu0 0
        %512 = vmatmul.mubr.bf16.gmra.mxu0 %v438
        %v513 = vpop.f32.mrf.mxu0
        %v514 = vadd.f32 0.0, %v513
        %v515 = vpop.f32.mrf.mxu0
        %v516 = vadd.f32 0.0, %v515
        %v517 = vpop.f32.mrf.mxu0
        %v518 = vadd.f32 0.0, %v517
        %v519 = vpop.f32.mrf.mxu0
        %v520 = vadd.f32 0.0, %v519
        %521 = vmatprep.mubr.bf16.mxu0 0
        %522 = vmatmul.mubr.bf16.gmra.mxu0 %v441
        %v523 = vpop.f32.mrf.mxu0
        %v524 = vadd.f32 0.0, %v523
        %v525 = vpop.f32.mrf.mxu0
        %v526 = vadd.f32 0.0, %v525
        %v527 = vpop.f32.mrf.mxu0
        %v528 = vadd.f32 0.0, %v527
        %v529 = vpop.f32.mrf.mxu0
        %v530 = vadd.f32 0.0, %v529
        %531 = vmatprep.mubr.bf16.mxu0 0
        %532 = vmatmul.mubr.bf16.gmra.mxu0 %v444
        %v533 = vpop.f32.mrf.mxu0
        %v534 = vadd.f32 0.0, %v533
        %v535 = vpop.f32.mrf.mxu0
        %v536 = vadd.f32 0.0, %v535
        %v537 = vpop.f32.mrf.mxu0
        %v538 = vadd.f32 0.0, %v537
        %v539 = vpop.f32.mrf.mxu0
        %v540 = vadd.f32 0.0, %v539
        %541 = vmatprep.mubr.bf16.mxu0 0
        %542 = vmatmul.mubr.bf16.gmra.mxu0 %v447
        %v543 = vpop.f32.mrf.mxu0
        %v544 = vadd.f32 0.0, %v543
        %v545 = vpop.f32.mrf.mxu0
        %v546 = vadd.f32 0.0, %v545
        %v547 = vpop.f32.mrf.mxu0
        %v548 = vpop.f32.mrf.mxu0
        %549 = vdwg.mxu0
        %550 = vmatprep.subr.bf16.mxu0 0
        %551 = vmatpush1.bf16.msra.mxu0 0
        %552 = vmatprep.subr.bf16.mxu0 0
        %553 = vmatpush1.bf16.msra.mxu0 0
        %554 = vmatprep.subr.bf16.mxu0 0
        %555 = vmatpush1.bf16.msra.mxu0 0
        %556 = vmatprep.subr.bf16.mxu0 0
        %557 = vmatpush1.bf16.msra.mxu0 0
        %558 = vmatprep.subr.bf16.mxu0 0
        %559 = vmatpush1.bf16.msra.mxu0 0
        %560 = vmatprep.subr.bf16.mxu0 0
        %561 = vmatpush1.bf16.msra.mxu0 0
        %562 = vmatprep.subr.bf16.mxu0 0
        %563 = vmatpush1.bf16.msra.mxu0 %v420
        %564 = vmatprep.subr.bf16.mxu0 0
        %565 = vmatpush1.bf16.msra.mxu0 %v417
        %566 = vmatprep.subr.bf16.mxu0 0
        %567 = vmatpush2.bf16.msra.mxu0 0
        %568 = vmatprep.subr.bf16.mxu0 0
        %569 = vmatpush2.bf16.msra.mxu0 0
        %570 = vmatprep.subr.bf16.mxu0 0
        %571 = vmatpush2.bf16.msra.mxu0 0
        %572 = vmatprep.subr.bf16.mxu0 0
        %573 = vmatpush2.bf16.msra.mxu0 0
        %574 = vmatprep.subr.bf16.mxu0 0
        %575 = vmatpush2.bf16.msra.mxu0 0
        %576 = vmatprep.subr.bf16.mxu0 0
        %577 = vmatpush2.bf16.msra.mxu0 0
        %578 = vmatprep.subr.bf16.mxu0 0
        %579 = vmatpush2.bf16.msra.mxu0 0
        %580 = vmatprep.subr.bf16.mxu0 0
        %581 = vmatpush2.bf16.msra.mxu0 0
        %582 = vmatprep.mubr.bf16.mxu0 0
        %583 = vmatmul.mubr.bf16.gmra.mxu0 %v429
        %v584 = vpop.f32.mrf.mxu0
        %v585 = vpop.f32.mrf.mxu0
        %v586 = vpop.f32.mrf.mxu0
        %v587 = vadd.f32 0.0, %v586
        %v588 = vpop.f32.mrf.mxu0
        %589 = vmatprep.mubr.bf16.mxu0 0
        %590 = vmatmul.mubr.bf16.gmra.mxu0 %v432
        %v591 = vpop.f32.mrf.mxu0
        %v592 = vadd.f32 0.0, %v591
        %v593 = vpop.f32.mrf.mxu0
        %v594 = vpop.f32.mrf.mxu0
        %v595 = vadd.f32 0.0, %v594
        %v596 = vpop.f32.mrf.mxu0
        %597 = vmatprep.mubr.bf16.mxu0 0
        %598 = vmatmul.mubr.bf16.gmra.mxu0 %v435
        %v599 = vpop.f32.mrf.mxu0
        %v600 = vadd.f32 0.0, %v599
        %v601 = vpop.f32.mrf.mxu0
        %v602 = vpop.f32.mrf.mxu0
        %v603 = vadd.f32 0.0, %v602
        %v604 = vpop.f32.mrf.mxu0
        %605 = vmatprep.mubr.bf16.mxu0 0
        %606 = vmatmul.mubr.bf16.gmra.mxu0 %v438
        %v607 = vpop.f32.mrf.mxu0
        %v608 = vadd.f32 0.0, %v607
        %v609 = vpop.f32.mrf.mxu0
        %v610 = vpop.f32.mrf.mxu0
        %v611 = vadd.f32 0.0, %v610
        %v612 = vpop.f32.mrf.mxu0
        %613 = vmatprep.mubr.bf16.mxu0 0
        %614 = vmatmul.mubr.bf16.gmra.mxu0 %v441
        %v615 = vpop.f32.mrf.mxu0
        %v616 = vadd.f32 0.0, %v615
        %v617 = vpop.f32.mrf.mxu0
        %v618 = vpop.f32.mrf.mxu0
        %v619 = vadd.f32 0.0, %v618
        %v620 = vpop.f32.mrf.mxu0
        %621 = vmatprep.mubr.bf16.mxu0 0
        %622 = vmatmul.mubr.bf16.gmra.mxu0 %v444
        %v623 = vpop.f32.mrf.mxu0
        %v624 = vadd.f32 0.0, %v623
        %v625 = vpop.f32.mrf.mxu0
        %v626 = vpop.f32.mrf.mxu0
        %v627 = vadd.f32 0.0, %v626
        %v628 = vpop.f32.mrf.mxu0
        %629 = vmatprep.mubr.bf16.mxu0 0
        %630 = vmatmul.mubr.bf16.gmra.mxu0 %v447
        %v631 = vpop.f32.mrf.mxu0
        %v632 = vadd.f32 0.0, %v631
        %v633 = vpop.f32.mrf.mxu0
        %v634 = vpop.f32.mrf.mxu0
        %v635 = vpop.f32.mrf.mxu0
        %636 = vdwg.mxu0
        %v637 = vld [vmem:[#allocation2 + $0xb] sm:$0xff]
        %v638 = vld [vmem:[#allocation2 + $0x13] sm:$0xff]
        %v639 = vld [vmem:[#allocation2 + $0x1b] sm:$0xff]
        %v640 = vld [vmem:[#allocation2 + $0x23] sm:$0xff]
        %v641 = vld [vmem:[#allocation2 + $0x2b] sm:$0xff]
        %v642 = vld [vmem:[#allocation2 + $0x33] sm:$0xff]
        %v643 = vld [vmem:[#allocation2 + $0x3b] sm:$0xff]
        %v644 = vld [vmem:[#allocation2 + $0x43] sm:$0xff]
        %v645 = vld [vmem:[#allocation2 + $0x4b] sm:$0xff]
        %v646 = vld [vmem:[#allocation2 + $0x53] sm:$0xff]
        %v647 = vld [vmem:[#allocation2 + $0x5b] sm:$0xff]
        %v648 = vld [vmem:[#allocation2 + $0x63] sm:$0x1]
        %v649 = vadd.f32 %v637, %v484
        %v650 = vadd.f32 %v638, %v488
        %v651 = vadd.f32 %v639, %v494
        %v652 = vadd.f32 %v640, %v498
        %v653 = vadd.f32 %v641, %v504
        %v654 = vadd.f32 %v642, %v508
        %v655 = vadd.f32 %v643, %v514
        %v656 = vadd.f32 %v644, %v518
        %v657 = vadd.f32 %v645, %v524
        %v658 = vadd.f32 %v646, %v528
        %v659 = vadd.f32 %v647, %v534
        %v660 = vadd.f32 %v648, %v538
        %661 = vst.msk [vmem:[#allocation2 + $0xb] sm:$0xff] %vm427, %v649
        %662 = vst.msk [vmem:[#allocation2 + $0x13] sm:$0xff] %vm427, %v650
        %663 = vst.msk [vmem:[#allocation2 + $0x1b] sm:$0xff] %vm427, %v651
        %664 = vst.msk [vmem:[#allocation2 + $0x23] sm:$0xff] %vm427, %v652
        %665 = vst.msk [vmem:[#allocation2 + $0x2b] sm:$0xff] %vm427, %v653
        %666 = vst.msk [vmem:[#allocation2 + $0x33] sm:$0xff] %vm427, %v654
        %667 = vst.msk [vmem:[#allocation2 + $0x3b] sm:$0xff] %vm427, %v655
        %668 = vst.msk [vmem:[#allocation2 + $0x43] sm:$0xff] %vm427, %v656
        %669 = vst.msk [vmem:[#allocation2 + $0x4b] sm:$0xff] %vm427, %v657
        %670 = vst.msk [vmem:[#allocation2 + $0x53] sm:$0xff] %vm427, %v658
        %671 = vst.msk [vmem:[#allocation2 + $0x5b] sm:$0xff] %vm427, %v659
        %vm672 = vcmask 253952
        %673 = vst.msk [vmem:[#allocation2 + $0x63] sm:$0x1] %vm672, %v660
        %v674 = vld [vmem:[#allocation2 + $0xa] sm:$0xff]
        %v675 = vld [vmem:[#allocation2 + $0x12] sm:$0xff]
        %v676 = vld [vmem:[#allocation2 + $0x1a] sm:$0xff]
        %v677 = vld [vmem:[#allocation2 + $0x22] sm:$0xff]
        %v678 = vld [vmem:[#allocation2 + $0x2a] sm:$0xff]
        %v679 = vld [vmem:[#allocation2 + $0x32] sm:$0xff]
        %v680 = vld [vmem:[#allocation2 + $0x3a] sm:$0xff]
        %v681 = vld [vmem:[#allocation2 + $0x42] sm:$0xff]
        %v682 = vld [vmem:[#allocation2 + $0x4a] sm:$0xff]
        %v683 = vld [vmem:[#allocation2 + $0x52] sm:$0xff]
        %v684 = vld [vmem:[#allocation2 + $0x5a] sm:$0xff]
        %v685 = vld [vmem:[#allocation2 + $0x62] sm:$0x3]
        %698 = vrot.lane.b32.xlu0 %v484, 96
        %v699 = vpop.permute.xlu0 %698
        %700 = vrot.lane.b32.xlu0 %v488, 96
        %v701 = vpop.permute.xlu0 %700
        %702 = vrot.lane.b32.xlu0 %v494, 96
        %v703 = vpop.permute.xlu0 %702
        %704 = vrot.lane.b32.xlu0 %v498, 96
        %v705 = vpop.permute.xlu0 %704
        %706 = vrot.lane.b32.xlu0 %v504, 96
        %v707 = vpop.permute.xlu0 %706
        %708 = vrot.lane.b32.xlu0 %v508, 96
        %v709 = vpop.permute.xlu0 %708
        %710 = vrot.lane.b32.xlu0 %v514, 96
        %v711 = vpop.permute.xlu0 %710
        %712 = vrot.lane.b32.xlu0 %v518, 96
        %v713 = vpop.permute.xlu0 %712
        %714 = vrot.lane.b32.xlu0 %v524, 96
        %v715 = vpop.permute.xlu0 %714
        %716 = vrot.lane.b32.xlu0 %v528, 96
        %v717 = vpop.permute.xlu0 %716
        %718 = vrot.lane.b32.xlu0 %v534, 96
        %v719 = vpop.permute.xlu0 %718
        %720 = vrot.lane.b32.xlu0 %v538, 96
        %v721 = vpop.permute.xlu0 %720
        %v734 = vadd.f32 %v674, %v699
        %v735 = vadd.f32 %v675, %v701
        %v736 = vadd.f32 %v676, %v703
        %v737 = vadd.f32 %v677, %v705
        %v738 = vadd.f32 %v678, %v707
        %v739 = vadd.f32 %v679, %v709
        %v740 = vadd.f32 %v680, %v711
        %v741 = vadd.f32 %v681, %v713
        %v742 = vadd.f32 %v682, %v715
        %v743 = vadd.f32 %v683, %v717
        %v744 = vadd.f32 %v684, %v719
        %v745 = vadd.f32 %v685, %v721
        %746 = vst.msk [vmem:[#allocation2 + $0xa] sm:$0xff] %vm427, %v734
        %747 = vst.msk [vmem:[#allocation2 + $0x12] sm:$0xff] %vm427, %v735
        %748 = vst.msk [vmem:[#allocation2 + $0x1a] sm:$0xff] %vm427, %v736
        %749 = vst.msk [vmem:[#allocation2 + $0x22] sm:$0xff] %vm427, %v737
        %750 = vst.msk [vmem:[#allocation2 + $0x2a] sm:$0xff] %vm427, %v738
        %751 = vst.msk [vmem:[#allocation2 + $0x32] sm:$0xff] %vm427, %v739
        %752 = vst.msk [vmem:[#allocation2 + $0x3a] sm:$0xff] %vm427, %v740
        %753 = vst.msk [vmem:[#allocation2 + $0x42] sm:$0xff] %vm427, %v741
        %754 = vst.msk [vmem:[#allocation2 + $0x4a] sm:$0xff] %vm427, %v742
        %755 = vst.msk [vmem:[#allocation2 + $0x52] sm:$0xff] %vm427, %v743
        %756 = vst.msk [vmem:[#allocation2 + $0x5a] sm:$0xff] %vm427, %v744
        %vm757 = vcmask 254976
        %758 = vst.msk [vmem:[#allocation2 + $0x62] sm:$0x3] %vm757, %v745
        %v759 = vld [vmem:[#allocation2 + $0x9] sm:$0xff]
        %v760 = vld [vmem:[#allocation2 + $0x11] sm:$0xff]
        %v761 = vld [vmem:[#allocation2 + $0x19] sm:$0xff]
        %v762 = vld [vmem:[#allocation2 + $0x21] sm:$0xff]
        %v763 = vld [vmem:[#allocation2 + $0x29] sm:$0xff]
        %v764 = vld [vmem:[#allocation2 + $0x31] sm:$0xff]
        %v765 = vld [vmem:[#allocation2 + $0x39] sm:$0xff]
        %v766 = vld [vmem:[#allocation2 + $0x41] sm:$0xff]
        %v767 = vld [vmem:[#allocation2 + $0x49] sm:$0xff]
        %v768 = vld [vmem:[#allocation2 + $0x51] sm:$0xff]
        %v769 = vld [vmem:[#allocation2 + $0x59] sm:$0xff]
        %v770 = vld [vmem:[#allocation2 + $0x61] sm:$0x7]
        %771 = vrot.lane.b32.xlu0 %v484, 64
        %v772 = vpop.permute.xlu0 %771
        %773 = vrot.lane.b32.xlu0 %v488, 64
        %v774 = vpop.permute.xlu0 %773
        %775 = vrot.lane.b32.xlu0 %v494, 64
        %v776 = vpop.permute.xlu0 %775
        %777 = vrot.lane.b32.xlu0 %v498, 64
        %v778 = vpop.permute.xlu0 %777
        %779 = vrot.lane.b32.xlu0 %v504, 64
        %v780 = vpop.permute.xlu0 %779
        %781 = vrot.lane.b32.xlu0 %v508, 64
        %v782 = vpop.permute.xlu0 %781
        %783 = vrot.lane.b32.xlu0 %v514, 64
        %v784 = vpop.permute.xlu0 %783
        %785 = vrot.lane.b32.xlu0 %v518, 64
        %v786 = vpop.permute.xlu0 %785
        %787 = vrot.lane.b32.xlu0 %v524, 64
        %v788 = vpop.permute.xlu0 %787
        %789 = vrot.lane.b32.xlu0 %v528, 64
        %v790 = vpop.permute.xlu0 %789
        %791 = vrot.lane.b32.xlu0 %v534, 64
        %v792 = vpop.permute.xlu0 %791
        %793 = vrot.lane.b32.xlu0 %v538, 64
        %v794 = vpop.permute.xlu0 %793
        %v807 = vadd.f32 %v759, %v772
        %v808 = vadd.f32 %v760, %v774
        %v809 = vadd.f32 %v761, %v776
        %v810 = vadd.f32 %v762, %v778
        %v811 = vadd.f32 %v763, %v780
        %v812 = vadd.f32 %v764, %v782
        %v813 = vadd.f32 %v765, %v784
        %v814 = vadd.f32 %v766, %v786
        %v815 = vadd.f32 %v767, %v788
        %v816 = vadd.f32 %v768, %v790
        %v817 = vadd.f32 %v769, %v792
        %v818 = vadd.f32 %v770, %v794
        %819 = vst.msk [vmem:[#allocation2 + $0x9] sm:$0xff] %vm427, %v807
        %820 = vst.msk [vmem:[#allocation2 + $0x11] sm:$0xff] %vm427, %v808
        %821 = vst.msk [vmem:[#allocation2 + $0x19] sm:$0xff] %vm427, %v809
        %822 = vst.msk [vmem:[#allocation2 + $0x21] sm:$0xff] %vm427, %v810
        %823 = vst.msk [vmem:[#allocation2 + $0x29] sm:$0xff] %vm427, %v811
        %824 = vst.msk [vmem:[#allocation2 + $0x31] sm:$0xff] %vm427, %v812
        %825 = vst.msk [vmem:[#allocation2 + $0x39] sm:$0xff] %vm427, %v813
        %826 = vst.msk [vmem:[#allocation2 + $0x41] sm:$0xff] %vm427, %v814
        %827 = vst.msk [vmem:[#allocation2 + $0x49] sm:$0xff] %vm427, %v815
        %828 = vst.msk [vmem:[#allocation2 + $0x51] sm:$0xff] %vm427, %v816
        %829 = vst.msk [vmem:[#allocation2 + $0x59] sm:$0xff] %vm427, %v817
        %vm830 = vcmask 256000
        %831 = vst.msk [vmem:[#allocation2 + $0x61] sm:$0x7] %vm830, %v818
        %v832 = vld [vmem:[#allocation2 + $0x1] sm:$0xff]
        %v833 = vld [vmem:[#allocation2 + $0x9] sm:$0xff]
        %v834 = vld [vmem:[#allocation2 + $0x11] sm:$0xff]
        %v835 = vld [vmem:[#allocation2 + $0x19] sm:$0xff]
        %v836 = vld [vmem:[#allocation2 + $0x21] sm:$0xff]
        %v837 = vld [vmem:[#allocation2 + $0x29] sm:$0xff]
        %v838 = vld [vmem:[#allocation2 + $0x31] sm:$0xff]
        %v839 = vld [vmem:[#allocation2 + $0x39] sm:$0xff]
        %v840 = vld [vmem:[#allocation2 + $0x41] sm:$0xff]
        %v841 = vld [vmem:[#allocation2 + $0x49] sm:$0xff]
        %v842 = vld [vmem:[#allocation2 + $0x51] sm:$0xff]
        %v843 = vld [vmem:[#allocation2 + $0x59] sm:$0xff]
        %v844 = vld [vmem:[#allocation2 + $0x61] sm:$0x7]
        %846 = vrot.lane.b32.xlu0 %v484, 32
        %v847 = vpop.permute.xlu0 %846
        %848 = vrot.lane.b32.xlu0 %v488, 32
        %v849 = vpop.permute.xlu0 %848
        %850 = vrot.lane.b32.xlu0 %v494, 32
        %v851 = vpop.permute.xlu0 %850
        %852 = vrot.lane.b32.xlu0 %v498, 32
        %v853 = vpop.permute.xlu0 %852
        %854 = vrot.lane.b32.xlu0 %v504, 32
        %v855 = vpop.permute.xlu0 %854
        %856 = vrot.lane.b32.xlu0 %v508, 32
        %v857 = vpop.permute.xlu0 %856
        %858 = vrot.lane.b32.xlu0 %v514, 32
        %v859 = vpop.permute.xlu0 %858
        %860 = vrot.lane.b32.xlu0 %v518, 32
        %v861 = vpop.permute.xlu0 %860
        %862 = vrot.lane.b32.xlu0 %v524, 32
        %v863 = vpop.permute.xlu0 %862
        %864 = vrot.lane.b32.xlu0 %v528, 32
        %v865 = vpop.permute.xlu0 %864
        %866 = vrot.lane.b32.xlu0 %v534, 32
        %v867 = vpop.permute.xlu0 %866
        %868 = vrot.lane.b32.xlu0 %v538, 32
        %v869 = vpop.permute.xlu0 %868
        %870 = vrot.lane.b32.xlu0 %v544, 32
        %v871 = vpop.permute.xlu0 %870
        %v885 = vadd.f32 %v832, %v847
        %v886 = vadd.f32 %v833, %v849
        %v887 = vadd.f32 %v834, %v851
        %v888 = vadd.f32 %v835, %v853
        %v889 = vadd.f32 %v836, %v855
        %v890 = vadd.f32 %v837, %v857
        %v891 = vadd.f32 %v838, %v859
        %v892 = vadd.f32 %v839, %v861
        %v893 = vadd.f32 %v840, %v863
        %v894 = vadd.f32 %v841, %v865
        %v895 = vadd.f32 %v842, %v867
        %v896 = vadd.f32 %v843, %v869
        %v897 = vadd.f32 %v844, %v871
        %898 = vst.msk [vmem:[#allocation2 + $0x1] sm:$0xff] %vm427, %v885
        %899 = vst.msk [vmem:[#allocation2 + $0x9] sm:$0xff] %vm427, %v886
        %900 = vst.msk [vmem:[#allocation2 + $0x11] sm:$0xff] %vm427, %v887
        %901 = vst.msk [vmem:[#allocation2 + $0x19] sm:$0xff] %vm427, %v888
        %902 = vst.msk [vmem:[#allocation2 + $0x21] sm:$0xff] %vm427, %v889
        %903 = vst.msk [vmem:[#allocation2 + $0x29] sm:$0xff] %vm427, %v890
        %904 = vst.msk [vmem:[#allocation2 + $0x31] sm:$0xff] %vm427, %v891
        %905 = vst.msk [vmem:[#allocation2 + $0x39] sm:$0xff] %vm427, %v892
        %906 = vst.msk [vmem:[#allocation2 + $0x41] sm:$0xff] %vm427, %v893
        %907 = vst.msk [vmem:[#allocation2 + $0x49] sm:$0xff] %vm427, %v894
        %908 = vst.msk [vmem:[#allocation2 + $0x51] sm:$0xff] %vm427, %v895
        %909 = vst.msk [vmem:[#allocation2 + $0x59] sm:$0xff] %vm427, %v896
        %910 = vst.msk [vmem:[#allocation2 + $0x61] sm:$0x7] %vm830, %v897
        %v911 = vld [vmem:[#allocation2] sm:$0xff]
        %v912 = vld [vmem:[#allocation2 + $0x8] sm:$0xff]
        %v913 = vld [vmem:[#allocation2 + $0x10] sm:$0xff]
        %v914 = vld [vmem:[#allocation2 + $0x18] sm:$0xff]
        %v915 = vld [vmem:[#allocation2 + $0x20] sm:$0xff]
        %v916 = vld [vmem:[#allocation2 + $0x28] sm:$0xff]
        %v917 = vld [vmem:[#allocation2 + $0x30] sm:$0xff]
        %v918 = vld [vmem:[#allocation2 + $0x38] sm:$0xff]
        %v919 = vld [vmem:[#allocation2 + $0x40] sm:$0xff]
        %v920 = vld [vmem:[#allocation2 + $0x48] sm:$0xff]
        %v921 = vld [vmem:[#allocation2 + $0x50] sm:$0xff]
        %v922 = vld [vmem:[#allocation2 + $0x58] sm:$0xff]
        %v923 = vld [vmem:[#allocation2 + $0x60] sm:$0xf]
        %v924 = vadd.f32 %v911, %v486
        %v925 = vadd.f32 %v912, %v490
        %v926 = vadd.f32 %v913, %v496
        %v927 = vadd.f32 %v914, %v500
        %v928 = vadd.f32 %v915, %v506
        %v929 = vadd.f32 %v916, %v510
        %v930 = vadd.f32 %v917, %v516
        %v931 = vadd.f32 %v918, %v520
        %v932 = vadd.f32 %v919, %v526
        %v933 = vadd.f32 %v920, %v530
        %v934 = vadd.f32 %v921, %v536
        %v935 = vadd.f32 %v922, %v540
        %v936 = vadd.f32 %v923, %v546
        %937 = vst.msk [vmem:[#allocation2] sm:$0xff] %vm427, %v924
        %938 = vst.msk [vmem:[#allocation2 + $0x8] sm:$0xff] %vm427, %v925
        %939 = vst.msk [vmem:[#allocation2 + $0x10] sm:$0xff] %vm427, %v926
        %940 = vst.msk [vmem:[#allocation2 + $0x18] sm:$0xff] %vm427, %v927
        %941 = vst.msk [vmem:[#allocation2 + $0x20] sm:$0xff] %vm427, %v928
        %942 = vst.msk [vmem:[#allocation2 + $0x28] sm:$0xff] %vm427, %v929
        %943 = vst.msk [vmem:[#allocation2 + $0x30] sm:$0xff] %vm427, %v930
        %944 = vst.msk [vmem:[#allocation2 + $0x38] sm:$0xff] %vm427, %v931
        %945 = vst.msk [vmem:[#allocation2 + $0x40] sm:$0xff] %vm427, %v932
        %946 = vst.msk [vmem:[#allocation2 + $0x48] sm:$0xff] %vm427, %v933
        %947 = vst.msk [vmem:[#allocation2 + $0x50] sm:$0xff] %vm427, %v934
        %948 = vst.msk [vmem:[#allocation2 + $0x58] sm:$0xff] %vm427, %v935
        %vm949 = vcmask 257024
        %950 = vst.msk [vmem:[#allocation2 + $0x60] sm:$0xf] %vm949, %v936
        %v951 = vld [vmem:[#allocation2] sm:$0xff]
        %v952 = vld [vmem:[#allocation2 + $0x8] sm:$0xff]
        %v953 = vld [vmem:[#allocation2 + $0x10] sm:$0xff]
        %v954 = vld [vmem:[#allocation2 + $0x18] sm:$0xff]
        %v955 = vld [vmem:[#allocation2 + $0x20] sm:$0xff]
        %v956 = vld [vmem:[#allocation2 + $0x28] sm:$0xff]
        %v957 = vld [vmem:[#allocation2 + $0x30] sm:$0xff]
        %v958 = vld [vmem:[#allocation2 + $0x38] sm:$0xff]
        %v959 = vld [vmem:[#allocation2 + $0x40] sm:$0xff]
        %v960 = vld [vmem:[#allocation2 + $0x48] sm:$0xff]
        %v961 = vld [vmem:[#allocation2 + $0x50] sm:$0xff]
        %v962 = vld [vmem:[#allocation2 + $0x58] sm:$0xff]
        %v963 = vld [vmem:[#allocation2 + $0x60] sm:$0x7]
        %vm977 = vcmask 1046528
        %v978 = vrot.slane %v486, 1
        %v979 = vrot.slane %v490, 1
        %v980 = vsel %vm977, %v978, %v979
        %v981 = vrot.slane %v496, 1
        %v982 = vsel %vm977, %v979, %v981
        %v983 = vrot.slane %v500, 1
        %v984 = vsel %vm977, %v981, %v983
        %v985 = vrot.slane %v506, 1
        %v986 = vsel %vm977, %v983, %v985
        %v987 = vrot.slane %v510, 1
        %v988 = vsel %vm977, %v985, %v987
        %v989 = vrot.slane %v516, 1
        %v990 = vsel %vm977, %v987, %v989
        %v991 = vrot.slane %v520, 1
        %v992 = vsel %vm977, %v989, %v991
        %v993 = vrot.slane %v526, 1
        %v994 = vsel %vm977, %v991, %v993
        %v995 = vrot.slane %v530, 1
        %v996 = vsel %vm977, %v993, %v995
        %v997 = vrot.slane %v536, 1
        %v998 = vsel %vm977, %v995, %v997
        %v999 = vrot.slane %v540, 1
        %v1000 = vsel %vm977, %v997, %v999
        %v1001 = vrot.slane %v546, 1
        %v1002 = vsel %vm977, %v999, %v1001
        %1003 = vrot.lane.b32.xlu0 %v980, 96
        %v1004 = vpop.permute.xlu0 %1003
        %1005 = vrot.lane.b32.xlu0 %v982, 96
        %v1006 = vpop.permute.xlu0 %1005
        %1007 = vrot.lane.b32.xlu0 %v984, 96
        %v1008 = vpop.permute.xlu0 %1007
        %1009 = vrot.lane.b32.xlu0 %v986, 96
        %v1010 = vpop.permute.xlu0 %1009
        %1011 = vrot.lane.b32.xlu0 %v988, 96
        %v1012 = vpop.permute.xlu0 %1011
        %1013 = vrot.lane.b32.xlu0 %v990, 96
        %v1014 = vpop.permute.xlu0 %1013
        %1015 = vrot.lane.b32.xlu0 %v992, 96
        %v1016 = vpop.permute.xlu0 %1015
        %1017 = vrot.lane.b32.xlu0 %v994, 96
        %v1018 = vpop.permute.xlu0 %1017
        %1019 = vrot.lane.b32.xlu0 %v996, 96
        %v1020 = vpop.permute.xlu0 %1019
        %1021 = vrot.lane.b32.xlu0 %v998, 96
        %v1022 = vpop.permute.xlu0 %1021
        %1023 = vrot.lane.b32.xlu0 %v1000, 96
        %v1024 = vpop.permute.xlu0 %1023
        %1025 = vrot.lane.b32.xlu0 %v1002, 96
        %v1026 = vpop.permute.xlu0 %1025
        %1027 = vrot.lane.b32.xlu0 %v1001, 96
        %v1028 = vpop.permute.xlu0 %1027
        %v1042 = vadd.f32 %v951, %v1004
        %v1043 = vadd.f32 %v952, %v1006
        %v1044 = vadd.f32 %v953, %v1008
        %v1045 = vadd.f32 %v954, %v1010
        %v1046 = vadd.f32 %v955, %v1012
        %v1047 = vadd.f32 %v956, %v1014
        %v1048 = vadd.f32 %v957, %v1016
        %v1049 = vadd.f32 %v958, %v1018
        %v1050 = vadd.f32 %v959, %v1020
        %v1051 = vadd.f32 %v960, %v1022
        %v1052 = vadd.f32 %v961, %v1024
        %v1053 = vadd.f32 %v962, %v1026
        %v1054 = vadd.f32 %v963, %v1028
        %1055 = vst.msk [vmem:[#allocation2] sm:$0xff] %vm427, %v1042
        %1056 = vst.msk [vmem:[#allocation2 + $0x8] sm:$0xff] %vm427, %v1043
        %1057 = vst.msk [vmem:[#allocation2 + $0x10] sm:$0xff] %vm427, %v1044
        %1058 = vst.msk [vmem:[#allocation2 + $0x18] sm:$0xff] %vm427, %v1045
        %1059 = vst.msk [vmem:[#allocation2 + $0x20] sm:$0xff] %vm427, %v1046
        %1060 = vst.msk [vmem:[#allocation2 + $0x28] sm:$0xff] %vm427, %v1047
        %1061 = vst.msk [vmem:[#allocation2 + $0x30] sm:$0xff] %vm427, %v1048
        %1062 = vst.msk [vmem:[#allocation2 + $0x38] sm:$0xff] %vm427, %v1049
        %1063 = vst.msk [vmem:[#allocation2 + $0x40] sm:$0xff] %vm427, %v1050
        %1064 = vst.msk [vmem:[#allocation2 + $0x48] sm:$0xff] %vm427, %v1051
        %1065 = vst.msk [vmem:[#allocation2 + $0x50] sm:$0xff] %vm427, %v1052
        %1066 = vst.msk [vmem:[#allocation2 + $0x58] sm:$0xff] %vm427, %v1053
        %1067 = vst.msk [vmem:[#allocation2 + $0x60] sm:$0x7] %vm830, %v1054
        %v1068 = vld [vmem:[#allocation2] sm:$0xff]
        %v1069 = vld [vmem:[#allocation2 + $0x8] sm:$0xff]
        %v1070 = vld [vmem:[#allocation2 + $0x10] sm:$0xff]
        %v1071 = vld [vmem:[#allocation2 + $0x18] sm:$0xff]
        %v1072 = vld [vmem:[#allocation2 + $0x20] sm:$0xff]
        %v1073 = vld [vmem:[#allocation2 + $0x28] sm:$0xff]
        %v1074 = vld [vmem:[#allocation2 + $0x30] sm:$0xff]
        %v1075 = vld [vmem:[#allocation2 + $0x38] sm:$0xff]
        %v1076 = vld [vmem:[#allocation2 + $0x40] sm:$0xff]
        %v1077 = vld [vmem:[#allocation2 + $0x48] sm:$0xff]
        %v1078 = vld [vmem:[#allocation2 + $0x50] sm:$0xff]
        %v1079 = vld [vmem:[#allocation2 + $0x58] sm:$0x7]
        %1080 = vrot.lane.b32.xlu0 %v982, 64
        %v1081 = vpop.permute.xlu0 %1080
        %1082 = vrot.lane.b32.xlu0 %v984, 64
        %v1083 = vpop.permute.xlu0 %1082
        %1084 = vrot.lane.b32.xlu0 %v986, 64
        %v1085 = vpop.permute.xlu0 %1084
        %1086 = vrot.lane.b32.xlu0 %v988, 64
        %v1087 = vpop.permute.xlu0 %1086
        %1088 = vrot.lane.b32.xlu0 %v990, 64
        %v1089 = vpop.permute.xlu0 %1088
        %1090 = vrot.lane.b32.xlu0 %v992, 64
        %v1091 = vpop.permute.xlu0 %1090
        %1092 = vrot.lane.b32.xlu0 %v994, 64
        %v1093 = vpop.permute.xlu0 %1092
        %1094 = vrot.lane.b32.xlu0 %v996, 64
        %v1095 = vpop.permute.xlu0 %1094
        %1096 = vrot.lane.b32.xlu0 %v998, 64
        %v1097 = vpop.permute.xlu0 %1096
        %1098 = vrot.lane.b32.xlu0 %v1000, 64
        %v1099 = vpop.permute.xlu0 %1098
        %1100 = vrot.lane.b32.xlu0 %v1002, 64
        %v1101 = vpop.permute.xlu0 %1100
        %1102 = vrot.lane.b32.xlu0 %v1001, 64
        %v1103 = vpop.permute.xlu0 %1102
        %v1116 = vadd.f32 %v1068, %v1081
        %v1117 = vadd.f32 %v1069, %v1083
        %v1118 = vadd.f32 %v1070, %v1085
        %v1119 = vadd.f32 %v1071, %v1087
        %v1120 = vadd.f32 %v1072, %v1089
        %v1121 = vadd.f32 %v1073, %v1091
        %v1122 = vadd.f32 %v1074, %v1093
        %v1123 = vadd.f32 %v1075, %v1095
        %v1124 = vadd.f32 %v1076, %v1097
        %v1125 = vadd.f32 %v1077, %v1099
        %v1126 = vadd.f32 %v1078, %v1101
        %v1127 = vadd.f32 %v1079, %v1103
        %1128 = vst.msk [vmem:[#allocation2] sm:$0xff] %vm427, %v1116
        %1129 = vst.msk [vmem:[#allocation2 + $0x8] sm:$0xff] %vm427, %v1117
        %1130 = vst.msk [vmem:[#allocation2 + $0x10] sm:$0xff] %vm427, %v1118
        %1131 = vst.msk [vmem:[#allocation2 + $0x18] sm:$0xff] %vm427, %v1119
        %1132 = vst.msk [vmem:[#allocation2 + $0x20] sm:$0xff] %vm427, %v1120
        %1133 = vst.msk [vmem:[#allocation2 + $0x28] sm:$0xff] %vm427, %v1121
        %1134 = vst.msk [vmem:[#allocation2 + $0x30] sm:$0xff] %vm427, %v1122
        %1135 = vst.msk [vmem:[#allocation2 + $0x38] sm:$0xff] %vm427, %v1123
        %1136 = vst.msk [vmem:[#allocation2 + $0x40] sm:$0xff] %vm427, %v1124
        %1137 = vst.msk [vmem:[#allocation2 + $0x48] sm:$0xff] %vm427, %v1125
        %1138 = vst.msk [vmem:[#allocation2 + $0x50] sm:$0xff] %vm427, %v1126
        %1139 = vst.msk [vmem:[#allocation2 + $0x58] sm:$0x7] %vm830, %v1127
        %v1140 = vld [vmem:[#allocation2] sm:$0xff]
        %v1141 = vld [vmem:[#allocation2 + $0x8] sm:$0xff]
        %v1142 = vld [vmem:[#allocation2 + $0x10] sm:$0xff]
        %v1143 = vld [vmem:[#allocation2 + $0x18] sm:$0xff]
        %v1144 = vld [vmem:[#allocation2 + $0x20] sm:$0xff]
        %v1145 = vld [vmem:[#allocation2 + $0x28] sm:$0xff]
        %v1146 = vld [vmem:[#allocation2 + $0x30] sm:$0xff]
        %v1147 = vld [vmem:[#allocation2 + $0x38] sm:$0xff]
        %v1148 = vld [vmem:[#allocation2 + $0x40] sm:$0xff]
        %v1149 = vld [vmem:[#allocation2 + $0x48] sm:$0xff]
        %v1150 = vld [vmem:[#allocation2 + $0x50] sm:$0xff]
        %v1151 = vld [vmem:[#allocation2 + $0x58] sm:$0x3]
        %vm1152 = vcmask 1045504
        %v1153 = vrot.slane %v490, 2
        %v1154 = vrot.slane %v496, 2
        %v1155 = vsel %vm1152, %v1153, %v1154
        %v1156 = vrot.slane %v500, 2
        %v1157 = vsel %vm1152, %v1154, %v1156
        %v1158 = vrot.slane %v506, 2
        %v1159 = vsel %vm1152, %v1156, %v1158
        %v1160 = vrot.slane %v510, 2
        %v1161 = vsel %vm1152, %v1158, %v1160
        %v1162 = vrot.slane %v516, 2
        %v1163 = vsel %vm1152, %v1160, %v1162
        %v1164 = vrot.slane %v520, 2
        %v1165 = vsel %vm1152, %v1162, %v1164
        %v1166 = vrot.slane %v526, 2
        %v1167 = vsel %vm1152, %v1164, %v1166
        %v1168 = vrot.slane %v530, 2
        %v1169 = vsel %vm1152, %v1166, %v1168
        %v1170 = vrot.slane %v536, 2
        %v1171 = vsel %vm1152, %v1168, %v1170
        %v1172 = vrot.slane %v540, 2
        %v1173 = vsel %vm1152, %v1170, %v1172
        %v1174 = vrot.slane %v546, 2
        %v1175 = vsel %vm1152, %v1172, %v1174
        %1176 = vrot.lane.b32.xlu0 %v1155, 32
        %v1177 = vpop.permute.xlu0 %1176
        %1178 = vrot.lane.b32.xlu0 %v1157, 32
        %v1179 = vpop.permute.xlu0 %1178
        %1180 = vrot.lane.b32.xlu0 %v1159, 32
        %v1181 = vpop.permute.xlu0 %1180
        %1182 = vrot.lane.b32.xlu0 %v1161, 32
        %v1183 = vpop.permute.xlu0 %1182
        %1184 = vrot.lane.b32.xlu0 %v1163, 32
        %v1185 = vpop.permute.xlu0 %1184
        %1186 = vrot.lane.b32.xlu0 %v1165, 32
        %v1187 = vpop.permute.xlu0 %1186
        %1188 = vrot.lane.b32.xlu0 %v1167, 32
        %v1189 = vpop.permute.xlu0 %1188
        %1190 = vrot.lane.b32.xlu0 %v1169, 32
        %v1191 = vpop.permute.xlu0 %1190
        %1192 = vrot.lane.b32.xlu0 %v1171, 32
        %v1193 = vpop.permute.xlu0 %1192
        %1194 = vrot.lane.b32.xlu0 %v1173, 32
        %v1195 = vpop.permute.xlu0 %1194
        %1196 = vrot.lane.b32.xlu0 %v1175, 32
        %v1197 = vpop.permute.xlu0 %1196
        %1198 = vrot.lane.b32.xlu0 %v1174, 32
        %v1199 = vpop.permute.xlu0 %1198
        %v1212 = vadd.f32 %v1140, %v1177
        %v1213 = vadd.f32 %v1141, %v1179
        %v1214 = vadd.f32 %v1142, %v1181
        %v1215 = vadd.f32 %v1143, %v1183
        %v1216 = vadd.f32 %v1144, %v1185
        %v1217 = vadd.f32 %v1145, %v1187
        %v1218 = vadd.f32 %v1146, %v1189
        %v1219 = vadd.f32 %v1147, %v1191
        %v1220 = vadd.f32 %v1148, %v1193
        %v1221 = vadd.f32 %v1149, %v1195
        %v1222 = vadd.f32 %v1150, %v1197
        %v1223 = vadd.f32 %v1151, %v1199
        %1224 = vst.msk [vmem:[#allocation2] sm:$0xff] %vm427, %v1212
        %1225 = vst.msk [vmem:[#allocation2 + $0x8] sm:$0xff] %vm427, %v1213
        %1226 = vst.msk [vmem:[#allocation2 + $0x10] sm:$0xff] %vm427, %v1214
        %1227 = vst.msk [vmem:[#allocation2 + $0x18] sm:$0xff] %vm427, %v1215
        %1228 = vst.msk [vmem:[#allocation2 + $0x20] sm:$0xff] %vm427, %v1216
        %1229 = vst.msk [vmem:[#allocation2 + $0x28] sm:$0xff] %vm427, %v1217
        %1230 = vst.msk [vmem:[#allocation2 + $0x30] sm:$0xff] %vm427, %v1218
        %1231 = vst.msk [vmem:[#allocation2 + $0x38] sm:$0xff] %vm427, %v1219
        %1232 = vst.msk [vmem:[#allocation2 + $0x40] sm:$0xff] %vm427, %v1220
        %1233 = vst.msk [vmem:[#allocation2 + $0x48] sm:$0xff] %vm427, %v1221
        %1234 = vst.msk [vmem:[#allocation2 + $0x50] sm:$0xff] %vm427, %v1222
        %1235 = vst.msk [vmem:[#allocation2 + $0x58] sm:$0x3] %vm757, %v1223
        %v1236 = vld [vmem:[#allocation2] sm:$0xff]
        %v1237 = vld [vmem:[#allocation2 + $0x8] sm:$0xff]
        %v1238 = vld [vmem:[#allocation2 + $0x10] sm:$0xff]
        %v1239 = vld [vmem:[#allocation2 + $0x18] sm:$0xff]
        %v1240 = vld [vmem:[#allocation2 + $0x20] sm:$0xff]
        %v1241 = vld [vmem:[#allocation2 + $0x28] sm:$0xff]
        %v1242 = vld [vmem:[#allocation2 + $0x30] sm:$0xff]
        %v1243 = vld [vmem:[#allocation2 + $0x38] sm:$0xff]
        %v1244 = vld [vmem:[#allocation2 + $0x40] sm:$0xff]
        %v1245 = vld [vmem:[#allocation2 + $0x48] sm:$0xff]
        %v1246 = vld [vmem:[#allocation2 + $0x50] sm:$0xff]
        %v1247 = vld [vmem:[#allocation2 + $0x58] sm:$0x1]
        %vm1260 = vcmask 1044480
        %v1261 = vrot.slane %v587, 3
        %v1262 = vrot.slane %v592, 3
        %v1263 = vsel %vm1260, %v1261, %v1262
        %v1264 = vrot.slane %v595, 3
        %v1265 = vsel %vm1260, %v1262, %v1264
        %v1266 = vrot.slane %v600, 3
        %v1267 = vsel %vm1260, %v1264, %v1266
        %v1268 = vrot.slane %v603, 3
        %v1269 = vsel %vm1260, %v1266, %v1268
        %v1270 = vrot.slane %v608, 3
        %v1271 = vsel %vm1260, %v1268, %v1270
        %v1272 = vrot.slane %v611, 3
        %v1273 = vsel %vm1260, %v1270, %v1272
        %v1274 = vrot.slane %v616, 3
        %v1275 = vsel %vm1260, %v1272, %v1274
        %v1276 = vrot.slane %v619, 3
        %v1277 = vsel %vm1260, %v1274, %v1276
        %v1278 = vrot.slane %v624, 3
        %v1279 = vsel %vm1260, %v1276, %v1278
        %v1280 = vrot.slane %v627, 3
        %v1281 = vsel %vm1260, %v1278, %v1280
        %v1282 = vrot.slane %v632, 3
        %v1283 = vsel %vm1260, %v1280, %v1282
        %v1296 = vadd.f32 %v1236, %v1263
        %v1297 = vadd.f32 %v1237, %v1265
        %v1298 = vadd.f32 %v1238, %v1267
        %v1299 = vadd.f32 %v1239, %v1269
        %v1300 = vadd.f32 %v1240, %v1271
        %v1301 = vadd.f32 %v1241, %v1273
        %v1302 = vadd.f32 %v1242, %v1275
        %v1303 = vadd.f32 %v1243, %v1277
        %v1304 = vadd.f32 %v1244, %v1279
        %v1305 = vadd.f32 %v1245, %v1281
        %v1306 = vadd.f32 %v1246, %v1283
        %v1307 = vadd.f32 %v1247, %v1282
        %1308 = vst.msk [vmem:[#allocation2] sm:$0xff] %vm427, %v1296
        %1309 = vst.msk [vmem:[#allocation2 + $0x8] sm:$0xff] %vm427, %v1297
        %1310 = vst.msk [vmem:[#allocation2 + $0x10] sm:$0xff] %vm427, %v1298
        %1311 = vst.msk [vmem:[#allocation2 + $0x18] sm:$0xff] %vm427, %v1299
        %1312 = vst.msk [vmem:[#allocation2 + $0x20] sm:$0xff] %vm427, %v1300
        %1313 = vst.msk [vmem:[#allocation2 + $0x28] sm:$0xff] %vm427, %v1301
        %1314 = vst.msk [vmem:[#allocation2 + $0x30] sm:$0xff] %vm427, %v1302
        %1315 = vst.msk [vmem:[#allocation2 + $0x38] sm:$0xff] %vm427, %v1303
        %1316 = vst.msk [vmem:[#allocation2 + $0x40] sm:$0xff] %vm427, %v1304
        %1317 = vst.msk [vmem:[#allocation2 + $0x48] sm:$0xff] %vm427, %v1305
        %1318 = vst.msk [vmem:[#allocation2 + $0x50] sm:$0xff] %vm427, %v1306
        %1319 = vst.msk [vmem:[#allocation2 + $0x58] sm:$0x1] %vm672, %v1307
      $region48: #{seg_head_forward.9} parent=39 // pred_fallthru
        _
      %p1320 = scmp.eq.s32.totalorder %s23, 2
      // Predicated region
      $region49: #{seg_head_forward.9} parent=39 // pred_check
        %p1321 = pneg %p1320
      $region50: #{seg_head_forward.9} parent=39 // pred_check_branch
        %1323 = sbr.rel (%p1321) target = $region52
      $region51: #{seg_head_forward.9} parent=39 // pred_region
        %v1324 = vld [vmem:[#allocation2] sm:$0xff]
        %v1325 = vld [vmem:[#allocation2 + $0x8] sm:$0xff]
        %v1326 = vld [vmem:[#allocation2 + $0x10] sm:$0xff]
        %v1327 = vld [vmem:[#allocation2 + $0x18] sm:$0xff]
        %v1328 = vld [vmem:[#allocation2 + $0x20] sm:$0xff]
        %v1329 = vld [vmem:[#allocation2 + $0x28] sm:$0xff]
        %v1330 = vld [vmem:[#allocation2 + $0x30] sm:$0xff]
        %v1331 = vld [vmem:[#allocation2 + $0x38] sm:$0xff]
        %v1332 = vld [vmem:[#allocation2 + $0x40] sm:$0xff]
        %v1333 = vld [vmem:[#allocation2 + $0x48] sm:$0xff]
        %v1334 = vld [vmem:[#allocation2 + $0x50] sm:$0xff]
        %v1335 = vld [vmem:[#allocation2 + $0x58] sm:$0xff]
        %v1336 = vld [vmem:[#allocation2 + $0x60] sm:$0xf]
        %v1337 = vld [vmem:[%s2] sm:$0x1]
        %v1339 = vlaneseq
        %v1340 = vshrl.u32 %v1339, 7
        %v1341 = vsub.s32 0, %v1340
        %v1342 = vrot.slane %v1337, %v1341
        %v1344 = vmul.f32 %v1324, %v1342
        %v1345 = vmul.f32 %v1325, %v1342
        %v1346 = vmul.f32 %v1326, %v1342
        %v1347 = vmul.f32 %v1327, %v1342
        %v1348 = vmul.f32 %v1328, %v1342
        %v1349 = vmul.f32 %v1329, %v1342
        %v1350 = vmul.f32 %v1330, %v1342
        %v1351 = vmul.f32 %v1331, %v1342
        %v1352 = vmul.f32 %v1332, %v1342
        %v1353 = vmul.f32 %v1333, %v1342
        %v1354 = vmul.f32 %v1334, %v1342
        %v1355 = vmul.f32 %v1335, %v1342
        %v1356 = vmul.f32 %v1336, %v1342
        %v1357 = vld [vmem:[%s3] sm:$0x1]
        %v1359 = vlaneseq
        %v1360 = vshrl.u32 %v1359, 7
        %v1361 = vsub.s32 0, %v1360
        %v1362 = vrot.slane %v1357, %v1361
        %v1364 = vadd.f32 %v1344, %v1362
        %v1365 = vadd.f32 %v1345, %v1362
        %v1366 = vadd.f32 %v1346, %v1362
        %v1367 = vadd.f32 %v1347, %v1362
        %v1368 = vadd.f32 %v1348, %v1362
        %v1369 = vadd.f32 %v1349, %v1362
        %v1370 = vadd.f32 %v1350, %v1362
        %v1371 = vadd.f32 %v1351, %v1362
        %v1372 = vadd.f32 %v1352, %v1362
        %v1373 = vadd.f32 %v1353, %v1362
        %v1374 = vadd.f32 %v1354, %v1362
        %v1375 = vadd.f32 %v1355, %v1362
        %v1376 = vadd.f32 %v1356, %v1362
        %vm1377 = vcmp.gt.f32.partialorder %v1364, 0.0
        %vm1378 = vcmp.gt.f32.partialorder %v1365, 0.0
        %vm1379 = vcmp.gt.f32.partialorder %v1366, 0.0
        %vm1380 = vcmp.gt.f32.partialorder %v1367, 0.0
        %vm1381 = vcmp.gt.f32.partialorder %v1368, 0.0
        %vm1382 = vcmp.gt.f32.partialorder %v1369, 0.0
        %vm1383 = vcmp.gt.f32.partialorder %v1370, 0.0
        %vm1384 = vcmp.gt.f32.partialorder %v1371, 0.0
        %vm1385 = vcmp.gt.f32.partialorder %v1372, 0.0
        %vm1386 = vcmp.gt.f32.partialorder %v1373, 0.0
        %vm1387 = vcmp.gt.f32.partialorder %v1374, 0.0
        %vm1388 = vcmp.gt.f32.partialorder %v1375, 0.0
        %vm1389 = vcmp.gt.f32.partialorder %v1376, 0.0
        %v1390 = vmul.f32 %v1364, 1e-05
        %v1391 = vmul.f32 %v1365, 1e-05
        %v1392 = vmul.f32 %v1366, 1e-05
        %v1393 = vmul.f32 %v1367, 1e-05
        %v1394 = vmul.f32 %v1368, 1e-05
        %v1395 = vmul.f32 %v1369, 1e-05
        %v1396 = vmul.f32 %v1370, 1e-05
        %v1397 = vmul.f32 %v1371, 1e-05
        %v1398 = vmul.f32 %v1372, 1e-05
        %v1399 = vmul.f32 %v1373, 1e-05
        %v1400 = vmul.f32 %v1374, 1e-05
        %v1401 = vmul.f32 %v1375, 1e-05
        %v1402 = vmul.f32 %v1376, 1e-05
        %v1403 = vsel %vm1377, %v1364, %v1390
        %v1404 = vsel %vm1378, %v1365, %v1391
        %v1405 = vsel %vm1379, %v1366, %v1392
        %v1406 = vsel %vm1380, %v1367, %v1393
        %v1407 = vsel %vm1381, %v1368, %v1394
        %v1408 = vsel %vm1382, %v1369, %v1395
        %v1409 = vsel %vm1383, %v1370, %v1396
        %v1410 = vsel %vm1384, %v1371, %v1397
        %v1411 = vsel %vm1385, %v1372, %v1398
        %v1412 = vsel %vm1386, %v1373, %v1399
        %v1413 = vsel %vm1387, %v1374, %v1400
        %v1414 = vsel %vm1388, %v1375, %v1401
        %v1415 = vsel %vm1389, %v1376, %v1402
        %v1416 = vld [vmem:[%s4] sm:$0xff]
        %v1417 = vld [vmem:[%s4 + $0x8] sm:$0xff]
        %v1418 = vld [vmem:[%s4 + $0x10] sm:$0xff]
        %v1419 = vld [vmem:[%s4 + $0x18] sm:$0xff]
        %v1420 = vld [vmem:[%s4 + $0x20] sm:$0xff]
        %v1421 = vld [vmem:[%s4 + $0x28] sm:$0xff]
        %v1422 = vld [vmem:[%s4 + $0x30] sm:$0xff]
        %v1423 = vld [vmem:[%s4 + $0x38] sm:$0xff]
        %v1424 = vld [vmem:[%s4 + $0x40] sm:$0xff]
        %v1425 = vld [vmem:[%s4 + $0x48] sm:$0xff]
        %v1426 = vld [vmem:[%s4 + $0x50] sm:$0xff]
        %v1427 = vld [vmem:[%s4 + $0x58] sm:$0xff]
        %v1428 = vld [vmem:[%s4 + $0x60] sm:$0xf]
        %1430 = vset.pattern.permute.xlu0 0
        %1431 = vperm.xlu0 %1430, %v1416
        %v1432 = vpop.permute.xlu0 %1431
        %1435 = vset.pattern.permute.xlu0 0
        %1436 = vperm.xlu0 %1435, %v1417
        %v1437 = vpop.permute.xlu0 %1436
        %1440 = vset.pattern.permute.xlu0 0
        %1441 = vperm.xlu0 %1440, %v1418
        %v1442 = vpop.permute.xlu0 %1441
        %1445 = vset.pattern.permute.xlu0 0
        %1446 = vperm.xlu0 %1445, %v1419
        %v1447 = vpop.permute.xlu0 %1446
        %1450 = vset.pattern.permute.xlu0 0
        %1451 = vperm.xlu0 %1450, %v1420
        %v1452 = vpop.permute.xlu0 %1451
        %1455 = vset.pattern.permute.xlu0 0
        %1456 = vperm.xlu0 %1455, %v1421
        %v1457 = vpop.permute.xlu0 %1456
        %1460 = vset.pattern.permute.xlu0 0
        %1461 = vperm.xlu0 %1460, %v1422
        %v1462 = vpop.permute.xlu0 %1461
        %1465 = vset.pattern.permute.xlu0 0
        %1466 = vperm.xlu0 %1465, %v1423
        %v1467 = vpop.permute.xlu0 %1466
        %1470 = vset.pattern.permute.xlu0 0
        %1471 = vperm.xlu0 %1470, %v1424
        %v1472 = vpop.permute.xlu0 %1471
        %1475 = vset.pattern.permute.xlu0 0
        %1476 = vperm.xlu0 %1475, %v1425
        %v1477 = vpop.permute.xlu0 %1476
        %1480 = vset.pattern.permute.xlu0 0
        %1481 = vperm.xlu0 %1480, %v1426
        %v1482 = vpop.permute.xlu0 %1481
        %1485 = vset.pattern.permute.xlu0 0
        %1486 = vperm.xlu0 %1485, %v1427
        %v1487 = vpop.permute.xlu0 %1486
        %1490 = vset.pattern.permute.xlu0 0
        %1491 = vperm.xlu0 %1490, %v1428
        %v1492 = vpop.permute.xlu0 %1491
        %v1494 = vmul.f32 %v1403, %v1432
        %v1495 = vmul.f32 %v1404, %v1437
        %v1496 = vmul.f32 %v1405, %v1442
        %v1497 = vmul.f32 %v1406, %v1447
        %v1498 = vmul.f32 %v1407, %v1452
        %v1499 = vmul.f32 %v1408, %v1457
        %v1500 = vmul.f32 %v1409, %v1462
        %v1501 = vmul.f32 %v1410, %v1467
        %v1502 = vmul.f32 %v1411, %v1472
        %v1503 = vmul.f32 %v1412, %v1477
        %v1504 = vmul.f32 %v1413, %v1482
        %v1505 = vmul.f32 %v1414, %v1487
        %v1506 = vmul.f32 %v1415, %v1492
        %v1507 = vpack.c.bf16 %v1495, %v1494
        %v1508 = vpack.c.bf16 %v1497, %v1496
        %v1509 = vpack.c.bf16 %v1499, %v1498
        %v1510 = vpack.c.bf16 %v1501, %v1500
        %v1511 = vpack.c.bf16 %v1503, %v1502
        %v1512 = vpack.c.bf16 %v1505, %v1504
        %v1513 = vpack.c.bf16 %v1506, %v1506
        %v1521 = vunpack.c.l.b16 %v1507
        %v1522 = vunpack.c.h.b16 %v1507
        %v1523 = vunpack.c.l.b16 %v1508
        %v1524 = vunpack.c.h.b16 %v1508
        %v1525 = vunpack.c.l.b16 %v1509
        %v1526 = vunpack.c.h.b16 %v1509
        %v1527 = vunpack.c.l.b16 %v1510
        %v1528 = vunpack.c.h.b16 %v1510
        %v1529 = vunpack.c.l.b16 %v1511
        %v1530 = vunpack.c.h.b16 %v1511
        %v1531 = vunpack.c.l.b16 %v1512
        %v1532 = vunpack.c.h.b16 %v1512
        %v1533 = vunpack.c.l.b16 %v1513
        %v1534 = vpack.c.b16 %v1521, %v1521
        %v1535 = vpack.c.b16 %v1522, %v1522
        %v1536 = vpack.c.b16 %v1523, %v1523
        %v1537 = vpack.c.b16 %v1524, %v1524
        %v1538 = vpack.c.b16 %v1525, %v1525
        %v1539 = vpack.c.b16 %v1526, %v1526
        %v1540 = vpack.c.b16 %v1527, %v1527
        %v1541 = vpack.c.b16 %v1528, %v1528
        %v1542 = vpack.c.b16 %v1529, %v1529
        %v1543 = vpack.c.b16 %v1530, %v1530
        %v1544 = vpack.c.b16 %v1531, %v1531
        %v1545 = vpack.c.b16 %v1532, %v1532
        %v1546 = vpack.c.b16 %v1533, %v1533
        %vm1560 = vcmask 257024
        %1561 = vst.msk [vmem:[%s309] sm:$0xf] %vm1560, %v1534
        %1562 = vst.msk [vmem:[%s309 + $0x4] sm:$0xf] %vm1560, %v1535
        %1563 = vst.msk [vmem:[%s309 + $0x8] sm:$0xf] %vm1560, %v1536
        %1564 = vst.msk [vmem:[%s309 + $0xc] sm:$0xf] %vm1560, %v1537
        %1565 = vst.msk [vmem:[%s309 + $0x10] sm:$0xf] %vm1560, %v1538
        %1566 = vst.msk [vmem:[%s309 + $0x14] sm:$0xf] %vm1560, %v1539
        %1567 = vst.msk [vmem:[%s309 + $0x18] sm:$0xf] %vm1560, %v1540
        %1568 = vst.msk [vmem:[%s309 + $0x1c] sm:$0xf] %vm1560, %v1541
        %1569 = vst.msk [vmem:[%s309 + $0x20] sm:$0xf] %vm1560, %v1542
        %1570 = vst.msk [vmem:[%s309 + $0x24] sm:$0xf] %vm1560, %v1543
        %1571 = vst.msk [vmem:[%s309 + $0x28] sm:$0xf] %vm1560, %v1544
        %1572 = vst.msk [vmem:[%s309 + $0x2c] sm:$0xf] %vm1560, %v1545
        %vm1573 = vcmask 254976
        %1574 = vst.msk [vmem:[%s309 + $0x30] sm:$0x3] %vm1573, %v1546
      $region52: #{seg_head_forward.9} parent=39 // pred_fallthru
        _
      %p1575 = scmp.lt.s32.totalorder %s21, 1
      %s1576 = scalar_select %p1575, %s21, 1
      %p1577 = scmp.lt.s32.totalorder %s22, 7
      %s1578 = scalar_select %p1577, %s22, 7
      %s1579 = smul.addr %s1578, 13
      %s1580 = smul.addr %s1576, 104
      %s1581 = sadd.s32 %s1579, %s1580
      %s1582 = smul.addr %s1581, 4
      %s1583 = scalar_lea.vmem %s5, %s1582
      // Predicated region
      $region53: #{seg_head_forward.9} parent=39 // pred_check
        %p1584 = pneg %p179
      $region54: #{seg_head_forward.9} parent=39 // pred_check_branch
        %1586 = sbr.rel (%p1584) target = $region56
      $region55: #{seg_head_forward.9} parent=39 // pred_region
        _
      $region56: #{seg_head_forward.9} parent=39 // pred_fallthru
        _
    $region40: #{seg_head_forward.9} parent=5 // pred_fallthru
      _
    %p1587 = scmp.le.s32.totalorder 2, %s11
    // Predicated region
    $region57: #{seg_head_forward.9} parent=5 // pred_check
      %p1588 = pneg %p1587
    $region58: #{seg_head_forward.9} parent=5 // pred_check_branch
      %1590 = sbr.rel (%p1588) target = $region60
    $region59: #{seg_head_forward.9} parent=5 // pred_region
      %s1591 = ssub.s32 %s11, 2
      // Predicated region
      $region61: #{seg_head_forward.9} parent=59 // pred_check
        %p1592 = pneg %p185
      $region62: #{seg_head_forward.9} parent=59 // pred_check_branch
        %1594 = sbr.rel (%p1592) target = $region64
      $region63: #{seg_head_forward.9} parent=59 // pred_region
        %p1595 = scmp.lt.s32.totalorder %s24, 1
        %s1596 = scalar_select %p1595, %s24, 1
        %p1597 = scmp.lt.s32.totalorder %s25, 7
        %s1598 = scalar_select %p1597, %s25, 7
        %s1599 = smul.addr %s1598, 13
        %s1600 = smul.addr %s1596, 104
        %s1601 = sadd.s32 %s1599, %s1600
        %s1602 = smul.addr %s1601, 4
        %s1603 = scalar_lea.vmem %s5, %s1602
      $region64: #{seg_head_forward.9} parent=59 // pred_fallthru
        _
    $region60: #{seg_head_forward.9} parent=5 // pred_fallthru
      _
  $region6: #{seg_head_forward.9} parent=0 // loop_footer
    %s15 = sadd.s32 1, %s11
  $region7: #{seg_head_forward.9} parent=0 // loop_footer_branch
    %10 = sbr.rel target = $region3
  $region8: #{seg_head_forward.9} parent=0 // loop_exit
    _

// kernel: seg_head_forward.10
$region0: #{seg_head_forward.10}
  #allocation0 [shape = 'u32[]', space=smem, size = 0x4, offset = 0x4, fixed_abs, tag = 'smem constant byte address 0x4 - core index']
  #allocation1 [shape = 'u32[144,128]{1,0:T(1,128)}', space=vmem, size = 0x12000, scoped, tag = 'internal scratch']
  %s0 = inlined_call_operand.vmem [shape: bf16[128,864], index: 0, kind: input, shape index: {}]
  %s1 = inlined_call_operand.vmem [shape: bf16[864,64], index: 1, kind: input, shape index: {}]
  %s2 = inlined_call_operand.vmem [shape: f32[1,64], index: 2, kind: input, shape index: {}]
  %s3 = inlined_call_operand.vmem [shape: f32[1,64], index: 3, kind: input, shape index: {}]
  %s4 = inlined_call_operand.vmem [shape: bf16[128,64], index: 4, kind: output, shape index: {}]
  %s5 = sld [smem:[#allocation0]]
  $region26: #{seg_head_forward.10} parent=0
    _
  %s7 = ssub.s32 1, %s5
  %s8 = scalar_select 0, %s7, %s5
  // Predicated region
  $region2: #{seg_head_forward.10} parent=0 // pred_check
    _
  $region3: #{seg_head_forward.10} parent=0 // pred_check_branch
    %10 = sbr.rel (0) target = $region5
  $region4: #{seg_head_forward.10} parent=0 // pred_region
    _
  $region5: #{seg_head_forward.10} parent=0 // pred_fallthru
    _
  // Predicated region
  $region6: #{seg_head_forward.10} parent=0 // pred_check
    _
  $region7: #{seg_head_forward.10} parent=0 // pred_check_branch
    %12 = sbr.rel (0) target = $region9
  $region8: #{seg_head_forward.10} parent=0 // pred_region
    _
  $region9: #{seg_head_forward.10} parent=0 // pred_fallthru
    _
  // Predicated region
  $region10: #{seg_head_forward.10} parent=0 // pred_check
    _
  $region11: #{seg_head_forward.10} parent=0 // pred_check_branch
    %14 = sbr.rel (0) target = $region13
  $region12: #{seg_head_forward.10} parent=0 // pred_region
    _
  $region13: #{seg_head_forward.10} parent=0 // pred_fallthru
    _
  // Predicated region
  $region14: #{seg_head_forward.10} parent=0 // pred_check
    _
  $region15: #{seg_head_forward.10} parent=0 // pred_check_branch
    %16 = sbr.rel (0) target = $region17
  $region16: #{seg_head_forward.10} parent=0 // pred_region
    _
  $region17: #{seg_head_forward.10} parent=0 // pred_fallthru
    _
  %v18 = vld [vmem:[%s0] sm:$0xff]
  %v19 = vld [vmem:[%s0 + $0x8] sm:$0xff]
  %v20 = vld [vmem:[%s0 + $0x10] sm:$0xff]
  %v21 = vld [vmem:[%s0 + $0x18] sm:$0xf]
  %v22 = vld [vmem:[%s0 + $0x1c] sm:$0xff]
  %v23 = vld [vmem:[%s0 + $0x24] sm:$0xff]
  %v24 = vld [vmem:[%s0 + $0x2c] sm:$0xff]
  %v25 = vld [vmem:[%s0 + $0x34] sm:$0xf]
  %v26 = vld [vmem:[%s0 + $0x38] sm:$0xff]
  %v27 = vld [vmem:[%s0 + $0x40] sm:$0xff]
  %v28 = vld [vmem:[%s0 + $0x48] sm:$0xff]
  %v29 = vld [vmem:[%s0 + $0x50] sm:$0xf]
  %v30 = vld [vmem:[%s0 + $0x54] sm:$0xff]
  %v31 = vld [vmem:[%s0 + $0x5c] sm:$0xff]
  %v32 = vld [vmem:[%s0 + $0x64] sm:$0xff]
  %v33 = vld [vmem:[%s0 + $0x6c] sm:$0xf]
  %v34 = vld [vmem:[%s0 + $0x70] sm:$0xff]
  %v35 = vld [vmem:[%s0 + $0x78] sm:$0xff]
  %v36 = vld [vmem:[%s0 + $0x80] sm:$0xff]
  %v37 = vld [vmem:[%s0 + $0x88] sm:$0xf]
  %v38 = vld [vmem:[%s0 + $0x8c] sm:$0xff]
  %v39 = vld [vmem:[%s0 + $0x94] sm:$0xff]
  %v40 = vld [vmem:[%s0 + $0x9c] sm:$0xff]
  %v41 = vld [vmem:[%s0 + $0xa4] sm:$0xf]
  %v42 = vld [vmem:[%s0 + $0xa8] sm:$0xff]
  %v43 = vld [vmem:[%s0 + $0xb0] sm:$0xff]
  %v44 = vld [vmem:[%s0 + $0xb8] sm:$0xff]
  %v45 = vld [vmem:[%s0 + $0xc0] sm:$0xf]
  %v46 = vld [vmem:[%s0 + $0xc4] sm:$0xff]
  %v47 = vld [vmem:[%s0 + $0xcc] sm:$0xff]
  %v48 = vld [vmem:[%s0 + $0xd4] sm:$0xff]
  %v49 = vld [vmem:[%s0 + $0xdc] sm:$0xf]
  %v50 = vld [vmem:[%s0 + $0xe0] sm:$0xff]
  %v51 = vld [vmem:[%s0 + $0xe8] sm:$0xff]
  %v52 = vld [vmem:[%s0 + $0xf0] sm:$0xff]
  %v53 = vld [vmem:[%s0 + $0xf8] sm:$0xf]
  %v54 = vld [vmem:[%s0 + $0xfc] sm:$0xff]
  %v55 = vld [vmem:[%s0 + $0x104] sm:$0xff]
  %v56 = vld [vmem:[%s0 + $0x10c] sm:$0xff]
  %v57 = vld [vmem:[%s0 + $0x114] sm:$0xf]
  %v58 = vld [vmem:[%s0 + $0x118] sm:$0xff]
  %v59 = vld [vmem:[%s0 + $0x120] sm:$0xff]
  %v60 = vld [vmem:[%s0 + $0x128] sm:$0xff]
  %v61 = vld [vmem:[%s0 + $0x130] sm:$0xf]
  %v62 = vld [vmem:[%s0 + $0x134] sm:$0xff]
  %v63 = vld [vmem:[%s0 + $0x13c] sm:$0xff]
  %v64 = vld [vmem:[%s0 + $0x144] sm:$0xff]
  %v65 = vld [vmem:[%s0 + $0x14c] sm:$0xf]
  %v66 = vld [vmem:[%s0 + $0x150] sm:$0xff]
  %v67 = vld [vmem:[%s0 + $0x158] sm:$0xff]
  %v68 = vld [vmem:[%s0 + $0x160] sm:$0xff]
  %v69 = vld [vmem:[%s0 + $0x168] sm:$0xf]
  %v70 = vld [vmem:[%s0 + $0x16c] sm:$0xff]
  %v71 = vld [vmem:[%s0 + $0x174] sm:$0xff]
  %v72 = vld [vmem:[%s0 + $0x17c] sm:$0xff]
  %v73 = vld [vmem:[%s0 + $0x184] sm:$0xf]
  %v74 = vld [vmem:[%s0 + $0x188] sm:$0xff]
  %v75 = vld [vmem:[%s0 + $0x190] sm:$0xff]
  %v76 = vld [vmem:[%s0 + $0x198] sm:$0xff]
  %v77 = vld [vmem:[%s0 + $0x1a0] sm:$0xf]
  %v78 = vld [vmem:[%s0 + $0x1a4] sm:$0xff]
  %v79 = vld [vmem:[%s0 + $0x1ac] sm:$0xff]
  %v80 = vld [vmem:[%s0 + $0x1b4] sm:$0xff]
  %v81 = vld [vmem:[%s0 + $0x1bc] sm:$0xf]
  %v82 = vld [vmem:[%s1] sm:$0xf]
  %v83 = vld [vmem:[%s1 + $0x4] sm:$0xf]
  %v84 = vld [vmem:[%s1 + $0x8] sm:$0xf]
  %v85 = vld [vmem:[%s1 + $0xc] sm:$0xf]
  %v86 = vld [vmem:[%s1 + $0x10] sm:$0xf]
  %v87 = vld [vmem:[%s1 + $0x14] sm:$0xf]
  %v88 = vld [vmem:[%s1 + $0x18] sm:$0xf]
  %v89 = vld [vmem:[%s1 + $0x1c] sm:$0xf]
  %v90 = vld [vmem:[%s1 + $0x20] sm:$0xf]
  %v91 = vld [vmem:[%s1 + $0x24] sm:$0xf]
  %v92 = vld [vmem:[%s1 + $0x28] sm:$0xf]
  %v93 = vld [vmem:[%s1 + $0x2c] sm:$0xf]
  %v94 = vld [vmem:[%s1 + $0x30] sm:$0xf]
  %v95 = vld [vmem:[%s1 + $0x34] sm:$0xf]
  %v96 = vld [vmem:[%s1 + $0x38] sm:$0xf]
  %v97 = vld [vmem:[%s1 + $0x3c] sm:$0xf]
  %v98 = vld [vmem:[%s1 + $0x40] sm:$0xf]
  %v99 = vld [vmem:[%s1 + $0x44] sm:$0xf]
  %v100 = vld [vmem:[%s1 + $0x48] sm:$0xf]
  %v101 = vld [vmem:[%s1 + $0x4c] sm:$0xf]
  %v102 = vld [vmem:[%s1 + $0x50] sm:$0xf]
  %v103 = vld [vmem:[%s1 + $0x54] sm:$0xf]
  %v104 = vld [vmem:[%s1 + $0x58] sm:$0xf]
  %v105 = vld [vmem:[%s1 + $0x5c] sm:$0xf]
  %v106 = vld [vmem:[%s1 + $0x60] sm:$0xf]
  %v107 = vld [vmem:[%s1 + $0x64] sm:$0xf]
  %v108 = vld [vmem:[%s1 + $0x68] sm:$0xf]
  %v109 = vld [vmem:[%s1 + $0x6c] sm:$0xf]
  %v110 = vld [vmem:[%s1 + $0x70] sm:$0xf]
  %v111 = vld [vmem:[%s1 + $0x74] sm:$0xf]
  %v112 = vld [vmem:[%s1 + $0x78] sm:$0xf]
  %v113 = vld [vmem:[%s1 + $0x7c] sm:$0xf]
  %v114 = vld [vmem:[%s1 + $0x80] sm:$0xf]
  %v115 = vld [vmem:[%s1 + $0x84] sm:$0xf]
  %v116 = vld [vmem:[%s1 + $0x88] sm:$0xf]
  %v117 = vld [vmem:[%s1 + $0x8c] sm:$0xf]
  %v118 = vld [vmem:[%s1 + $0x90] sm:$0xf]
  %v119 = vld [vmem:[%s1 + $0x94] sm:$0xf]
  %v120 = vld [vmem:[%s1 + $0x98] sm:$0xf]
  %v121 = vld [vmem:[%s1 + $0x9c] sm:$0xf]
  %v122 = vld [vmem:[%s1 + $0xa0] sm:$0xf]
  %v123 = vld [vmem:[%s1 + $0xa4] sm:$0xf]
  %v124 = vld [vmem:[%s1 + $0xa8] sm:$0xf]
  %v125 = vld [vmem:[%s1 + $0xac] sm:$0xf]
  %v126 = vld [vmem:[%s1 + $0xb0] sm:$0xf]
  %v127 = vld [vmem:[%s1 + $0xb4] sm:$0xf]
  %v128 = vld [vmem:[%s1 + $0xb8] sm:$0xf]
  %v129 = vld [vmem:[%s1 + $0xbc] sm:$0xf]
  %v130 = vld [vmem:[%s1 + $0xc0] sm:$0xf]
  %v131 = vld [vmem:[%s1 + $0xc4] sm:$0xf]
  %v132 = vld [vmem:[%s1 + $0xc8] sm:$0xf]
  %v133 = vld [vmem:[%s1 + $0xcc] sm:$0xf]
  %v134 = vld [vmem:[%s1 + $0xd0] sm:$0xf]
  %v135 = vld [vmem:[%s1 + $0xd4] sm:$0xf]
  %v136 = vld [vmem:[%s1 + $0xd8] sm:$0xf]
  %v137 = vld [vmem:[%s1 + $0xdc] sm:$0xf]
  %v138 = vld [vmem:[%s1 + $0xe0] sm:$0xf]
  %v139 = vld [vmem:[%s1 + $0xe4] sm:$0xf]
  %v140 = vld [vmem:[%s1 + $0xe8] sm:$0xf]
  %v141 = vld [vmem:[%s1 + $0xec] sm:$0xf]
  %v142 = vld [vmem:[%s1 + $0xf0] sm:$0xf]
  %v143 = vld [vmem:[%s1 + $0xf4] sm:$0xf]
  %v144 = vld [vmem:[%s1 + $0xf8] sm:$0xf]
  %v145 = vld [vmem:[%s1 + $0xfc] sm:$0xf]
  %v146 = vld [vmem:[%s1 + $0x100] sm:$0xf]
  %v147 = vld [vmem:[%s1 + $0x104] sm:$0xf]
  %v148 = vld [vmem:[%s1 + $0x108] sm:$0xf]
  %v149 = vld [vmem:[%s1 + $0x10c] sm:$0xf]
  %v150 = vld [vmem:[%s1 + $0x110] sm:$0xf]
  %v151 = vld [vmem:[%s1 + $0x114] sm:$0xf]
  %v152 = vld [vmem:[%s1 + $0x118] sm:$0xf]
  %v153 = vld [vmem:[%s1 + $0x11c] sm:$0xf]
  %v154 = vld [vmem:[%s1 + $0x120] sm:$0xf]
  %v155 = vld [vmem:[%s1 + $0x124] sm:$0xf]
  %v156 = vld [vmem:[%s1 + $0x128] sm:$0xf]
  %v157 = vld [vmem:[%s1 + $0x12c] sm:$0xf]
  %v158 = vld [vmem:[%s1 + $0x130] sm:$0xf]
  %v159 = vld [vmem:[%s1 + $0x134] sm:$0xf]
  %v160 = vld [vmem:[%s1 + $0x138] sm:$0xf]
  %v161 = vld [vmem:[%s1 + $0x13c] sm:$0xf]
  %v162 = vld [vmem:[%s1 + $0x140] sm:$0xf]
  %v163 = vld [vmem:[%s1 + $0x144] sm:$0xf]
  %v164 = vld [vmem:[%s1 + $0x148] sm:$0xf]
  %v165 = vld [vmem:[%s1 + $0x14c] sm:$0xf]
  %v166 = vld [vmem:[%s1 + $0x150] sm:$0xf]
  %v167 = vld [vmem:[%s1 + $0x154] sm:$0xf]
  %v168 = vld [vmem:[%s1 + $0x158] sm:$0xf]
  %v169 = vld [vmem:[%s1 + $0x15c] sm:$0xf]
  %v170 = vld [vmem:[%s1 + $0x160] sm:$0xf]
  %v171 = vld [vmem:[%s1 + $0x164] sm:$0xf]
  %v172 = vld [vmem:[%s1 + $0x168] sm:$0xf]
  %v173 = vld [vmem:[%s1 + $0x16c] sm:$0xf]
  %v174 = vld [vmem:[%s1 + $0x170] sm:$0xf]
  %v175 = vld [vmem:[%s1 + $0x174] sm:$0xf]
  %v176 = vld [vmem:[%s1 + $0x178] sm:$0xf]
  %v177 = vld [vmem:[%s1 + $0x17c] sm:$0xf]
  %v178 = vld [vmem:[%s1 + $0x180] sm:$0xf]
  %v179 = vld [vmem:[%s1 + $0x184] sm:$0xf]
  %v180 = vld [vmem:[%s1 + $0x188] sm:$0xf]
  %v181 = vld [vmem:[%s1 + $0x18c] sm:$0xf]
  %v182 = vld [vmem:[%s1 + $0x190] sm:$0xf]
  %v183 = vld [vmem:[%s1 + $0x194] sm:$0xf]
  %v184 = vld [vmem:[%s1 + $0x198] sm:$0xf]
  %v185 = vld [vmem:[%s1 + $0x19c] sm:$0xf]
  %v186 = vld [vmem:[%s1 + $0x1a0] sm:$0xf]
  %v187 = vld [vmem:[%s1 + $0x1a4] sm:$0xf]
  %v188 = vld [vmem:[%s1 + $0x1a8] sm:$0xf]
  %v189 = vld [vmem:[%s1 + $0x1ac] sm:$0xf]
  %v254 = vunpack.c.l.b16 %v18
  %v255 = vunpack.c.h.b16 %v18
  %v256 = vunpack.c.l.b16 %v19
  %v257 = vunpack.c.h.b16 %v19
  %v258 = vunpack.c.l.b16 %v20
  %v259 = vunpack.c.h.b16 %v20
  %v260 = vunpack.c.l.b16 %v21
  %v261 = vunpack.c.l.b16 %v22
  %v262 = vunpack.c.h.b16 %v22
  %v263 = vunpack.c.l.b16 %v23
  %v264 = vunpack.c.h.b16 %v23
  %v265 = vunpack.c.l.b16 %v24
  %v266 = vunpack.c.h.b16 %v24
  %v267 = vunpack.c.l.b16 %v25
  %v268 = vunpack.c.l.b16 %v26
  %v269 = vunpack.c.h.b16 %v26
  %v270 = vunpack.c.l.b16 %v27
  %v271 = vunpack.c.h.b16 %v27
  %v272 = vunpack.c.l.b16 %v28
  %v273 = vunpack.c.h.b16 %v28
  %v274 = vunpack.c.l.b16 %v29
  %v275 = vunpack.c.l.b16 %v30
  %v276 = vunpack.c.h.b16 %v30
  %v277 = vunpack.c.l.b16 %v31
  %v278 = vunpack.c.h.b16 %v31
  %v279 = vunpack.c.l.b16 %v32
  %v280 = vunpack.c.h.b16 %v32
  %v281 = vunpack.c.l.b16 %v33
  %v282 = vunpack.c.l.b16 %v34
  %v283 = vunpack.c.h.b16 %v34
  %v284 = vunpack.c.l.b16 %v35
  %v285 = vunpack.c.h.b16 %v35
  %v286 = vunpack.c.l.b16 %v36
  %v287 = vunpack.c.h.b16 %v36
  %v288 = vunpack.c.l.b16 %v37
  %v289 = vunpack.c.l.b16 %v38
  %v290 = vunpack.c.h.b16 %v38
  %v291 = vunpack.c.l.b16 %v39
  %v292 = vunpack.c.h.b16 %v39
  %v293 = vunpack.c.l.b16 %v40
  %v294 = vunpack.c.h.b16 %v40
  %v295 = vunpack.c.l.b16 %v41
  %v296 = vunpack.c.l.b16 %v42
  %v297 = vunpack.c.h.b16 %v42
  %v298 = vunpack.c.l.b16 %v43
  %v299 = vunpack.c.h.b16 %v43
  %v300 = vunpack.c.l.b16 %v44
  %v301 = vunpack.c.h.b16 %v44
  %v302 = vunpack.c.l.b16 %v45
  %v303 = vunpack.c.l.b16 %v46
  %v304 = vunpack.c.h.b16 %v46
  %v305 = vunpack.c.l.b16 %v47
  %v306 = vunpack.c.h.b16 %v47
  %v307 = vunpack.c.l.b16 %v48
  %v308 = vunpack.c.h.b16 %v48
  %v309 = vunpack.c.l.b16 %v49
  %v310 = vunpack.c.l.b16 %v50
  %v311 = vunpack.c.h.b16 %v50
  %v312 = vunpack.c.l.b16 %v51
  %v313 = vunpack.c.h.b16 %v51
  %v314 = vunpack.c.l.b16 %v52
  %v315 = vunpack.c.h.b16 %v52
  %v316 = vunpack.c.l.b16 %v53
  %v317 = vunpack.c.l.b16 %v54
  %v318 = vunpack.c.h.b16 %v54
  %v319 = vunpack.c.l.b16 %v55
  %v320 = vunpack.c.h.b16 %v55
  %v321 = vunpack.c.l.b16 %v56
  %v322 = vunpack.c.h.b16 %v56
  %v323 = vunpack.c.l.b16 %v57
  %v324 = vunpack.c.l.b16 %v58
  %v325 = vunpack.c.h.b16 %v58
  %v326 = vunpack.c.l.b16 %v59
  %v327 = vunpack.c.h.b16 %v59
  %v328 = vunpack.c.l.b16 %v60
  %v329 = vunpack.c.h.b16 %v60
  %v330 = vunpack.c.l.b16 %v61
  %v331 = vunpack.c.l.b16 %v62
  %v332 = vunpack.c.h.b16 %v62
  %v333 = vunpack.c.l.b16 %v63
  %v334 = vunpack.c.h.b16 %v63
  %v335 = vunpack.c.l.b16 %v64
  %v336 = vunpack.c.h.b16 %v64
  %v337 = vunpack.c.l.b16 %v65
  %v338 = vunpack.c.l.b16 %v66
  %v339 = vunpack.c.h.b16 %v66
  %v340 = vunpack.c.l.b16 %v67
  %v341 = vunpack.c.h.b16 %v67
  %v342 = vunpack.c.l.b16 %v68
  %v343 = vunpack.c.h.b16 %v68
  %v344 = vunpack.c.l.b16 %v69
  %v345 = vunpack.c.l.b16 %v70
  %v346 = vunpack.c.h.b16 %v70
  %v347 = vunpack.c.l.b16 %v71
  %v348 = vunpack.c.h.b16 %v71
  %v349 = vunpack.c.l.b16 %v72
  %v350 = vunpack.c.h.b16 %v72
  %v351 = vunpack.c.l.b16 %v73
  %v352 = vunpack.c.l.b16 %v74
  %v353 = vunpack.c.h.b16 %v74
  %v354 = vunpack.c.l.b16 %v75
  %v355 = vunpack.c.h.b16 %v75
  %v356 = vunpack.c.l.b16 %v76
  %v357 = vunpack.c.h.b16 %v76
  %v358 = vunpack.c.l.b16 %v77
  %v359 = vunpack.c.l.b16 %v78
  %v360 = vunpack.c.h.b16 %v78
  %v361 = vunpack.c.l.b16 %v79
  %v362 = vunpack.c.h.b16 %v79
  %v363 = vunpack.c.l.b16 %v80
  %v364 = vunpack.c.h.b16 %v80
  %v365 = vunpack.c.l.b16 %v81
  %v366 = vpack.c.b16 %v261, %v254
  %v367 = vpack.c.b16 %v262, %v255
  %v368 = vpack.c.b16 %v263, %v256
  %v369 = vpack.c.b16 %v264, %v257
  %v370 = vpack.c.b16 %v265, %v258
  %v371 = vpack.c.b16 %v266, %v259
  %v372 = vpack.c.b16 %v267, %v260
  %v373 = vpack.c.b16 %v275, %v268
  %v374 = vpack.c.b16 %v276, %v269
  %v375 = vpack.c.b16 %v277, %v270
  %v376 = vpack.c.b16 %v278, %v271
  %v377 = vpack.c.b16 %v279, %v272
  %v378 = vpack.c.b16 %v280, %v273
  %v379 = vpack.c.b16 %v281, %v274
  %v380 = vpack.c.b16 %v289, %v282
  %v381 = vpack.c.b16 %v290, %v283
  %v382 = vpack.c.b16 %v291, %v284
  %v383 = vpack.c.b16 %v292, %v285
  %v384 = vpack.c.b16 %v293, %v286
  %v385 = vpack.c.b16 %v294, %v287
  %v386 = vpack.c.b16 %v295, %v288
  %v387 = vpack.c.b16 %v303, %v296
  %v388 = vpack.c.b16 %v304, %v297
  %v389 = vpack.c.b16 %v305, %v298
  %v390 = vpack.c.b16 %v306, %v299
  %v391 = vpack.c.b16 %v307, %v300
  %v392 = vpack.c.b16 %v308, %v301
  %v393 = vpack.c.b16 %v309, %v302
  %v394 = vpack.c.b16 %v317, %v310
  %v395 = vpack.c.b16 %v318, %v311
  %v396 = vpack.c.b16 %v319, %v312
  %v397 = vpack.c.b16 %v320, %v313
  %v398 = vpack.c.b16 %v321, %v314
  %v399 = vpack.c.b16 %v322, %v315
  %v400 = vpack.c.b16 %v323, %v316
  %v401 = vpack.c.b16 %v331, %v324
  %v402 = vpack.c.b16 %v332, %v325
  %v403 = vpack.c.b16 %v333, %v326
  %v404 = vpack.c.b16 %v334, %v327
  %v405 = vpack.c.b16 %v335, %v328
  %v406 = vpack.c.b16 %v336, %v329
  %v407 = vpack.c.b16 %v337, %v330
  %v408 = vpack.c.b16 %v345, %v338
  %v409 = vpack.c.b16 %v346, %v339
  %v410 = vpack.c.b16 %v347, %v340
  %v411 = vpack.c.b16 %v348, %v341
  %v412 = vpack.c.b16 %v349, %v342
  %v413 = vpack.c.b16 %v350, %v343
  %v414 = vpack.c.b16 %v351, %v344
  %v415 = vpack.c.b16 %v359, %v352
  %v416 = vpack.c.b16 %v360, %v353
  %v417 = vpack.c.b16 %v361, %v354
  %v418 = vpack.c.b16 %v362, %v355
  %v419 = vpack.c.b16 %v363, %v356
  %v420 = vpack.c.b16 %v364, %v357
  %v421 = vpack.c.b16 %v365, %v358
  %v578 = vunpack.c.l.b16 %v82
  %v579 = vunpack.c.l.b16 %v83
  %v580 = vunpack.c.l.b16 %v84
  %v581 = vunpack.c.l.b16 %v85
  %v582 = vunpack.c.l.b16 %v86
  %v583 = vunpack.c.l.b16 %v87
  %v584 = vunpack.c.l.b16 %v88
  %v585 = vunpack.c.l.b16 %v89
  %v586 = vunpack.c.l.b16 %v90
  %v587 = vunpack.c.l.b16 %v91
  %v588 = vunpack.c.l.b16 %v92
  %v589 = vunpack.c.l.b16 %v93
  %v590 = vunpack.c.l.b16 %v94
  %v591 = vunpack.c.l.b16 %v95
  %v592 = vunpack.c.l.b16 %v96
  %v593 = vunpack.c.l.b16 %v97
  %v594 = vunpack.c.l.b16 %v98
  %v595 = vunpack.c.l.b16 %v99
  %v596 = vunpack.c.l.b16 %v100
  %v597 = vunpack.c.l.b16 %v101
  %v598 = vunpack.c.l.b16 %v102
  %v599 = vunpack.c.l.b16 %v103
  %v600 = vunpack.c.l.b16 %v104
  %v601 = vunpack.c.l.b16 %v105
  %v602 = vunpack.c.l.b16 %v106
  %v603 = vunpack.c.l.b16 %v107
  %v604 = vunpack.c.l.b16 %v108
  %v605 = vunpack.c.l.b16 %v109
  %v606 = vunpack.c.l.b16 %v110
  %v607 = vunpack.c.l.b16 %v111
  %v608 = vunpack.c.l.b16 %v112
  %v609 = vunpack.c.l.b16 %v113
  %v610 = vunpack.c.l.b16 %v114
  %v611 = vunpack.c.l.b16 %v115
  %v612 = vunpack.c.l.b16 %v116
  %v613 = vunpack.c.l.b16 %v117
  %v614 = vunpack.c.l.b16 %v118
  %v615 = vunpack.c.l.b16 %v119
  %v616 = vunpack.c.l.b16 %v120
  %v617 = vunpack.c.l.b16 %v121
  %v618 = vunpack.c.l.b16 %v122
  %v619 = vunpack.c.l.b16 %v123
  %v620 = vunpack.c.l.b16 %v124
  %v621 = vunpack.c.l.b16 %v125
  %v622 = vunpack.c.l.b16 %v126
  %v623 = vunpack.c.l.b16 %v127
  %v624 = vunpack.c.l.b16 %v128
  %v625 = vunpack.c.l.b16 %v129
  %v626 = vunpack.c.l.b16 %v130
  %v627 = vunpack.c.l.b16 %v131
  %v628 = vunpack.c.l.b16 %v132
  %v629 = vunpack.c.l.b16 %v133
  %v630 = vunpack.c.l.b16 %v134
  %v631 = vunpack.c.l.b16 %v135
  %v632 = vunpack.c.l.b16 %v136
  %v633 = vunpack.c.l.b16 %v137
  %v634 = vunpack.c.l.b16 %v138
  %v635 = vunpack.c.l.b16 %v139
  %v636 = vunpack.c.l.b16 %v140
  %v637 = vunpack.c.l.b16 %v141
  %v638 = vunpack.c.l.b16 %v142
  %v639 = vunpack.c.l.b16 %v143
  %v640 = vunpack.c.l.b16 %v144
  %v641 = vunpack.c.l.b16 %v145
  %v642 = vunpack.c.l.b16 %v146
  %v643 = vunpack.c.l.b16 %v147
  %v644 = vunpack.c.l.b16 %v148
  %v645 = vunpack.c.l.b16 %v149
  %v646 = vunpack.c.l.b16 %v150
  %v647 = vunpack.c.l.b16 %v151
  %v648 = vunpack.c.l.b16 %v152
  %v649 = vunpack.c.l.b16 %v153
  %v650 = vunpack.c.l.b16 %v154
  %v651 = vunpack.c.l.b16 %v155
  %v652 = vunpack.c.l.b16 %v156
  %v653 = vunpack.c.l.b16 %v157
  %v654 = vunpack.c.l.b16 %v158
  %v655 = vunpack.c.l.b16 %v159
  %v656 = vunpack.c.l.b16 %v160
  %v657 = vunpack.c.l.b16 %v161
  %v658 = vunpack.c.l.b16 %v162
  %v659 = vunpack.c.l.b16 %v163
  %v660 = vunpack.c.l.b16 %v164
  %v661 = vunpack.c.l.b16 %v165
  %v662 = vunpack.c.l.b16 %v166
  %v663 = vunpack.c.l.b16 %v167
  %v664 = vunpack.c.l.b16 %v168
  %v665 = vunpack.c.l.b16 %v169
  %v666 = vunpack.c.l.b16 %v170
  %v667 = vunpack.c.l.b16 %v171
  %v668 = vunpack.c.l.b16 %v172
  %v669 = vunpack.c.l.b16 %v173
  %v670 = vunpack.c.l.b16 %v174
  %v671 = vunpack.c.l.b16 %v175
  %v672 = vunpack.c.l.b16 %v176
  %v673 = vunpack.c.l.b16 %v177
  %v674 = vunpack.c.l.b16 %v178
  %v675 = vunpack.c.l.b16 %v179
  %v676 = vunpack.c.l.b16 %v180
  %v677 = vunpack.c.l.b16 %v181
  %v678 = vunpack.c.l.b16 %v182
  %v679 = vunpack.c.l.b16 %v183
  %v680 = vunpack.c.l.b16 %v184
  %v681 = vunpack.c.l.b16 %v185
  %v682 = vunpack.c.l.b16 %v186
  %v683 = vunpack.c.l.b16 %v187
  %v684 = vunpack.c.l.b16 %v188
  %v685 = vunpack.c.l.b16 %v189
  %v686 = vpack.c.b16 %v579, %v578
  %v687 = vpack.c.b16 %v581, %v580
  %v688 = vpack.c.b16 %v583, %v582
  %v689 = vpack.c.b16 %v585, %v584
  %v690 = vpack.c.b16 %v587, %v586
  %v691 = vpack.c.b16 %v589, %v588
  %v692 = vpack.c.b16 %v591, %v590
  %v693 = vpack.c.b16 %v593, %v592
  %v694 = vpack.c.b16 %v595, %v594
  %v695 = vpack.c.b16 %v597, %v596
  %v696 = vpack.c.b16 %v599, %v598
  %v697 = vpack.c.b16 %v601, %v600
  %v698 = vpack.c.b16 %v603, %v602
  %v699 = vpack.c.b16 %v605, %v604
  %v700 = vpack.c.b16 %v607, %v606
  %v701 = vpack.c.b16 %v609, %v608
  %v702 = vpack.c.b16 %v611, %v610
  %v703 = vpack.c.b16 %v613, %v612
  %v704 = vpack.c.b16 %v615, %v614
  %v705 = vpack.c.b16 %v617, %v616
  %v706 = vpack.c.b16 %v619, %v618
  %v707 = vpack.c.b16 %v621, %v620
  %v708 = vpack.c.b16 %v623, %v622
  %v709 = vpack.c.b16 %v625, %v624
  %v710 = vpack.c.b16 %v627, %v626
  %v711 = vpack.c.b16 %v629, %v628
  %v712 = vpack.c.b16 %v631, %v630
  %v713 = vpack.c.b16 %v633, %v632
  %v714 = vpack.c.b16 %v635, %v634
  %v715 = vpack.c.b16 %v637, %v636
  %v716 = vpack.c.b16 %v639, %v638
  %v717 = vpack.c.b16 %v641, %v640
  %v718 = vpack.c.b16 %v643, %v642
  %v719 = vpack.c.b16 %v645, %v644
  %v720 = vpack.c.b16 %v647, %v646
  %v721 = vpack.c.b16 %v649, %v648
  %v722 = vpack.c.b16 %v651, %v650
  %v723 = vpack.c.b16 %v653, %v652
  %v724 = vpack.c.b16 %v655, %v654
  %v725 = vpack.c.b16 %v657, %v656
  %v726 = vpack.c.b16 %v659, %v658
  %v727 = vpack.c.b16 %v661, %v660
  %v728 = vpack.c.b16 %v663, %v662
  %v729 = vpack.c.b16 %v665, %v664
  %v730 = vpack.c.b16 %v667, %v666
  %v731 = vpack.c.b16 %v669, %v668
  %v732 = vpack.c.b16 %v671, %v670
  %v733 = vpack.c.b16 %v673, %v672
  %v734 = vpack.c.b16 %v675, %v674
  %v735 = vpack.c.b16 %v677, %v676
  %v736 = vpack.c.b16 %v679, %v678
  %v737 = vpack.c.b16 %v681, %v680
  %v738 = vpack.c.b16 %v683, %v682
  %v739 = vpack.c.b16 %v685, %v684
  %vm794 = vcmask 785408
  %v796 = vsel %vm794, %v372, 0
  %v799 = vsel %vm794, %v379, 0
  %v802 = vsel %vm794, %v386, 0
  %v805 = vsel %vm794, %v393, 0
  %v808 = vsel %vm794, %v400, 0
  %v811 = vsel %vm794, %v407, 0
  %v814 = vsel %vm794, %v414, 0
  %v817 = vsel %vm794, %v421, 0
  %819 = vmatprep.subr.bf16.mxu0 0
  %820 = vmatpush1.bf16.msra.mxu0 %v693
  %821 = vmatprep.subr.bf16.mxu0 0
  %822 = vmatpush1.bf16.msra.mxu0 %v692
  %823 = vmatprep.subr.bf16.mxu0 0
  %824 = vmatpush1.bf16.msra.mxu0 %v691
  %825 = vmatprep.subr.bf16.mxu0 0
  %826 = vmatpush1.bf16.msra.mxu0 %v690
  %827 = vmatprep.subr.bf16.mxu0 0
  %828 = vmatpush1.bf16.msra.mxu0 %v689
  %829 = vmatprep.subr.bf16.mxu0 0
  %830 = vmatpush1.bf16.msra.mxu0 %v688
  %831 = vmatprep.subr.bf16.mxu0 0
  %832 = vmatpush1.bf16.msra.mxu0 %v687
  %833 = vmatprep.subr.bf16.mxu0 0
  %834 = vmatpush1.bf16.msra.mxu0 %v686
  %835 = vmatprep.subr.bf16.mxu0 0
  %836 = vmatpush2.bf16.msra.mxu0 %v701
  %837 = vmatprep.subr.bf16.mxu0 0
  %838 = vmatpush2.bf16.msra.mxu0 %v700
  %839 = vmatprep.subr.bf16.mxu0 0
  %840 = vmatpush2.bf16.msra.mxu0 %v699
  %841 = vmatprep.subr.bf16.mxu0 0
  %842 = vmatpush2.bf16.msra.mxu0 %v698
  %843 = vmatprep.subr.bf16.mxu0 0
  %844 = vmatpush2.bf16.msra.mxu0 %v697
  %845 = vmatprep.subr.bf16.mxu0 0
  %846 = vmatpush2.bf16.msra.mxu0 %v696
  %847 = vmatprep.subr.bf16.mxu0 0
  %848 = vmatpush2.bf16.msra.mxu0 %v695
  %849 = vmatprep.subr.bf16.mxu0 0
  %850 = vmatpush2.bf16.msra.mxu0 %v694
  %851 = vmatprep.mubr.bf16.mxu0 %v367
  %852 = vmatmul.mubr.bf16.gmra.mxu0 %v366
  %v853 = vpop.f32.mrf.mxu0
  %v854 = vadd.f32 0.0, %v853
  %v855 = vpop.f32.mrf.mxu0
  %v856 = vpop.f32.mrf.mxu0
  %v857 = vadd.f32 0.0, %v856
  %v858 = vpop.f32.mrf.mxu0
  %859 = vmatprep.mubr.bf16.mxu0 %v374
  %860 = vmatmul.mubr.bf16.gmra.mxu0 %v373
  %v861 = vpop.f32.mrf.mxu0
  %v862 = vadd.f32 0.0, %v861
  %v863 = vpop.f32.mrf.mxu0
  %v864 = vpop.f32.mrf.mxu0
  %v865 = vadd.f32 0.0, %v864
  %v866 = vpop.f32.mrf.mxu0
  %867 = vmatprep.mubr.bf16.mxu0 %v381
  %868 = vmatmul.mubr.bf16.gmra.mxu0 %v380
  %v869 = vpop.f32.mrf.mxu0
  %v870 = vadd.f32 0.0, %v869
  %v871 = vpop.f32.mrf.mxu0
  %v872 = vpop.f32.mrf.mxu0
  %v873 = vadd.f32 0.0, %v872
  %v874 = vpop.f32.mrf.mxu0
  %875 = vmatprep.mubr.bf16.mxu0 %v388
  %876 = vmatmul.mubr.bf16.gmra.mxu0 %v387
  %v877 = vpop.f32.mrf.mxu0
  %v878 = vadd.f32 0.0, %v877
  %v879 = vpop.f32.mrf.mxu0
  %v880 = vpop.f32.mrf.mxu0
  %v881 = vadd.f32 0.0, %v880
  %v882 = vpop.f32.mrf.mxu0
  %883 = vmatprep.mubr.bf16.mxu0 %v395
  %884 = vmatmul.mubr.bf16.gmra.mxu0 %v394
  %v885 = vpop.f32.mrf.mxu0
  %v886 = vadd.f32 0.0, %v885
  %v887 = vpop.f32.mrf.mxu0
  %v888 = vpop.f32.mrf.mxu0
  %v889 = vadd.f32 0.0, %v888
  %v890 = vpop.f32.mrf.mxu0
  %891 = vmatprep.mubr.bf16.mxu0 %v402
  %892 = vmatmul.mubr.bf16.gmra.mxu0 %v401
  %v893 = vpop.f32.mrf.mxu0
  %v894 = vadd.f32 0.0, %v893
  %v895 = vpop.f32.mrf.mxu0
  %v896 = vpop.f32.mrf.mxu0
  %v897 = vadd.f32 0.0, %v896
  %v898 = vpop.f32.mrf.mxu0
  %899 = vmatprep.mubr.bf16.mxu0 %v409
  %900 = vmatmul.mubr.bf16.gmra.mxu0 %v408
  %v901 = vpop.f32.mrf.mxu0
  %v902 = vadd.f32 0.0, %v901
  %v903 = vpop.f32.mrf.mxu0
  %v904 = vpop.f32.mrf.mxu0
  %v905 = vadd.f32 0.0, %v904
  %v906 = vpop.f32.mrf.mxu0
  %907 = vmatprep.mubr.bf16.mxu0 %v416
  %908 = vmatmul.mubr.bf16.gmra.mxu0 %v415
  %v909 = vpop.f32.mrf.mxu0
  %v910 = vadd.f32 0.0, %v909
  %v911 = vpop.f32.mrf.mxu0
  %v912 = vpop.f32.mrf.mxu0
  %v913 = vadd.f32 0.0, %v912
  %v914 = vpop.f32.mrf.mxu0
  %915 = vdwg.mxu0
  %916 = vmatprep.subr.bf16.mxu0 0
  %917 = vmatpush1.bf16.msra.mxu0 %v709
  %918 = vmatprep.subr.bf16.mxu0 0
  %919 = vmatpush1.bf16.msra.mxu0 %v708
  %920 = vmatprep.subr.bf16.mxu0 0
  %921 = vmatpush1.bf16.msra.mxu0 %v707
  %922 = vmatprep.subr.bf16.mxu0 0
  %923 = vmatpush1.bf16.msra.mxu0 %v706
  %924 = vmatprep.subr.bf16.mxu0 0
  %925 = vmatpush1.bf16.msra.mxu0 %v705
  %926 = vmatprep.subr.bf16.mxu0 0
  %927 = vmatpush1.bf16.msra.mxu0 %v704
  %928 = vmatprep.subr.bf16.mxu0 0
  %929 = vmatpush1.bf16.msra.mxu0 %v703
  %930 = vmatprep.subr.bf16.mxu0 0
  %931 = vmatpush1.bf16.msra.mxu0 %v702
  %932 = vmatprep.subr.bf16.mxu0 0
  %933 = vmatpush2.bf16.msra.mxu0 %v717
  %934 = vmatprep.subr.bf16.mxu0 0
  %935 = vmatpush2.bf16.msra.mxu0 %v716
  %936 = vmatprep.subr.bf16.mxu0 0
  %937 = vmatpush2.bf16.msra.mxu0 %v715
  %938 = vmatprep.subr.bf16.mxu0 0
  %939 = vmatpush2.bf16.msra.mxu0 %v714
  %940 = vmatprep.subr.bf16.mxu0 0
  %941 = vmatpush2.bf16.msra.mxu0 %v713
  %942 = vmatprep.subr.bf16.mxu0 0
  %943 = vmatpush2.bf16.msra.mxu0 %v712
  %944 = vmatprep.subr.bf16.mxu0 0
  %945 = vmatpush2.bf16.msra.mxu0 %v711
  %946 = vmatprep.subr.bf16.mxu0 0
  %947 = vmatpush2.bf16.msra.mxu0 %v710
  %948 = vmatprep.mubr.bf16.mxu0 %v369
  %949 = vmatmul.mubr.bf16.gmra.mxu0 %v368
  %v950 = vpop.f32.mrf.mxu0
  %v951 = vadd.f32 %v854, %v950
  %v952 = vpop.f32.mrf.mxu0
  %v953 = vpop.f32.mrf.mxu0
  %v954 = vadd.f32 %v857, %v953
  %v955 = vpop.f32.mrf.mxu0
  %956 = vmatprep.mubr.bf16.mxu0 %v376
  %957 = vmatmul.mubr.bf16.gmra.mxu0 %v375
  %v958 = vpop.f32.mrf.mxu0
  %v959 = vadd.f32 %v862, %v958
  %v960 = vpop.f32.mrf.mxu0
  %v961 = vpop.f32.mrf.mxu0
  %v962 = vadd.f32 %v865, %v961
  %v963 = vpop.f32.mrf.mxu0
  %964 = vmatprep.mubr.bf16.mxu0 %v383
  %965 = vmatmul.mubr.bf16.gmra.mxu0 %v382
  %v966 = vpop.f32.mrf.mxu0
  %v967 = vadd.f32 %v870, %v966
  %v968 = vpop.f32.mrf.mxu0
  %v969 = vpop.f32.mrf.mxu0
  %v970 = vadd.f32 %v873, %v969
  %v971 = vpop.f32.mrf.mxu0
  %972 = vmatprep.mubr.bf16.mxu0 %v390
  %973 = vmatmul.mubr.bf16.gmra.mxu0 %v389
  %v974 = vpop.f32.mrf.mxu0
  %v975 = vadd.f32 %v878, %v974
  %v976 = vpop.f32.mrf.mxu0
  %v977 = vpop.f32.mrf.mxu0
  %v978 = vadd.f32 %v881, %v977
  %v979 = vpop.f32.mrf.mxu0
  %980 = vmatprep.mubr.bf16.mxu0 %v397
  %981 = vmatmul.mubr.bf16.gmra.mxu0 %v396
  %v982 = vpop.f32.mrf.mxu0
  %v983 = vadd.f32 %v886, %v982
  %v984 = vpop.f32.mrf.mxu0
  %v985 = vpop.f32.mrf.mxu0
  %v986 = vadd.f32 %v889, %v985
  %v987 = vpop.f32.mrf.mxu0
  %988 = vmatprep.mubr.bf16.mxu0 %v404
  %989 = vmatmul.mubr.bf16.gmra.mxu0 %v403
  %v990 = vpop.f32.mrf.mxu0
  %v991 = vadd.f32 %v894, %v990
  %v992 = vpop.f32.mrf.mxu0
  %v993 = vpop.f32.mrf.mxu0
  %v994 = vadd.f32 %v897, %v993
  %v995 = vpop.f32.mrf.mxu0
  %996 = vmatprep.mubr.bf16.mxu0 %v411
  %997 = vmatmul.mubr.bf16.gmra.mxu0 %v410
  %v998 = vpop.f32.mrf.mxu0
  %v999 = vadd.f32 %v902, %v998
  %v1000 = vpop.f32.mrf.mxu0
  %v1001 = vpop.f32.mrf.mxu0
  %v1002 = vadd.f32 %v905, %v1001
  %v1003 = vpop.f32.mrf.mxu0
  %1004 = vmatprep.mubr.bf16.mxu0 %v418
  %1005 = vmatmul.mubr.bf16.gmra.mxu0 %v417
  %v1006 = vpop.f32.mrf.mxu0
  %v1007 = vadd.f32 %v910, %v1006
  %v1008 = vpop.f32.mrf.mxu0
  %v1009 = vpop.f32.mrf.mxu0
  %v1010 = vadd.f32 %v913, %v1009
  %v1011 = vpop.f32.mrf.mxu0
  %1012 = vdwg.mxu0
  %1013 = vmatprep.subr.bf16.mxu0 0
  %1014 = vmatpush1.bf16.msra.mxu0 %v725
  %1015 = vmatprep.subr.bf16.mxu0 0
  %1016 = vmatpush1.bf16.msra.mxu0 %v724
  %1017 = vmatprep.subr.bf16.mxu0 0
  %1018 = vmatpush1.bf16.msra.mxu0 %v723
  %1019 = vmatprep.subr.bf16.mxu0 0
  %1020 = vmatpush1.bf16.msra.mxu0 %v722
  %1021 = vmatprep.subr.bf16.mxu0 0
  %1022 = vmatpush1.bf16.msra.mxu0 %v721
  %1023 = vmatprep.subr.bf16.mxu0 0
  %1024 = vmatpush1.bf16.msra.mxu0 %v720
  %1025 = vmatprep.subr.bf16.mxu0 0
  %1026 = vmatpush1.bf16.msra.mxu0 %v719
  %1027 = vmatprep.subr.bf16.mxu0 0
  %1028 = vmatpush1.bf16.msra.mxu0 %v718
  %1029 = vmatprep.subr.bf16.mxu0 0
  %1030 = vmatpush2.bf16.msra.mxu0 %v733
  %1031 = vmatprep.subr.bf16.mxu0 0
  %1032 = vmatpush2.bf16.msra.mxu0 %v732
  %1033 = vmatprep.subr.bf16.mxu0 0
  %1034 = vmatpush2.bf16.msra.mxu0 %v731
  %1035 = vmatprep.subr.bf16.mxu0 0
  %1036 = vmatpush2.bf16.msra.mxu0 %v730
  %1037 = vmatprep.subr.bf16.mxu0 0
  %1038 = vmatpush2.bf16.msra.mxu0 %v729
  %1039 = vmatprep.subr.bf16.mxu0 0
  %1040 = vmatpush2.bf16.msra.mxu0 %v728
  %1041 = vmatprep.subr.bf16.mxu0 0
  %1042 = vmatpush2.bf16.msra.mxu0 %v727
  %1043 = vmatprep.subr.bf16.mxu0 0
  %1044 = vmatpush2.bf16.msra.mxu0 %v726
  %1045 = vmatprep.mubr.bf16.mxu0 %v371
  %1046 = vmatmul.mubr.bf16.gmra.mxu0 %v370
  %v1047 = vpop.f32.mrf.mxu0
  %v1048 = vadd.f32 %v951, %v1047
  %v1049 = vpop.f32.mrf.mxu0
  %v1050 = vpop.f32.mrf.mxu0
  %v1051 = vadd.f32 %v954, %v1050
  %v1052 = vpop.f32.mrf.mxu0
  %1053 = vmatprep.mubr.bf16.mxu0 %v378
  %1054 = vmatmul.mubr.bf16.gmra.mxu0 %v377
  %v1055 = vpop.f32.mrf.mxu0
  %v1056 = vadd.f32 %v959, %v1055
  %v1057 = vpop.f32.mrf.mxu0
  %v1058 = vpop.f32.mrf.mxu0
  %v1059 = vadd.f32 %v962, %v1058
  %v1060 = vpop.f32.mrf.mxu0
  %1061 = vmatprep.mubr.bf16.mxu0 %v385
  %1062 = vmatmul.mubr.bf16.gmra.mxu0 %v384
  %v1063 = vpop.f32.mrf.mxu0
  %v1064 = vadd.f32 %v967, %v1063
  %v1065 = vpop.f32.mrf.mxu0
  %v1066 = vpop.f32.mrf.mxu0
  %v1067 = vadd.f32 %v970, %v1066
  %v1068 = vpop.f32.mrf.mxu0
  %1069 = vmatprep.mubr.bf16.mxu0 %v392
  %1070 = vmatmul.mubr.bf16.gmra.mxu0 %v391
  %v1071 = vpop.f32.mrf.mxu0
  %v1072 = vadd.f32 %v975, %v1071
  %v1073 = vpop.f32.mrf.mxu0
  %v1074 = vpop.f32.mrf.mxu0
  %v1075 = vadd.f32 %v978, %v1074
  %v1076 = vpop.f32.mrf.mxu0
  %1077 = vmatprep.mubr.bf16.mxu0 %v399
  %1078 = vmatmul.mubr.bf16.gmra.mxu0 %v398
  %v1079 = vpop.f32.mrf.mxu0
  %v1080 = vadd.f32 %v983, %v1079
  %v1081 = vpop.f32.mrf.mxu0
  %v1082 = vpop.f32.mrf.mxu0
  %v1083 = vadd.f32 %v986, %v1082
  %v1084 = vpop.f32.mrf.mxu0
  %1085 = vmatprep.mubr.bf16.mxu0 %v406
  %1086 = vmatmul.mubr.bf16.gmra.mxu0 %v405
  %v1087 = vpop.f32.mrf.mxu0
  %v1088 = vadd.f32 %v991, %v1087
  %v1089 = vpop.f32.mrf.mxu0
  %v1090 = vpop.f32.mrf.mxu0
  %v1091 = vadd.f32 %v994, %v1090
  %v1092 = vpop.f32.mrf.mxu0
  %1093 = vmatprep.mubr.bf16.mxu0 %v413
  %1094 = vmatmul.mubr.bf16.gmra.mxu0 %v412
  %v1095 = vpop.f32.mrf.mxu0
  %v1096 = vadd.f32 %v999, %v1095
  %v1097 = vpop.f32.mrf.mxu0
  %v1098 = vpop.f32.mrf.mxu0
  %v1099 = vadd.f32 %v1002, %v1098
  %v1100 = vpop.f32.mrf.mxu0
  %1101 = vmatprep.mubr.bf16.mxu0 %v420
  %1102 = vmatmul.mubr.bf16.gmra.mxu0 %v419
  %v1103 = vpop.f32.mrf.mxu0
  %v1104 = vadd.f32 %v1007, %v1103
  %v1105 = vpop.f32.mrf.mxu0
  %v1106 = vpop.f32.mrf.mxu0
  %v1107 = vadd.f32 %v1010, %v1106
  %v1108 = vpop.f32.mrf.mxu0
  %1109 = vdwg.mxu0
  %1110 = vmatprep.subr.bf16.mxu0 0
  %1111 = vmatpush1.bf16.msra.mxu0 0
  %1112 = vmatprep.subr.bf16.mxu0 0
  %1113 = vmatpush1.bf16.msra.mxu0 0
  %1114 = vmatprep.subr.bf16.mxu0 0
  %1115 = vmatpush1.bf16.msra.mxu0 %v739
  %1116 = vmatprep.subr.bf16.mxu0 0
  %1117 = vmatpush1.bf16.msra.mxu0 %v738
  %1118 = vmatprep.subr.bf16.mxu0 0
  %1119 = vmatpush1.bf16.msra.mxu0 %v737
  %1120 = vmatprep.subr.bf16.mxu0 0
  %1121 = vmatpush1.bf16.msra.mxu0 %v736
  %1122 = vmatprep.subr.bf16.mxu0 0
  %1123 = vmatpush1.bf16.msra.mxu0 %v735
  %1124 = vmatprep.subr.bf16.mxu0 0
  %1125 = vmatpush1.bf16.msra.mxu0 %v734
  %1126 = vmatprep.subr.bf16.mxu0 0
  %1127 = vmatpush2.bf16.msra.mxu0 0
  %1128 = vmatprep.subr.bf16.mxu0 0
  %1129 = vmatpush2.bf16.msra.mxu0 0
  %1130 = vmatprep.subr.bf16.mxu0 0
  %1131 = vmatpush2.bf16.msra.mxu0 0
  %1132 = vmatprep.subr.bf16.mxu0 0
  %1133 = vmatpush2.bf16.msra.mxu0 0
  %1134 = vmatprep.subr.bf16.mxu0 0
  %1135 = vmatpush2.bf16.msra.mxu0 0
  %1136 = vmatprep.subr.bf16.mxu0 0
  %1137 = vmatpush2.bf16.msra.mxu0 0
  %1138 = vmatprep.subr.bf16.mxu0 0
  %1139 = vmatpush2.bf16.msra.mxu0 0
  %1140 = vmatprep.subr.bf16.mxu0 0
  %1141 = vmatpush2.bf16.msra.mxu0 0
  %1142 = vmatprep.mubr.bf16.mxu0 0
  %1143 = vmatmul.mubr.bf16.gmra.mxu0 %v796
  %v1144 = vpop.f32.mrf.mxu0
  %v1145 = vadd.f32 %v1048, %v1144
  %v1146 = vpop.f32.mrf.mxu0
  %v1147 = vpop.f32.mrf.mxu0
  %v1148 = vadd.f32 %v1051, %v1147
  %v1149 = vpop.f32.mrf.mxu0
  %1150 = vmatprep.mubr.bf16.mxu0 0
  %1151 = vmatmul.mubr.bf16.gmra.mxu0 %v799
  %v1152 = vpop.f32.mrf.mxu0
  %v1153 = vadd.f32 %v1056, %v1152
  %v1154 = vpop.f32.mrf.mxu0
  %v1155 = vpop.f32.mrf.mxu0
  %v1156 = vadd.f32 %v1059, %v1155
  %v1157 = vpop.f32.mrf.mxu0
  %1158 = vmatprep.mubr.bf16.mxu0 0
  %1159 = vmatmul.mubr.bf16.gmra.mxu0 %v802
  %v1160 = vpop.f32.mrf.mxu0
  %v1161 = vadd.f32 %v1064, %v1160
  %v1162 = vpop.f32.mrf.mxu0
  %v1163 = vpop.f32.mrf.mxu0
  %v1164 = vadd.f32 %v1067, %v1163
  %v1165 = vpop.f32.mrf.mxu0
  %1166 = vmatprep.mubr.bf16.mxu0 0
  %1167 = vmatmul.mubr.bf16.gmra.mxu0 %v805
  %v1168 = vpop.f32.mrf.mxu0
  %v1169 = vadd.f32 %v1072, %v1168
  %v1170 = vpop.f32.mrf.mxu0
  %v1171 = vpop.f32.mrf.mxu0
  %v1172 = vadd.f32 %v1075, %v1171
  %v1173 = vpop.f32.mrf.mxu0
  %1174 = vmatprep.mubr.bf16.mxu0 0
  %1175 = vmatmul.mubr.bf16.gmra.mxu0 %v808
  %v1176 = vpop.f32.mrf.mxu0
  %v1177 = vadd.f32 %v1080, %v1176
  %v1178 = vpop.f32.mrf.mxu0
  %v1179 = vpop.f32.mrf.mxu0
  %v1180 = vadd.f32 %v1083, %v1179
  %v1181 = vpop.f32.mrf.mxu0
  %1182 = vmatprep.mubr.bf16.mxu0 0
  %1183 = vmatmul.mubr.bf16.gmra.mxu0 %v811
  %v1184 = vpop.f32.mrf.mxu0
  %v1185 = vadd.f32 %v1088, %v1184
  %v1186 = vpop.f32.mrf.mxu0
  %v1187 = vpop.f32.mrf.mxu0
  %v1188 = vadd.f32 %v1091, %v1187
  %v1189 = vpop.f32.mrf.mxu0
  %1190 = vmatprep.mubr.bf16.mxu0 0
  %1191 = vmatmul.mubr.bf16.gmra.mxu0 %v814
  %v1192 = vpop.f32.mrf.mxu0
  %v1193 = vadd.f32 %v1096, %v1192
  %v1194 = vpop.f32.mrf.mxu0
  %v1195 = vpop.f32.mrf.mxu0
  %v1196 = vadd.f32 %v1099, %v1195
  %v1197 = vpop.f32.mrf.mxu0
  %1198 = vmatprep.mubr.bf16.mxu0 0
  %1199 = vmatmul.mubr.bf16.gmra.mxu0 %v817
  %v1200 = vpop.f32.mrf.mxu0
  %v1201 = vadd.f32 %v1104, %v1200
  %v1202 = vpop.f32.mrf.mxu0
  %v1203 = vpop.f32.mrf.mxu0
  %v1204 = vadd.f32 %v1107, %v1203
  %v1205 = vpop.f32.mrf.mxu0
  %1206 = vdwg.mxu0
  %v1207 = vld [vmem:[%s2] sm:$0x1]
  %v1209 = vlaneseq
  %v1210 = vshrl.u32 %v1209, 7
  %v1211 = vsub.s32 0, %v1210
  %v1212 = vrot.slane %v1207, %v1211
  %v1214 = vmul.f32 %v1145, %v1212
  %v1215 = vmul.f32 %v1148, %v1212
  %v1216 = vmul.f32 %v1153, %v1212
  %v1217 = vmul.f32 %v1156, %v1212
  %v1218 = vmul.f32 %v1161, %v1212
  %v1219 = vmul.f32 %v1164, %v1212
  %v1220 = vmul.f32 %v1169, %v1212
  %v1221 = vmul.f32 %v1172, %v1212
  %v1222 = vmul.f32 %v1177, %v1212
  %v1223 = vmul.f32 %v1180, %v1212
  %v1224 = vmul.f32 %v1185, %v1212
  %v1225 = vmul.f32 %v1188, %v1212
  %v1226 = vmul.f32 %v1193, %v1212
  %v1227 = vmul.f32 %v1196, %v1212
  %v1228 = vmul.f32 %v1201, %v1212
  %v1229 = vmul.f32 %v1204, %v1212
  %v1230 = vld [vmem:[%s3] sm:$0x1]
  %v1232 = vlaneseq
  %v1233 = vshrl.u32 %v1232, 7
  %v1234 = vsub.s32 0, %v1233
  %v1235 = vrot.slane %v1230, %v1234
  %v1237 = vadd.f32 %v1214, %v1235
  %v1238 = vadd.f32 %v1215, %v1235
  %v1239 = vadd.f32 %v1216, %v1235
  %v1240 = vadd.f32 %v1217, %v1235
  %v1241 = vadd.f32 %v1218, %v1235
  %v1242 = vadd.f32 %v1219, %v1235
  %v1243 = vadd.f32 %v1220, %v1235
  %v1244 = vadd.f32 %v1221, %v1235
  %v1245 = vadd.f32 %v1222, %v1235
  %v1246 = vadd.f32 %v1223, %v1235
  %v1247 = vadd.f32 %v1224, %v1235
  %v1248 = vadd.f32 %v1225, %v1235
  %v1249 = vadd.f32 %v1226, %v1235
  %v1250 = vadd.f32 %v1227, %v1235
  %v1251 = vadd.f32 %v1228, %v1235
  %v1252 = vadd.f32 %v1229, %v1235
  %v1253 = vpack.c.bf16 %v1238, %v1237
  %v1254 = vpack.c.bf16 %v1240, %v1239
  %v1255 = vpack.c.bf16 %v1242, %v1241
  %v1256 = vpack.c.bf16 %v1244, %v1243
  %v1257 = vpack.c.bf16 %v1246, %v1245
  %v1258 = vpack.c.bf16 %v1248, %v1247
  %v1259 = vpack.c.bf16 %v1250, %v1249
  %v1260 = vpack.c.bf16 %v1252, %v1251
  %v1269 = vunpack.c.l.b16 %v1253
  %v1270 = vunpack.c.h.b16 %v1253
  %v1271 = vunpack.c.l.b16 %v1254
  %v1272 = vunpack.c.h.b16 %v1254
  %v1273 = vunpack.c.l.b16 %v1255
  %v1274 = vunpack.c.h.b16 %v1255
  %v1275 = vunpack.c.l.b16 %v1256
  %v1276 = vunpack.c.h.b16 %v1256
  %v1277 = vunpack.c.l.b16 %v1257
  %v1278 = vunpack.c.h.b16 %v1257
  %v1279 = vunpack.c.l.b16 %v1258
  %v1280 = vunpack.c.h.b16 %v1258
  %v1281 = vunpack.c.l.b16 %v1259
  %v1282 = vunpack.c.h.b16 %v1259
  %v1283 = vunpack.c.l.b16 %v1260
  %v1284 = vunpack.c.h.b16 %v1260
  %v1285 = vpack.c.b16 %v1269, %v1269
  %v1286 = vpack.c.b16 %v1270, %v1270
  %v1287 = vpack.c.b16 %v1271, %v1271
  %v1288 = vpack.c.b16 %v1272, %v1272
  %v1289 = vpack.c.b16 %v1273, %v1273
  %v1290 = vpack.c.b16 %v1274, %v1274
  %v1291 = vpack.c.b16 %v1275, %v1275
  %v1292 = vpack.c.b16 %v1276, %v1276
  %v1293 = vpack.c.b16 %v1277, %v1277
  %v1294 = vpack.c.b16 %v1278, %v1278
  %v1295 = vpack.c.b16 %v1279, %v1279
  %v1296 = vpack.c.b16 %v1280, %v1280
  %v1297 = vpack.c.b16 %v1281, %v1281
  %v1298 = vpack.c.b16 %v1282, %v1282
  %v1299 = vpack.c.b16 %v1283, %v1283
  %v1300 = vpack.c.b16 %v1284, %v1284
  %vm1317 = vcmask 519168
  %1318 = vst.msk [vmem:[%s4] sm:$0xf] %vm1317, %v1285
  %1319 = vst.msk [vmem:[%s4 + $0x4] sm:$0xf] %vm1317, %v1286
  %1320 = vst.msk [vmem:[%s4 + $0x8] sm:$0xf] %vm1317, %v1287
  %1321 = vst.msk [vmem:[%s4 + $0xc] sm:$0xf] %vm1317, %v1288
  %1322 = vst.msk [vmem:[%s4 + $0x10] sm:$0xf] %vm1317, %v1289
  %1323 = vst.msk [vmem:[%s4 + $0x14] sm:$0xf] %vm1317, %v1290
  %1324 = vst.msk [vmem:[%s4 + $0x18] sm:$0xf] %vm1317, %v1291
  %1325 = vst.msk [vmem:[%s4 + $0x1c] sm:$0xf] %vm1317, %v1292
  %1326 = vst.msk [vmem:[%s4 + $0x20] sm:$0xf] %vm1317, %v1293
  %1327 = vst.msk [vmem:[%s4 + $0x24] sm:$0xf] %vm1317, %v1294
  %1328 = vst.msk [vmem:[%s4 + $0x28] sm:$0xf] %vm1317, %v1295
  %1329 = vst.msk [vmem:[%s4 + $0x2c] sm:$0xf] %vm1317, %v1296
  %1330 = vst.msk [vmem:[%s4 + $0x30] sm:$0xf] %vm1317, %v1297
  %1331 = vst.msk [vmem:[%s4 + $0x34] sm:$0xf] %vm1317, %v1298
  %1332 = vst.msk [vmem:[%s4 + $0x38] sm:$0xf] %vm1317, %v1299
  %1333 = vst.msk [vmem:[%s4 + $0x3c] sm:$0xf] %vm1317, %v1300
  // Predicated region
  $region18: #{seg_head_forward.10} parent=0 // pred_check
    _
  $region19: #{seg_head_forward.10} parent=0 // pred_check_branch
    %1335 = sbr.rel (0) target = $region21
  $region20: #{seg_head_forward.10} parent=0 // pred_region
    _
  $region21: #{seg_head_forward.10} parent=0 // pred_fallthru
    _
  // Predicated region
  $region22: #{seg_head_forward.10} parent=0 // pred_check
    _
  $region23: #{seg_head_forward.10} parent=0 // pred_check_branch
    %1337 = sbr.rel (0) target = $region25
  $region24: #{seg_head_forward.10} parent=0 // pred_region
    _
  $region25: #{seg_head_forward.10} parent=0 // pred_fallthru
    _

// kernel: seg_head_forward.11
$region0: #{seg_head_forward.11}
  #allocation0 [shape = 'u32[]', space=smem, size = 0x4, offset = 0x4, fixed_abs, tag = 'smem constant byte address 0x4 - core index']
  #allocation1 [shape = 'u32[144,128]{1,0:T(1,128)}', space=vmem, size = 0x12000, scoped, tag = 'internal scratch']
  #allocation2 [shape = 'f32[36,64]{1,0:T(8,128)}', space=vmem, size = 0x5000, scoped, tag = 'scratch operand']
  %s0 = inlined_call_operand.vmem [shape: bf16[2,4,36,64], index: 0, kind: input, shape index: {}]
  %s1 = inlined_call_operand.vmem [shape: bf16[3,64,576], index: 1, kind: input, shape index: {}]
  %s2 = inlined_call_operand.vmem [shape: f32[1,64], index: 2, kind: input, shape index: {}]
  %s3 = inlined_call_operand.vmem [shape: f32[1,64], index: 3, kind: input, shape index: {}]
  %s4 = inlined_call_operand.vmem [shape: f32[36,1], index: 4, kind: input, shape index: {}]
  %s5 = inlined_call_operand.vmem [shape: f32[1,64], index: 5, kind: input, shape index: {}]
  %s6 = inlined_call_operand.vmem [shape: f32[1,64], index: 6, kind: input, shape index: {}]
  %s7 = inlined_call_operand.vmem [shape: bf16[2,4,36,64], index: 7, kind: output, shape index: {}]
  %s8 = sld [smem:[#allocation0]]
  $region73: #{seg_head_forward.11} parent=0
    _
  %s10 = ssub.s32 1, %s8
  %s11 = scalar_select 0, %s10, %s8
  loop: start=0, step=1, limit=26
  $region2: #{seg_head_forward.11} parent=0 // loop_pre_header
    _
  $region3: #{seg_head_forward.11} parent=0 // loop_header
    %s13 = sphi 0, %s17
    %p14 = scmp.ge.s32.totalorder %s13, 26
    %s20 = sphi 0, %s39
    %s21 = sphi 0, %s35
    %s22 = sphi 0, %s31
    %s23 = sphi 0, %s20
    %s24 = sphi 0, %s21
    %s25 = sphi 0, %s22
    %s26 = sphi 0, %s23
    %s27 = sphi 0, %s24
    %s28 = sphi 0, %s25
    %s56 = sphi 0, %s58
    %s59 = sphi 0, %s56
    %s60 = sphi 0, %s59
    %s76 = sphi 0, %s60
    %s80 = sphi 0, %s80
    %s82 = sphi 0, %s80
    %s83 = sphi 0, %s82
    %s97 = sphi 0, %s83
    %s101 = sphi 0, %s101
    %s103 = sphi 0, %s101
    %s104 = sphi 0, %s103
    %s118 = sphi 0, %s104
    %s122 = sphi 0, %s122
    %s124 = sphi 0, %s122
    %s125 = sphi 0, %s124
    %s139 = sphi 0, %s125
    %s143 = sphi 0, %s143
    %s145 = sphi 0, %s143
    %s146 = sphi 0, %s145
    %s160 = sphi 0, %s146
    %s164 = sphi 0, %s164
    %s166 = sphi 0, %s164
    %s167 = sphi 0, %s166
    %s181 = sphi 0, %s167
    %s185 = sphi 0, %s185
    %s187 = sphi 0, %s185
    %s188 = sphi 0, %s187
    %s202 = sphi 0, %s188
    %s210 = sphi 0, %s212
    %s213 = sphi 0, %s210
    %s214 = sphi 0, %s213
    %s230 = sphi 0, %s214
  $region4: #{seg_head_forward.11} parent=0 // loop_header_branch
    %16 = sbr.rel (%p14) target = $region8
  $region5: #{seg_head_forward.11} parent=0 // loop_body
    %s18 = ssub.s32 %s13, 1
    %s19 = ssub.s32 %s13, 2
    %s29 = sadd.s32 1, %s22
    %p30 = scmp.ge.s32.totalorder %s29, 3
    %s31 = scalar_select %p30, 0, %s29
    %s32 = sadd.s32 1, %s21
    %s33 = scalar_select %p30, %s32, %s21
    %p34 = scmp.ge.s32.totalorder %s33, 4
    %s35 = scalar_select %p34, 0, %s33
    %s36 = sadd.s32 1, %s20
    %s37 = scalar_select %p34, %s36, %s20
    %p38 = scmp.ge.s32.totalorder %s37, 2
    %s39 = scalar_select %p38, 0, %s37
    %s40 = sadd.s32 %s21, %s22
    %s41 = ssub.s32 %s40, 1
    %p42 = scmp.gt.s32.totalorder %s41, 0
    %s43 = scalar_select %p42, %s41, 0
    %p44 = scmp.lt.s32.totalorder %s43, 3
    %s45 = scalar_select %p44, %s43, 3
    %s46 = sadd.s32 %s35, %s31
    %s47 = ssub.s32 %s46, 1
    %p48 = scmp.gt.s32.totalorder %s47, 0
    %s49 = scalar_select %p48, %s47, 0
    %p50 = scmp.lt.s32.totalorder %s49, 3
    %s51 = scalar_select %p50, %s49, 3
    %s52 = ssub.s32 %s20, %s39
    %s53 = ssub.s32 %s45, %s51
    %s54 = sor.u32 %s52, %s53
    %p55 = scmp.eq.s32.totalorder %s54, 0
    %s57 = sadd.s32 %s56, 1
    %s58 = scalar_select %p55, %s56, %s57
    %p61 = pneg %p55
    %p62 = scmp.eq.s32.totalorder %s13, 23
    %p63 = por %p61, %p62
    %p64 = scmp.ne.s32.totalorder %s56, %s59
    %p65 = scmp.eq.s32.totalorder %s13, 0
    %p66 = por %p64, %p65
    %p67 = scmp.ne.s32.totalorder %s56, %s59
    %p68 = scmp.eq.s32.totalorder %s18, 23
    %p69 = por %p67, %p68
    %p70 = scmp.ne.s32.totalorder %s59, %s60
    %p71 = scmp.eq.s32.totalorder %s18, 0
    %p72 = por %p70, %p71
    %p73 = scmp.ne.s32.totalorder %s59, %s60
    %p74 = scmp.eq.s32.totalorder %s19, 23
    %p75 = por %p73, %p74
    %p77 = scmp.ne.s32.totalorder %s60, %s76
    %p78 = scmp.eq.s32.totalorder %s19, 0
    %p79 = por %p77, %p78
    %s81 = sadd.s32 %s80, 1
    %p84 = scmp.eq.s32.totalorder %s13, 23
    %p85 = scmp.ne.s32.totalorder %s80, %s82
    %p86 = scmp.eq.s32.totalorder %s13, 0
    %p87 = por %p85, %p86
    %p88 = scmp.ne.s32.totalorder %s80, %s82
    %p89 = scmp.eq.s32.totalorder %s18, 23
    %p90 = por %p88, %p89
    %p91 = scmp.ne.s32.totalorder %s82, %s83
    %p92 = scmp.eq.s32.totalorder %s18, 0
    %p93 = por %p91, %p92
    %p94 = scmp.ne.s32.totalorder %s82, %s83
    %p95 = scmp.eq.s32.totalorder %s19, 23
    %p96 = por %p94, %p95
    %p98 = scmp.ne.s32.totalorder %s83, %s97
    %p99 = scmp.eq.s32.totalorder %s19, 0
    %p100 = por %p98, %p99
    %s102 = sadd.s32 %s101, 1
    %p105 = scmp.eq.s32.totalorder %s13, 23
    %p106 = scmp.ne.s32.totalorder %s101, %s103
    %p107 = scmp.eq.s32.totalorder %s13, 0
    %p108 = por %p106, %p107
    %p109 = scmp.ne.s32.totalorder %s101, %s103
    %p110 = scmp.eq.s32.totalorder %s18, 23
    %p111 = por %p109, %p110
    %p112 = scmp.ne.s32.totalorder %s103, %s104
    %p113 = scmp.eq.s32.totalorder %s18, 0
    %p114 = por %p112, %p113
    %p115 = scmp.ne.s32.totalorder %s103, %s104
    %p116 = scmp.eq.s32.totalorder %s19, 23
    %p117 = por %p115, %p116
    %p119 = scmp.ne.s32.totalorder %s104, %s118
    %p120 = scmp.eq.s32.totalorder %s19, 0
    %p121 = por %p119, %p120
    %s123 = sadd.s32 %s122, 1
    %p126 = scmp.eq.s32.totalorder %s13, 23
    %p127 = scmp.ne.s32.totalorder %s122, %s124
    %p128 = scmp.eq.s32.totalorder %s13, 0
    %p129 = por %p127, %p128
    %p130 = scmp.ne.s32.totalorder %s122, %s124
    %p131 = scmp.eq.s32.totalorder %s18, 23
    %p132 = por %p130, %p131
    %p133 = scmp.ne.s32.totalorder %s124, %s125
    %p134 = scmp.eq.s32.totalorder %s18, 0
    %p135 = por %p133, %p134
    %p136 = scmp.ne.s32.totalorder %s124, %s125
    %p137 = scmp.eq.s32.totalorder %s19, 23
    %p138 = por %p136, %p137
    %p140 = scmp.ne.s32.totalorder %s125, %s139
    %p141 = scmp.eq.s32.totalorder %s19, 0
    %p142 = por %p140, %p141
    %s144 = sadd.s32 %s143, 1
    %p147 = scmp.eq.s32.totalorder %s13, 23
    %p148 = scmp.ne.s32.totalorder %s143, %s145
    %p149 = scmp.eq.s32.totalorder %s13, 0
    %p150 = por %p148, %p149
    %p151 = scmp.ne.s32.totalorder %s143, %s145
    %p152 = scmp.eq.s32.totalorder %s18, 23
    %p153 = por %p151, %p152
    %p154 = scmp.ne.s32.totalorder %s145, %s146
    %p155 = scmp.eq.s32.totalorder %s18, 0
    %p156 = por %p154, %p155
    %p157 = scmp.ne.s32.totalorder %s145, %s146
    %p158 = scmp.eq.s32.totalorder %s19, 23
    %p159 = por %p157, %p158
    %p161 = scmp.ne.s32.totalorder %s146, %s160
    %p162 = scmp.eq.s32.totalorder %s19, 0
    %p163 = por %p161, %p162
    %s165 = sadd.s32 %s164, 1
    %p168 = scmp.eq.s32.totalorder %s13, 23
    %p169 = scmp.ne.s32.totalorder %s164, %s166
    %p170 = scmp.eq.s32.totalorder %s13, 0
    %p171 = por %p169, %p170
    %p172 = scmp.ne.s32.totalorder %s164, %s166
    %p173 = scmp.eq.s32.totalorder %s18, 23
    %p174 = por %p172, %p173
    %p175 = scmp.ne.s32.totalorder %s166, %s167
    %p176 = scmp.eq.s32.totalorder %s18, 0
    %p177 = por %p175, %p176
    %p178 = scmp.ne.s32.totalorder %s166, %s167
    %p179 = scmp.eq.s32.totalorder %s19, 23
    %p180 = por %p178, %p179
    %p182 = scmp.ne.s32.totalorder %s167, %s181
    %p183 = scmp.eq.s32.totalorder %s19, 0
    %p184 = por %p182, %p183
    %s186 = sadd.s32 %s185, 1
    %p189 = scmp.eq.s32.totalorder %s13, 23
    %p190 = scmp.ne.s32.totalorder %s185, %s187
    %p191 = scmp.eq.s32.totalorder %s13, 0
    %p192 = por %p190, %p191
    %p193 = scmp.ne.s32.totalorder %s185, %s187
    %p194 = scmp.eq.s32.totalorder %s18, 23
    %p195 = por %p193, %p194
    %p196 = scmp.ne.s32.totalorder %s187, %s188
    %p197 = scmp.eq.s32.totalorder %s18, 0
    %p198 = por %p196, %p197
    %p199 = scmp.ne.s32.totalorder %s187, %s188
    %p200 = scmp.eq.s32.totalorder %s19, 23
    %p201 = por %p199, %p200
    %p203 = scmp.ne.s32.totalorder %s188, %s202
    %p204 = scmp.eq.s32.totalorder %s19, 0
    %p205 = por %p203, %p204
    %s206 = ssub.s32 %s20, %s39
    %s207 = ssub.s32 %s21, %s35
    %s208 = sor.u32 %s206, %s207
    %p209 = scmp.eq.s32.totalorder %s208, 0
    %s211 = sadd.s32 %s210, 1
    %s212 = scalar_select %p209, %s210, %s211
    %p215 = pneg %p209
    %p216 = scmp.eq.s32.totalorder %s13, 23
    %p217 = por %p215, %p216
    %p218 = scmp.ne.s32.totalorder %s210, %s213
    %p219 = scmp.eq.s32.totalorder %s13, 0
    %p220 = por %p218, %p219
    %p221 = scmp.ne.s32.totalorder %s210, %s213
    %p222 = scmp.eq.s32.totalorder %s18, 23
    %p223 = por %p221, %p222
    %p224 = scmp.ne.s32.totalorder %s213, %s214
    %p225 = scmp.eq.s32.totalorder %s18, 0
    %p226 = por %p224, %p225
    %p227 = scmp.ne.s32.totalorder %s213, %s214
    %p228 = scmp.eq.s32.totalorder %s19, 23
    %p229 = por %p227, %p228
    %p231 = scmp.ne.s32.totalorder %s214, %s230
    %p232 = scmp.eq.s32.totalorder %s19, 0
    %p233 = por %p231, %p232
    %p234 = scmp.le.s32.totalorder 1, %s13
    %p235 = scmp.lt.s32.totalorder %s13, 25
    %p236 = pnand %p234, %p235
    %p237 = pneg %p236
    // Predicated region
    $region9: #{seg_head_forward.11} parent=5 // pred_check
      _
    $region10: #{seg_head_forward.11} parent=5 // pred_check_branch
      %239 = sbr.rel (%p236) target = $region12
    $region11: #{seg_head_forward.11} parent=5 // pred_region
      %s240 = ssub.s32 %s13, 1
      // Predicated region
      $region13: #{seg_head_forward.11} parent=11 // pred_check
        %p241 = pneg %p93
      $region14: #{seg_head_forward.11} parent=11 // pred_check_branch
        %243 = sbr.rel (%p241) target = $region16
      $region15: #{seg_head_forward.11} parent=11 // pred_region
        _
      $region16: #{seg_head_forward.11} parent=11 // pred_fallthru
        _
      // Predicated region
      $region17: #{seg_head_forward.11} parent=11 // pred_check
        %p244 = pneg %p114
      $region18: #{seg_head_forward.11} parent=11 // pred_check_branch
        %246 = sbr.rel (%p244) target = $region20
      $region19: #{seg_head_forward.11} parent=11 // pred_region
        _
      $region20: #{seg_head_forward.11} parent=11 // pred_fallthru
        _
      // Predicated region
      $region21: #{seg_head_forward.11} parent=11 // pred_check
        %p247 = pneg %p135
      $region22: #{seg_head_forward.11} parent=11 // pred_check_branch
        %249 = sbr.rel (%p247) target = $region24
      $region23: #{seg_head_forward.11} parent=11 // pred_region
        _
      $region24: #{seg_head_forward.11} parent=11 // pred_fallthru
        _
      // Predicated region
      $region25: #{seg_head_forward.11} parent=11 // pred_check
        %p250 = pneg %p156
      $region26: #{seg_head_forward.11} parent=11 // pred_check_branch
        %252 = sbr.rel (%p250) target = $region28
      $region27: #{seg_head_forward.11} parent=11 // pred_region
        _
      $region28: #{seg_head_forward.11} parent=11 // pred_fallthru
        _
      // Predicated region
      $region29: #{seg_head_forward.11} parent=11 // pred_check
        %p253 = pneg %p177
      $region30: #{seg_head_forward.11} parent=11 // pred_check_branch
        %255 = sbr.rel (%p253) target = $region32
      $region31: #{seg_head_forward.11} parent=11 // pred_region
        _
      $region32: #{seg_head_forward.11} parent=11 // pred_fallthru
        _
      // Predicated region
      $region33: #{seg_head_forward.11} parent=11 // pred_check
        %p256 = pneg %p198
      $region34: #{seg_head_forward.11} parent=11 // pred_check_branch
        %258 = sbr.rel (%p256) target = $region36
      $region35: #{seg_head_forward.11} parent=11 // pred_region
        _
      $region36: #{seg_head_forward.11} parent=11 // pred_fallthru
        _
    $region12: #{seg_head_forward.11} parent=5 // pred_fallthru
      _
    %p259 = scmp.lt.s32.totalorder %s13, 24
    // Predicated region
    $region37: #{seg_head_forward.11} parent=5 // pred_check
      %p260 = pneg %p259
    $region38: #{seg_head_forward.11} parent=5 // pred_check_branch
      %262 = sbr.rel (%p260) target = $region40
    $region39: #{seg_head_forward.11} parent=5 // pred_region
      // Predicated region
      $region41: #{seg_head_forward.11} parent=39 // pred_check
        %p263 = pneg %p66
      $region42: #{seg_head_forward.11} parent=39 // pred_check_branch
        %265 = sbr.rel (%p263) target = $region44
      $region43: #{seg_head_forward.11} parent=39 // pred_region
        %s266 = sadd.s32 %s21, %s22
        %s267 = ssub.s32 %s266, 1
        %p268 = scmp.gt.s32.totalorder %s267, 0
        %s269 = scalar_select %p268, %s267, 0
        %p270 = scmp.lt.s32.totalorder %s269, 3
        %s271 = scalar_select %p270, %s269, 3
        %p272 = scmp.lt.s32.totalorder %s20, 1
        %s273 = scalar_select %p272, %s20, 1
        %p274 = scmp.lt.s32.totalorder %s271, 3
        %s275 = scalar_select %p274, %s271, 3
        %s276 = smul.addr %s275, 5
        %s277 = smul.addr %s273, 20
        %s278 = sadd.s32 %s276, %s277
        %s279 = smul.addr %s278, 4
        %s280 = scalar_lea.vmem %s0, %s279
        %s281 = sadd.s32 %s21, %s22
        %s282 = ssub.s32 %s281, 1
        %p283 = scmp.gt.s32.totalorder %s282, 0
        %s284 = scalar_select %p283, %s282, 0
        %p285 = scmp.lt.s32.totalorder %s284, 3
        %s286 = scalar_select %p285, %s284, 3
      $region44: #{seg_head_forward.11} parent=39 // pred_fallthru
        _
    $region40: #{seg_head_forward.11} parent=5 // pred_fallthru
      _
    %p287 = scmp.le.s32.totalorder 1, %s13
    %p288 = scmp.lt.s32.totalorder %s13, 25
    %p289 = pnand %p287, %p288
    %p290 = pneg %p289
    // Predicated region
    $region45: #{seg_head_forward.11} parent=5 // pred_check
      _
    $region46: #{seg_head_forward.11} parent=5 // pred_check_branch
      %292 = sbr.rel (%p289) target = $region48
    $region47: #{seg_head_forward.11} parent=5 // pred_region
      %s293 = ssub.s32 %s13, 1
      %s294 = sadd.s32 %s24, %s25
      %s295 = ssub.s32 %s294, 1
      %p296 = scmp.gt.s32.totalorder %s295, 0
      %s297 = scalar_select %p296, %s295, 0
      %p298 = scmp.lt.s32.totalorder %s297, 3
      %s299 = scalar_select %p298, %s297, 3
      %p300 = scmp.lt.s32.totalorder %s23, 1
      %s301 = scalar_select %p300, %s23, 1
      %p302 = scmp.lt.s32.totalorder %s299, 3
      %s303 = scalar_select %p302, %s299, 3
      %s304 = smul.addr %s303, 5
      %s305 = smul.addr %s301, 20
      %s306 = sadd.s32 %s304, %s305
      %s307 = smul.addr %s306, 4
      %s308 = scalar_lea.vmem %s0, %s307
      %p309 = pneg %p72
      %p310 = pneg %p69
      %p311 = pneg %p93
      %p312 = pneg %p90
      %p313 = pneg %p114
      %p314 = pneg %p111
      %p315 = pneg %p135
      %p316 = pneg %p132
      %p317 = pneg %p156
      %p318 = pneg %p153
      %p319 = pneg %p177
      %p320 = pneg %p174
      %p321 = pneg %p198
      %p322 = pneg %p195
      %p323 = pneg %p226
      %p324 = pneg %p223
      %p325 = scmp.lt.s32.totalorder %s23, 1
      %s326 = scalar_select %p325, %s23, 1
      %p327 = scmp.lt.s32.totalorder %s24, 3
      %s328 = scalar_select %p327, %s24, 3
      %s329 = smul.addr %s328, 5
      %s330 = smul.addr %s326, 20
      %s331 = sadd.s32 %s329, %s330
      %s332 = smul.addr %s331, 4
      %s333 = scalar_lea.vmem %s7, %s332
      %s334 = sadd.s32 %s24, %s25
      %s335 = ssub.s32 %s334, 1
      %p336 = scmp.gt.s32.totalorder %s335, 0
      %s337 = scalar_select %p336, %s335, 0
      %p338 = scmp.lt.s32.totalorder %s337, 3
      %s339 = scalar_select %p338, %s337, 3
      %p340 = scmp.lt.s32.totalorder %s23, 1
      %s341 = scalar_select %p340, %s23, 1
      %p342 = scmp.lt.s32.totalorder %s339, 3
      %s343 = scalar_select %p342, %s339, 3
      %s344 = smul.addr %s343, 5
      %s345 = smul.addr %s341, 20
      %s346 = sadd.s32 %s344, %s345
      %s347 = smul.addr %s346, 4
      %s348 = scalar_lea.vmem %s0, %s347
      %s349 = sadd.s32 %s24, %s25
      %s350 = ssub.s32 %s349, 1
      %p351 = scmp.gt.s32.totalorder %s350, 0
      %s352 = scalar_select %p351, %s350, 0
      %p353 = scmp.lt.s32.totalorder %s352, 3
      %s354 = scalar_select %p353, %s352, 3
      %p355 = scmp.lt.s32.totalorder %s23, 1
      %s356 = scalar_select %p355, %s23, 1
      %p357 = scmp.lt.s32.totalorder %s24, 3
      %s358 = scalar_select %p357, %s24, 3
      %s359 = smul.addr %s358, 5
      %s360 = smul.addr %s356, 20
      %s361 = sadd.s32 %s359, %s360
      %s362 = smul.addr %s361, 4
      %s363 = scalar_lea.vmem %s7, %s362
      %p365 = scmp.eq.s32.totalorder %s25, 0
      // Predicated region
      $region49: #{seg_head_forward.11} parent=47 // pred_check
        %p366 = pneg %p365
      $region50: #{seg_head_forward.11} parent=47 // pred_check_branch
        %368 = sbr.rel (%p366) target = $region52
      $region51: #{seg_head_forward.11} parent=47 // pred_region
        %vm369 = vcmask 523264
        %370 = vst.msk [vmem:[#allocation2] sm:$0xff] %vm369, 0.0
        %371 = vst.msk [vmem:[#allocation2 + $0x8] sm:$0xff] %vm369, 0.0
        %372 = vst.msk [vmem:[#allocation2 + $0x10] sm:$0xff] %vm369, 0.0
        %373 = vst.msk [vmem:[#allocation2 + $0x18] sm:$0xff] %vm369, 0.0
        %vm374 = vcmask 519168
        %375 = vst.msk [vmem:[#allocation2 + $0x20] sm:$0xf] %vm374, 0.0
      $region52: #{seg_head_forward.11} parent=47 // pred_fallthru
        _
      %s376 = sadd.s32 %s24, %s25
      %s377 = ssub.s32 %s376, 1
      %p378 = scmp.ge.s32.totalorder %s377, 0
      %p379 = scmp.lt.s32.totalorder %s377, 4
      %p380 = pnand %p378, %p379
      %p381 = pneg %p380
      // Predicated region
      $region53: #{seg_head_forward.11} parent=47 // pred_check
        _
      $region54: #{seg_head_forward.11} parent=47 // pred_check_branch
        %383 = sbr.rel (%p380) target = $region56
      $region55: #{seg_head_forward.11} parent=47 // pred_region
        %v384 = vld [vmem:[%s348] sm:$0xf]
        %v385 = vld [vmem:[%s348 + $0x4] sm:$0xf]
        %v386 = vld [vmem:[%s348 + $0x8] sm:$0xf]
        %v387 = vld [vmem:[%s348 + $0xc] sm:$0xf]
        %v388 = vld [vmem:[%s348 + $0x10] sm:$0x3]
        %v389 = vunpack.c.l.bf16 %v384
        %v390 = vunpack.c.l.bf16 %v385
        %v391 = vunpack.c.l.bf16 %v386
        %v392 = vunpack.c.l.bf16 %v387
        %v393 = vunpack.c.l.bf16 %v388
        %v394 = vld [vmem:[%s5] sm:$0x1]
        %v396 = vlaneseq
        %v397 = vshrl.u32 %v396, 7
        %v398 = vsub.s32 0, %v397
        %v399 = vrot.slane %v394, %v398
        %v401 = vmul.f32 %v389, %v399
        %v402 = vmul.f32 %v390, %v399
        %v403 = vmul.f32 %v391, %v399
        %v404 = vmul.f32 %v392, %v399
        %v405 = vmul.f32 %v393, %v399
        %v406 = vld [vmem:[%s6] sm:$0x1]
        %v408 = vlaneseq
        %v409 = vshrl.u32 %v408, 7
        %v410 = vsub.s32 0, %v409
        %v411 = vrot.slane %v406, %v410
        %v413 = vadd.f32 %v401, %v411
        %v414 = vadd.f32 %v402, %v411
        %v415 = vadd.f32 %v403, %v411
        %v416 = vadd.f32 %v404, %v411
        %v417 = vadd.f32 %v405, %v411
        %vm418 = vcmp.gt.f32.partialorder %v413, 0.0
        %vm419 = vcmp.gt.f32.partialorder %v414, 0.0
        %vm420 = vcmp.gt.f32.partialorder %v415, 0.0
        %vm421 = vcmp.gt.f32.partialorder %v416, 0.0
        %vm422 = vcmp.gt.f32.partialorder %v417, 0.0
        %v423 = vmul.f32 %v413, 1e-05
        %v424 = vmul.f32 %v414, 1e-05
        %v425 = vmul.f32 %v415, 1e-05
        %v426 = vmul.f32 %v416, 1e-05
        %v427 = vmul.f32 %v417, 1e-05
        %v428 = vsel %vm418, %v413, %v423
        %v429 = vsel %vm419, %v414, %v424
        %v430 = vsel %vm420, %v415, %v425
        %v431 = vsel %vm421, %v416, %v426
        %v432 = vsel %vm422, %v417, %v427
        %v433 = vld [vmem:[%s4] sm:$0xff]
        %v434 = vld [vmem:[%s4 + $0x8] sm:$0xff]
        %v435 = vld [vmem:[%s4 + $0x10] sm:$0xff]
        %v436 = vld [vmem:[%s4 + $0x18] sm:$0xff]
        %v437 = vld [vmem:[%s4 + $0x20] sm:$0xf]
        %439 = vset.pattern.permute.xlu0 0
        %440 = vperm.xlu0 %439, %v433
        %v441 = vpop.permute.xlu0 %440
        %444 = vset.pattern.permute.xlu0 0
        %445 = vperm.xlu0 %444, %v434
        %v446 = vpop.permute.xlu0 %445
        %449 = vset.pattern.permute.xlu0 0
        %450 = vperm.xlu0 %449, %v435
        %v451 = vpop.permute.xlu0 %450
        %454 = vset.pattern.permute.xlu0 0
        %455 = vperm.xlu0 %454, %v436
        %v456 = vpop.permute.xlu0 %455
        %459 = vset.pattern.permute.xlu0 0
        %460 = vperm.xlu0 %459, %v437
        %v461 = vpop.permute.xlu0 %460
        %v463 = vmul.f32 %v428, %v441
        %v464 = vmul.f32 %v429, %v446
        %v465 = vmul.f32 %v430, %v451
        %v466 = vmul.f32 %v431, %v456
        %v467 = vmul.f32 %v432, %v461
        %v468 = vpack.c.bf16 %v464, %v463
        %v469 = vpack.c.bf16 %v466, %v465
        %v470 = vpack.c.bf16 %v467, %v467
        %s471 = smul.u32 %s25, 40
        %s472 = smul.addr %s471, 4
        %s473 = scalar_lea.vmem %s1, %s472
        %v474 = vld [vmem:[%s473] sm:$0xff]
        %v475 = vld [vmem:[%s473 + $0x8] sm:$0xff]
        %v476 = vld [vmem:[%s473 + $0x10] sm:$0xf]
        %v477 = vld [vmem:[%s473 + $0x14] sm:$0xff]
        %v478 = vld [vmem:[%s473 + $0x1c] sm:$0xff]
        %v479 = vld [vmem:[%s473 + $0x24] sm:$0xf]
        %v480 = vld [vmem:[%s473 + $0x28] sm:$0xff]
        %v481 = vld [vmem:[%s473 + $0x30] sm:$0xff]
        %v482 = vld [vmem:[%s473 + $0x38] sm:$0xf]
        %v483 = vld [vmem:[%s473 + $0x3c] sm:$0xff]
        %v484 = vld [vmem:[%s473 + $0x44] sm:$0xff]
        %v485 = vld [vmem:[%s473 + $0x4c] sm:$0xf]
        %v486 = vld [vmem:[%s473 + $0x50] sm:$0xff]
        %v487 = vld [vmem:[%s473 + $0x58] sm:$0xff]
        %v488 = vld [vmem:[%s473 + $0x60] sm:$0xf]
        %v489 = vld [vmem:[%s473 + $0x64] sm:$0xff]
        %v490 = vld [vmem:[%s473 + $0x6c] sm:$0xff]
        %v491 = vld [vmem:[%s473 + $0x74] sm:$0xf]
        %v492 = vld [vmem:[%s473 + $0x78] sm:$0xff]
        %v493 = vld [vmem:[%s473 + $0x80] sm:$0xff]
        %v494 = vld [vmem:[%s473 + $0x88] sm:$0xf]
        %v495 = vld [vmem:[%s473 + $0x8c] sm:$0xff]
        %v496 = vld [vmem:[%s473 + $0x94] sm:$0xff]
        %v497 = vld [vmem:[%s473 + $0x9c] sm:$0xf]
        %v522 = vunpack.c.l.b16 %v474
        %v523 = vunpack.c.h.b16 %v474
        %v524 = vunpack.c.l.b16 %v475
        %v525 = vunpack.c.h.b16 %v475
        %v526 = vunpack.c.l.b16 %v476
        %v527 = vunpack.c.l.b16 %v477
        %v528 = vunpack.c.h.b16 %v477
        %v529 = vunpack.c.l.b16 %v478
        %v530 = vunpack.c.h.b16 %v478
        %v531 = vunpack.c.l.b16 %v479
        %v532 = vunpack.c.l.b16 %v480
        %v533 = vunpack.c.h.b16 %v480
        %v534 = vunpack.c.l.b16 %v481
        %v535 = vunpack.c.h.b16 %v481
        %v536 = vunpack.c.l.b16 %v482
        %v537 = vunpack.c.l.b16 %v483
        %v538 = vunpack.c.h.b16 %v483
        %v539 = vunpack.c.l.b16 %v484
        %v540 = vunpack.c.h.b16 %v484
        %v541 = vunpack.c.l.b16 %v485
        %v542 = vunpack.c.l.b16 %v486
        %v543 = vunpack.c.h.b16 %v486
        %v544 = vunpack.c.l.b16 %v487
        %v545 = vunpack.c.h.b16 %v487
        %v546 = vunpack.c.l.b16 %v488
        %v547 = vunpack.c.l.b16 %v489
        %v548 = vunpack.c.h.b16 %v489
        %v549 = vunpack.c.l.b16 %v490
        %v550 = vunpack.c.h.b16 %v490
        %v551 = vunpack.c.l.b16 %v491
        %v552 = vunpack.c.l.b16 %v492
        %v553 = vunpack.c.h.b16 %v492
        %v554 = vunpack.c.l.b16 %v493
        %v555 = vunpack.c.h.b16 %v493
        %v556 = vunpack.c.l.b16 %v494
        %v557 = vunpack.c.l.b16 %v495
        %v558 = vunpack.c.h.b16 %v495
        %v559 = vunpack.c.l.b16 %v496
        %v560 = vunpack.c.h.b16 %v496
        %v561 = vunpack.c.l.b16 %v497
        %v562 = vpack.c.b16 %v527, %v522
        %v563 = vpack.c.b16 %v528, %v523
        %v564 = vpack.c.b16 %v529, %v524
        %v565 = vpack.c.b16 %v530, %v525
        %v566 = vpack.c.b16 %v531, %v526
        %v567 = vpack.c.b16 %v537, %v532
        %v568 = vpack.c.b16 %v538, %v533
        %v569 = vpack.c.b16 %v539, %v534
        %v570 = vpack.c.b16 %v540, %v535
        %v571 = vpack.c.b16 %v541, %v536
        %v572 = vpack.c.b16 %v547, %v542
        %v573 = vpack.c.b16 %v548, %v543
        %v574 = vpack.c.b16 %v549, %v544
        %v575 = vpack.c.b16 %v550, %v545
        %v576 = vpack.c.b16 %v551, %v546
        %v577 = vpack.c.b16 %v557, %v552
        %v578 = vpack.c.b16 %v558, %v553
        %v579 = vpack.c.b16 %v559, %v554
        %v580 = vpack.c.b16 %v560, %v555
        %v581 = vpack.c.b16 %v561, %v556
        %vm602 = vcmask 523264
        %v604 = vsel %vm602, %v468, 0
        %v607 = vsel %vm602, %v469, 0
        %v610 = vsel %vm602, %v470, 0
        %612 = vmatprep.subr.bf16.mxu0 0
        %613 = vmatpush1.bf16.msra.mxu0 0
        %614 = vmatprep.subr.bf16.mxu0 0
        %615 = vmatpush1.bf16.msra.mxu0 0
        %616 = vmatprep.subr.bf16.mxu0 0
        %617 = vmatpush1.bf16.msra.mxu0 0
        %618 = vmatprep.subr.bf16.mxu0 0
        %619 = vmatpush1.bf16.msra.mxu0 0
        %620 = vmatprep.subr.bf16.mxu0 %v578
        %621 = vmatpush1.bf16.msra.mxu0 %v577
        %622 = vmatprep.subr.bf16.mxu0 %v573
        %623 = vmatpush1.bf16.msra.mxu0 %v572
        %624 = vmatprep.subr.bf16.mxu0 %v568
        %625 = vmatpush1.bf16.msra.mxu0 %v567
        %626 = vmatprep.subr.bf16.mxu0 %v563
        %627 = vmatpush1.bf16.msra.mxu0 %v562
        %628 = vmatprep.subr.bf16.mxu0 0
        %629 = vmatpush2.bf16.msra.mxu0 0
        %630 = vmatprep.subr.bf16.mxu0 0
        %631 = vmatpush2.bf16.msra.mxu0 0
        %632 = vmatprep.subr.bf16.mxu0 0
        %633 = vmatpush2.bf16.msra.mxu0 0
        %634 = vmatprep.subr.bf16.mxu0 0
        %635 = vmatpush2.bf16.msra.mxu0 0
        %636 = vmatprep.subr.bf16.mxu0 0
        %637 = vmatpush2.bf16.msra.mxu0 0
        %638 = vmatprep.subr.bf16.mxu0 0
        %639 = vmatpush2.bf16.msra.mxu0 0
        %640 = vmatprep.subr.bf16.mxu0 0
        %641 = vmatpush2.bf16.msra.mxu0 0
        %642 = vmatprep.subr.bf16.mxu0 0
        %643 = vmatpush2.bf16.msra.mxu0 0
        %644 = vmatprep.mubr.bf16.mxu0 0
        %645 = vmatmul.mubr.bf16.gmra.mxu0 %v604
        %v646 = vpop.f32.mrf.mxu0
        %v647 = vadd.f32 0.0, %v646
        %v648 = vpop.f32.mrf.mxu0
        %v649 = vadd.f32 0.0, %v648
        %v650 = vpop.f32.mrf.mxu0
        %v651 = vadd.f32 0.0, %v650
        %v652 = vpop.f32.mrf.mxu0
        %v653 = vadd.f32 0.0, %v652
        %654 = vmatprep.mubr.bf16.mxu0 0
        %655 = vmatmul.mubr.bf16.gmra.mxu0 %v607
        %v656 = vpop.f32.mrf.mxu0
        %v657 = vadd.f32 0.0, %v656
        %v658 = vpop.f32.mrf.mxu0
        %v659 = vadd.f32 0.0, %v658
        %v660 = vpop.f32.mrf.mxu0
        %v661 = vadd.f32 0.0, %v660
        %v662 = vpop.f32.mrf.mxu0
        %v663 = vadd.f32 0.0, %v662
        %664 = vmatprep.mubr.bf16.mxu0 0
        %665 = vmatmul.mubr.bf16.gmra.mxu0 %v610
        %v666 = vpop.f32.mrf.mxu0
        %v667 = vpop.f32.mrf.mxu0
        %v668 = vadd.f32 0.0, %v667
        %v669 = vpop.f32.mrf.mxu0
        %v670 = vpop.f32.mrf.mxu0
        %671 = vdwg.mxu0
        %672 = vmatprep.subr.bf16.mxu0 0
        %673 = vmatpush1.bf16.msra.mxu0 0
        %674 = vmatprep.subr.bf16.mxu0 0
        %675 = vmatpush1.bf16.msra.mxu0 0
        %676 = vmatprep.subr.bf16.mxu0 0
        %677 = vmatpush1.bf16.msra.mxu0 0
        %678 = vmatprep.subr.bf16.mxu0 0
        %679 = vmatpush1.bf16.msra.mxu0 0
        %680 = vmatprep.subr.bf16.mxu0 %v580
        %681 = vmatpush1.bf16.msra.mxu0 %v579
        %682 = vmatprep.subr.bf16.mxu0 %v575
        %683 = vmatpush1.bf16.msra.mxu0 %v574
        %684 = vmatprep.subr.bf16.mxu0 %v570
        %685 = vmatpush1.bf16.msra.mxu0 %v569
        %686 = vmatprep.subr.bf16.mxu0 %v565
        %687 = vmatpush1.bf16.msra.mxu0 %v564
        %688 = vmatprep.subr.bf16.mxu0 0
        %689 = vmatpush2.bf16.msra.mxu0 0
        %690 = vmatprep.subr.bf16.mxu0 0
        %691 = vmatpush2.bf16.msra.mxu0 0
        %692 = vmatprep.subr.bf16.mxu0 0
        %693 = vmatpush2.bf16.msra.mxu0 0
        %694 = vmatprep.subr.bf16.mxu0 0
        %695 = vmatpush2.bf16.msra.mxu0 0
        %696 = vmatprep.subr.bf16.mxu0 0
        %697 = vmatpush2.bf16.msra.mxu0 0
        %698 = vmatprep.subr.bf16.mxu0 0
        %699 = vmatpush2.bf16.msra.mxu0 0
        %700 = vmatprep.subr.bf16.mxu0 0
        %701 = vmatpush2.bf16.msra.mxu0 0
        %702 = vmatprep.subr.bf16.mxu0 0
        %703 = vmatpush2.bf16.msra.mxu0 0
        %704 = vmatprep.mubr.bf16.mxu0 0
        %705 = vmatmul.mubr.bf16.gmra.mxu0 %v604
        %v706 = vpop.f32.mrf.mxu0
        %v707 = vadd.f32 0.0, %v706
        %v708 = vpop.f32.mrf.mxu0
        %v709 = vadd.f32 0.0, %v708
        %v710 = vpop.f32.mrf.mxu0
        %v711 = vadd.f32 0.0, %v710
        %v712 = vpop.f32.mrf.mxu0
        %v713 = vadd.f32 0.0, %v712
        %714 = vmatprep.mubr.bf16.mxu0 0
        %715 = vmatmul.mubr.bf16.gmra.mxu0 %v607
        %v716 = vpop.f32.mrf.mxu0
        %v717 = vadd.f32 0.0, %v716
        %v718 = vpop.f32.mrf.mxu0
        %v719 = vadd.f32 0.0, %v718
        %v720 = vpop.f32.mrf.mxu0
        %v721 = vadd.f32 0.0, %v720
        %v722 = vpop.f32.mrf.mxu0
        %v723 = vadd.f32 0.0, %v722
        %724 = vmatprep.mubr.bf16.mxu0 0
        %725 = vmatmul.mubr.bf16.gmra.mxu0 %v610
        %v726 = vpop.f32.mrf.mxu0
        %v727 = vadd.f32 0.0, %v726
        %v728 = vpop.f32.mrf.mxu0
        %v729 = vadd.f32 0.0, %v728
        %v730 = vpop.f32.mrf.mxu0
        %v731 = vpop.f32.mrf.mxu0
        %732 = vdwg.mxu0
        %733 = vmatprep.subr.bf16.mxu0 0
        %734 = vmatpush1.bf16.msra.mxu0 0
        %735 = vmatprep.subr.bf16.mxu0 0
        %736 = vmatpush1.bf16.msra.mxu0 0
        %737 = vmatprep.subr.bf16.mxu0 0
        %738 = vmatpush1.bf16.msra.mxu0 0
        %739 = vmatprep.subr.bf16.mxu0 0
        %740 = vmatpush1.bf16.msra.mxu0 0
        %741 = vmatprep.subr.bf16.mxu0 0
        %742 = vmatpush1.bf16.msra.mxu0 %v581
        %743 = vmatprep.subr.bf16.mxu0 0
        %744 = vmatpush1.bf16.msra.mxu0 %v576
        %745 = vmatprep.subr.bf16.mxu0 0
        %746 = vmatpush1.bf16.msra.mxu0 %v571
        %747 = vmatprep.subr.bf16.mxu0 0
        %748 = vmatpush1.bf16.msra.mxu0 %v566
        %749 = vmatprep.subr.bf16.mxu0 0
        %750 = vmatpush2.bf16.msra.mxu0 0
        %751 = vmatprep.subr.bf16.mxu0 0
        %752 = vmatpush2.bf16.msra.mxu0 0
        %753 = vmatprep.subr.bf16.mxu0 0
        %754 = vmatpush2.bf16.msra.mxu0 0
        %755 = vmatprep.subr.bf16.mxu0 0
        %756 = vmatpush2.bf16.msra.mxu0 0
        %757 = vmatprep.subr.bf16.mxu0 0
        %758 = vmatpush2.bf16.msra.mxu0 0
        %759 = vmatprep.subr.bf16.mxu0 0
        %760 = vmatpush2.bf16.msra.mxu0 0
        %761 = vmatprep.subr.bf16.mxu0 0
        %762 = vmatpush2.bf16.msra.mxu0 0
        %763 = vmatprep.subr.bf16.mxu0 0
        %764 = vmatpush2.bf16.msra.mxu0 0
        %765 = vmatprep.mubr.bf16.mxu0 0
        %766 = vmatmul.mubr.bf16.gmra.mxu0 %v604
        %v767 = vpop.f32.mrf.mxu0
        %v768 = vadd.f32 0.0, %v767
        %v769 = vpop.f32.mrf.mxu0
        %v770 = vpop.f32.mrf.mxu0
        %v771 = vadd.f32 0.0, %v770
        %v772 = vpop.f32.mrf.mxu0
        %773 = vmatprep.mubr.bf16.mxu0 0
        %774 = vmatmul.mubr.bf16.gmra.mxu0 %v607
        %v775 = vpop.f32.mrf.mxu0
        %v776 = vadd.f32 0.0, %v775
        %v777 = vpop.f32.mrf.mxu0
        %v778 = vpop.f32.mrf.mxu0
        %v779 = vadd.f32 0.0, %v778
        %v780 = vpop.f32.mrf.mxu0
        %781 = vmatprep.mubr.bf16.mxu0 0
        %782 = vmatmul.mubr.bf16.gmra.mxu0 %v610
        %v783 = vpop.f32.mrf.mxu0
        %v784 = vadd.f32 0.0, %v783
        %v785 = vpop.f32.mrf.mxu0
        %v786 = vpop.f32.mrf.mxu0
        %v787 = vpop.f32.mrf.mxu0
        %788 = vdwg.mxu0
        %v789 = vld [vmem:[#allocation2 + $0x7] sm:$0xff]
        %v790 = vld [vmem:[#allocation2 + $0xf] sm:$0xff]
        %v791 = vld [vmem:[#allocation2 + $0x17] sm:$0xff]
        %v792 = vld [vmem:[#allocation2 + $0x1f] sm:$0x1f]
        %v793 = vadd.f32 %v789, %v647
        %v794 = vadd.f32 %v790, %v651
        %v795 = vadd.f32 %v791, %v657
        %v796 = vadd.f32 %v792, %v661
        %797 = vst.msk [vmem:[#allocation2 + $0x7] sm:$0xff] %vm602, %v793
        %798 = vst.msk [vmem:[#allocation2 + $0xf] sm:$0xff] %vm602, %v794
        %799 = vst.msk [vmem:[#allocation2 + $0x17] sm:$0xff] %vm602, %v795
        %vm800 = vcmask 520192
        %801 = vst.msk [vmem:[#allocation2 + $0x1f] sm:$0x1f] %vm800, %v796
        %v802 = vld [vmem:[#allocation2 + $0x6] sm:$0xff]
        %v803 = vld [vmem:[#allocation2 + $0xe] sm:$0xff]
        %v804 = vld [vmem:[#allocation2 + $0x16] sm:$0xff]
        %v805 = vld [vmem:[#allocation2 + $0x1e] sm:$0x3f]
        %810 = vrot.lane.b32.xlu0 %v647, 64
        %v811 = vpop.permute.xlu0 %810
        %812 = vrot.lane.b32.xlu0 %v651, 64
        %v813 = vpop.permute.xlu0 %812
        %814 = vrot.lane.b32.xlu0 %v657, 64
        %v815 = vpop.permute.xlu0 %814
        %816 = vrot.lane.b32.xlu0 %v661, 64
        %v817 = vpop.permute.xlu0 %816
        %v822 = vadd.f32 %v802, %v811
        %v823 = vadd.f32 %v803, %v813
        %v824 = vadd.f32 %v804, %v815
        %v825 = vadd.f32 %v805, %v817
        %826 = vst.msk [vmem:[#allocation2 + $0x6] sm:$0xff] %vm602, %v822
        %827 = vst.msk [vmem:[#allocation2 + $0xe] sm:$0xff] %vm602, %v823
        %828 = vst.msk [vmem:[#allocation2 + $0x16] sm:$0xff] %vm602, %v824
        %vm829 = vcmask 521216
        %830 = vst.msk [vmem:[#allocation2 + $0x1e] sm:$0x3f] %vm829, %v825
        %v831 = vld [vmem:[#allocation2 + $0x5] sm:$0xff]
        %v832 = vld [vmem:[#allocation2 + $0xd] sm:$0xff]
        %v833 = vld [vmem:[#allocation2 + $0x15] sm:$0xff]
        %v834 = vld [vmem:[#allocation2 + $0x1d] sm:$0x7f]
        %v835 = vadd.f32 %v831, %v649
        %v836 = vadd.f32 %v832, %v653
        %v837 = vadd.f32 %v833, %v659
        %v838 = vadd.f32 %v834, %v663
        %839 = vst.msk [vmem:[#allocation2 + $0x5] sm:$0xff] %vm602, %v835
        %840 = vst.msk [vmem:[#allocation2 + $0xd] sm:$0xff] %vm602, %v836
        %841 = vst.msk [vmem:[#allocation2 + $0x15] sm:$0xff] %vm602, %v837
        %vm842 = vcmask 522240
        %843 = vst.msk [vmem:[#allocation2 + $0x1d] sm:$0x7f] %vm842, %v838
        %v844 = vld [vmem:[#allocation2 + $0x1] sm:$0xff]
        %v845 = vld [vmem:[#allocation2 + $0x9] sm:$0xff]
        %v846 = vld [vmem:[#allocation2 + $0x11] sm:$0xff]
        %v847 = vld [vmem:[#allocation2 + $0x19] sm:$0xff]
        %v848 = vld [vmem:[#allocation2 + $0x21] sm:$0x7]
        %854 = vrot.lane.b32.xlu0 %v649, 64
        %v855 = vpop.permute.xlu0 %854
        %856 = vrot.lane.b32.xlu0 %v653, 64
        %v857 = vpop.permute.xlu0 %856
        %858 = vrot.lane.b32.xlu0 %v659, 64
        %v859 = vpop.permute.xlu0 %858
        %860 = vrot.lane.b32.xlu0 %v663, 64
        %v861 = vpop.permute.xlu0 %860
        %862 = vrot.lane.b32.xlu0 %v668, 64
        %v863 = vpop.permute.xlu0 %862
        %v869 = vadd.f32 %v844, %v855
        %v870 = vadd.f32 %v845, %v857
        %v871 = vadd.f32 %v846, %v859
        %v872 = vadd.f32 %v847, %v861
        %v873 = vadd.f32 %v848, %v863
        %874 = vst.msk [vmem:[#allocation2 + $0x1] sm:$0xff] %vm602, %v869
        %875 = vst.msk [vmem:[#allocation2 + $0x9] sm:$0xff] %vm602, %v870
        %876 = vst.msk [vmem:[#allocation2 + $0x11] sm:$0xff] %vm602, %v871
        %877 = vst.msk [vmem:[#allocation2 + $0x19] sm:$0xff] %vm602, %v872
        %vm878 = vcmask 518144
        %879 = vst.msk [vmem:[#allocation2 + $0x21] sm:$0x7] %vm878, %v873
        %v880 = vld [vmem:[#allocation2] sm:$0xff]
        %v881 = vld [vmem:[#allocation2 + $0x8] sm:$0xff]
        %v882 = vld [vmem:[#allocation2 + $0x10] sm:$0xff]
        %v883 = vld [vmem:[#allocation2 + $0x18] sm:$0xff]
        %v884 = vld [vmem:[#allocation2 + $0x20] sm:$0xf]
        %v885 = vadd.f32 %v880, %v707
        %v886 = vadd.f32 %v881, %v711
        %v887 = vadd.f32 %v882, %v717
        %v888 = vadd.f32 %v883, %v721
        %v889 = vadd.f32 %v884, %v727
        %890 = vst.msk [vmem:[#allocation2] sm:$0xff] %vm602, %v885
        %891 = vst.msk [vmem:[#allocation2 + $0x8] sm:$0xff] %vm602, %v886
        %892 = vst.msk [vmem:[#allocation2 + $0x10] sm:$0xff] %vm602, %v887
        %893 = vst.msk [vmem:[#allocation2 + $0x18] sm:$0xff] %vm602, %v888
        %vm894 = vcmask 519168
        %895 = vst.msk [vmem:[#allocation2 + $0x20] sm:$0xf] %vm894, %v889
        %v896 = vld [vmem:[#allocation2] sm:$0xff]
        %v897 = vld [vmem:[#allocation2 + $0x8] sm:$0xff]
        %v898 = vld [vmem:[#allocation2 + $0x10] sm:$0xff]
        %v899 = vld [vmem:[#allocation2 + $0x18] sm:$0xff]
        %v900 = vld [vmem:[#allocation2 + $0x20] sm:$0x7]
        %vm906 = vcmask 1046528
        %v907 = vrot.slane %v707, 1
        %v908 = vrot.slane %v711, 1
        %v909 = vsel %vm906, %v907, %v908
        %v910 = vrot.slane %v717, 1
        %v911 = vsel %vm906, %v908, %v910
        %v912 = vrot.slane %v721, 1
        %v913 = vsel %vm906, %v910, %v912
        %v914 = vrot.slane %v727, 1
        %v915 = vsel %vm906, %v912, %v914
        %916 = vrot.lane.b32.xlu0 %v909, 64
        %v917 = vpop.permute.xlu0 %916
        %918 = vrot.lane.b32.xlu0 %v911, 64
        %v919 = vpop.permute.xlu0 %918
        %920 = vrot.lane.b32.xlu0 %v913, 64
        %v921 = vpop.permute.xlu0 %920
        %922 = vrot.lane.b32.xlu0 %v915, 64
        %v923 = vpop.permute.xlu0 %922
        %924 = vrot.lane.b32.xlu0 %v914, 64
        %v925 = vpop.permute.xlu0 %924
        %v931 = vadd.f32 %v896, %v917
        %v932 = vadd.f32 %v897, %v919
        %v933 = vadd.f32 %v898, %v921
        %v934 = vadd.f32 %v899, %v923
        %v935 = vadd.f32 %v900, %v925
        %936 = vst.msk [vmem:[#allocation2] sm:$0xff] %vm602, %v931
        %937 = vst.msk [vmem:[#allocation2 + $0x8] sm:$0xff] %vm602, %v932
        %938 = vst.msk [vmem:[#allocation2 + $0x10] sm:$0xff] %vm602, %v933
        %939 = vst.msk [vmem:[#allocation2 + $0x18] sm:$0xff] %vm602, %v934
        %940 = vst.msk [vmem:[#allocation2 + $0x20] sm:$0x7] %vm878, %v935
        %v941 = vld [vmem:[#allocation2] sm:$0xff]
        %v942 = vld [vmem:[#allocation2 + $0x8] sm:$0xff]
        %v943 = vld [vmem:[#allocation2 + $0x10] sm:$0xff]
        %v944 = vld [vmem:[#allocation2 + $0x18] sm:$0x7f]
        %vm950 = vcmask 1042432
        %v951 = vrot.slane %v709, 5
        %v952 = vrot.slane %v713, 5
        %v953 = vsel %vm950, %v951, %v952
        %v954 = vrot.slane %v719, 5
        %v955 = vsel %vm950, %v952, %v954
        %v956 = vrot.slane %v723, 5
        %v957 = vsel %vm950, %v954, %v956
        %v958 = vrot.slane %v729, 5
        %v959 = vsel %vm950, %v956, %v958
        %v964 = vadd.f32 %v941, %v953
        %v965 = vadd.f32 %v942, %v955
        %v966 = vadd.f32 %v943, %v957
        %v967 = vadd.f32 %v944, %v959
        %968 = vst.msk [vmem:[#allocation2] sm:$0xff] %vm602, %v964
        %969 = vst.msk [vmem:[#allocation2 + $0x8] sm:$0xff] %vm602, %v965
        %970 = vst.msk [vmem:[#allocation2 + $0x10] sm:$0xff] %vm602, %v966
        %971 = vst.msk [vmem:[#allocation2 + $0x18] sm:$0x7f] %vm842, %v967
        %v972 = vld [vmem:[#allocation2] sm:$0xff]
        %v973 = vld [vmem:[#allocation2 + $0x8] sm:$0xff]
        %v974 = vld [vmem:[#allocation2 + $0x10] sm:$0xff]
        %v975 = vld [vmem:[#allocation2 + $0x18] sm:$0x3f]
        %vm976 = vcmask 1041408
        %v977 = vrot.slane %v709, 6
        %v978 = vrot.slane %v713, 6
        %v979 = vsel %vm976, %v977, %v978
        %v980 = vrot.slane %v719, 6
        %v981 = vsel %vm976, %v978, %v980
        %v982 = vrot.slane %v723, 6
        %v983 = vsel %vm976, %v980, %v982
        %v984 = vrot.slane %v729, 6
        %v985 = vsel %vm976, %v982, %v984
        %986 = vrot.lane.b32.xlu0 %v979, 64
        %v987 = vpop.permute.xlu0 %986
        %988 = vrot.lane.b32.xlu0 %v981, 64
        %v989 = vpop.permute.xlu0 %988
        %990 = vrot.lane.b32.xlu0 %v983, 64
        %v991 = vpop.permute.xlu0 %990
        %992 = vrot.lane.b32.xlu0 %v985, 64
        %v993 = vpop.permute.xlu0 %992
        %v998 = vadd.f32 %v972, %v987
        %v999 = vadd.f32 %v973, %v989
        %v1000 = vadd.f32 %v974, %v991
        %v1001 = vadd.f32 %v975, %v993
        %1002 = vst.msk [vmem:[#allocation2] sm:$0xff] %vm602, %v998
        %1003 = vst.msk [vmem:[#allocation2 + $0x8] sm:$0xff] %vm602, %v999
        %1004 = vst.msk [vmem:[#allocation2 + $0x10] sm:$0xff] %vm602, %v1000
        %1005 = vst.msk [vmem:[#allocation2 + $0x18] sm:$0x3f] %vm829, %v1001
        %v1006 = vld [vmem:[#allocation2] sm:$0xff]
        %v1007 = vld [vmem:[#allocation2 + $0x8] sm:$0xff]
        %v1008 = vld [vmem:[#allocation2 + $0x10] sm:$0xff]
        %v1009 = vld [vmem:[#allocation2 + $0x18] sm:$0x1f]
        %vm1015 = vcmask 1040384
        %v1016 = vrot.slane %v768, 7
        %v1017 = vrot.slane %v771, 7
        %v1018 = vsel %vm1015, %v1016, %v1017
        %v1019 = vrot.slane %v776, 7
        %v1020 = vsel %vm1015, %v1017, %v1019
        %v1021 = vrot.slane %v779, 7
        %v1022 = vsel %vm1015, %v1019, %v1021
        %v1023 = vrot.slane %v784, 7
        %v1024 = vsel %vm1015, %v1021, %v1023
        %v1029 = vadd.f32 %v1006, %v1018
        %v1030 = vadd.f32 %v1007, %v1020
        %v1031 = vadd.f32 %v1008, %v1022
        %v1032 = vadd.f32 %v1009, %v1024
        %1033 = vst.msk [vmem:[#allocation2] sm:$0xff] %vm602, %v1029
        %1034 = vst.msk [vmem:[#allocation2 + $0x8] sm:$0xff] %vm602, %v1030
        %1035 = vst.msk [vmem:[#allocation2 + $0x10] sm:$0xff] %vm602, %v1031
        %1036 = vst.msk [vmem:[#allocation2 + $0x18] sm:$0x1f] %vm800, %v1032
      $region56: #{seg_head_forward.11} parent=47 // pred_fallthru
        _
      %p1037 = scmp.eq.s32.totalorder %s25, 2
      // Predicated region
      $region57: #{seg_head_forward.11} parent=47 // pred_check
        %p1038 = pneg %p1037
      $region58: #{seg_head_forward.11} parent=47 // pred_check_branch
        %1040 = sbr.rel (%p1038) target = $region60
      $region59: #{seg_head_forward.11} parent=47 // pred_region
        %v1041 = vld [vmem:[#allocation2] sm:$0xff]
        %v1042 = vld [vmem:[#allocation2 + $0x8] sm:$0xff]
        %v1043 = vld [vmem:[#allocation2 + $0x10] sm:$0xff]
        %v1044 = vld [vmem:[#allocation2 + $0x18] sm:$0xff]
        %v1045 = vld [vmem:[#allocation2 + $0x20] sm:$0xf]
        %v1046 = vld [vmem:[%s2] sm:$0x1]
        %v1048 = vlaneseq
        %v1049 = vshrl.u32 %v1048, 7
        %v1050 = vsub.s32 0, %v1049
        %v1051 = vrot.slane %v1046, %v1050
        %v1053 = vmul.f32 %v1041, %v1051
        %v1054 = vmul.f32 %v1042, %v1051
        %v1055 = vmul.f32 %v1043, %v1051
        %v1056 = vmul.f32 %v1044, %v1051
        %v1057 = vmul.f32 %v1045, %v1051
        %v1058 = vld [vmem:[%s3] sm:$0x1]
        %v1060 = vlaneseq
        %v1061 = vshrl.u32 %v1060, 7
        %v1062 = vsub.s32 0, %v1061
        %v1063 = vrot.slane %v1058, %v1062
        %v1065 = vadd.f32 %v1053, %v1063
        %v1066 = vadd.f32 %v1054, %v1063
        %v1067 = vadd.f32 %v1055, %v1063
        %v1068 = vadd.f32 %v1056, %v1063
        %v1069 = vadd.f32 %v1057, %v1063
        %vm1070 = vcmp.gt.f32.partialorder %v1065, 0.0
        %vm1071 = vcmp.gt.f32.partialorder %v1066, 0.0
        %vm1072 = vcmp.gt.f32.partialorder %v1067, 0.0
        %vm1073 = vcmp.gt.f32.partialorder %v1068, 0.0
        %vm1074 = vcmp.gt.f32.partialorder %v1069, 0.0
        %v1075 = vmul.f32 %v1065, 1e-05
        %v1076 = vmul.f32 %v1066, 1e-05
        %v1077 = vmul.f32 %v1067, 1e-05
        %v1078 = vmul.f32 %v1068, 1e-05
        %v1079 = vmul.f32 %v1069, 1e-05
        %v1080 = vsel %vm1070, %v1065, %v1075
        %v1081 = vsel %vm1071, %v1066, %v1076
        %v1082 = vsel %vm1072, %v1067, %v1077
        %v1083 = vsel %vm1073, %v1068, %v1078
        %v1084 = vsel %vm1074, %v1069, %v1079
        %v1085 = vld [vmem:[%s4] sm:$0xff]
        %v1086 = vld [vmem:[%s4 + $0x8] sm:$0xff]
        %v1087 = vld [vmem:[%s4 + $0x10] sm:$0xff]
        %v1088 = vld [vmem:[%s4 + $0x18] sm:$0xff]
        %v1089 = vld [vmem:[%s4 + $0x20] sm:$0xf]
        %1091 = vset.pattern.permute.xlu0 0
        %1092 = vperm.xlu0 %1091, %v1085
        %v1093 = vpop.permute.xlu0 %1092
        %1096 = vset.pattern.permute.xlu0 0
        %1097 = vperm.xlu0 %1096, %v1086
        %v1098 = vpop.permute.xlu0 %1097
        %1101 = vset.pattern.permute.xlu0 0
        %1102 = vperm.xlu0 %1101, %v1087
        %v1103 = vpop.permute.xlu0 %1102
        %1106 = vset.pattern.permute.xlu0 0
        %1107 = vperm.xlu0 %1106, %v1088
        %v1108 = vpop.permute.xlu0 %1107
        %1111 = vset.pattern.permute.xlu0 0
        %1112 = vperm.xlu0 %1111, %v1089
        %v1113 = vpop.permute.xlu0 %1112
        %v1115 = vmul.f32 %v1080, %v1093
        %v1116 = vmul.f32 %v1081, %v1098
        %v1117 = vmul.f32 %v1082, %v1103
        %v1118 = vmul.f32 %v1083, %v1108
        %v1119 = vmul.f32 %v1084, %v1113
        %v1120 = vpack.c.bf16 %v1116, %v1115
        %v1121 = vpack.c.bf16 %v1118, %v1117
        %v1122 = vpack.c.bf16 %v1119, %v1119
        %v1126 = vunpack.c.l.b16 %v1120
        %v1127 = vunpack.c.h.b16 %v1120
        %v1128 = vunpack.c.l.b16 %v1121
        %v1129 = vunpack.c.h.b16 %v1121
        %v1130 = vunpack.c.l.b16 %v1122
        %v1131 = vpack.c.b16 %v1126, %v1126
        %v1132 = vpack.c.b16 %v1127, %v1127
        %v1133 = vpack.c.b16 %v1128, %v1128
        %v1134 = vpack.c.b16 %v1129, %v1129
        %v1135 = vpack.c.b16 %v1130, %v1130
        %vm1141 = vcmask 519168
        %1142 = vst.msk [vmem:[%s363] sm:$0xf] %vm1141, %v1131
        %1143 = vst.msk [vmem:[%s363 + $0x4] sm:$0xf] %vm1141, %v1132
        %1144 = vst.msk [vmem:[%s363 + $0x8] sm:$0xf] %vm1141, %v1133
        %1145 = vst.msk [vmem:[%s363 + $0xc] sm:$0xf] %vm1141, %v1134
        %vm1146 = vcmask 517120
        %1147 = vst.msk [vmem:[%s363 + $0x10] sm:$0x3] %vm1146, %v1135
      $region60: #{seg_head_forward.11} parent=47 // pred_fallthru
        _
      %p1148 = scmp.lt.s32.totalorder %s23, 1
      %s1149 = scalar_select %p1148, %s23, 1
      %p1150 = scmp.lt.s32.totalorder %s24, 3
      %s1151 = scalar_select %p1150, %s24, 3
      %s1152 = smul.addr %s1151, 5
      %s1153 = smul.addr %s1149, 20
      %s1154 = sadd.s32 %s1152, %s1153
      %s1155 = smul.addr %s1154, 4
      %s1156 = scalar_lea.vmem %s7, %s1155
      // Predicated region
      $region61: #{seg_head_forward.11} parent=47 // pred_check
        %p1157 = pneg %p223
      $region62: #{seg_head_forward.11} parent=47 // pred_check_branch
        %1159 = sbr.rel (%p1157) target = $region64
      $region63: #{seg_head_forward.11} parent=47 // pred_region
        _
      $region64: #{seg_head_forward.11} parent=47 // pred_fallthru
        _
    $region48: #{seg_head_forward.11} parent=5 // pred_fallthru
      _
    %p1160 = scmp.le.s32.totalorder 2, %s13
    // Predicated region
    $region65: #{seg_head_forward.11} parent=5 // pred_check
      %p1161 = pneg %p1160
    $region66: #{seg_head_forward.11} parent=5 // pred_check_branch
      %1163 = sbr.rel (%p1161) target = $region68
    $region67: #{seg_head_forward.11} parent=5 // pred_region
      %s1164 = ssub.s32 %s13, 2
      // Predicated region
      $region69: #{seg_head_forward.11} parent=67 // pred_check
        %p1165 = pneg %p229
      $region70: #{seg_head_forward.11} parent=67 // pred_check_branch
        %1167 = sbr.rel (%p1165) target = $region72
      $region71: #{seg_head_forward.11} parent=67 // pred_region
        %p1168 = scmp.lt.s32.totalorder %s26, 1
        %s1169 = scalar_select %p1168, %s26, 1
        %p1170 = scmp.lt.s32.totalorder %s27, 3
        %s1171 = scalar_select %p1170, %s27, 3
        %s1172 = smul.addr %s1171, 5
        %s1173 = smul.addr %s1169, 20
        %s1174 = sadd.s32 %s1172, %s1173
        %s1175 = smul.addr %s1174, 4
        %s1176 = scalar_lea.vmem %s7, %s1175
      $region72: #{seg_head_forward.11} parent=67 // pred_fallthru
        _
    $region68: #{seg_head_forward.11} parent=5 // pred_fallthru
      _
  $region6: #{seg_head_forward.11} parent=0 // loop_footer
    %s17 = sadd.s32 1, %s13
  $region7: #{seg_head_forward.11} parent=0 // loop_footer_branch
    %12 = sbr.rel target = $region3
  $region8: #{seg_head_forward.11} parent=0 // loop_exit
    _

// kernel: seg_head_forward.12
$region0: #{seg_head_forward.12}
  #allocation0 [shape = 'u32[]', space=smem, size = 0x4, offset = 0x4, fixed_abs, tag = 'smem constant byte address 0x4 - core index']
  #allocation1 [shape = 'u32[144,128]{1,0:T(1,128)}', space=vmem, size = 0x12000, scoped, tag = 'internal scratch']
  #allocation2 [shape = 'f32[36,64]{1,0:T(8,128)}', space=vmem, size = 0x5000, scoped, tag = 'scratch operand']
  %s0 = inlined_call_operand.vmem [shape: bf16[2,4,36,64], index: 0, kind: input, shape index: {}]
  %s1 = inlined_call_operand.vmem [shape: bf16[3,64,576], index: 1, kind: input, shape index: {}]
  %s2 = inlined_call_operand.vmem [shape: f32[1,64], index: 2, kind: input, shape index: {}]
  %s3 = inlined_call_operand.vmem [shape: f32[1,64], index: 3, kind: input, shape index: {}]
  %s4 = inlined_call_operand.vmem [shape: f32[36,1], index: 4, kind: input, shape index: {}]
  %s5 = inlined_call_operand.vmem [shape: bf16[2,4,36,64], index: 5, kind: input, shape index: {}]
  %s6 = inlined_call_operand.vmem [shape: bf16[2,4,36,64], index: 6, kind: output, shape index: {}]
  %s7 = sld [smem:[#allocation0]]
  $region69: #{seg_head_forward.12} parent=0
    _
  %s9 = ssub.s32 1, %s7
  %s10 = scalar_select 0, %s9, %s7
  loop: start=0, step=1, limit=26
  $region2: #{seg_head_forward.12} parent=0 // loop_pre_header
    _
  $region3: #{seg_head_forward.12} parent=0 // loop_header
    %s12 = sphi 0, %s16
    %p13 = scmp.ge.s32.totalorder %s12, 26
    %s19 = sphi 0, %s38
    %s20 = sphi 0, %s34
    %s21 = sphi 0, %s30
    %s22 = sphi 0, %s19
    %s23 = sphi 0, %s20
    %s24 = sphi 0, %s21
    %s25 = sphi 0, %s22
    %s26 = sphi 0, %s23
    %s27 = sphi 0, %s24
    %s55 = sphi 0, %s57
    %s58 = sphi 0, %s55
    %s59 = sphi 0, %s58
    %s75 = sphi 0, %s59
    %s79 = sphi 0, %s79
    %s81 = sphi 0, %s79
    %s82 = sphi 0, %s81
    %s96 = sphi 0, %s82
    %s100 = sphi 0, %s100
    %s102 = sphi 0, %s100
    %s103 = sphi 0, %s102
    %s117 = sphi 0, %s103
    %s121 = sphi 0, %s121
    %s123 = sphi 0, %s121
    %s124 = sphi 0, %s123
    %s138 = sphi 0, %s124
    %s142 = sphi 0, %s142
    %s144 = sphi 0, %s142
    %s145 = sphi 0, %s144
    %s159 = sphi 0, %s145
    %s167 = sphi 0, %s169
    %s170 = sphi 0, %s167
    %s171 = sphi 0, %s170
    %s187 = sphi 0, %s171
    %s195 = sphi 0, %s197
    %s198 = sphi 0, %s195
    %s199 = sphi 0, %s198
    %s215 = sphi 0, %s199
  $region4: #{seg_head_forward.12} parent=0 // loop_header_branch
    %15 = sbr.rel (%p13) target = $region8
  $region5: #{seg_head_forward.12} parent=0 // loop_body
    %s17 = ssub.s32 %s12, 1
    %s18 = ssub.s32 %s12, 2
    %s28 = sadd.s32 1, %s21
    %p29 = scmp.ge.s32.totalorder %s28, 3
    %s30 = scalar_select %p29, 0, %s28
    %s31 = sadd.s32 1, %s20
    %s32 = scalar_select %p29, %s31, %s20
    %p33 = scmp.ge.s32.totalorder %s32, 4
    %s34 = scalar_select %p33, 0, %s32
    %s35 = sadd.s32 1, %s19
    %s36 = scalar_select %p33, %s35, %s19
    %p37 = scmp.ge.s32.totalorder %s36, 2
    %s38 = scalar_select %p37, 0, %s36
    %s39 = sadd.s32 %s20, %s21
    %s40 = ssub.s32 %s39, 1
    %p41 = scmp.gt.s32.totalorder %s40, 0
    %s42 = scalar_select %p41, %s40, 0
    %p43 = scmp.lt.s32.totalorder %s42, 3
    %s44 = scalar_select %p43, %s42, 3
    %s45 = sadd.s32 %s34, %s30
    %s46 = ssub.s32 %s45, 1
    %p47 = scmp.gt.s32.totalorder %s46, 0
    %s48 = scalar_select %p47, %s46, 0
    %p49 = scmp.lt.s32.totalorder %s48, 3
    %s50 = scalar_select %p49, %s48, 3
    %s51 = ssub.s32 %s19, %s38
    %s52 = ssub.s32 %s44, %s50
    %s53 = sor.u32 %s51, %s52
    %p54 = scmp.eq.s32.totalorder %s53, 0
    %s56 = sadd.s32 %s55, 1
    %s57 = scalar_select %p54, %s55, %s56
    %p60 = pneg %p54
    %p61 = scmp.eq.s32.totalorder %s12, 23
    %p62 = por %p60, %p61
    %p63 = scmp.ne.s32.totalorder %s55, %s58
    %p64 = scmp.eq.s32.totalorder %s12, 0
    %p65 = por %p63, %p64
    %p66 = scmp.ne.s32.totalorder %s55, %s58
    %p67 = scmp.eq.s32.totalorder %s17, 23
    %p68 = por %p66, %p67
    %p69 = scmp.ne.s32.totalorder %s58, %s59
    %p70 = scmp.eq.s32.totalorder %s17, 0
    %p71 = por %p69, %p70
    %p72 = scmp.ne.s32.totalorder %s58, %s59
    %p73 = scmp.eq.s32.totalorder %s18, 23
    %p74 = por %p72, %p73
    %p76 = scmp.ne.s32.totalorder %s59, %s75
    %p77 = scmp.eq.s32.totalorder %s18, 0
    %p78 = por %p76, %p77
    %s80 = sadd.s32 %s79, 1
    %p83 = scmp.eq.s32.totalorder %s12, 23
    %p84 = scmp.ne.s32.totalorder %s79, %s81
    %p85 = scmp.eq.s32.totalorder %s12, 0
    %p86 = por %p84, %p85
    %p87 = scmp.ne.s32.totalorder %s79, %s81
    %p88 = scmp.eq.s32.totalorder %s17, 23
    %p89 = por %p87, %p88
    %p90 = scmp.ne.s32.totalorder %s81, %s82
    %p91 = scmp.eq.s32.totalorder %s17, 0
    %p92 = por %p90, %p91
    %p93 = scmp.ne.s32.totalorder %s81, %s82
    %p94 = scmp.eq.s32.totalorder %s18, 23
    %p95 = por %p93, %p94
    %p97 = scmp.ne.s32.totalorder %s82, %s96
    %p98 = scmp.eq.s32.totalorder %s18, 0
    %p99 = por %p97, %p98
    %s101 = sadd.s32 %s100, 1
    %p104 = scmp.eq.s32.totalorder %s12, 23
    %p105 = scmp.ne.s32.totalorder %s100, %s102
    %p106 = scmp.eq.s32.totalorder %s12, 0
    %p107 = por %p105, %p106
    %p108 = scmp.ne.s32.totalorder %s100, %s102
    %p109 = scmp.eq.s32.totalorder %s17, 23
    %p110 = por %p108, %p109
    %p111 = scmp.ne.s32.totalorder %s102, %s103
    %p112 = scmp.eq.s32.totalorder %s17, 0
    %p113 = por %p111, %p112
    %p114 = scmp.ne.s32.totalorder %s102, %s103
    %p115 = scmp.eq.s32.totalorder %s18, 23
    %p116 = por %p114, %p115
    %p118 = scmp.ne.s32.totalorder %s103, %s117
    %p119 = scmp.eq.s32.totalorder %s18, 0
    %p120 = por %p118, %p119
    %s122 = sadd.s32 %s121, 1
    %p125 = scmp.eq.s32.totalorder %s12, 23
    %p126 = scmp.ne.s32.totalorder %s121, %s123
    %p127 = scmp.eq.s32.totalorder %s12, 0
    %p128 = por %p126, %p127
    %p129 = scmp.ne.s32.totalorder %s121, %s123
    %p130 = scmp.eq.s32.totalorder %s17, 23
    %p131 = por %p129, %p130
    %p132 = scmp.ne.s32.totalorder %s123, %s124
    %p133 = scmp.eq.s32.totalorder %s17, 0
    %p134 = por %p132, %p133
    %p135 = scmp.ne.s32.totalorder %s123, %s124
    %p136 = scmp.eq.s32.totalorder %s18, 23
    %p137 = por %p135, %p136
    %p139 = scmp.ne.s32.totalorder %s124, %s138
    %p140 = scmp.eq.s32.totalorder %s18, 0
    %p141 = por %p139, %p140
    %s143 = sadd.s32 %s142, 1
    %p146 = scmp.eq.s32.totalorder %s12, 23
    %p147 = scmp.ne.s32.totalorder %s142, %s144
    %p148 = scmp.eq.s32.totalorder %s12, 0
    %p149 = por %p147, %p148
    %p150 = scmp.ne.s32.totalorder %s142, %s144
    %p151 = scmp.eq.s32.totalorder %s17, 23
    %p152 = por %p150, %p151
    %p153 = scmp.ne.s32.totalorder %s144, %s145
    %p154 = scmp.eq.s32.totalorder %s17, 0
    %p155 = por %p153, %p154
    %p156 = scmp.ne.s32.totalorder %s144, %s145
    %p157 = scmp.eq.s32.totalorder %s18, 23
    %p158 = por %p156, %p157
    %p160 = scmp.ne.s32.totalorder %s145, %s159
    %p161 = scmp.eq.s32.totalorder %s18, 0
    %p162 = por %p160, %p161
    %s163 = ssub.s32 %s19, %s38
    %s164 = ssub.s32 %s20, %s34
    %s165 = sor.u32 %s163, %s164
    %p166 = scmp.eq.s32.totalorder %s165, 0
    %s168 = sadd.s32 %s167, 1
    %s169 = scalar_select %p166, %s167, %s168
    %p172 = pneg %p166
    %p173 = scmp.eq.s32.totalorder %s12, 23
    %p174 = por %p172, %p173
    %p175 = scmp.ne.s32.totalorder %s167, %s170
    %p176 = scmp.eq.s32.totalorder %s12, 0
    %p177 = por %p175, %p176
    %p178 = scmp.ne.s32.totalorder %s167, %s170
    %p179 = scmp.eq.s32.totalorder %s17, 23
    %p180 = por %p178, %p179
    %p181 = scmp.ne.s32.totalorder %s170, %s171
    %p182 = scmp.eq.s32.totalorder %s17, 0
    %p183 = por %p181, %p182
    %p184 = scmp.ne.s32.totalorder %s170, %s171
    %p185 = scmp.eq.s32.totalorder %s18, 23
    %p186 = por %p184, %p185
    %p188 = scmp.ne.s32.totalorder %s171, %s187
    %p189 = scmp.eq.s32.totalorder %s18, 0
    %p190 = por %p188, %p189
    %s191 = ssub.s32 %s19, %s38
    %s192 = ssub.s32 %s20, %s34
    %s193 = sor.u32 %s191, %s192
    %p194 = scmp.eq.s32.totalorder %s193, 0
    %s196 = sadd.s32 %s195, 1
    %s197 = scalar_select %p194, %s195, %s196
    %p200 = pneg %p194
    %p201 = scmp.eq.s32.totalorder %s12, 23
    %p202 = por %p200, %p201
    %p203 = scmp.ne.s32.totalorder %s195, %s198
    %p204 = scmp.eq.s32.totalorder %s12, 0
    %p205 = por %p203, %p204
    %p206 = scmp.ne.s32.totalorder %s195, %s198
    %p207 = scmp.eq.s32.totalorder %s17, 23
    %p208 = por %p206, %p207
    %p209 = scmp.ne.s32.totalorder %s198, %s199
    %p210 = scmp.eq.s32.totalorder %s17, 0
    %p211 = por %p209, %p210
    %p212 = scmp.ne.s32.totalorder %s198, %s199
    %p213 = scmp.eq.s32.totalorder %s18, 23
    %p214 = por %p212, %p213
    %p216 = scmp.ne.s32.totalorder %s199, %s215
    %p217 = scmp.eq.s32.totalorder %s18, 0
    %p218 = por %p216, %p217
    %p219 = scmp.le.s32.totalorder 1, %s12
    %p220 = scmp.lt.s32.totalorder %s12, 25
    %p221 = pnand %p219, %p220
    %p222 = pneg %p221
    // Predicated region
    $region9: #{seg_head_forward.12} parent=5 // pred_check
      _
    $region10: #{seg_head_forward.12} parent=5 // pred_check_branch
      %224 = sbr.rel (%p221) target = $region12
    $region11: #{seg_head_forward.12} parent=5 // pred_region
      %s225 = ssub.s32 %s12, 1
      // Predicated region
      $region13: #{seg_head_forward.12} parent=11 // pred_check
        %p226 = pneg %p92
      $region14: #{seg_head_forward.12} parent=11 // pred_check_branch
        %228 = sbr.rel (%p226) target = $region16
      $region15: #{seg_head_forward.12} parent=11 // pred_region
        _
      $region16: #{seg_head_forward.12} parent=11 // pred_fallthru
        _
      // Predicated region
      $region17: #{seg_head_forward.12} parent=11 // pred_check
        %p229 = pneg %p113
      $region18: #{seg_head_forward.12} parent=11 // pred_check_branch
        %231 = sbr.rel (%p229) target = $region20
      $region19: #{seg_head_forward.12} parent=11 // pred_region
        _
      $region20: #{seg_head_forward.12} parent=11 // pred_fallthru
        _
      // Predicated region
      $region21: #{seg_head_forward.12} parent=11 // pred_check
        %p232 = pneg %p134
      $region22: #{seg_head_forward.12} parent=11 // pred_check_branch
        %234 = sbr.rel (%p232) target = $region24
      $region23: #{seg_head_forward.12} parent=11 // pred_region
        _
      $region24: #{seg_head_forward.12} parent=11 // pred_fallthru
        _
      // Predicated region
      $region25: #{seg_head_forward.12} parent=11 // pred_check
        %p235 = pneg %p155
      $region26: #{seg_head_forward.12} parent=11 // pred_check_branch
        %237 = sbr.rel (%p235) target = $region28
      $region27: #{seg_head_forward.12} parent=11 // pred_region
        _
      $region28: #{seg_head_forward.12} parent=11 // pred_fallthru
        _
    $region12: #{seg_head_forward.12} parent=5 // pred_fallthru
      _
    %p238 = scmp.lt.s32.totalorder %s12, 24
    // Predicated region
    $region29: #{seg_head_forward.12} parent=5 // pred_check
      %p239 = pneg %p238
    $region30: #{seg_head_forward.12} parent=5 // pred_check_branch
      %241 = sbr.rel (%p239) target = $region32
    $region31: #{seg_head_forward.12} parent=5 // pred_region
      // Predicated region
      $region33: #{seg_head_forward.12} parent=31 // pred_check
        %p242 = pneg %p65
      $region34: #{seg_head_forward.12} parent=31 // pred_check_branch
        %244 = sbr.rel (%p242) target = $region36
      $region35: #{seg_head_forward.12} parent=31 // pred_region
        %s245 = sadd.s32 %s20, %s21
        %s246 = ssub.s32 %s245, 1
        %p247 = scmp.gt.s32.totalorder %s246, 0
        %s248 = scalar_select %p247, %s246, 0
        %p249 = scmp.lt.s32.totalorder %s248, 3
        %s250 = scalar_select %p249, %s248, 3
        %p251 = scmp.lt.s32.totalorder %s19, 1
        %s252 = scalar_select %p251, %s19, 1
        %p253 = scmp.lt.s32.totalorder %s250, 3
        %s254 = scalar_select %p253, %s250, 3
        %s255 = smul.addr %s254, 5
        %s256 = smul.addr %s252, 20
        %s257 = sadd.s32 %s255, %s256
        %s258 = smul.addr %s257, 4
        %s259 = scalar_lea.vmem %s0, %s258
        %s260 = sadd.s32 %s20, %s21
        %s261 = ssub.s32 %s260, 1
        %p262 = scmp.gt.s32.totalorder %s261, 0
        %s263 = scalar_select %p262, %s261, 0
        %p264 = scmp.lt.s32.totalorder %s263, 3
        %s265 = scalar_select %p264, %s263, 3
      $region36: #{seg_head_forward.12} parent=31 // pred_fallthru
        _
      // Predicated region
      $region37: #{seg_head_forward.12} parent=31 // pred_check
        %p266 = pneg %p177
      $region38: #{seg_head_forward.12} parent=31 // pred_check_branch
        %268 = sbr.rel (%p266) target = $region40
      $region39: #{seg_head_forward.12} parent=31 // pred_region
        %p269 = scmp.lt.s32.totalorder %s19, 1
        %s270 = scalar_select %p269, %s19, 1
        %p271 = scmp.lt.s32.totalorder %s20, 3
        %s272 = scalar_select %p271, %s20, 3
        %s273 = smul.addr %s272, 5
        %s274 = smul.addr %s270, 20
        %s275 = sadd.s32 %s273, %s274
        %s276 = smul.addr %s275, 4
        %s277 = scalar_lea.vmem %s5, %s276
      $region40: #{seg_head_forward.12} parent=31 // pred_fallthru
        _
    $region32: #{seg_head_forward.12} parent=5 // pred_fallthru
      _
    %p278 = scmp.le.s32.totalorder 1, %s12
    %p279 = scmp.lt.s32.totalorder %s12, 25
    %p280 = pnand %p278, %p279
    %p281 = pneg %p280
    // Predicated region
    $region41: #{seg_head_forward.12} parent=5 // pred_check
      _
    $region42: #{seg_head_forward.12} parent=5 // pred_check_branch
      %283 = sbr.rel (%p280) target = $region44
    $region43: #{seg_head_forward.12} parent=5 // pred_region
      %s284 = ssub.s32 %s12, 1
      %s285 = sadd.s32 %s23, %s24
      %s286 = ssub.s32 %s285, 1
      %p287 = scmp.gt.s32.totalorder %s286, 0
      %s288 = scalar_select %p287, %s286, 0
      %p289 = scmp.lt.s32.totalorder %s288, 3
      %s290 = scalar_select %p289, %s288, 3
      %p291 = scmp.lt.s32.totalorder %s22, 1
      %s292 = scalar_select %p291, %s22, 1
      %p293 = scmp.lt.s32.totalorder %s290, 3
      %s294 = scalar_select %p293, %s290, 3
      %s295 = smul.addr %s294, 5
      %s296 = smul.addr %s292, 20
      %s297 = sadd.s32 %s295, %s296
      %s298 = smul.addr %s297, 4
      %s299 = scalar_lea.vmem %s0, %s298
      %p300 = pneg %p71
      %p301 = pneg %p68
      %p302 = pneg %p92
      %p303 = pneg %p89
      %p304 = pneg %p113
      %p305 = pneg %p110
      %p306 = pneg %p134
      %p307 = pneg %p131
      %p308 = pneg %p155
      %p309 = pneg %p152
      %p310 = scmp.lt.s32.totalorder %s22, 1
      %s311 = scalar_select %p310, %s22, 1
      %p312 = scmp.lt.s32.totalorder %s23, 3
      %s313 = scalar_select %p312, %s23, 3
      %s314 = smul.addr %s313, 5
      %s315 = smul.addr %s311, 20
      %s316 = sadd.s32 %s314, %s315
      %s317 = smul.addr %s316, 4
      %s318 = scalar_lea.vmem %s5, %s317
      %p319 = pneg %p183
      %p320 = pneg %p180
      %p321 = pneg %p211
      %p322 = pneg %p208
      %p323 = scmp.lt.s32.totalorder %s22, 1
      %s324 = scalar_select %p323, %s22, 1
      %p325 = scmp.lt.s32.totalorder %s23, 3
      %s326 = scalar_select %p325, %s23, 3
      %s327 = smul.addr %s326, 5
      %s328 = smul.addr %s324, 20
      %s329 = sadd.s32 %s327, %s328
      %s330 = smul.addr %s329, 4
      %s331 = scalar_lea.vmem %s6, %s330
      %s332 = sadd.s32 %s23, %s24
      %s333 = ssub.s32 %s332, 1
      %p334 = scmp.gt.s32.totalorder %s333, 0
      %s335 = scalar_select %p334, %s333, 0
      %p336 = scmp.lt.s32.totalorder %s335, 3
      %s337 = scalar_select %p336, %s335, 3
      %p338 = scmp.lt.s32.totalorder %s22, 1
      %s339 = scalar_select %p338, %s22, 1
      %p340 = scmp.lt.s32.totalorder %s337, 3
      %s341 = scalar_select %p340, %s337, 3
      %s342 = smul.addr %s341, 5
      %s343 = smul.addr %s339, 20
      %s344 = sadd.s32 %s342, %s343
      %s345 = smul.addr %s344, 4
      %s346 = scalar_lea.vmem %s0, %s345
      %s347 = sadd.s32 %s23, %s24
      %s348 = ssub.s32 %s347, 1
      %p349 = scmp.gt.s32.totalorder %s348, 0
      %s350 = scalar_select %p349, %s348, 0
      %p351 = scmp.lt.s32.totalorder %s350, 3
      %s352 = scalar_select %p351, %s350, 3
      %p353 = scmp.lt.s32.totalorder %s22, 1
      %s354 = scalar_select %p353, %s22, 1
      %p355 = scmp.lt.s32.totalorder %s23, 3
      %s356 = scalar_select %p355, %s23, 3
      %s357 = smul.addr %s356, 5
      %s358 = smul.addr %s354, 20
      %s359 = sadd.s32 %s357, %s358
      %s360 = smul.addr %s359, 4
      %s361 = scalar_lea.vmem %s5, %s360
      %p362 = scmp.lt.s32.totalorder %s22, 1
      %s363 = scalar_select %p362, %s22, 1
      %p364 = scmp.lt.s32.totalorder %s23, 3
      %s365 = scalar_select %p364, %s23, 3
      %s366 = smul.addr %s365, 5
      %s367 = smul.addr %s363, 20
      %s368 = sadd.s32 %s366, %s367
      %s369 = smul.addr %s368, 4
      %s370 = scalar_lea.vmem %s6, %s369
      %p372 = scmp.eq.s32.totalorder %s24, 0
      // Predicated region
      $region45: #{seg_head_forward.12} parent=43 // pred_check
        %p373 = pneg %p372
      $region46: #{seg_head_forward.12} parent=43 // pred_check_branch
        %375 = sbr.rel (%p373) target = $region48
      $region47: #{seg_head_forward.12} parent=43 // pred_region
        %vm376 = vcmask 523264
        %377 = vst.msk [vmem:[#allocation2] sm:$0xff] %vm376, 0.0
        %378 = vst.msk [vmem:[#allocation2 + $0x8] sm:$0xff] %vm376, 0.0
        %379 = vst.msk [vmem:[#allocation2 + $0x10] sm:$0xff] %vm376, 0.0
        %380 = vst.msk [vmem:[#allocation2 + $0x18] sm:$0xff] %vm376, 0.0
        %vm381 = vcmask 519168
        %382 = vst.msk [vmem:[#allocation2 + $0x20] sm:$0xf] %vm381, 0.0
      $region48: #{seg_head_forward.12} parent=43 // pred_fallthru
        _
      %s383 = sadd.s32 %s23, %s24
      %s384 = ssub.s32 %s383, 1
      %p385 = scmp.ge.s32.totalorder %s384, 0
      %p386 = scmp.lt.s32.totalorder %s384, 4
      %p387 = pnand %p385, %p386
      %p388 = pneg %p387
      // Predicated region
      $region49: #{seg_head_forward.12} parent=43 // pred_check
        _
      $region50: #{seg_head_forward.12} parent=43 // pred_check_branch
        %390 = sbr.rel (%p387) target = $region52
      $region51: #{seg_head_forward.12} parent=43 // pred_region
        %v391 = vld [vmem:[%s346] sm:$0xf]
        %v392 = vld [vmem:[%s346 + $0x4] sm:$0xf]
        %v393 = vld [vmem:[%s346 + $0x8] sm:$0xf]
        %v394 = vld [vmem:[%s346 + $0xc] sm:$0xf]
        %v395 = vld [vmem:[%s346 + $0x10] sm:$0x3]
        %s396 = smul.u32 %s24, 40
        %s397 = smul.addr %s396, 4
        %s398 = scalar_lea.vmem %s1, %s397
        %v399 = vld [vmem:[%s398] sm:$0xff]
        %v400 = vld [vmem:[%s398 + $0x8] sm:$0xff]
        %v401 = vld [vmem:[%s398 + $0x10] sm:$0xf]
        %v402 = vld [vmem:[%s398 + $0x14] sm:$0xff]
        %v403 = vld [vmem:[%s398 + $0x1c] sm:$0xff]
        %v404 = vld [vmem:[%s398 + $0x24] sm:$0xf]
        %v405 = vld [vmem:[%s398 + $0x28] sm:$0xff]
        %v406 = vld [vmem:[%s398 + $0x30] sm:$0xff]
        %v407 = vld [vmem:[%s398 + $0x38] sm:$0xf]
        %v408 = vld [vmem:[%s398 + $0x3c] sm:$0xff]
        %v409 = vld [vmem:[%s398 + $0x44] sm:$0xff]
        %v410 = vld [vmem:[%s398 + $0x4c] sm:$0xf]
        %v411 = vld [vmem:[%s398 + $0x50] sm:$0xff]
        %v412 = vld [vmem:[%s398 + $0x58] sm:$0xff]
        %v413 = vld [vmem:[%s398 + $0x60] sm:$0xf]
        %v414 = vld [vmem:[%s398 + $0x64] sm:$0xff]
        %v415 = vld [vmem:[%s398 + $0x6c] sm:$0xff]
        %v416 = vld [vmem:[%s398 + $0x74] sm:$0xf]
        %v417 = vld [vmem:[%s398 + $0x78] sm:$0xff]
        %v418 = vld [vmem:[%s398 + $0x80] sm:$0xff]
        %v419 = vld [vmem:[%s398 + $0x88] sm:$0xf]
        %v420 = vld [vmem:[%s398 + $0x8c] sm:$0xff]
        %v421 = vld [vmem:[%s398 + $0x94] sm:$0xff]
        %v422 = vld [vmem:[%s398 + $0x9c] sm:$0xf]
        %v428 = vunpack.c.l.b16 %v391
        %v429 = vunpack.c.l.b16 %v392
        %v430 = vunpack.c.l.b16 %v393
        %v431 = vunpack.c.l.b16 %v394
        %v432 = vunpack.c.l.b16 %v395
        %v433 = vpack.c.b16 %v429, %v428
        %v434 = vpack.c.b16 %v431, %v430
        %v435 = vpack.c.b16 %v432, %v432
        %v460 = vunpack.c.l.b16 %v399
        %v461 = vunpack.c.h.b16 %v399
        %v462 = vunpack.c.l.b16 %v400
        %v463 = vunpack.c.h.b16 %v400
        %v464 = vunpack.c.l.b16 %v401
        %v465 = vunpack.c.l.b16 %v402
        %v466 = vunpack.c.h.b16 %v402
        %v467 = vunpack.c.l.b16 %v403
        %v468 = vunpack.c.h.b16 %v403
        %v469 = vunpack.c.l.b16 %v404
        %v470 = vunpack.c.l.b16 %v405
        %v471 = vunpack.c.h.b16 %v405
        %v472 = vunpack.c.l.b16 %v406
        %v473 = vunpack.c.h.b16 %v406
        %v474 = vunpack.c.l.b16 %v407
        %v475 = vunpack.c.l.b16 %v408
        %v476 = vunpack.c.h.b16 %v408
        %v477 = vunpack.c.l.b16 %v409
        %v478 = vunpack.c.h.b16 %v409
        %v479 = vunpack.c.l.b16 %v410
        %v480 = vunpack.c.l.b16 %v411
        %v481 = vunpack.c.h.b16 %v411
        %v482 = vunpack.c.l.b16 %v412
        %v483 = vunpack.c.h.b16 %v412
        %v484 = vunpack.c.l.b16 %v413
        %v485 = vunpack.c.l.b16 %v414
        %v486 = vunpack.c.h.b16 %v414
        %v487 = vunpack.c.l.b16 %v415
        %v488 = vunpack.c.h.b16 %v415
        %v489 = vunpack.c.l.b16 %v416
        %v490 = vunpack.c.l.b16 %v417
        %v491 = vunpack.c.h.b16 %v417
        %v492 = vunpack.c.l.b16 %v418
        %v493 = vunpack.c.h.b16 %v418
        %v494 = vunpack.c.l.b16 %v419
        %v495 = vunpack.c.l.b16 %v420
        %v496 = vunpack.c.h.b16 %v420
        %v497 = vunpack.c.l.b16 %v421
        %v498 = vunpack.c.h.b16 %v421
        %v499 = vunpack.c.l.b16 %v422
        %v500 = vpack.c.b16 %v465, %v460
        %v501 = vpack.c.b16 %v466, %v461
        %v502 = vpack.c.b16 %v467, %v462
        %v503 = vpack.c.b16 %v468, %v463
        %v504 = vpack.c.b16 %v469, %v464
        %v505 = vpack.c.b16 %v475, %v470
        %v506 = vpack.c.b16 %v476, %v471
        %v507 = vpack.c.b16 %v477, %v472
        %v508 = vpack.c.b16 %v478, %v473
        %v509 = vpack.c.b16 %v479, %v474
        %v510 = vpack.c.b16 %v485, %v480
        %v511 = vpack.c.b16 %v486, %v481
        %v512 = vpack.c.b16 %v487, %v482
        %v513 = vpack.c.b16 %v488, %v483
        %v514 = vpack.c.b16 %v489, %v484
        %v515 = vpack.c.b16 %v495, %v490
        %v516 = vpack.c.b16 %v496, %v491
        %v517 = vpack.c.b16 %v497, %v492
        %v518 = vpack.c.b16 %v498, %v493
        %v519 = vpack.c.b16 %v499, %v494
        %vm540 = vcmask 523264
        %v542 = vsel %vm540, %v433, 0
        %v545 = vsel %vm540, %v434, 0
        %v548 = vsel %vm540, %v435, 0
        %550 = vmatprep.subr.bf16.mxu0 0
        %551 = vmatpush1.bf16.msra.mxu0 0
        %552 = vmatprep.subr.bf16.mxu0 0
        %553 = vmatpush1.bf16.msra.mxu0 0
        %554 = vmatprep.subr.bf16.mxu0 0
        %555 = vmatpush1.bf16.msra.mxu0 0
        %556 = vmatprep.subr.bf16.mxu0 0
        %557 = vmatpush1.bf16.msra.mxu0 0
        %558 = vmatprep.subr.bf16.mxu0 %v516
        %559 = vmatpush1.bf16.msra.mxu0 %v515
        %560 = vmatprep.subr.bf16.mxu0 %v511
        %561 = vmatpush1.bf16.msra.mxu0 %v510
        %562 = vmatprep.subr.bf16.mxu0 %v506
        %563 = vmatpush1.bf16.msra.mxu0 %v505
        %564 = vmatprep.subr.bf16.mxu0 %v501
        %565 = vmatpush1.bf16.msra.mxu0 %v500
        %566 = vmatprep.subr.bf16.mxu0 0
        %567 = vmatpush2.bf16.msra.mxu0 0
        %568 = vmatprep.subr.bf16.mxu0 0
        %569 = vmatpush2.bf16.msra.mxu0 0
        %570 = vmatprep.subr.bf16.mxu0 0
        %571 = vmatpush2.bf16.msra.mxu0 0
        %572 = vmatprep.subr.bf16.mxu0 0
        %573 = vmatpush2.bf16.msra.mxu0 0
        %574 = vmatprep.subr.bf16.mxu0 0
        %575 = vmatpush2.bf16.msra.mxu0 0
        %576 = vmatprep.subr.bf16.mxu0 0
        %577 = vmatpush2.bf16.msra.mxu0 0
        %578 = vmatprep.subr.bf16.mxu0 0
        %579 = vmatpush2.bf16.msra.mxu0 0
        %580 = vmatprep.subr.bf16.mxu0 0
        %581 = vmatpush2.bf16.msra.mxu0 0
        %582 = vmatprep.mubr.bf16.mxu0 0
        %583 = vmatmul.mubr.bf16.gmra.mxu0 %v542
        %v584 = vpop.f32.mrf.mxu0
        %v585 = vadd.f32 0.0, %v584
        %v586 = vpop.f32.mrf.mxu0
        %v587 = vadd.f32 0.0, %v586
        %v588 = vpop.f32.mrf.mxu0
        %v589 = vadd.f32 0.0, %v588
        %v590 = vpop.f32.mrf.mxu0
        %v591 = vadd.f32 0.0, %v590
        %592 = vmatprep.mubr.bf16.mxu0 0
        %593 = vmatmul.mubr.bf16.gmra.mxu0 %v545
        %v594 = vpop.f32.mrf.mxu0
        %v595 = vadd.f32 0.0, %v594
        %v596 = vpop.f32.mrf.mxu0
        %v597 = vadd.f32 0.0, %v596
        %v598 = vpop.f32.mrf.mxu0
        %v599 = vadd.f32 0.0, %v598
        %v600 = vpop.f32.mrf.mxu0
        %v601 = vadd.f32 0.0, %v600
        %602 = vmatprep.mubr.bf16.mxu0 0
        %603 = vmatmul.mubr.bf16.gmra.mxu0 %v548
        %v604 = vpop.f32.mrf.mxu0
        %v605 = vpop.f32.mrf.mxu0
        %v606 = vadd.f32 0.0, %v605
        %v607 = vpop.f32.mrf.mxu0
        %v608 = vpop.f32.mrf.mxu0
        %609 = vdwg.mxu0
        %610 = vmatprep.subr.bf16.mxu0 0
        %611 = vmatpush1.bf16.msra.mxu0 0
        %612 = vmatprep.subr.bf16.mxu0 0
        %613 = vmatpush1.bf16.msra.mxu0 0
        %614 = vmatprep.subr.bf16.mxu0 0
        %615 = vmatpush1.bf16.msra.mxu0 0
        %616 = vmatprep.subr.bf16.mxu0 0
        %617 = vmatpush1.bf16.msra.mxu0 0
        %618 = vmatprep.subr.bf16.mxu0 %v518
        %619 = vmatpush1.bf16.msra.mxu0 %v517
        %620 = vmatprep.subr.bf16.mxu0 %v513
        %621 = vmatpush1.bf16.msra.mxu0 %v512
        %622 = vmatprep.subr.bf16.mxu0 %v508
        %623 = vmatpush1.bf16.msra.mxu0 %v507
        %624 = vmatprep.subr.bf16.mxu0 %v503
        %625 = vmatpush1.bf16.msra.mxu0 %v502
        %626 = vmatprep.subr.bf16.mxu0 0
        %627 = vmatpush2.bf16.msra.mxu0 0
        %628 = vmatprep.subr.bf16.mxu0 0
        %629 = vmatpush2.bf16.msra.mxu0 0
        %630 = vmatprep.subr.bf16.mxu0 0
        %631 = vmatpush2.bf16.msra.mxu0 0
        %632 = vmatprep.subr.bf16.mxu0 0
        %633 = vmatpush2.bf16.msra.mxu0 0
        %634 = vmatprep.subr.bf16.mxu0 0
        %635 = vmatpush2.bf16.msra.mxu0 0
        %636 = vmatprep.subr.bf16.mxu0 0
        %637 = vmatpush2.bf16.msra.mxu0 0
        %638 = vmatprep.subr.bf16.mxu0 0
        %639 = vmatpush2.bf16.msra.mxu0 0
        %640 = vmatprep.subr.bf16.mxu0 0
        %641 = vmatpush2.bf16.msra.mxu0 0
        %642 = vmatprep.mubr.bf16.mxu0 0
        %643 = vmatmul.mubr.bf16.gmra.mxu0 %v542
        %v644 = vpop.f32.mrf.mxu0
        %v645 = vadd.f32 0.0, %v644
        %v646 = vpop.f32.mrf.mxu0
        %v647 = vadd.f32 0.0, %v646
        %v648 = vpop.f32.mrf.mxu0
        %v649 = vadd.f32 0.0, %v648
        %v650 = vpop.f32.mrf.mxu0
        %v651 = vadd.f32 0.0, %v650
        %652 = vmatprep.mubr.bf16.mxu0 0
        %653 = vmatmul.mubr.bf16.gmra.mxu0 %v545
        %v654 = vpop.f32.mrf.mxu0
        %v655 = vadd.f32 0.0, %v654
        %v656 = vpop.f32.mrf.mxu0
        %v657 = vadd.f32 0.0, %v656
        %v658 = vpop.f32.mrf.mxu0
        %v659 = vadd.f32 0.0, %v658
        %v660 = vpop.f32.mrf.mxu0
        %v661 = vadd.f32 0.0, %v660
        %662 = vmatprep.mubr.bf16.mxu0 0
        %663 = vmatmul.mubr.bf16.gmra.mxu0 %v548
        %v664 = vpop.f32.mrf.mxu0
        %v665 = vadd.f32 0.0, %v664
        %v666 = vpop.f32.mrf.mxu0
        %v667 = vadd.f32 0.0, %v666
        %v668 = vpop.f32.mrf.mxu0
        %v669 = vpop.f32.mrf.mxu0
        %670 = vdwg.mxu0
        %671 = vmatprep.subr.bf16.mxu0 0
        %672 = vmatpush1.bf16.msra.mxu0 0
        %673 = vmatprep.subr.bf16.mxu0 0
        %674 = vmatpush1.bf16.msra.mxu0 0
        %675 = vmatprep.subr.bf16.mxu0 0
        %676 = vmatpush1.bf16.msra.mxu0 0
        %677 = vmatprep.subr.bf16.mxu0 0
        %678 = vmatpush1.bf16.msra.mxu0 0
        %679 = vmatprep.subr.bf16.mxu0 0
        %680 = vmatpush1.bf16.msra.mxu0 %v519
        %681 = vmatprep.subr.bf16.mxu0 0
        %682 = vmatpush1.bf16.msra.mxu0 %v514
        %683 = vmatprep.subr.bf16.mxu0 0
        %684 = vmatpush1.bf16.msra.mxu0 %v509
        %685 = vmatprep.subr.bf16.mxu0 0
        %686 = vmatpush1.bf16.msra.mxu0 %v504
        %687 = vmatprep.subr.bf16.mxu0 0
        %688 = vmatpush2.bf16.msra.mxu0 0
        %689 = vmatprep.subr.bf16.mxu0 0
        %690 = vmatpush2.bf16.msra.mxu0 0
        %691 = vmatprep.subr.bf16.mxu0 0
        %692 = vmatpush2.bf16.msra.mxu0 0
        %693 = vmatprep.subr.bf16.mxu0 0
        %694 = vmatpush2.bf16.msra.mxu0 0
        %695 = vmatprep.subr.bf16.mxu0 0
        %696 = vmatpush2.bf16.msra.mxu0 0
        %697 = vmatprep.subr.bf16.mxu0 0
        %698 = vmatpush2.bf16.msra.mxu0 0
        %699 = vmatprep.subr.bf16.mxu0 0
        %700 = vmatpush2.bf16.msra.mxu0 0
        %701 = vmatprep.subr.bf16.mxu0 0
        %702 = vmatpush2.bf16.msra.mxu0 0
        %703 = vmatprep.mubr.bf16.mxu0 0
        %704 = vmatmul.mubr.bf16.gmra.mxu0 %v542
        %v705 = vpop.f32.mrf.mxu0
        %v706 = vadd.f32 0.0, %v705
        %v707 = vpop.f32.mrf.mxu0
        %v708 = vpop.f32.mrf.mxu0
        %v709 = vadd.f32 0.0, %v708
        %v710 = vpop.f32.mrf.mxu0
        %711 = vmatprep.mubr.bf16.mxu0 0
        %712 = vmatmul.mubr.bf16.gmra.mxu0 %v545
        %v713 = vpop.f32.mrf.mxu0
        %v714 = vadd.f32 0.0, %v713
        %v715 = vpop.f32.mrf.mxu0
        %v716 = vpop.f32.mrf.mxu0
        %v717 = vadd.f32 0.0, %v716
        %v718 = vpop.f32.mrf.mxu0
        %719 = vmatprep.mubr.bf16.mxu0 0
        %720 = vmatmul.mubr.bf16.gmra.mxu0 %v548
        %v721 = vpop.f32.mrf.mxu0
        %v722 = vadd.f32 0.0, %v721
        %v723 = vpop.f32.mrf.mxu0
        %v724 = vpop.f32.mrf.mxu0
        %v725 = vpop.f32.mrf.mxu0
        %726 = vdwg.mxu0
        %v727 = vld [vmem:[#allocation2 + $0x7] sm:$0xff]
        %v728 = vld [vmem:[#allocation2 + $0xf] sm:$0xff]
        %v729 = vld [vmem:[#allocation2 + $0x17] sm:$0xff]
        %v730 = vld [vmem:[#allocation2 + $0x1f] sm:$0x1f]
        %v731 = vadd.f32 %v727, %v585
        %v732 = vadd.f32 %v728, %v589
        %v733 = vadd.f32 %v729, %v595
        %v734 = vadd.f32 %v730, %v599
        %735 = vst.msk [vmem:[#allocation2 + $0x7] sm:$0xff] %vm540, %v731
        %736 = vst.msk [vmem:[#allocation2 + $0xf] sm:$0xff] %vm540, %v732
        %737 = vst.msk [vmem:[#allocation2 + $0x17] sm:$0xff] %vm540, %v733
        %vm738 = vcmask 520192
        %739 = vst.msk [vmem:[#allocation2 + $0x1f] sm:$0x1f] %vm738, %v734
        %v740 = vld [vmem:[#allocation2 + $0x6] sm:$0xff]
        %v741 = vld [vmem:[#allocation2 + $0xe] sm:$0xff]
        %v742 = vld [vmem:[#allocation2 + $0x16] sm:$0xff]
        %v743 = vld [vmem:[#allocation2 + $0x1e] sm:$0x3f]
        %748 = vrot.lane.b32.xlu0 %v585, 64
        %v749 = vpop.permute.xlu0 %748
        %750 = vrot.lane.b32.xlu0 %v589, 64
        %v751 = vpop.permute.xlu0 %750
        %752 = vrot.lane.b32.xlu0 %v595, 64
        %v753 = vpop.permute.xlu0 %752
        %754 = vrot.lane.b32.xlu0 %v599, 64
        %v755 = vpop.permute.xlu0 %754
        %v760 = vadd.f32 %v740, %v749
        %v761 = vadd.f32 %v741, %v751
        %v762 = vadd.f32 %v742, %v753
        %v763 = vadd.f32 %v743, %v755
        %764 = vst.msk [vmem:[#allocation2 + $0x6] sm:$0xff] %vm540, %v760
        %765 = vst.msk [vmem:[#allocation2 + $0xe] sm:$0xff] %vm540, %v761
        %766 = vst.msk [vmem:[#allocation2 + $0x16] sm:$0xff] %vm540, %v762
        %vm767 = vcmask 521216
        %768 = vst.msk [vmem:[#allocation2 + $0x1e] sm:$0x3f] %vm767, %v763
        %v769 = vld [vmem:[#allocation2 + $0x5] sm:$0xff]
        %v770 = vld [vmem:[#allocation2 + $0xd] sm:$0xff]
        %v771 = vld [vmem:[#allocation2 + $0x15] sm:$0xff]
        %v772 = vld [vmem:[#allocation2 + $0x1d] sm:$0x7f]
        %v773 = vadd.f32 %v769, %v587
        %v774 = vadd.f32 %v770, %v591
        %v775 = vadd.f32 %v771, %v597
        %v776 = vadd.f32 %v772, %v601
        %777 = vst.msk [vmem:[#allocation2 + $0x5] sm:$0xff] %vm540, %v773
        %778 = vst.msk [vmem:[#allocation2 + $0xd] sm:$0xff] %vm540, %v774
        %779 = vst.msk [vmem:[#allocation2 + $0x15] sm:$0xff] %vm540, %v775
        %vm780 = vcmask 522240
        %781 = vst.msk [vmem:[#allocation2 + $0x1d] sm:$0x7f] %vm780, %v776
        %v782 = vld [vmem:[#allocation2 + $0x1] sm:$0xff]
        %v783 = vld [vmem:[#allocation2 + $0x9] sm:$0xff]
        %v784 = vld [vmem:[#allocation2 + $0x11] sm:$0xff]
        %v785 = vld [vmem:[#allocation2 + $0x19] sm:$0xff]
        %v786 = vld [vmem:[#allocation2 + $0x21] sm:$0x7]
        %792 = vrot.lane.b32.xlu0 %v587, 64
        %v793 = vpop.permute.xlu0 %792
        %794 = vrot.lane.b32.xlu0 %v591, 64
        %v795 = vpop.permute.xlu0 %794
        %796 = vrot.lane.b32.xlu0 %v597, 64
        %v797 = vpop.permute.xlu0 %796
        %798 = vrot.lane.b32.xlu0 %v601, 64
        %v799 = vpop.permute.xlu0 %798
        %800 = vrot.lane.b32.xlu0 %v606, 64
        %v801 = vpop.permute.xlu0 %800
        %v807 = vadd.f32 %v782, %v793
        %v808 = vadd.f32 %v783, %v795
        %v809 = vadd.f32 %v784, %v797
        %v810 = vadd.f32 %v785, %v799
        %v811 = vadd.f32 %v786, %v801
        %812 = vst.msk [vmem:[#allocation2 + $0x1] sm:$0xff] %vm540, %v807
        %813 = vst.msk [vmem:[#allocation2 + $0x9] sm:$0xff] %vm540, %v808
        %814 = vst.msk [vmem:[#allocation2 + $0x11] sm:$0xff] %vm540, %v809
        %815 = vst.msk [vmem:[#allocation2 + $0x19] sm:$0xff] %vm540, %v810
        %vm816 = vcmask 518144
        %817 = vst.msk [vmem:[#allocation2 + $0x21] sm:$0x7] %vm816, %v811
        %v818 = vld [vmem:[#allocation2] sm:$0xff]
        %v819 = vld [vmem:[#allocation2 + $0x8] sm:$0xff]
        %v820 = vld [vmem:[#allocation2 + $0x10] sm:$0xff]
        %v821 = vld [vmem:[#allocation2 + $0x18] sm:$0xff]
        %v822 = vld [vmem:[#allocation2 + $0x20] sm:$0xf]
        %v823 = vadd.f32 %v818, %v645
        %v824 = vadd.f32 %v819, %v649
        %v825 = vadd.f32 %v820, %v655
        %v826 = vadd.f32 %v821, %v659
        %v827 = vadd.f32 %v822, %v665
        %828 = vst.msk [vmem:[#allocation2] sm:$0xff] %vm540, %v823
        %829 = vst.msk [vmem:[#allocation2 + $0x8] sm:$0xff] %vm540, %v824
        %830 = vst.msk [vmem:[#allocation2 + $0x10] sm:$0xff] %vm540, %v825
        %831 = vst.msk [vmem:[#allocation2 + $0x18] sm:$0xff] %vm540, %v826
        %vm832 = vcmask 519168
        %833 = vst.msk [vmem:[#allocation2 + $0x20] sm:$0xf] %vm832, %v827
        %v834 = vld [vmem:[#allocation2] sm:$0xff]
        %v835 = vld [vmem:[#allocation2 + $0x8] sm:$0xff]
        %v836 = vld [vmem:[#allocation2 + $0x10] sm:$0xff]
        %v837 = vld [vmem:[#allocation2 + $0x18] sm:$0xff]
        %v838 = vld [vmem:[#allocation2 + $0x20] sm:$0x7]
        %vm844 = vcmask 1046528
        %v845 = vrot.slane %v645, 1
        %v846 = vrot.slane %v649, 1
        %v847 = vsel %vm844, %v845, %v846
        %v848 = vrot.slane %v655, 1
        %v849 = vsel %vm844, %v846, %v848
        %v850 = vrot.slane %v659, 1
        %v851 = vsel %vm844, %v848, %v850
        %v852 = vrot.slane %v665, 1
        %v853 = vsel %vm844, %v850, %v852
        %854 = vrot.lane.b32.xlu0 %v847, 64
        %v855 = vpop.permute.xlu0 %854
        %856 = vrot.lane.b32.xlu0 %v849, 64
        %v857 = vpop.permute.xlu0 %856
        %858 = vrot.lane.b32.xlu0 %v851, 64
        %v859 = vpop.permute.xlu0 %858
        %860 = vrot.lane.b32.xlu0 %v853, 64
        %v861 = vpop.permute.xlu0 %860
        %862 = vrot.lane.b32.xlu0 %v852, 64
        %v863 = vpop.permute.xlu0 %862
        %v869 = vadd.f32 %v834, %v855
        %v870 = vadd.f32 %v835, %v857
        %v871 = vadd.f32 %v836, %v859
        %v872 = vadd.f32 %v837, %v861
        %v873 = vadd.f32 %v838, %v863
        %874 = vst.msk [vmem:[#allocation2] sm:$0xff] %vm540, %v869
        %875 = vst.msk [vmem:[#allocation2 + $0x8] sm:$0xff] %vm540, %v870
        %876 = vst.msk [vmem:[#allocation2 + $0x10] sm:$0xff] %vm540, %v871
        %877 = vst.msk [vmem:[#allocation2 + $0x18] sm:$0xff] %vm540, %v872
        %878 = vst.msk [vmem:[#allocation2 + $0x20] sm:$0x7] %vm816, %v873
        %v879 = vld [vmem:[#allocation2] sm:$0xff]
        %v880 = vld [vmem:[#allocation2 + $0x8] sm:$0xff]
        %v881 = vld [vmem:[#allocation2 + $0x10] sm:$0xff]
        %v882 = vld [vmem:[#allocation2 + $0x18] sm:$0x7f]
        %vm888 = vcmask 1042432
        %v889 = vrot.slane %v647, 5
        %v890 = vrot.slane %v651, 5
        %v891 = vsel %vm888, %v889, %v890
        %v892 = vrot.slane %v657, 5
        %v893 = vsel %vm888, %v890, %v892
        %v894 = vrot.slane %v661, 5
        %v895 = vsel %vm888, %v892, %v894
        %v896 = vrot.slane %v667, 5
        %v897 = vsel %vm888, %v894, %v896
        %v902 = vadd.f32 %v879, %v891
        %v903 = vadd.f32 %v880, %v893
        %v904 = vadd.f32 %v881, %v895
        %v905 = vadd.f32 %v882, %v897
        %906 = vst.msk [vmem:[#allocation2] sm:$0xff] %vm540, %v902
        %907 = vst.msk [vmem:[#allocation2 + $0x8] sm:$0xff] %vm540, %v903
        %908 = vst.msk [vmem:[#allocation2 + $0x10] sm:$0xff] %vm540, %v904
        %909 = vst.msk [vmem:[#allocation2 + $0x18] sm:$0x7f] %vm780, %v905
        %v910 = vld [vmem:[#allocation2] sm:$0xff]
        %v911 = vld [vmem:[#allocation2 + $0x8] sm:$0xff]
        %v912 = vld [vmem:[#allocation2 + $0x10] sm:$0xff]
        %v913 = vld [vmem:[#allocation2 + $0x18] sm:$0x3f]
        %vm914 = vcmask 1041408
        %v915 = vrot.slane %v647, 6
        %v916 = vrot.slane %v651, 6
        %v917 = vsel %vm914, %v915, %v916
        %v918 = vrot.slane %v657, 6
        %v919 = vsel %vm914, %v916, %v918
        %v920 = vrot.slane %v661, 6
        %v921 = vsel %vm914, %v918, %v920
        %v922 = vrot.slane %v667, 6
        %v923 = vsel %vm914, %v920, %v922
        %924 = vrot.lane.b32.xlu0 %v917, 64
        %v925 = vpop.permute.xlu0 %924
        %926 = vrot.lane.b32.xlu0 %v919, 64
        %v927 = vpop.permute.xlu0 %926
        %928 = vrot.lane.b32.xlu0 %v921, 64
        %v929 = vpop.permute.xlu0 %928
        %930 = vrot.lane.b32.xlu0 %v923, 64
        %v931 = vpop.permute.xlu0 %930
        %v936 = vadd.f32 %v910, %v925
        %v937 = vadd.f32 %v911, %v927
        %v938 = vadd.f32 %v912, %v929
        %v939 = vadd.f32 %v913, %v931
        %940 = vst.msk [vmem:[#allocation2] sm:$0xff] %vm540, %v936
        %941 = vst.msk [vmem:[#allocation2 + $0x8] sm:$0xff] %vm540, %v937
        %942 = vst.msk [vmem:[#allocation2 + $0x10] sm:$0xff] %vm540, %v938
        %943 = vst.msk [vmem:[#allocation2 + $0x18] sm:$0x3f] %vm767, %v939
        %v944 = vld [vmem:[#allocation2] sm:$0xff]
        %v945 = vld [vmem:[#allocation2 + $0x8] sm:$0xff]
        %v946 = vld [vmem:[#allocation2 + $0x10] sm:$0xff]
        %v947 = vld [vmem:[#allocation2 + $0x18] sm:$0x1f]
        %vm953 = vcmask 1040384
        %v954 = vrot.slane %v706, 7
        %v955 = vrot.slane %v709, 7
        %v956 = vsel %vm953, %v954, %v955
        %v957 = vrot.slane %v714, 7
        %v958 = vsel %vm953, %v955, %v957
        %v959 = vrot.slane %v717, 7
        %v960 = vsel %vm953, %v957, %v959
        %v961 = vrot.slane %v722, 7
        %v962 = vsel %vm953, %v959, %v961
        %v967 = vadd.f32 %v944, %v956
        %v968 = vadd.f32 %v945, %v958
        %v969 = vadd.f32 %v946, %v960
        %v970 = vadd.f32 %v947, %v962
        %971 = vst.msk [vmem:[#allocation2] sm:$0xff] %vm540, %v967
        %972 = vst.msk [vmem:[#allocation2 + $0x8] sm:$0xff] %vm540, %v968
        %973 = vst.msk [vmem:[#allocation2 + $0x10] sm:$0xff] %vm540, %v969
        %974 = vst.msk [vmem:[#allocation2 + $0x18] sm:$0x1f] %vm738, %v970
      $region52: #{seg_head_forward.12} parent=43 // pred_fallthru
        _
      %p975 = scmp.eq.s32.totalorder %s24, 2
      // Predicated region
      $region53: #{seg_head_forward.12} parent=43 // pred_check
        %p976 = pneg %p975
      $region54: #{seg_head_forward.12} parent=43 // pred_check_branch
        %978 = sbr.rel (%p976) target = $region56
      $region55: #{seg_head_forward.12} parent=43 // pred_region
        %v979 = vld [vmem:[#allocation2] sm:$0xff]
        %v980 = vld [vmem:[#allocation2 + $0x8] sm:$0xff]
        %v981 = vld [vmem:[#allocation2 + $0x10] sm:$0xff]
        %v982 = vld [vmem:[#allocation2 + $0x18] sm:$0xff]
        %v983 = vld [vmem:[#allocation2 + $0x20] sm:$0xf]
        %v984 = vld [vmem:[%s2] sm:$0x1]
        %v986 = vlaneseq
        %v987 = vshrl.u32 %v986, 7
        %v988 = vsub.s32 0, %v987
        %v989 = vrot.slane %v984, %v988
        %v991 = vmul.f32 %v979, %v989
        %v992 = vmul.f32 %v980, %v989
        %v993 = vmul.f32 %v981, %v989
        %v994 = vmul.f32 %v982, %v989
        %v995 = vmul.f32 %v983, %v989
        %v996 = vld [vmem:[%s3] sm:$0x1]
        %v998 = vlaneseq
        %v999 = vshrl.u32 %v998, 7
        %v1000 = vsub.s32 0, %v999
        %v1001 = vrot.slane %v996, %v1000
        %v1003 = vadd.f32 %v991, %v1001
        %v1004 = vadd.f32 %v992, %v1001
        %v1005 = vadd.f32 %v993, %v1001
        %v1006 = vadd.f32 %v994, %v1001
        %v1007 = vadd.f32 %v995, %v1001
        %v1008 = vld [vmem:[%s361] sm:$0xf]
        %v1009 = vld [vmem:[%s361 + $0x4] sm:$0xf]
        %v1010 = vld [vmem:[%s361 + $0x8] sm:$0xf]
        %v1011 = vld [vmem:[%s361 + $0xc] sm:$0xf]
        %v1012 = vld [vmem:[%s361 + $0x10] sm:$0x3]
        %v1013 = vunpack.c.l.bf16 %v1008
        %v1014 = vunpack.c.l.bf16 %v1009
        %v1015 = vunpack.c.l.bf16 %v1010
        %v1016 = vunpack.c.l.bf16 %v1011
        %v1017 = vunpack.c.l.bf16 %v1012
        %v1018 = vadd.f32 %v1003, %v1013
        %v1019 = vadd.f32 %v1004, %v1014
        %v1020 = vadd.f32 %v1005, %v1015
        %v1021 = vadd.f32 %v1006, %v1016
        %v1022 = vadd.f32 %v1007, %v1017
        %v1023 = vld [vmem:[%s4] sm:$0xff]
        %v1024 = vld [vmem:[%s4 + $0x8] sm:$0xff]
        %v1025 = vld [vmem:[%s4 + $0x10] sm:$0xff]
        %v1026 = vld [vmem:[%s4 + $0x18] sm:$0xff]
        %v1027 = vld [vmem:[%s4 + $0x20] sm:$0xf]
        %1029 = vset.pattern.permute.xlu0 0
        %1030 = vperm.xlu0 %1029, %v1023
        %v1031 = vpop.permute.xlu0 %1030
        %1034 = vset.pattern.permute.xlu0 0
        %1035 = vperm.xlu0 %1034, %v1024
        %v1036 = vpop.permute.xlu0 %1035
        %1039 = vset.pattern.permute.xlu0 0
        %1040 = vperm.xlu0 %1039, %v1025
        %v1041 = vpop.permute.xlu0 %1040
        %1044 = vset.pattern.permute.xlu0 0
        %1045 = vperm.xlu0 %1044, %v1026
        %v1046 = vpop.permute.xlu0 %1045
        %1049 = vset.pattern.permute.xlu0 0
        %1050 = vperm.xlu0 %1049, %v1027
        %v1051 = vpop.permute.xlu0 %1050
        %v1053 = vmul.f32 %v1018, %v1031
        %v1054 = vmul.f32 %v1019, %v1036
        %v1055 = vmul.f32 %v1020, %v1041
        %v1056 = vmul.f32 %v1021, %v1046
        %v1057 = vmul.f32 %v1022, %v1051
        %v1058 = vpack.c.bf16 %v1054, %v1053
        %v1059 = vpack.c.bf16 %v1056, %v1055
        %v1060 = vpack.c.bf16 %v1057, %v1057
        %v1064 = vunpack.c.l.b16 %v1058
        %v1065 = vunpack.c.h.b16 %v1058
        %v1066 = vunpack.c.l.b16 %v1059
        %v1067 = vunpack.c.h.b16 %v1059
        %v1068 = vunpack.c.l.b16 %v1060
        %v1069 = vpack.c.b16 %v1064, %v1064
        %v1070 = vpack.c.b16 %v1065, %v1065
        %v1071 = vpack.c.b16 %v1066, %v1066
        %v1072 = vpack.c.b16 %v1067, %v1067
        %v1073 = vpack.c.b16 %v1068, %v1068
        %vm1079 = vcmask 519168
        %1080 = vst.msk [vmem:[%s370] sm:$0xf] %vm1079, %v1069
        %1081 = vst.msk [vmem:[%s370 + $0x4] sm:$0xf] %vm1079, %v1070
        %1082 = vst.msk [vmem:[%s370 + $0x8] sm:$0xf] %vm1079, %v1071
        %1083 = vst.msk [vmem:[%s370 + $0xc] sm:$0xf] %vm1079, %v1072
        %vm1084 = vcmask 517120
        %1085 = vst.msk [vmem:[%s370 + $0x10] sm:$0x3] %vm1084, %v1073
      $region56: #{seg_head_forward.12} parent=43 // pred_fallthru
        _
      %p1086 = scmp.lt.s32.totalorder %s22, 1
      %s1087 = scalar_select %p1086, %s22, 1
      %p1088 = scmp.lt.s32.totalorder %s23, 3
      %s1089 = scalar_select %p1088, %s23, 3
      %s1090 = smul.addr %s1089, 5
      %s1091 = smul.addr %s1087, 20
      %s1092 = sadd.s32 %s1090, %s1091
      %s1093 = smul.addr %s1092, 4
      %s1094 = scalar_lea.vmem %s6, %s1093
      // Predicated region
      $region57: #{seg_head_forward.12} parent=43 // pred_check
        %p1095 = pneg %p208
      $region58: #{seg_head_forward.12} parent=43 // pred_check_branch
        %1097 = sbr.rel (%p1095) target = $region60
      $region59: #{seg_head_forward.12} parent=43 // pred_region
        _
      $region60: #{seg_head_forward.12} parent=43 // pred_fallthru
        _
    $region44: #{seg_head_forward.12} parent=5 // pred_fallthru
      _
    %p1098 = scmp.le.s32.totalorder 2, %s12
    // Predicated region
    $region61: #{seg_head_forward.12} parent=5 // pred_check
      %p1099 = pneg %p1098
    $region62: #{seg_head_forward.12} parent=5 // pred_check_branch
      %1101 = sbr.rel (%p1099) target = $region64
    $region63: #{seg_head_forward.12} parent=5 // pred_region
      %s1102 = ssub.s32 %s12, 2
      // Predicated region
      $region65: #{seg_head_forward.12} parent=63 // pred_check
        %p1103 = pneg %p214
      $region66: #{seg_head_forward.12} parent=63 // pred_check_branch
        %1105 = sbr.rel (%p1103) target = $region68
      $region67: #{seg_head_forward.12} parent=63 // pred_region
        %p1106 = scmp.lt.s32.totalorder %s25, 1
        %s1107 = scalar_select %p1106, %s25, 1
        %p1108 = scmp.lt.s32.totalorder %s26, 3
        %s1109 = scalar_select %p1108, %s26, 3
        %s1110 = smul.addr %s1109, 5
        %s1111 = smul.addr %s1107, 20
        %s1112 = sadd.s32 %s1110, %s1111
        %s1113 = smul.addr %s1112, 4
        %s1114 = scalar_lea.vmem %s6, %s1113
      $region68: #{seg_head_forward.12} parent=63 // pred_fallthru
        _
    $region64: #{seg_head_forward.12} parent=5 // pred_fallthru
      _
  $region6: #{seg_head_forward.12} parent=0 // loop_footer
    %s16 = sadd.s32 1, %s12
  $region7: #{seg_head_forward.12} parent=0 // loop_footer_branch
    %11 = sbr.rel target = $region3
  $region8: #{seg_head_forward.12} parent=0 // loop_exit
    _

// kernel: seg_head_forward.15
$region0: #{seg_head_forward.15}
  #allocation0 [shape = 'u32[]', space=smem, size = 0x4, offset = 0x4, fixed_abs, tag = 'smem constant byte address 0x4 - core index']
  #allocation1 [shape = 'u32[144,128]{1,0:T(1,128)}', space=vmem, size = 0x12000, scoped, tag = 'internal scratch']
  %s0 = inlined_call_operand.vmem [shape: bf16[128,64], index: 0, kind: input, shape index: {}]
  %s1 = inlined_call_operand.vmem [shape: bf16[64,16], index: 1, kind: input, shape index: {}]
  %s2 = inlined_call_operand.vmem [shape: f32[1,16], index: 2, kind: input, shape index: {}]
  %s3 = inlined_call_operand.vmem [shape: f32[1,16], index: 3, kind: input, shape index: {}]
  %s4 = inlined_call_operand.vmem [shape: f32[128,16], index: 4, kind: output, shape index: {}]
  %s5 = sld [smem:[#allocation0]]
  $region26: #{seg_head_forward.15} parent=0
    _
  %s7 = ssub.s32 1, %s5
  %s8 = scalar_select 0, %s7, %s5
  // Predicated region
  $region2: #{seg_head_forward.15} parent=0 // pred_check
    _
  $region3: #{seg_head_forward.15} parent=0 // pred_check_branch
    %10 = sbr.rel (0) target = $region5
  $region4: #{seg_head_forward.15} parent=0 // pred_region
    _
  $region5: #{seg_head_forward.15} parent=0 // pred_fallthru
    _
  // Predicated region
  $region6: #{seg_head_forward.15} parent=0 // pred_check
    _
  $region7: #{seg_head_forward.15} parent=0 // pred_check_branch
    %12 = sbr.rel (0) target = $region9
  $region8: #{seg_head_forward.15} parent=0 // pred_region
    _
  $region9: #{seg_head_forward.15} parent=0 // pred_fallthru
    _
  // Predicated region
  $region10: #{seg_head_forward.15} parent=0 // pred_check
    _
  $region11: #{seg_head_forward.15} parent=0 // pred_check_branch
    %14 = sbr.rel (0) target = $region13
  $region12: #{seg_head_forward.15} parent=0 // pred_region
    _
  $region13: #{seg_head_forward.15} parent=0 // pred_fallthru
    _
  // Predicated region
  $region14: #{seg_head_forward.15} parent=0 // pred_check
    _
  $region15: #{seg_head_forward.15} parent=0 // pred_check_branch
    %16 = sbr.rel (0) target = $region17
  $region16: #{seg_head_forward.15} parent=0 // pred_region
    _
  $region17: #{seg_head_forward.15} parent=0 // pred_fallthru
    _
  %v18 = vld [vmem:[%s0] sm:$0xf]
  %v19 = vld [vmem:[%s0 + $0x4] sm:$0xf]
  %v20 = vld [vmem:[%s0 + $0x8] sm:$0xf]
  %v21 = vld [vmem:[%s0 + $0xc] sm:$0xf]
  %v22 = vld [vmem:[%s0 + $0x10] sm:$0xf]
  %v23 = vld [vmem:[%s0 + $0x14] sm:$0xf]
  %v24 = vld [vmem:[%s0 + $0x18] sm:$0xf]
  %v25 = vld [vmem:[%s0 + $0x1c] sm:$0xf]
  %v26 = vld [vmem:[%s0 + $0x20] sm:$0xf]
  %v27 = vld [vmem:[%s0 + $0x24] sm:$0xf]
  %v28 = vld [vmem:[%s0 + $0x28] sm:$0xf]
  %v29 = vld [vmem:[%s0 + $0x2c] sm:$0xf]
  %v30 = vld [vmem:[%s0 + $0x30] sm:$0xf]
  %v31 = vld [vmem:[%s0 + $0x34] sm:$0xf]
  %v32 = vld [vmem:[%s0 + $0x38] sm:$0xf]
  %v33 = vld [vmem:[%s0 + $0x3c] sm:$0xf]
  %v34 = vld [vmem:[%s1] sm:$0xf]
  %v35 = vld [vmem:[%s1 + $0x4] sm:$0xf]
  %v36 = vld [vmem:[%s1 + $0x8] sm:$0xf]
  %v37 = vld [vmem:[%s1 + $0xc] sm:$0xf]
  %v38 = vld [vmem:[%s1 + $0x10] sm:$0xf]
  %v39 = vld [vmem:[%s1 + $0x14] sm:$0xf]
  %v40 = vld [vmem:[%s1 + $0x18] sm:$0xf]
  %v41 = vld [vmem:[%s1 + $0x1c] sm:$0xf]
  %v58 = vunpack.c.l.b16 %v18
  %v59 = vunpack.c.l.b16 %v19
  %v60 = vunpack.c.l.b16 %v20
  %v61 = vunpack.c.l.b16 %v21
  %v62 = vunpack.c.l.b16 %v22
  %v63 = vunpack.c.l.b16 %v23
  %v64 = vunpack.c.l.b16 %v24
  %v65 = vunpack.c.l.b16 %v25
  %v66 = vunpack.c.l.b16 %v26
  %v67 = vunpack.c.l.b16 %v27
  %v68 = vunpack.c.l.b16 %v28
  %v69 = vunpack.c.l.b16 %v29
  %v70 = vunpack.c.l.b16 %v30
  %v71 = vunpack.c.l.b16 %v31
  %v72 = vunpack.c.l.b16 %v32
  %v73 = vunpack.c.l.b16 %v33
  %v74 = vpack.c.b16 %v59, %v58
  %v75 = vpack.c.b16 %v61, %v60
  %v76 = vpack.c.b16 %v63, %v62
  %v77 = vpack.c.b16 %v65, %v64
  %v78 = vpack.c.b16 %v67, %v66
  %v79 = vpack.c.b16 %v69, %v68
  %v80 = vpack.c.b16 %v71, %v70
  %v81 = vpack.c.b16 %v73, %v72
  %v90 = vunpack.c.l.b16 %v34
  %v91 = vunpack.c.l.b16 %v35
  %v92 = vunpack.c.l.b16 %v36
  %v93 = vunpack.c.l.b16 %v37
  %v94 = vunpack.c.l.b16 %v38
  %v95 = vunpack.c.l.b16 %v39
  %v96 = vunpack.c.l.b16 %v40
  %v97 = vunpack.c.l.b16 %v41
  %v98 = vpack.c.b16 %v91, %v90
  %v99 = vpack.c.b16 %v93, %v92
  %v100 = vpack.c.b16 %v95, %v94
  %v101 = vpack.c.b16 %v97, %v96
  %vm106 = vcmask 523264
  %v108 = vsel %vm106, %v74, 0
  %v111 = vsel %vm106, %v75, 0
  %v114 = vsel %vm106, %v76, 0
  %v117 = vsel %vm106, %v77, 0
  %v120 = vsel %vm106, %v78, 0
  %v123 = vsel %vm106, %v79, 0
  %v126 = vsel %vm106, %v80, 0
  %v129 = vsel %vm106, %v81, 0
  %131 = vmatprep.subr.bf16.mxu0 0
  %132 = vmatpush1.bf16.msra.mxu0 0
  %133 = vmatprep.subr.bf16.mxu0 0
  %134 = vmatpush1.bf16.msra.mxu0 0
  %135 = vmatprep.subr.bf16.mxu0 0
  %136 = vmatpush1.bf16.msra.mxu0 0
  %137 = vmatprep.subr.bf16.mxu0 0
  %138 = vmatpush1.bf16.msra.mxu0 0
  %139 = vmatprep.subr.bf16.mxu0 0
  %140 = vmatpush1.bf16.msra.mxu0 %v101
  %141 = vmatprep.subr.bf16.mxu0 0
  %142 = vmatpush1.bf16.msra.mxu0 %v100
  %143 = vmatprep.subr.bf16.mxu0 0
  %144 = vmatpush1.bf16.msra.mxu0 %v99
  %145 = vmatprep.subr.bf16.mxu0 0
  %146 = vmatpush1.bf16.msra.mxu0 %v98
  %147 = vmatprep.subr.bf16.mxu0 0
  %148 = vmatpush2.bf16.msra.mxu0 0
  %149 = vmatprep.subr.bf16.mxu0 0
  %150 = vmatpush2.bf16.msra.mxu0 0
  %151 = vmatprep.subr.bf16.mxu0 0
  %152 = vmatpush2.bf16.msra.mxu0 0
  %153 = vmatprep.subr.bf16.mxu0 0
  %154 = vmatpush2.bf16.msra.mxu0 0
  %155 = vmatprep.subr.bf16.mxu0 0
  %156 = vmatpush2.bf16.msra.mxu0 0
  %157 = vmatprep.subr.bf16.mxu0 0
  %158 = vmatpush2.bf16.msra.mxu0 0
  %159 = vmatprep.subr.bf16.mxu0 0
  %160 = vmatpush2.bf16.msra.mxu0 0
  %161 = vmatprep.subr.bf16.mxu0 0
  %162 = vmatpush2.bf16.msra.mxu0 0
  %163 = vmatprep.mubr.bf16.mxu0 0
  %164 = vmatmul.mubr.bf16.gmra.mxu0 %v108
  %v165 = vpop.f32.mrf.mxu0
  %v166 = vadd.f32 0.0, %v165
  %v167 = vpop.f32.mrf.mxu0
  %v168 = vpop.f32.mrf.mxu0
  %v169 = vadd.f32 0.0, %v168
  %v170 = vpop.f32.mrf.mxu0
  %171 = vmatprep.mubr.bf16.mxu0 0
  %172 = vmatmul.mubr.bf16.gmra.mxu0 %v111
  %v173 = vpop.f32.mrf.mxu0
  %v174 = vadd.f32 0.0, %v173
  %v175 = vpop.f32.mrf.mxu0
  %v176 = vpop.f32.mrf.mxu0
  %v177 = vadd.f32 0.0, %v176
  %v178 = vpop.f32.mrf.mxu0
  %179 = vmatprep.mubr.bf16.mxu0 0
  %180 = vmatmul.mubr.bf16.gmra.mxu0 %v114
  %v181 = vpop.f32.mrf.mxu0
  %v182 = vadd.f32 0.0, %v181
  %v183 = vpop.f32.mrf.mxu0
  %v184 = vpop.f32.mrf.mxu0
  %v185 = vadd.f32 0.0, %v184
  %v186 = vpop.f32.mrf.mxu0
  %187 = vmatprep.mubr.bf16.mxu0 0
  %188 = vmatmul.mubr.bf16.gmra.mxu0 %v117
  %v189 = vpop.f32.mrf.mxu0
  %v190 = vadd.f32 0.0, %v189
  %v191 = vpop.f32.mrf.mxu0
  %v192 = vpop.f32.mrf.mxu0
  %v193 = vadd.f32 0.0, %v192
  %v194 = vpop.f32.mrf.mxu0
  %195 = vmatprep.mubr.bf16.mxu0 0
  %196 = vmatmul.mubr.bf16.gmra.mxu0 %v120
  %v197 = vpop.f32.mrf.mxu0
  %v198 = vadd.f32 0.0, %v197
  %v199 = vpop.f32.mrf.mxu0
  %v200 = vpop.f32.mrf.mxu0
  %v201 = vadd.f32 0.0, %v200
  %v202 = vpop.f32.mrf.mxu0
  %203 = vmatprep.mubr.bf16.mxu0 0
  %204 = vmatmul.mubr.bf16.gmra.mxu0 %v123
  %v205 = vpop.f32.mrf.mxu0
  %v206 = vadd.f32 0.0, %v205
  %v207 = vpop.f32.mrf.mxu0
  %v208 = vpop.f32.mrf.mxu0
  %v209 = vadd.f32 0.0, %v208
  %v210 = vpop.f32.mrf.mxu0
  %211 = vmatprep.mubr.bf16.mxu0 0
  %212 = vmatmul.mubr.bf16.gmra.mxu0 %v126
  %v213 = vpop.f32.mrf.mxu0
  %v214 = vadd.f32 0.0, %v213
  %v215 = vpop.f32.mrf.mxu0
  %v216 = vpop.f32.mrf.mxu0
  %v217 = vadd.f32 0.0, %v216
  %v218 = vpop.f32.mrf.mxu0
  %219 = vmatprep.mubr.bf16.mxu0 0
  %220 = vmatmul.mubr.bf16.gmra.mxu0 %v129
  %v221 = vpop.f32.mrf.mxu0
  %v222 = vadd.f32 0.0, %v221
  %v223 = vpop.f32.mrf.mxu0
  %v224 = vpop.f32.mrf.mxu0
  %v225 = vadd.f32 0.0, %v224
  %v226 = vpop.f32.mrf.mxu0
  %227 = vdwg.mxu0
  %v228 = vld [vmem:[%s2] sm:$0x1]
  %v230 = vlaneseq
  %v231 = vshrl.u32 %v230, 7
  %v232 = vsub.s32 0, %v231
  %v233 = vrot.slane %v228, %v232
  %v235 = vmul.f32 %v166, %v233
  %v236 = vmul.f32 %v169, %v233
  %v237 = vmul.f32 %v174, %v233
  %v238 = vmul.f32 %v177, %v233
  %v239 = vmul.f32 %v182, %v233
  %v240 = vmul.f32 %v185, %v233
  %v241 = vmul.f32 %v190, %v233
  %v242 = vmul.f32 %v193, %v233
  %v243 = vmul.f32 %v198, %v233
  %v244 = vmul.f32 %v201, %v233
  %v245 = vmul.f32 %v206, %v233
  %v246 = vmul.f32 %v209, %v233
  %v247 = vmul.f32 %v214, %v233
  %v248 = vmul.f32 %v217, %v233
  %v249 = vmul.f32 %v222, %v233
  %v250 = vmul.f32 %v225, %v233
  %v251 = vld [vmem:[%s3] sm:$0x1]
  %v253 = vlaneseq
  %v254 = vshrl.u32 %v253, 7
  %v255 = vsub.s32 0, %v254
  %v256 = vrot.slane %v251, %v255
  %v258 = vadd.f32 %v235, %v256
  %v259 = vadd.f32 %v236, %v256
  %v260 = vadd.f32 %v237, %v256
  %v261 = vadd.f32 %v238, %v256
  %v262 = vadd.f32 %v239, %v256
  %v263 = vadd.f32 %v240, %v256
  %v264 = vadd.f32 %v241, %v256
  %v265 = vadd.f32 %v242, %v256
  %v266 = vadd.f32 %v243, %v256
  %v267 = vadd.f32 %v244, %v256
  %v268 = vadd.f32 %v245, %v256
  %v269 = vadd.f32 %v246, %v256
  %v270 = vadd.f32 %v247, %v256
  %v271 = vadd.f32 %v248, %v256
  %v272 = vadd.f32 %v249, %v256
  %v273 = vadd.f32 %v250, %v256
  %vm274 = vcmask 130048
  %275 = vst.msk [vmem:[%s4] sm:$0xff] %vm274, %v258
  %276 = vst.msk [vmem:[%s4 + $0x8] sm:$0xff] %vm274, %v259
  %277 = vst.msk [vmem:[%s4 + $0x10] sm:$0xff] %vm274, %v260
  %278 = vst.msk [vmem:[%s4 + $0x18] sm:$0xff] %vm274, %v261
  %279 = vst.msk [vmem:[%s4 + $0x20] sm:$0xff] %vm274, %v262
  %280 = vst.msk [vmem:[%s4 + $0x28] sm:$0xff] %vm274, %v263
  %281 = vst.msk [vmem:[%s4 + $0x30] sm:$0xff] %vm274, %v264
  %282 = vst.msk [vmem:[%s4 + $0x38] sm:$0xff] %vm274, %v265
  %283 = vst.msk [vmem:[%s4 + $0x40] sm:$0xff] %vm274, %v266
  %284 = vst.msk [vmem:[%s4 + $0x48] sm:$0xff] %vm274, %v267
  %285 = vst.msk [vmem:[%s4 + $0x50] sm:$0xff] %vm274, %v268
  %286 = vst.msk [vmem:[%s4 + $0x58] sm:$0xff] %vm274, %v269
  %287 = vst.msk [vmem:[%s4 + $0x60] sm:$0xff] %vm274, %v270
  %288 = vst.msk [vmem:[%s4 + $0x68] sm:$0xff] %vm274, %v271
  %289 = vst.msk [vmem:[%s4 + $0x70] sm:$0xff] %vm274, %v272
  %290 = vst.msk [vmem:[%s4 + $0x78] sm:$0xff] %vm274, %v273
  // Predicated region
  $region18: #{seg_head_forward.15} parent=0 // pred_check
    _
  $region19: #{seg_head_forward.15} parent=0 // pred_check_branch
    %292 = sbr.rel (0) target = $region21
  $region20: #{seg_head_forward.15} parent=0 // pred_region
    _
  $region21: #{seg_head_forward.15} parent=0 // pred_fallthru
    _
  // Predicated region
  $region22: #{seg_head_forward.15} parent=0 // pred_check
    _
  $region23: #{seg_head_forward.15} parent=0 // pred_check_branch
    %294 = sbr.rel (0) target = $region25
  $region24: #{seg_head_forward.15} parent=0 // pred_region
    _
  $region25: #{seg_head_forward.15} parent=0 // pred_fallthru
    _

</llo_original>
